<compile_context>
chip_gen: v6e
topology: v6e:2x2x1
jax: 0.10.0
libtpu: 0.0.40
codegen_flags: <defaults>
</compile_context>

<pallas_src>
import functools
import math

import jax
import jax.numpy as jnp
from jax import lax
from jax.experimental import pallas as pl
from jax.experimental.pallas import tpu as pltpu

# Keep kernel (MXU) and XLA reference matmuls at the same (full f32) precision.
jax.config.update("jax_default_matmul_precision", "highest")


def _round_up(x, m):
    return ((x + m - 1) // m) * m


# -----------------------------------------------------------------------------
# Kernel 1: tiled linear  y = x @ w + b
# -----------------------------------------------------------------------------
def _linear_kernel(x_ref, w_ref, b_ref, o_ref, acc_ref):
    k = pl.program_id(2)

    @pl.when(k == 0)
    def _():
        acc_ref[...] = jnp.zeros_like(acc_ref)

    acc_ref[...] += jnp.dot(
        x_ref[...], w_ref[...], preferred_element_type=jnp.float32
    )

    @pl.when(k == pl.num_programs(2) - 1)
    def _():
        o_ref[...] = (acc_ref[...] + b_ref[...]).astype(o_ref.dtype)


def pallas_linear(x, w, b=None, *, tile_m=256, tile_n=256, tile_k=512):
    """x:(M,K) @ w:(K,N) + b:(N,). Weights are stored (in, out): no per-call transpose."""
    M, K = x.shape
    K2, N = w.shape
    assert K == K2
    out_dtype = x.dtype
    if b is None:
        b = jnp.zeros((N,), dtype=jnp.float32)

    # Tiles: M multiple of 8, N/K multiples of 128 (clamped to the padded problem size).
    tm = min(tile_m, _round_up(M, 8))
    tn = min(tile_n, _round_up(N, 128))
    tk = min(tile_k, _round_up(K, 128))

    Mp, Kp, Np = _round_up(M, tm), _round_up(K, tk), _round_up(N, tn)
    xp = jnp.pad(x, ((0, Mp - M), (0, Kp - K))) if (Mp != M or Kp != K) else x
    wp = jnp.pad(w, ((0, Kp - K), (0, Np - N))) if (Kp != K or Np != N) else w
    bp = jnp.pad(b, (0, Np - N)).astype(jnp.float32).reshape(1, Np)

    grid = (Mp // tm, Np // tn, Kp // tk)

    itemsize = jnp.dtype(x.dtype).itemsize
    vmem_est = 2 * (tm * tk + tk * tn + tn + tm * tn) * itemsize + tm * tn * 4
    vmem_limit = int(min(48 * 1024 * 1024, max(2 * vmem_est, 8 * 1024 * 1024)))

    cost = pl.CostEstimate(
        flops=2 * Mp * Kp * Np,
        transcendentals=0,
        bytes_accessed=(Mp * Kp + Kp * Np + Mp * Np) * itemsize,
    )

    out = pl.pallas_call(
        _linear_kernel,
        out_shape=jax.ShapeDtypeStruct((Mp, Np), out_dtype),
        grid_spec=pltpu.PrefetchScalarGridSpec(
            num_scalar_prefetch=0,
            grid=grid,
            in_specs=[
                pl.BlockSpec((tm, tk), lambda i, j, k: (i, k)),
                pl.BlockSpec((tk, tn), lambda i, j, k: (k, j)),
                pl.BlockSpec((1, tn), lambda i, j, k: (0, j)),
            ],
            out_specs=pl.BlockSpec((tm, tn), lambda i, j, k: (i, j)),
            scratch_shapes=[pltpu.VMEM((tm, tn), jnp.float32)],
        ),
        compiler_params=pltpu.CompilerParams(
            dimension_semantics=("parallel", "parallel", "arbitrary"),
            vmem_limit_bytes=vmem_limit,
        ),
        cost_estimate=cost,
    )(xp, wp, bp)
    return out[:M, :N]


# -----------------------------------------------------------------------------
# Kernel 2: per-(batch, head) deformable sampling core
#   (softmax over points + bilinear grid_sample(zeros, align_corners=False)
#    + point-weighted sum), expressed as a one-hot weight matrix x MXU matmul.
# -----------------------------------------------------------------------------
def _deform_core_kernel(v_ref, px_ref, py_ref, aw_ref, o_ref, *, H, W, P):
    # v_ref : (S, D)   value tile for this (batch, head)
    # px/py : (Lq, P)  absolute pixel coordinates of the sampling points
    # aw    : (Lq, P)  attention logits (softmax over P happens here)
    # o_ref : (Lq, D)
    S = v_ref.shape[0]
    Lq = px_ref.shape[0]

    px = px_ref[...].astype(jnp.float32)
    py = py_ref[...].astype(jnp.float32)
    logits = aw_ref[...].astype(jnp.float32)

    # softmax over the P sampling points (n_levels * n_points with n_levels == 1)
    m = jnp.max(logits, axis=-1, keepdims=True)
    e = jnp.exp(logits - m)
    attn = e / jnp.sum(e, axis=-1, keepdims=True)

    x0 = jnp.floor(px)
    y0 = jnp.floor(py)
    wx1 = px - x0
    wy1 = py - y0
    wx0 = 1.0 - wx1
    wy0 = 1.0 - wy1
    x0i = x0.astype(jnp.int32)
    y0i = y0.astype(jnp.int32)
    x1i = x0i + 1
    y1i = y0i + 1

    iota_s = lax.broadcasted_iota(jnp.int32, (Lq, S), 1)

    def add_corner(wmat, xi, yi, w):
        # grid_sample padding_mode='zeros': out-of-range corners contribute nothing.
        valid = (xi >= 0) & (xi < W) & (yi >= 0) & (yi < H)
        wgt = jnp.where(valid, w, 0.0) * attn          # (Lq, P)
        idx = yi * W + xi                              # (Lq, P) flat spatial index
        for p in range(P):                             # small static unroll (P points)
            wmat = wmat + jnp.where(
                iota_s == idx[:, p : p + 1], wgt[:, p : p + 1], 0.0
            )
        return wmat

    wmat = jnp.zeros((Lq, S), jnp.float32)
    wmat = add_corner(wmat, x0i, y0i, wx0 * wy0)
    wmat = add_corner(wmat, x1i, y0i, wx1 * wy0)
    wmat = add_corner(wmat, x0i, y1i, wx0 * wy1)
    wmat = add_corner(wmat, x1i, y1i, wx1 * wy1)

    o_ref[...] = jnp.dot(
        wmat, v_ref[...].astype(jnp.float32), preferred_element_type=jnp.float32
    ).astype(o_ref.dtype)


def pallas_deform_core(value, px, py, aw_logits, Hc, Wc):
    # value: (bs, heads, S, D); px/py/aw_logits: (bs, heads, Lq, P)
    bs, heads, S, D = value.shape
    Lq, P = px.shape[2], px.shape[3]
    kernel = functools.partial(_deform_core_kernel, H=Hc, W=Wc, P=P)
    return pl.pallas_call(
        kernel,
        out_shape=jax.ShapeDtypeStruct((bs, heads, Lq, D), value.dtype),
        grid_spec=pltpu.PrefetchScalarGridSpec(
            num_scalar_prefetch=0,
            grid=(bs, heads),
            in_specs=[
                pl.BlockSpec((None, None, S, D), lambda b, h: (b, h, 0, 0)),
                pl.BlockSpec((None, None, Lq, P), lambda b, h: (b, h, 0, 0)),
                pl.BlockSpec((None, None, Lq, P), lambda b, h: (b, h, 0, 0)),
                pl.BlockSpec((None, None, Lq, P), lambda b, h: (b, h, 0, 0)),
            ],
            out_specs=pl.BlockSpec((None, None, Lq, D), lambda b, h: (b, h, 0, 0)),
        ),
        compiler_params=pltpu.CompilerParams(
            dimension_semantics=("parallel", "parallel"),
        ),
    )(value, px, py, aw_logits)


# -----------------------------------------------------------------------------
# Full DeformableCrossAttention forward
# -----------------------------------------------------------------------------
@functools.partial(
    jax.jit, static_argnames=("spatial_shapes", "spatial_shapes_c", "heads", "points")
)
def deformable_cross_attention(
    x, context, params, *, spatial_shapes, spatial_shapes_c, heads, points
):
    bs, Lq, qdim = x.shape
    S = context.shape[1]
    inner = params["wq"].shape[1]
    D = inner // heads

    x2 = x.reshape(bs * Lq, qdim)
    c2 = context.reshape(bs * S, context.shape[-1])

    q = pallas_linear(x2, params["wq"])                       # to_q (no bias)
    ctx = pallas_linear(c2, params["wk"])                     # to_k (no bias)
    value = pallas_linear(ctx, params["wv"], params["bv"])    # value_proj
    off = pallas_linear(q, params["wso"], params["bso"])      # sampling_offsets
    awl = pallas_linear(q, params["waw"], params["baw"])      # attention_weights (logits)

    # Reference points for the single query level, valid_ratios == 1 (tiny; stays in XLA).
    (Hq, Wq) = spatial_shapes[0]
    (Hc, Wc) = spatial_shapes_c[0]
    ry = (jnp.arange(Hq, dtype=jnp.float32) + 0.5) / Hq
    rx = (jnp.arange(Wq, dtype=jnp.float32) + 0.5) / Wq
    ref_y, ref_x = jnp.meshgrid(ry, rx, indexing="ij")
    ref = jnp.stack([ref_x.reshape(-1), ref_y.reshape(-1)], axis=-1)  # (Lq, 2)

    off = off.reshape(bs, Lq, heads, points, 2)
    loc = ref[None, :, None, None, :] + off / jnp.array([Wc, Hc], jnp.float32)
    # grid_sample with align_corners=False on grid = 2*loc - 1  =>  pixel = loc*size - 0.5
    px = (loc[..., 0] * Wc - 0.5).transpose(0, 2, 1, 3)       # (bs, heads, Lq, P)
    py = (loc[..., 1] * Hc - 0.5).transpose(0, 2, 1, 3)
    awl = awl.reshape(bs, Lq, heads, points).transpose(0, 2, 1, 3)

    vbh = value.reshape(bs, S, heads, D).transpose(0, 2, 1, 3)  # (bs, heads, S, D)

    core = pallas_deform_core(vbh, px, py, awl, Hc, Wc)         # (bs, heads, Lq, D)
    core2 = core.transpose(0, 2, 1, 3).reshape(bs * Lq, inner)

    out = pallas_linear(core2, params["wop"], params["bop"])    # MSDeformAttn.output_proj
    out = pallas_linear(out, params["wout"], params["bout"])    # to_out (dropout = identity)
    return out.reshape(bs, Lq, qdim)


# -----------------------------------------------------------------------------
# Pure-JAX reference (mirrors the PyTorch module math)
# -----------------------------------------------------------------------------
def _reference_forward(x, context, params, spatial_shapes, spatial_shapes_c, heads, points):
    hp = dict(precision=lax.Precision.HIGHEST)
    bs, Lq, _ = x.shape
    S = context.shape[1]
    inner = params["wq"].shape[1]
    D = inner // heads

    q = jnp.matmul(x, params["wq"], **hp)
    ctx = jnp.matmul(context, params["wk"], **hp)
    value = jnp.matmul(ctx, params["wv"], **hp) + params["bv"]
    off = jnp.matmul(q, params["wso"], **hp) + params["bso"]
    aw = jnp.matmul(q, params["waw"], **hp) + params["baw"]

    off = off.reshape(bs, Lq, heads, points, 2)
    attn = jax.nn.softmax(aw.reshape(bs, Lq, heads, points), axis=-1)

    (Hq, Wq) = spatial_shapes[0]
    (Hc, Wc) = spatial_shapes_c[0]
    ry = (jnp.arange(Hq, dtype=jnp.float32) + 0.5) / Hq
    rx = (jnp.arange(Wq, dtype=jnp.float32) + 0.5) / Wq
    ref_y, ref_x = jnp.meshgrid(ry, rx, indexing="ij")
    ref = jnp.stack([ref_x.reshape(-1), ref_y.reshape(-1)], axis=-1)

    loc = ref[None, :, None, None, :] + off / jnp.array([Wc, Hc], jnp.float32)
    px = (loc[..., 0] * Wc - 0.5).transpose(0, 2, 1, 3)
    py = (loc[..., 1] * Hc - 0.5).transpose(0, 2, 1, 3)
    attn = attn.transpose(0, 2, 1, 3)                          # (bs, heads, Lq, P)

    vbh = value.reshape(bs, S, heads, D).transpose(0, 2, 1, 3)  # (bs, heads, S, D)

    x0 = jnp.floor(px)
    y0 = jnp.floor(py)
    wx1 = px - x0
    wy1 = py - y0
    wx0 = 1.0 - wx1
    wy0 = 1.0 - wy1
    x0i = x0.astype(jnp.int32)
    y0i = y0.astype(jnp.int32)
    x1i = x0i + 1
    y1i = y0i + 1

    gather = jax.vmap(jax.vmap(lambda v, idx: v[idx]))

    def corner(xi, yi, w):
        valid = ((xi >= 0) & (xi < Wc) & (yi >= 0) & (yi < Hc)).astype(jnp.float32)
        idx = jnp.clip(yi, 0, Hc - 1) * Wc + jnp.clip(xi, 0, Wc - 1)
        g = gather(vbh, idx)                                   # (bs, heads, Lq, P, D)
        return g * (w * valid)[..., None]

    sampled = (
        corner(x0i, y0i, wx0 * wy0)
        + corner(x1i, y0i, wx1 * wy0)
        + corner(x0i, y1i, wx0 * wy1)
        + corner(x1i, y1i, wx1 * wy1)
    )
    core = jnp.sum(sampled * attn[..., None], axis=3)          # (bs, heads, Lq, D)
    core = core.transpose(0, 2, 1, 3).reshape(bs, Lq, inner)

    out = jnp.matmul(core, params["wop"], **hp) + params["bop"]
    out = jnp.matmul(out, params["wout"], **hp) + params["bout"]
    return out


if __name__ == "__main__":
    key = jax.random.PRNGKey(0)

    bs = 2
    query_dim = 32
    context_dim = 32
    heads = 4
    dim_head = 32
    points = 4
    inner = heads * dim_head

    spatial_shapes = ((8, 8),)      # query level  -> Lq = 64
    spatial_shapes_c = ((16, 8),)   # context level -> S = 128
    Lq = spatial_shapes[0][0] * spatial_shapes[0][1]
    S = spatial_shapes_c[0][0] * spatial_shapes_c[0][1]

    keys = jax.random.split(key, 16)

    def lin(kw, kb, fan_in, fan_out, bias=True):
        bound = 1.0 / math.sqrt(fan_in)
        w = jax.random.uniform(kw, (fan_in, fan_out), jnp.float32, -bound, bound)
        b = (
            jax.random.uniform(kb, (fan_out,), jnp.float32, -bound, bound)
            if bias
            else None
        )
        return w, b

    wq, _ = lin(keys[0], keys[1], query_dim, inner, bias=False)
    wk, _ = lin(keys[2], keys[3], context_dim, inner, bias=False)
    wv, bv = lin(keys[4], keys[5], inner, inner)
    wso, bso = lin(keys[6], keys[7], inner, heads * 1 * points * 2)
    waw, baw = lin(keys[8], keys[9], inner, heads * 1 * points)
    wop, bop = lin(keys[10], keys[11], inner, inner)
    wout, bout = lin(keys[12], keys[13], inner, query_dim)

    params = dict(
        wq=wq, wk=wk, wv=wv, bv=bv, wso=wso, bso=bso,
        waw=waw, baw=baw, wop=wop, bop=bop, wout=wout, bout=bout,
    )

    x = jax.random.normal(keys[14], (bs, Lq, query_dim), jnp.float32)
    context = jax.random.normal(keys[15], (bs, S, context_dim), jnp.float32)

    out = deformable_cross_attention(
        x, context, params,
        spatial_shapes=spatial_shapes, spatial_shapes_c=spatial_shapes_c,
        heads=heads, points=points,
    )
    out = jax.block_until_ready(out)

    ref = _reference_forward(
        x, context, params, spatial_shapes, spatial_shapes_c, heads, points
    )
    assert out.shape == (bs, Lq, query_dim)
    assert jnp.allclose(out, ref, atol=2e-3, rtol=2e-3), float(
        jnp.max(jnp.abs(out - ref))
    )

    print("KERNEL_OK")
</pallas_src>

<mosaic_0001>
module attributes {stable_mosaic.version = 11 : i64} {
  func.func @_linear_kernel(%arg0: i32, %arg1: i32, %arg2: i32, %arg3: memref<128x128xf32, #tpu.memory_space<vmem>>, %arg4: memref<128x128xf32, #tpu.memory_space<vmem>>, %arg5: memref<1x128xf32, #tpu.memory_space<vmem>>, %arg6: memref<128x128xf32, #tpu.memory_space<vmem>>, %arg7: memref<128x128xf32, #tpu.memory_space<vmem>>) attributes {dimension_semantics = [#tpu.dimension_semantics<parallel>, #tpu.dimension_semantics<parallel>, #tpu.dimension_semantics<arbitrary>], iteration_bounds = array<i64: 1, 1, 1>, scalar_prefetch = 0 : i64, scratch_operands = 1 : i64, tpu.core_type = #tpu.core_type<tc>, window_params = [{transform_indices = @transform_0, window_bounds = array<i64: 128, 128>}, {transform_indices = @transform_1, window_bounds = array<i64: 128, 128>}, {transform_indices = @transform_2, window_bounds = array<i64: 1, 128>}, {transform_indices = @transform_3, window_bounds = array<i64: 128, 128>}]} {
    %c0_i32 = arith.constant 0 : i32
    %0 = arith.cmpi eq, %arg2, %c0_i32 : i32
    %1 = arith.extui %0 : i1 to i32
    %c0_i32_0 = arith.constant 0 : i32
    %2 = arith.cmpi ne, %1, %c0_i32_0 : i32
    scf.if %2 {
      %cst_10 = arith.constant 0.000000e+00 : f32
      %12 = vector.broadcast %cst_10 : f32 to vector<128x128xf32>
      %c0_11 = arith.constant 0 : index
      %c0_12 = arith.constant 0 : index
      %13 = vector.load %arg7[%c0_11, %c0_12] : memref<128x128xf32, #tpu.memory_space<vmem>>, vector<128x128xf32>
      tpu.vector_store %arg7[%c0_11, %c0_12], %12 {strides = array<i32>} : memref<128x128xf32, #tpu.memory_space<vmem>>, vector<128x128xf32>,
    } else {
    }
    %c0 = arith.constant 0 : index
    %c0_1 = arith.constant 0 : index
    %3 = vector.load %arg7[%c0, %c0_1] : memref<128x128xf32, #tpu.memory_space<vmem>>, vector<128x128xf32>
    %c0_2 = arith.constant 0 : index
    %c0_3 = arith.constant 0 : index
    %4 = vector.load %arg3[%c0_2, %c0_3] : memref<128x128xf32, #tpu.memory_space<vmem>>, vector<128x128xf32>
    %c0_4 = arith.constant 0 : index
    %c0_5 = arith.constant 0 : index
    %5 = vector.load %arg4[%c0_4, %c0_5] : memref<128x128xf32, #tpu.memory_space<vmem>>, vector<128x128xf32>
    %cst = arith.constant dense<0.000000e+00> : vector<128x128xf32>
    %6 = tpu.matmul %4, %5, %cst {dimension_numbers = #tpu.dot_dimension_numbers<[1], [0], [0], [1], [0, 0, 1, 1], [], []>, precision = #tpu.contract_precision<fp32>} : vector<128x128xf32>, vector<128x128xf32>, vector<128x128xf32> -> vector<128x128xf32>
    %7 = arith.addf %3, %6 : vector<128x128xf32>
    %c0_6 = arith.constant 0 : index
    %c0_7 = arith.constant 0 : index
    %8 = vector.load %arg7[%c0_6, %c0_7] : memref<128x128xf32, #tpu.memory_space<vmem>>, vector<128x128xf32>
    tpu.vector_store %arg7[%c0_6, %c0_7], %7 {strides = array<i32>} : memref<128x128xf32, #tpu.memory_space<vmem>>, vector<128x128xf32>,
    %c0_i32_8 = arith.constant 0 : i32
    %9 = arith.cmpi eq, %arg2, %c0_i32_8 : i32
    %10 = arith.extui %9 : i1 to i32
    %c0_i32_9 = arith.constant 0 : i32
    %11 = arith.cmpi ne, %10, %c0_i32_9 : i32
    scf.if %11 {
      %c0_10 = arith.constant 0 : index
      %c0_11 = arith.constant 0 : index
      %12 = vector.load %arg7[%c0_10, %c0_11] : memref<128x128xf32, #tpu.memory_space<vmem>>, vector<128x128xf32>
      %c0_12 = arith.constant 0 : index
      %c0_13 = arith.constant 0 : index
      %13 = vector.load %arg5[%c0_12, %c0_13] : memref<1x128xf32, #tpu.memory_space<vmem>>, vector<1x128xf32>
      %14 = vector.broadcast %13 : vector<1x128xf32> to vector<128x128xf32>
      %15 = arith.addf %12, %14 : vector<128x128xf32>
      %c0_14 = arith.constant 0 : index
      %c0_15 = arith.constant 0 : index
      %16 = vector.load %arg6[%c0_14, %c0_15] : memref<128x128xf32, #tpu.memory_space<vmem>>, vector<128x128xf32>
      tpu.vector_store %arg6[%c0_14, %c0_15], %15 {strides = array<i32>} : memref<128x128xf32, #tpu.memory_space<vmem>>, vector<128x128xf32>,
    } else {
    }
    return
  }
  func.func @transform_0(%arg0: i32, %arg1: i32, %arg2: i32) -> (i32, i32) {
    %c0_i32 = arith.constant 0 : i32
    return %arg0, %arg2 : i32, i32
  }
  func.func @transform_1(%arg0: i32, %arg1: i32, %arg2: i32) -> (i32, i32) {
    %c0_i32 = arith.constant 0 : i32
    return %arg2, %arg1 : i32, i32
  }
  func.func @transform_2(%arg0: i32, %arg1: i32, %arg2: i32) -> (i32, i32) {
    %c0_i32 = arith.constant 0 : i32
    %c0_i32_0 = arith.constant 0 : i32
    return %c0_i32, %arg1 : i32, i32
  }
  func.func @transform_3(%arg0: i32, %arg1: i32, %arg2: i32) -> (i32, i32) {
    %c0_i32 = arith.constant 0 : i32
    return %arg0, %arg1 : i32, i32
  }
}

module attributes {stable_mosaic.version = 11 : i64} {
  func.func @_linear_kernel(%arg0: i32, %arg1: i32, %arg2: i32, %arg3: memref<256x128xf32, #tpu.memory_space<vmem>>, %arg4: memref<128x128xf32, #tpu.memory_space<vmem>>, %arg5: memref<1x128xf32, #tpu.memory_space<vmem>>, %arg6: memref<256x128xf32, #tpu.memory_space<vmem>>, %arg7: memref<256x128xf32, #tpu.memory_space<vmem>>) attributes {dimension_semantics = [#tpu.dimension_semantics<parallel>, #tpu.dimension_semantics<parallel>, #tpu.dimension_semantics<arbitrary>], iteration_bounds = array<i64: 1, 1, 1>, scalar_prefetch = 0 : i64, scratch_operands = 1 : i64, tpu.core_type = #tpu.core_type<tc>, window_params = [{transform_indices = @transform_0, window_bounds = array<i64: 256, 128>}, {transform_indices = @transform_1, window_bounds = array<i64: 128, 128>}, {transform_indices = @transform_2, window_bounds = array<i64: 1, 128>}, {transform_indices = @transform_3, window_bounds = array<i64: 256, 128>}]} {
    %c0_i32 = arith.constant 0 : i32
    %0 = arith.cmpi eq, %arg2, %c0_i32 : i32
    %1 = arith.extui %0 : i1 to i32
    %c0_i32_0 = arith.constant 0 : i32
    %2 = arith.cmpi ne, %1, %c0_i32_0 : i32
    scf.if %2 {
      %cst_10 = arith.constant 0.000000e+00 : f32
      %12 = vector.broadcast %cst_10 : f32 to vector<256x128xf32>
      %c0_11 = arith.constant 0 : index
      %c0_12 = arith.constant 0 : index
      %13 = vector.load %arg7[%c0_11, %c0_12] : memref<256x128xf32, #tpu.memory_space<vmem>>, vector<256x128xf32>
      tpu.vector_store %arg7[%c0_11, %c0_12], %12 {strides = array<i32>} : memref<256x128xf32, #tpu.memory_space<vmem>>, vector<256x128xf32>,
    } else {
    }
    %c0 = arith.constant 0 : index
    %c0_1 = arith.constant 0 : index
    %3 = vector.load %arg7[%c0, %c0_1] : memref<256x128xf32, #tpu.memory_space<vmem>>, vector<256x128xf32>
    %c0_2 = arith.constant 0 : index
    %c0_3 = arith.constant 0 : index
    %4 = vector.load %arg3[%c0_2, %c0_3] : memref<256x128xf32, #tpu.memory_space<vmem>>, vector<256x128xf32>
    %c0_4 = arith.constant 0 : index
    %c0_5 = arith.constant 0 : index
    %5 = vector.load %arg4[%c0_4, %c0_5] : memref<128x128xf32, #tpu.memory_space<vmem>>, vector<128x128xf32>
    %cst = arith.constant dense<0.000000e+00> : vector<256x128xf32>
    %6 = tpu.matmul %4, %5, %cst {dimension_numbers = #tpu.dot_dimension_numbers<[1], [0], [0], [1], [0, 0, 1, 1], [], []>, precision = #tpu.contract_precision<fp32>} : vector<256x128xf32>, vector<128x128xf32>, vector<256x128xf32> -> vector<256x128xf32>
    %7 = arith.addf %3, %6 : vector<256x128xf32>
    %c0_6 = arith.constant 0 : index
    %c0_7 = arith.constant 0 : index
    %8 = vector.load %arg7[%c0_6, %c0_7] : memref<256x128xf32, #tpu.memory_space<vmem>>, vector<256x128xf32>
    tpu.vector_store %arg7[%c0_6, %c0_7], %7 {strides = array<i32>} : memref<256x128xf32, #tpu.memory_space<vmem>>, vector<256x128xf32>,
    %c0_i32_8 = arith.constant 0 : i32
    %9 = arith.cmpi eq, %arg2, %c0_i32_8 : i32
    %10 = arith.extui %9 : i1 to i32
    %c0_i32_9 = arith.constant 0 : i32
    %11 = arith.cmpi ne, %10, %c0_i32_9 : i32
    scf.if %11 {
      %c0_10 = arith.constant 0 : index
      %c0_11 = arith.constant 0 : index
      %12 = vector.load %arg7[%c0_10, %c0_11] : memref<256x128xf32, #tpu.memory_space<vmem>>, vector<256x128xf32>
      %c0_12 = arith.constant 0 : index
      %c0_13 = arith.constant 0 : index
      %13 = vector.load %arg5[%c0_12, %c0_13] : memref<1x128xf32, #tpu.memory_space<vmem>>, vector<1x128xf32>
      %14 = vector.broadcast %13 : vector<1x128xf32> to vector<256x128xf32>
      %15 = arith.addf %12, %14 : vector<256x128xf32>
      %c0_14 = arith.constant 0 : index
      %c0_15 = arith.constant 0 : index
      %16 = vector.load %arg6[%c0_14, %c0_15] : memref<256x128xf32, #tpu.memory_space<vmem>>, vector<256x128xf32>
      tpu.vector_store %arg6[%c0_14, %c0_15], %15 {strides = array<i32>} : memref<256x128xf32, #tpu.memory_space<vmem>>, vector<256x128xf32>,
    } else {
    }
    return
  }
  func.func @transform_0(%arg0: i32, %arg1: i32, %arg2: i32) -> (i32, i32) {
    %c0_i32 = arith.constant 0 : i32
    return %arg0, %arg2 : i32, i32
  }
  func.func @transform_1(%arg0: i32, %arg1: i32, %arg2: i32) -> (i32, i32) {
    %c0_i32 = arith.constant 0 : i32
    return %arg2, %arg1 : i32, i32
  }
  func.func @transform_2(%arg0: i32, %arg1: i32, %arg2: i32) -> (i32, i32) {
    %c0_i32 = arith.constant 0 : i32
    %c0_i32_0 = arith.constant 0 : i32
    return %c0_i32, %arg1 : i32, i32
  }
  func.func @transform_3(%arg0: i32, %arg1: i32, %arg2: i32) -> (i32, i32) {
    %c0_i32 = arith.constant 0 : i32
    return %arg0, %arg1 : i32, i32
  }
}

module attributes {stable_mosaic.version = 11 : i64} {
  func.func @_deform_core_kernel(%arg0: i32, %arg1: i32, %arg2: memref<1x1x128x32xf32, #tpu.memory_space<vmem>>, %arg3: memref<1x1x64x4xf32, #tpu.memory_space<vmem>>, %arg4: memref<1x1x64x4xf32, #tpu.memory_space<vmem>>, %arg5: memref<1x1x64x4xf32, #tpu.memory_space<vmem>>, %arg6: memref<1x1x64x32xf32, #tpu.memory_space<vmem>>) attributes {dimension_semantics = [#tpu.dimension_semantics<parallel>, #tpu.dimension_semantics<parallel>], iteration_bounds = array<i64: 2, 4>, scalar_prefetch = 0 : i64, scratch_operands = 0 : i64, tpu.core_type = #tpu.core_type<tc>, window_params = [{transform_indices = @transform_0, window_bounds = array<i64: 1, 1, 128, 32>}, {transform_indices = @transform_1, window_bounds = array<i64: 1, 1, 64, 4>}, {transform_indices = @transform_2, window_bounds = array<i64: 1, 1, 64, 4>}, {transform_indices = @transform_3, window_bounds = array<i64: 1, 1, 64, 4>}, {transform_indices = @transform_4, window_bounds = array<i64: 1, 1, 64, 32>}]} {
    %c0 = arith.constant 0 : index
    %c0_0 = arith.constant 0 : index
    %c0_1 = arith.constant 0 : index
    %c0_2 = arith.constant 0 : index
    %0 = vector.load %arg3[%c0, %c0_0, %c0_1, %c0_2] : memref<1x1x64x4xf32, #tpu.memory_space<vmem>>, vector<1x1x64x4xf32>
    %1 = vector.shape_cast %0 : vector<1x1x64x4xf32> to vector<64x4xf32>
    %c0_3 = arith.constant 0 : index
    %c0_4 = arith.constant 0 : index
    %c0_5 = arith.constant 0 : index
    %c0_6 = arith.constant 0 : index
    %2 = vector.load %arg4[%c0_3, %c0_4, %c0_5, %c0_6] : memref<1x1x64x4xf32, #tpu.memory_space<vmem>>, vector<1x1x64x4xf32>
    %3 = vector.shape_cast %2 : vector<1x1x64x4xf32> to vector<64x4xf32>
    %c0_7 = arith.constant 0 : index
    %c0_8 = arith.constant 0 : index
    %c0_9 = arith.constant 0 : index
    %c0_10 = arith.constant 0 : index
    %4 = vector.load %arg5[%c0_7, %c0_8, %c0_9, %c0_10] : memref<1x1x64x4xf32, #tpu.memory_space<vmem>>, vector<1x1x64x4xf32>
    %5 = vector.shape_cast %4 : vector<1x1x64x4xf32> to vector<64x4xf32>
    %cst = arith.constant dense<0xFF800000> : vector<64xf32>
    %6 = vector.multi_reduction <maximumf>, %5, %cst [1] : vector<64x4xf32> to vector<64xf32>
    %7 = vector.shape_cast %6 : vector<64xf32> to vector<64x1xf32>
    %8 = vector.broadcast %7 : vector<64x1xf32> to vector<64x4xf32>
    %9 = arith.subf %5, %8 : vector<64x4xf32>
    %10 = math.exp %9 : vector<64x4xf32>
    %cst_11 = arith.constant dense<0.000000e+00> : vector<64xf32>
    %11 = vector.multi_reduction <add>, %10, %cst_11 [1] : vector<64x4xf32> to vector<64xf32>
    %12 = vector.shape_cast %11 : vector<64xf32> to vector<64x1xf32>
    %13 = vector.broadcast %12 : vector<64x1xf32> to vector<64x4xf32>
    %14 = arith.divf %10, %13 : vector<64x4xf32>
    %15 = math.floor %1 : vector<64x4xf32>
    %16 = math.floor %3 : vector<64x4xf32>
    %17 = arith.subf %1, %15 : vector<64x4xf32>
    %18 = arith.subf %3, %16 : vector<64x4xf32>
    %cst_12 = arith.constant 1.000000e+00 : f32
    %19 = vector.broadcast %cst_12 : f32 to vector<64x4xf32>
    %20 = arith.subf %19, %17 : vector<64x4xf32>
    %cst_13 = arith.constant 1.000000e+00 : f32
    %21 = vector.broadcast %cst_13 : f32 to vector<64x4xf32>
    %22 = arith.subf %21, %18 : vector<64x4xf32>
    %23 = arith.fptosi %15 : vector<64x4xf32> to vector<64x4xi32>
    %24 = arith.fptosi %16 : vector<64x4xf32> to vector<64x4xi32>
    %c1_i32 = arith.constant 1 : i32
    %25 = vector.broadcast %c1_i32 : i32 to vector<64x4xi32>
    %26 = arith.addi %23, %25 : vector<64x4xi32>
    %c1_i32_14 = arith.constant 1 : i32
    %27 = vector.broadcast %c1_i32_14 : i32 to vector<64x4xi32>
    %28 = arith.addi %24, %27 : vector<64x4xi32>
    %29 = tpu.iota {dimensions = array<i32: 1>} : vector<64x128xi32>
    %cst_15 = arith.constant 0.000000e+00 : f32
    %30 = vector.broadcast %cst_15 : f32 to vector<64x128xf32>
    %31 = arith.mulf %20, %22 : vector<64x4xf32>
    %c0_i32 = arith.constant 0 : i32
    %32 = vector.broadcast %c0_i32 : i32 to vector<64x4xi32>
    %33 = arith.cmpi sge, %23, %32 : vector<64x4xi32>
    %c8_i32 = arith.constant 8 : i32
    %34 = vector.broadcast %c8_i32 : i32 to vector<64x4xi32>
    %35 = arith.cmpi slt, %23, %34 : vector<64x4xi32>
    %36 = arith.andi %33, %35 : vector<64x4xi1>
    %c0_i32_16 = arith.constant 0 : i32
    %37 = vector.broadcast %c0_i32_16 : i32 to vector<64x4xi32>
    %38 = arith.cmpi sge, %24, %37 : vector<64x4xi32>
    %39 = arith.andi %36, %38 : vector<64x4xi1>
    %c16_i32 = arith.constant 16 : i32
    %40 = vector.broadcast %c16_i32 : i32 to vector<64x4xi32>
    %41 = arith.cmpi slt, %24, %40 : vector<64x4xi32>
    %42 = arith.andi %39, %41 : vector<64x4xi1>
    %cst_17 = arith.constant 0.000000e+00 : f32
    %43 = vector.broadcast %cst_17 : f32 to vector<64x4xf32>
    %44 = arith.select %42, %31, %43 : vector<64x4xi1>, vector<64x4xf32>
    %45 = arith.mulf %44, %14 : vector<64x4xf32>
    %c8_i32_18 = arith.constant 8 : i32
    %46 = vector.broadcast %c8_i32_18 : i32 to vector<64x4xi32>
    %47 = arith.muli %24, %46 : vector<64x4xi32>
    %48 = arith.addi %47, %23 : vector<64x4xi32>
    %49 = vector.extract_strided_slice %48 {offsets = [0, 0], sizes = [64, 1], strides = [1, 1]} : vector<64x4xi32> to vector<64x1xi32>
    %50 = vector.broadcast %49 : vector<64x1xi32> to vector<64x128xi32>
    %51 = arith.cmpi eq, %29, %50 : vector<64x128xi32>
    %52 = vector.extract_strided_slice %45 {offsets = [0, 0], sizes = [64, 1], strides = [1, 1]} : vector<64x4xf32> to vector<64x1xf32>
    %cst_19 = arith.constant 0.000000e+00 : f32
    %53 = vector.shape_cast %52 : vector<64x1xf32> to vector<64x1xf32>
    %54 = vector.broadcast %53 : vector<64x1xf32> to vector<64x128xf32>
    %55 = vector.broadcast %cst_19 : f32 to vector<64x128xf32>
    %56 = arith.select %51, %54, %55 : vector<64x128xi1>, vector<64x128xf32>
    %57 = arith.addf %30, %56 : vector<64x128xf32>
    %58 = vector.extract_strided_slice %48 {offsets = [0, 1], sizes = [64, 1], strides = [1, 1]} : vector<64x4xi32> to vector<64x1xi32>
    %59 = vector.broadcast %58 : vector<64x1xi32> to vector<64x128xi32>
    %60 = arith.cmpi eq, %29, %59 : vector<64x128xi32>
    %61 = vector.extract_strided_slice %45 {offsets = [0, 1], sizes = [64, 1], strides = [1, 1]} : vector<64x4xf32> to vector<64x1xf32>
    %cst_20 = arith.constant 0.000000e+00 : f32
    %62 = vector.shape_cast %61 : vector<64x1xf32> to vector<64x1xf32>
    %63 = vector.broadcast %62 : vector<64x1xf32> to vector<64x128xf32>
    %64 = vector.broadcast %cst_20 : f32 to vector<64x128xf32>
    %65 = arith.select %60, %63, %64 : vector<64x128xi1>, vector<64x128xf32>
    %66 = arith.addf %57, %65 : vector<64x128xf32>
    %67 = vector.extract_strided_slice %48 {offsets = [0, 2], sizes = [64, 1], strides = [1, 1]} : vector<64x4xi32> to vector<64x1xi32>
    %68 = vector.broadcast %67 : vector<64x1xi32> to vector<64x128xi32>
    %69 = arith.cmpi eq, %29, %68 : vector<64x128xi32>
    %70 = vector.extract_strided_slice %45 {offsets = [0, 2], sizes = [64, 1], strides = [1, 1]} : vector<64x4xf32> to vector<64x1xf32>
    %cst_21 = arith.constant 0.000000e+00 : f32
    %71 = vector.shape_cast %70 : vector<64x1xf32> to vector<64x1xf32>
    %72 = vector.broadcast %71 : vector<64x1xf32> to vector<64x128xf32>
    %73 = vector.broadcast %cst_21 : f32 to vector<64x128xf32>
    %74 = arith.select %69, %72, %73 : vector<64x128xi1>, vector<64x128xf32>
    %75 = arith.addf %66, %74 : vector<64x128xf32>
    %76 = vector.extract_strided_slice %48 {offsets = [0, 3], sizes = [64, 1], strides = [1, 1]} : vector<64x4xi32> to vector<64x1xi32>
    %77 = vector.broadcast %76 : vector<64x1xi32> to vector<64x128xi32>
    %78 = arith.cmpi eq, %29, %77 : vector<64x128xi32>
    %79 = vector.extract_strided_slice %45 {offsets = [0, 3], sizes = [64, 1], strides = [1, 1]} : vector<64x4xf32> to vector<64x1xf32>
    %cst_22 = arith.constant 0.000000e+00 : f32
    %80 = vector.shape_cast %79 : vector<64x1xf32> to vector<64x1xf32>
    %81 = vector.broadcast %80 : vector<64x1xf32> to vector<64x128xf32>
    %82 = vector.broadcast %cst_22 : f32 to vector<64x128xf32>
    %83 = arith.select %78, %81, %82 : vector<64x128xi1>, vector<64x128xf32>
    %84 = arith.addf %75, %83 : vector<64x128xf32>
    %85 = arith.mulf %17, %22 : vector<64x4xf32>
    %c0_i32_23 = arith.constant 0 : i32
    %86 = vector.broadcast %c0_i32_23 : i32 to vector<64x4xi32>
    %87 = arith.cmpi sge, %26, %86 : vector<64x4xi32>
    %c8_i32_24 = arith.constant 8 : i32
    %88 = vector.broadcast %c8_i32_24 : i32 to vector<64x4xi32>
    %89 = arith.cmpi slt, %26, %88 : vector<64x4xi32>
    %90 = arith.andi %87, %89 : vector<64x4xi1>
    %c0_i32_25 = arith.constant 0 : i32
    %91 = vector.broadcast %c0_i32_25 : i32 to vector<64x4xi32>
    %92 = arith.cmpi sge, %24, %91 : vector<64x4xi32>
    %93 = arith.andi %90, %92 : vector<64x4xi1>
    %c16_i32_26 = arith.constant 16 : i32
    %94 = vector.broadcast %c16_i32_26 : i32 to vector<64x4xi32>
    %95 = arith.cmpi slt, %24, %94 : vector<64x4xi32>
    %96 = arith.andi %93, %95 : vector<64x4xi1>
    %cst_27 = arith.constant 0.000000e+00 : f32
    %97 = vector.broadcast %cst_27 : f32 to vector<64x4xf32>
    %98 = arith.select %96, %85, %97 : vector<64x4xi1>, vector<64x4xf32>
    %99 = arith.mulf %98, %14 : vector<64x4xf32>
    %c8_i32_28 = arith.constant 8 : i32
    %100 = vector.broadcast %c8_i32_28 : i32 to vector<64x4xi32>
    %101 = arith.muli %24, %100 : vector<64x4xi32>
    %102 = arith.addi %101, %26 : vector<64x4xi32>
    %103 = vector.extract_strided_slice %102 {offsets = [0, 0], sizes = [64, 1], strides = [1, 1]} : vector<64x4xi32> to vector<64x1xi32>
    %104 = vector.broadcast %103 : vector<64x1xi32> to vector<64x128xi32>
    %105 = arith.cmpi eq, %29, %104 : vector<64x128xi32>
    %106 = vector.extract_strided_slice %99 {offsets = [0, 0], sizes = [64, 1], strides = [1, 1]} : vector<64x4xf32> to vector<64x1xf32>
    %cst_29 = arith.constant 0.000000e+00 : f32
    %107 = vector.shape_cast %106 : vector<64x1xf32> to vector<64x1xf32>
    %108 = vector.broadcast %107 : vector<64x1xf32> to vector<64x128xf32>
    %109 = vector.broadcast %cst_29 : f32 to vector<64x128xf32>
    %110 = arith.select %105, %108, %109 : vector<64x128xi1>, vector<64x128xf32>
    %111 = arith.addf %84, %110 : vector<64x128xf32>
    %112 = vector.extract_strided_slice %102 {offsets = [0, 1], sizes = [64, 1], strides = [1, 1]} : vector<64x4xi32> to vector<64x1xi32>
    %113 = vector.broadcast %112 : vector<64x1xi32> to vector<64x128xi32>
    %114 = arith.cmpi eq, %29, %113 : vector<64x128xi32>
    %115 = vector.extract_strided_slice %99 {offsets = [0, 1], sizes = [64, 1], strides = [1, 1]} : vector<64x4xf32> to vector<64x1xf32>
    %cst_30 = arith.constant 0.000000e+00 : f32
    %116 = vector.shape_cast %115 : vector<64x1xf32> to vector<64x1xf32>
    %117 = vector.broadcast %116 : vector<64x1xf32> to vector<64x128xf32>
    %118 = vector.broadcast %cst_30 : f32 to vector<64x128xf32>
    %119 = arith.select %114, %117, %118 : vector<64x128xi1>, vector<64x128xf32>
    %120 = arith.addf %111, %119 : vector<64x128xf32>
    %121 = vector.extract_strided_slice %102 {offsets = [0, 2], sizes = [64, 1], strides = [1, 1]} : vector<64x4xi32> to vector<64x1xi32>
    %122 = vector.broadcast %121 : vector<64x1xi32> to vector<64x128xi32>
    %123 = arith.cmpi eq, %29, %122 : vector<64x128xi32>
    %124 = vector.extract_strided_slice %99 {offsets = [0, 2], sizes = [64, 1], strides = [1, 1]} : vector<64x4xf32> to vector<64x1xf32>
    %cst_31 = arith.constant 0.000000e+00 : f32
    %125 = vector.shape_cast %124 : vector<64x1xf32> to vector<64x1xf32>
    %126 = vector.broadcast %125 : vector<64x1xf32> to vector<64x128xf32>
    %127 = vector.broadcast %cst_31 : f32 to vector<64x128xf32>
    %128 = arith.select %123, %126, %127 : vector<64x128xi1>, vector<64x128xf32>
    %129 = arith.addf %120, %128 : vector<64x128xf32>
    %130 = vector.extract_strided_slice %102 {offsets = [0, 3], sizes = [64, 1], strides = [1, 1]} : vector<64x4xi32> to vector<64x1xi32>
    %131 = vector.broadcast %130 : vector<64x1xi32> to vector<64x128xi32>
    %132 = arith.cmpi eq, %29, %131 : vector<64x128xi32>
    %133 = vector.extract_strided_slice %99 {offsets = [0, 3], sizes = [64, 1], strides = [1, 1]} : vector<64x4xf32> to vector<64x1xf32>
    %cst_32 = arith.constant 0.000000e+00 : f32
    %134 = vector.shape_cast %133 : vector<64x1xf32> to vector<64x1xf32>
    %135 = vector.broadcast %134 : vector<64x1xf32> to vector<64x128xf32>
    %136 = vector.broadcast %cst_32 : f32 to vector<64x128xf32>
    %137 = arith.select %132, %135, %136 : vector<64x128xi1>, vector<64x128xf32>
    %138 = arith.addf %129, %137 : vector<64x128xf32>
    %139 = arith.mulf %20, %18 : vector<64x4xf32>
    %c0_i32_33 = arith.constant 0 : i32
    %140 = vector.broadcast %c0_i32_33 : i32 to vector<64x4xi32>
    %141 = arith.cmpi sge, %23, %140 : vector<64x4xi32>
    %c8_i32_34 = arith.constant 8 : i32
    %142 = vector.broadcast %c8_i32_34 : i32 to vector<64x4xi32>
    %143 = arith.cmpi slt, %23, %142 : vector<64x4xi32>
    %144 = arith.andi %141, %143 : vector<64x4xi1>
    %c0_i32_35 = arith.constant 0 : i32
    %145 = vector.broadcast %c0_i32_35 : i32 to vector<64x4xi32>
    %146 = arith.cmpi sge, %28, %145 : vector<64x4xi32>
    %147 = arith.andi %144, %146 : vector<64x4xi1>
    %c16_i32_36 = arith.constant 16 : i32
    %148 = vector.broadcast %c16_i32_36 : i32 to vector<64x4xi32>
    %149 = arith.cmpi slt, %28, %148 : vector<64x4xi32>
    %150 = arith.andi %147, %149 : vector<64x4xi1>
    %cst_37 = arith.constant 0.000000e+00 : f32
    %151 = vector.broadcast %cst_37 : f32 to vector<64x4xf32>
    %152 = arith.select %150, %139, %151 : vector<64x4xi1>, vector<64x4xf32>
    %153 = arith.mulf %152, %14 : vector<64x4xf32>
    %c8_i32_38 = arith.constant 8 : i32
    %154 = vector.broadcast %c8_i32_38 : i32 to vector<64x4xi32>
    %155 = arith.muli %28, %154 : vector<64x4xi32>
    %156 = arith.addi %155, %23 : vector<64x4xi32>
    %157 = vector.extract_strided_slice %156 {offsets = [0, 0], sizes = [64, 1], strides = [1, 1]} : vector<64x4xi32> to vector<64x1xi32>
    %158 = vector.broadcast %157 : vector<64x1xi32> to vector<64x128xi32>
    %159 = arith.cmpi eq, %29, %158 : vector<64x128xi32>
    %160 = vector.extract_strided_slice %153 {offsets = [0, 0], sizes = [64, 1], strides = [1, 1]} : vector<64x4xf32> to vector<64x1xf32>
    %cst_39 = arith.constant 0.000000e+00 : f32
    %161 = vector.shape_cast %160 : vector<64x1xf32> to vector<64x1xf32>
    %162 = vector.broadcast %161 : vector<64x1xf32> to vector<64x128xf32>
    %163 = vector.broadcast %cst_39 : f32 to vector<64x128xf32>
    %164 = arith.select %159, %162, %163 : vector<64x128xi1>, vector<64x128xf32>
    %165 = arith.addf %138, %164 : vector<64x128xf32>
    %166 = vector.extract_strided_slice %156 {offsets = [0, 1], sizes = [64, 1], strides = [1, 1]} : vector<64x4xi32> to vector<64x1xi32>
    %167 = vector.broadcast %166 : vector<64x1xi32> to vector<64x128xi32>
    %168 = arith.cmpi eq, %29, %167 : vector<64x128xi32>
    %169 = vector.extract_strided_slice %153 {offsets = [0, 1], sizes = [64, 1], strides = [1, 1]} : vector<64x4xf32> to vector<64x1xf32>
    %cst_40 = arith.constant 0.000000e+00 : f32
    %170 = vector.shape_cast %169 : vector<64x1xf32> to vector<64x1xf32>
    %171 = vector.broadcast %170 : vector<64x1xf32> to vector<64x128xf32>
    %172 = vector.broadcast %cst_40 : f32 to vector<64x128xf32>
    %173 = arith.select %168, %171, %172 : vector<64x128xi1>, vector<64x128xf32>
    %174 = arith.addf %165, %173 : vector<64x128xf32>
    %175 = vector.extract_strided_slice %156 {offsets = [0, 2], sizes = [64, 1], strides = [1, 1]} : vector<64x4xi32> to vector<64x1xi32>
    %176 = vector.broadcast %175 : vector<64x1xi32> to vector<64x128xi32>
    %177 = arith.cmpi eq, %29, %176 : vector<64x128xi32>
    %178 = vector.extract_strided_slice %153 {offsets = [0, 2], sizes = [64, 1], strides = [1, 1]} : vector<64x4xf32> to vector<64x1xf32>
    %cst_41 = arith.constant 0.000000e+00 : f32
    %179 = vector.shape_cast %178 : vector<64x1xf32> to vector<64x1xf32>
    %180 = vector.broadcast %179 : vector<64x1xf32> to vector<64x128xf32>
    %181 = vector.broadcast %cst_41 : f32 to vector<64x128xf32>
    %182 = arith.select %177, %180, %181 : vector<64x128xi1>, vector<64x128xf32>
    %183 = arith.addf %174, %182 : vector<64x128xf32>
    %184 = vector.extract_strided_slice %156 {offsets = [0, 3], sizes = [64, 1], strides = [1, 1]} : vector<64x4xi32> to vector<64x1xi32>
    %185 = vector.broadcast %184 : vector<64x1xi32> to vector<64x128xi32>
    %186 = arith.cmpi eq, %29, %185 : vector<64x128xi32>
    %187 = vector.extract_strided_slice %153 {offsets = [0, 3], sizes = [64, 1], strides = [1, 1]} : vector<64x4xf32> to vector<64x1xf32>
    %cst_42 = arith.constant 0.000000e+00 : f32
    %188 = vector.shape_cast %187 : vector<64x1xf32> to vector<64x1xf32>
    %189 = vector.broadcast %188 : vector<64x1xf32> to vector<64x128xf32>
    %190 = vector.broadcast %cst_42 : f32 to vector<64x128xf32>
    %191 = arith.select %186, %189, %190 : vector<64x128xi1>, vector<64x128xf32>
    %192 = arith.addf %183, %191 : vector<64x128xf32>
    %193 = arith.mulf %17, %18 : vector<64x4xf32>
    %c0_i32_43 = arith.constant 0 : i32
    %194 = vector.broadcast %c0_i32_43 : i32 to vector<64x4xi32>
    %195 = arith.cmpi sge, %26, %194 : vector<64x4xi32>
    %c8_i32_44 = arith.constant 8 : i32
    %196 = vector.broadcast %c8_i32_44 : i32 to vector<64x4xi32>
    %197 = arith.cmpi slt, %26, %196 : vector<64x4xi32>
    %198 = arith.andi %195, %197 : vector<64x4xi1>
    %c0_i32_45 = arith.constant 0 : i32
    %199 = vector.broadcast %c0_i32_45 : i32 to vector<64x4xi32>
    %200 = arith.cmpi sge, %28, %199 : vector<64x4xi32>
    %201 = arith.andi %198, %200 : vector<64x4xi1>
    %c16_i32_46 = arith.constant 16 : i32
    %202 = vector.broadcast %c16_i32_46 : i32 to vector<64x4xi32>
    %203 = arith.cmpi slt, %28, %202 : vector<64x4xi32>
    %204 = arith.andi %201, %203 : vector<64x4xi1>
    %cst_47 = arith.constant 0.000000e+00 : f32
    %205 = vector.broadcast %cst_47 : f32 to vector<64x4xf32>
    %206 = arith.select %204, %193, %205 : vector<64x4xi1>, vector<64x4xf32>
    %207 = arith.mulf %206, %14 : vector<64x4xf32>
    %c8_i32_48 = arith.constant 8 : i32
    %208 = vector.broadcast %c8_i32_48 : i32 to vector<64x4xi32>
    %209 = arith.muli %28, %208 : vector<64x4xi32>
    %210 = arith.addi %209, %26 : vector<64x4xi32>
    %211 = vector.extract_strided_slice %210 {offsets = [0, 0], sizes = [64, 1], strides = [1, 1]} : vector<64x4xi32> to vector<64x1xi32>
    %212 = vector.broadcast %211 : vector<64x1xi32> to vector<64x128xi32>
    %213 = arith.cmpi eq, %29, %212 : vector<64x128xi32>
    %214 = vector.extract_strided_slice %207 {offsets = [0, 0], sizes = [64, 1], strides = [1, 1]} : vector<64x4xf32> to vector<64x1xf32>
    %cst_49 = arith.constant 0.000000e+00 : f32
    %215 = vector.shape_cast %214 : vector<64x1xf32> to vector<64x1xf32>
    %216 = vector.broadcast %215 : vector<64x1xf32> to vector<64x128xf32>
    %217 = vector.broadcast %cst_49 : f32 to vector<64x128xf32>
    %218 = arith.select %213, %216, %217 : vector<64x128xi1>, vector<64x128xf32>
    %219 = arith.addf %192, %218 : vector<64x128xf32>
    %220 = vector.extract_strided_slice %210 {offsets = [0, 1], sizes = [64, 1], strides = [1, 1]} : vector<64x4xi32> to vector<64x1xi32>
    %221 = vector.broadcast %220 : vector<64x1xi32> to vector<64x128xi32>
    %222 = arith.cmpi eq, %29, %221 : vector<64x128xi32>
    %223 = vector.extract_strided_slice %207 {offsets = [0, 1], sizes = [64, 1], strides = [1, 1]} : vector<64x4xf32> to vector<64x1xf32>
    %cst_50 = arith.constant 0.000000e+00 : f32
    %224 = vector.shape_cast %223 : vector<64x1xf32> to vector<64x1xf32>
    %225 = vector.broadcast %224 : vector<64x1xf32> to vector<64x128xf32>
    %226 = vector.broadcast %cst_50 : f32 to vector<64x128xf32>
    %227 = arith.select %222, %225, %226 : vector<64x128xi1>, vector<64x128xf32>
    %228 = arith.addf %219, %227 : vector<64x128xf32>
    %229 = vector.extract_strided_slice %210 {offsets = [0, 2], sizes = [64, 1], strides = [1, 1]} : vector<64x4xi32> to vector<64x1xi32>
    %230 = vector.broadcast %229 : vector<64x1xi32> to vector<64x128xi32>
    %231 = arith.cmpi eq, %29, %230 : vector<64x128xi32>
    %232 = vector.extract_strided_slice %207 {offsets = [0, 2], sizes = [64, 1], strides = [1, 1]} : vector<64x4xf32> to vector<64x1xf32>
    %cst_51 = arith.constant 0.000000e+00 : f32
    %233 = vector.shape_cast %232 : vector<64x1xf32> to vector<64x1xf32>
    %234 = vector.broadcast %233 : vector<64x1xf32> to vector<64x128xf32>
    %235 = vector.broadcast %cst_51 : f32 to vector<64x128xf32>
    %236 = arith.select %231, %234, %235 : vector<64x128xi1>, vector<64x128xf32>
    %237 = arith.addf %228, %236 : vector<64x128xf32>
    %238 = vector.extract_strided_slice %210 {offsets = [0, 3], sizes = [64, 1], strides = [1, 1]} : vector<64x4xi32> to vector<64x1xi32>
    %239 = vector.broadcast %238 : vector<64x1xi32> to vector<64x128xi32>
    %240 = arith.cmpi eq, %29, %239 : vector<64x128xi32>
    %241 = vector.extract_strided_slice %207 {offsets = [0, 3], sizes = [64, 1], strides = [1, 1]} : vector<64x4xf32> to vector<64x1xf32>
    %cst_52 = arith.constant 0.000000e+00 : f32
    %242 = vector.shape_cast %241 : vector<64x1xf32> to vector<64x1xf32>
    %243 = vector.broadcast %242 : vector<64x1xf32> to vector<64x128xf32>
    %244 = vector.broadcast %cst_52 : f32 to vector<64x128xf32>
    %245 = arith.select %240, %243, %244 : vector<64x128xi1>, vector<64x128xf32>
    %246 = arith.addf %237, %245 : vector<64x128xf32>
    %c0_53 = arith.constant 0 : index
    %c0_54 = arith.constant 0 : index
    %c0_55 = arith.constant 0 : index
    %c0_56 = arith.constant 0 : index
    %247 = vector.load %arg2[%c0_53, %c0_54, %c0_55, %c0_56] : memref<1x1x128x32xf32, #tpu.memory_space<vmem>>, vector<1x1x128x32xf32>
    %248 = vector.shape_cast %247 : vector<1x1x128x32xf32> to vector<128x32xf32>
    %cst_57 = arith.constant dense<0.000000e+00> : vector<64x32xf32>
    %249 = tpu.matmul %246, %248, %cst_57 {dimension_numbers = #tpu.dot_dimension_numbers<[1], [0], [0], [1], [0, 0, 1, 1], [], []>, precision = #tpu.contract_precision<fp32>} : vector<64x128xf32>, vector<128x32xf32>, vector<64x32xf32> -> vector<64x32xf32>
    %c0_58 = arith.constant 0 : index
    %c0_59 = arith.constant 0 : index
    %c0_60 = arith.constant 0 : index
    %c0_61 = arith.constant 0 : index
    %250 = vector.load %arg6[%c0_58, %c0_59, %c0_60, %c0_61] : memref<1x1x64x32xf32, #tpu.memory_space<vmem>>, vector<1x1x64x32xf32>
    %251 = vector.shape_cast %250 : vector<1x1x64x32xf32> to vector<64x32xf32>
    %252 = vector.shape_cast %249 : vector<64x32xf32> to vector<1x1x64x32xf32>
    tpu.vector_store %arg6[%c0_58, %c0_59, %c0_60, %c0_61], %252 {strides = array<i32>} : memref<1x1x64x32xf32, #tpu.memory_space<vmem>>, vector<1x1x64x32xf32>,
    return
  }
  func.func @transform_0(%arg0: i32, %arg1: i32) -> (i32, i32, i32, i32) {
    %c0_i32 = arith.constant 0 : i32
    %c0_i32_0 = arith.constant 0 : i32
    %c0_i32_1 = arith.constant 0 : i32
    return %arg0, %arg1, %c0_i32, %c0_i32_0 : i32, i32, i32, i32
  }
  func.func @transform_1(%arg0: i32, %arg1: i32) -> (i32, i32, i32, i32) {
    %c0_i32 = arith.constant 0 : i32
    %c0_i32_0 = arith.constant 0 : i32
    %c0_i32_1 = arith.constant 0 : i32
    return %arg0, %arg1, %c0_i32, %c0_i32_0 : i32, i32, i32, i32
  }
  func.func @transform_2(%arg0: i32, %arg1: i32) -> (i32, i32, i32, i32) {
    %c0_i32 = arith.constant 0 : i32
    %c0_i32_0 = arith.constant 0 : i32
    %c0_i32_1 = arith.constant 0 : i32
    return %arg0, %arg1, %c0_i32, %c0_i32_0 : i32, i32, i32, i32
  }
  func.func @transform_3(%arg0: i32, %arg1: i32) -> (i32, i32, i32, i32) {
    %c0_i32 = arith.constant 0 : i32
    %c0_i32_0 = arith.constant 0 : i32
    %c0_i32_1 = arith.constant 0 : i32
    return %arg0, %arg1, %c0_i32, %c0_i32_0 : i32, i32, i32, i32
  }
  func.func @transform_4(%arg0: i32, %arg1: i32) -> (i32, i32, i32, i32) {
    %c0_i32 = arith.constant 0 : i32
    %c0_i32_0 = arith.constant 0 : i32
    %c0_i32_1 = arith.constant 0 : i32
    return %arg0, %arg1, %c0_i32, %c0_i32_0 : i32, i32, i32, i32
  }
}

</mosaic_0001>

<llo_original>
// kernel: deformable_cross_attention.8
$region0: #{deformable_cross_attention.8}
  #allocation0 [shape = 'u32[]', space=smem, size = 0x4, offset = 0x4, fixed_abs, tag = 'smem constant byte address 0x4 - core index']
  #allocation1 [shape = 'u32[144,128]{1,0:T(1,128)}', space=vmem, size = 0x12000, scoped, tag = 'internal scratch']
  #allocation2 [shape = 'f32[128,128]{1,0:T(8,128)}', space=vmem, size = 0x10000, scoped, tag = 'scratch operand']
  %s0 = inlined_call_operand.vmem [shape: f32[128,128], index: 0, kind: input, shape index: {}]
  %s1 = inlined_call_operand.vmem [shape: f32[128,128], index: 1, kind: input, shape index: {}]
  %s2 = inlined_call_operand.vmem [shape: f32[1,128], index: 2, kind: input, shape index: {}]
  %s3 = inlined_call_operand.vmem [shape: f32[128,128], index: 3, kind: output, shape index: {}]
  %s4 = sld [smem:[#allocation0]]
  $region30: #{deformable_cross_attention.8} parent=0
    _
  %s6 = ssub.s32 1, %s4
  %s7 = scalar_select 0, %s6, %s4
  // Predicated region
  $region2: #{deformable_cross_attention.8} parent=0 // pred_check
    _
  $region3: #{deformable_cross_attention.8} parent=0 // pred_check_branch
    %9 = sbr.rel (0) target = $region5
  $region4: #{deformable_cross_attention.8} parent=0 // pred_region
    _
  $region5: #{deformable_cross_attention.8} parent=0 // pred_fallthru
    _
  // Predicated region
  $region6: #{deformable_cross_attention.8} parent=0 // pred_check
    _
  $region7: #{deformable_cross_attention.8} parent=0 // pred_check_branch
    %11 = sbr.rel (0) target = $region9
  $region8: #{deformable_cross_attention.8} parent=0 // pred_region
    _
  $region9: #{deformable_cross_attention.8} parent=0 // pred_fallthru
    _
  // Predicated region
  $region10: #{deformable_cross_attention.8} parent=0 // pred_check
    _
  $region11: #{deformable_cross_attention.8} parent=0 // pred_check_branch
    %13 = sbr.rel (0) target = $region13
  $region12: #{deformable_cross_attention.8} parent=0 // pred_region
    _
  $region13: #{deformable_cross_attention.8} parent=0 // pred_fallthru
    _
  %p14 = scmp.eq.s32.totalorder 0, 0
  // Predicated region
  $region14: #{deformable_cross_attention.8} parent=0 // pred_check
    %p15 = pneg %p14
  $region15: #{deformable_cross_attention.8} parent=0 // pred_check_branch
    %17 = sbr.rel (%p15) target = $region17
  $region16: #{deformable_cross_attention.8} parent=0 // pred_region
    %18 = vst [vmem:[#allocation2] sm:$0xff] 0.0
    %19 = vst [vmem:[#allocation2 + $0x8] sm:$0xff] 0.0
    %20 = vst [vmem:[#allocation2 + $0x10] sm:$0xff] 0.0
    %21 = vst [vmem:[#allocation2 + $0x18] sm:$0xff] 0.0
    %22 = vst [vmem:[#allocation2 + $0x20] sm:$0xff] 0.0
    %23 = vst [vmem:[#allocation2 + $0x28] sm:$0xff] 0.0
    %24 = vst [vmem:[#allocation2 + $0x30] sm:$0xff] 0.0
    %25 = vst [vmem:[#allocation2 + $0x38] sm:$0xff] 0.0
    %26 = vst [vmem:[#allocation2 + $0x40] sm:$0xff] 0.0
    %27 = vst [vmem:[#allocation2 + $0x48] sm:$0xff] 0.0
    %28 = vst [vmem:[#allocation2 + $0x50] sm:$0xff] 0.0
    %29 = vst [vmem:[#allocation2 + $0x58] sm:$0xff] 0.0
    %30 = vst [vmem:[#allocation2 + $0x60] sm:$0xff] 0.0
    %31 = vst [vmem:[#allocation2 + $0x68] sm:$0xff] 0.0
    %32 = vst [vmem:[#allocation2 + $0x70] sm:$0xff] 0.0
    %33 = vst [vmem:[#allocation2 + $0x78] sm:$0xff] 0.0
  $region17: #{deformable_cross_attention.8} parent=0 // pred_fallthru
    _
  %v34 = vld [vmem:[#allocation2] sm:$0xff]
  %v35 = vld [vmem:[#allocation2 + $0x8] sm:$0xff]
  %v36 = vld [vmem:[#allocation2 + $0x10] sm:$0xff]
  %v37 = vld [vmem:[#allocation2 + $0x18] sm:$0xff]
  %v38 = vld [vmem:[#allocation2 + $0x20] sm:$0xff]
  %v39 = vld [vmem:[#allocation2 + $0x28] sm:$0xff]
  %v40 = vld [vmem:[#allocation2 + $0x30] sm:$0xff]
  %v41 = vld [vmem:[#allocation2 + $0x38] sm:$0xff]
  %v42 = vld [vmem:[#allocation2 + $0x40] sm:$0xff]
  %v43 = vld [vmem:[#allocation2 + $0x48] sm:$0xff]
  %v44 = vld [vmem:[#allocation2 + $0x50] sm:$0xff]
  %v45 = vld [vmem:[#allocation2 + $0x58] sm:$0xff]
  %v46 = vld [vmem:[#allocation2 + $0x60] sm:$0xff]
  %v47 = vld [vmem:[#allocation2 + $0x68] sm:$0xff]
  %v48 = vld [vmem:[#allocation2 + $0x70] sm:$0xff]
  %v49 = vld [vmem:[#allocation2 + $0x78] sm:$0xff]
  %v50 = vld [vmem:[%s0] sm:$0xff]
  %v51 = vld [vmem:[%s0 + $0x8] sm:$0xff]
  %v52 = vld [vmem:[%s0 + $0x10] sm:$0xff]
  %v53 = vld [vmem:[%s0 + $0x18] sm:$0xff]
  %v54 = vld [vmem:[%s0 + $0x20] sm:$0xff]
  %v55 = vld [vmem:[%s0 + $0x28] sm:$0xff]
  %v56 = vld [vmem:[%s0 + $0x30] sm:$0xff]
  %v57 = vld [vmem:[%s0 + $0x38] sm:$0xff]
  %v58 = vld [vmem:[%s0 + $0x40] sm:$0xff]
  %v59 = vld [vmem:[%s0 + $0x48] sm:$0xff]
  %v60 = vld [vmem:[%s0 + $0x50] sm:$0xff]
  %v61 = vld [vmem:[%s0 + $0x58] sm:$0xff]
  %v62 = vld [vmem:[%s0 + $0x60] sm:$0xff]
  %v63 = vld [vmem:[%s0 + $0x68] sm:$0xff]
  %v64 = vld [vmem:[%s0 + $0x70] sm:$0xff]
  %v65 = vld [vmem:[%s0 + $0x78] sm:$0xff]
  %v66 = vld [vmem:[%s1] sm:$0xff]
  %v67 = vld [vmem:[%s1 + $0x8] sm:$0xff]
  %v68 = vld [vmem:[%s1 + $0x10] sm:$0xff]
  %v69 = vld [vmem:[%s1 + $0x18] sm:$0xff]
  %v70 = vld [vmem:[%s1 + $0x20] sm:$0xff]
  %v71 = vld [vmem:[%s1 + $0x28] sm:$0xff]
  %v72 = vld [vmem:[%s1 + $0x30] sm:$0xff]
  %v73 = vld [vmem:[%s1 + $0x38] sm:$0xff]
  %v74 = vld [vmem:[%s1 + $0x40] sm:$0xff]
  %v75 = vld [vmem:[%s1 + $0x48] sm:$0xff]
  %v76 = vld [vmem:[%s1 + $0x50] sm:$0xff]
  %v77 = vld [vmem:[%s1 + $0x58] sm:$0xff]
  %v78 = vld [vmem:[%s1 + $0x60] sm:$0xff]
  %v79 = vld [vmem:[%s1 + $0x68] sm:$0xff]
  %v80 = vld [vmem:[%s1 + $0x70] sm:$0xff]
  %v81 = vld [vmem:[%s1 + $0x78] sm:$0xff]
  %82 = vmatprep.subr.mxu0 0.0
  %v83 = vand.u32 %v81, 4294901760
  %84 = vmatpush1.msra.mxu0 %v83
  %85 = vmatprep.subr.mxu0 0.0
  %v86 = vand.u32 %v80, 4294901760
  %87 = vmatpush1.msra.mxu0 %v86
  %88 = vmatprep.subr.mxu0 0.0
  %v89 = vand.u32 %v79, 4294901760
  %90 = vmatpush1.msra.mxu0 %v89
  %91 = vmatprep.subr.mxu0 0.0
  %v92 = vand.u32 %v78, 4294901760
  %93 = vmatpush1.msra.mxu0 %v92
  %94 = vmatprep.subr.mxu0 0.0
  %v95 = vand.u32 %v77, 4294901760
  %96 = vmatpush1.msra.mxu0 %v95
  %97 = vmatprep.subr.mxu0 0.0
  %v98 = vand.u32 %v76, 4294901760
  %99 = vmatpush1.msra.mxu0 %v98
  %100 = vmatprep.subr.mxu0 0.0
  %v101 = vand.u32 %v75, 4294901760
  %102 = vmatpush1.msra.mxu0 %v101
  %103 = vmatprep.subr.mxu0 0.0
  %v104 = vand.u32 %v74, 4294901760
  %105 = vmatpush1.msra.mxu0 %v104
  %106 = vmatprep.subr.mxu0 0.0
  %v107 = vand.u32 %v73, 4294901760
  %108 = vmatpush1.msra.mxu0 %v107
  %109 = vmatprep.subr.mxu0 0.0
  %v110 = vand.u32 %v72, 4294901760
  %111 = vmatpush1.msra.mxu0 %v110
  %112 = vmatprep.subr.mxu0 0.0
  %v113 = vand.u32 %v71, 4294901760
  %114 = vmatpush1.msra.mxu0 %v113
  %115 = vmatprep.subr.mxu0 0.0
  %v116 = vand.u32 %v70, 4294901760
  %117 = vmatpush1.msra.mxu0 %v116
  %118 = vmatprep.subr.mxu0 0.0
  %v119 = vand.u32 %v69, 4294901760
  %120 = vmatpush1.msra.mxu0 %v119
  %121 = vmatprep.subr.mxu0 0.0
  %v122 = vand.u32 %v68, 4294901760
  %123 = vmatpush1.msra.mxu0 %v122
  %124 = vmatprep.subr.mxu0 0.0
  %v125 = vand.u32 %v67, 4294901760
  %126 = vmatpush1.msra.mxu0 %v125
  %127 = vmatprep.subr.mxu0 0.0
  %v128 = vand.u32 %v66, 4294901760
  %129 = vmatpush1.msra.mxu0 %v128
  %130 = vmatprep.subr.mxu0 0.0
  %131 = vmatpush2.msra.mxu0 0.0
  %132 = vmatprep.subr.mxu0 0.0
  %133 = vmatpush2.msra.mxu0 0.0
  %134 = vmatprep.subr.mxu0 0.0
  %135 = vmatpush2.msra.mxu0 0.0
  %136 = vmatprep.subr.mxu0 0.0
  %137 = vmatpush2.msra.mxu0 0.0
  %138 = vmatprep.subr.mxu0 0.0
  %139 = vmatpush2.msra.mxu0 0.0
  %140 = vmatprep.subr.mxu0 0.0
  %141 = vmatpush2.msra.mxu0 0.0
  %142 = vmatprep.subr.mxu0 0.0
  %143 = vmatpush2.msra.mxu0 0.0
  %144 = vmatprep.subr.mxu0 0.0
  %145 = vmatpush2.msra.mxu0 0.0
  %146 = vmatprep.subr.mxu0 0.0
  %147 = vmatpush2.msra.mxu0 0.0
  %148 = vmatprep.subr.mxu0 0.0
  %149 = vmatpush2.msra.mxu0 0.0
  %150 = vmatprep.subr.mxu0 0.0
  %151 = vmatpush2.msra.mxu0 0.0
  %152 = vmatprep.subr.mxu0 0.0
  %153 = vmatpush2.msra.mxu0 0.0
  %154 = vmatprep.subr.mxu0 0.0
  %155 = vmatpush2.msra.mxu0 0.0
  %156 = vmatprep.subr.mxu0 0.0
  %157 = vmatpush2.msra.mxu0 0.0
  %158 = vmatprep.subr.mxu0 0.0
  %159 = vmatpush2.msra.mxu0 0.0
  %160 = vmatprep.subr.mxu0 0.0
  %161 = vmatpush2.msra.mxu0 0.0
  %162 = vmatprep.mubr.f32.mxu0 0.0
  %v163 = vand.u32 %v50, 4294901760
  %v164 = vsub.f32 %v50, %v163
  %v165 = vand.u32 %v164, 4294901760
  %v166 = vsub.f32 %v164, %v165
  %v167 = vand.u32 %v166, 4294901760
  %168 = vmatmul.mubr.f32.gmra.mxu0 %v167
  %v169 = vpop.f32.mrf.mxu0
  %v170 = vadd.f32 0.0, %v169
  %v171 = vpop.f32.mrf.mxu0
  %172 = vmatprep.mubr.f32.mxu0 0.0
  %v173 = vand.u32 %v51, 4294901760
  %v174 = vsub.f32 %v51, %v173
  %v175 = vand.u32 %v174, 4294901760
  %v176 = vsub.f32 %v174, %v175
  %v177 = vand.u32 %v176, 4294901760
  %178 = vmatmul.mubr.f32.gmra.mxu0 %v177
  %v179 = vpop.f32.mrf.mxu0
  %v180 = vadd.f32 0.0, %v179
  %v181 = vpop.f32.mrf.mxu0
  %182 = vmatprep.mubr.f32.mxu0 0.0
  %v183 = vand.u32 %v52, 4294901760
  %v184 = vsub.f32 %v52, %v183
  %v185 = vand.u32 %v184, 4294901760
  %v186 = vsub.f32 %v184, %v185
  %v187 = vand.u32 %v186, 4294901760
  %188 = vmatmul.mubr.f32.gmra.mxu0 %v187
  %v189 = vpop.f32.mrf.mxu0
  %v190 = vadd.f32 0.0, %v189
  %v191 = vpop.f32.mrf.mxu0
  %192 = vmatprep.mubr.f32.mxu0 0.0
  %v193 = vand.u32 %v53, 4294901760
  %v194 = vsub.f32 %v53, %v193
  %v195 = vand.u32 %v194, 4294901760
  %v196 = vsub.f32 %v194, %v195
  %v197 = vand.u32 %v196, 4294901760
  %198 = vmatmul.mubr.f32.gmra.mxu0 %v197
  %v199 = vpop.f32.mrf.mxu0
  %v200 = vadd.f32 0.0, %v199
  %v201 = vpop.f32.mrf.mxu0
  %202 = vmatprep.mubr.f32.mxu0 0.0
  %v203 = vand.u32 %v54, 4294901760
  %v204 = vsub.f32 %v54, %v203
  %v205 = vand.u32 %v204, 4294901760
  %v206 = vsub.f32 %v204, %v205
  %v207 = vand.u32 %v206, 4294901760
  %208 = vmatmul.mubr.f32.gmra.mxu0 %v207
  %v209 = vpop.f32.mrf.mxu0
  %v210 = vadd.f32 0.0, %v209
  %v211 = vpop.f32.mrf.mxu0
  %212 = vmatprep.mubr.f32.mxu0 0.0
  %v213 = vand.u32 %v55, 4294901760
  %v214 = vsub.f32 %v55, %v213
  %v215 = vand.u32 %v214, 4294901760
  %v216 = vsub.f32 %v214, %v215
  %v217 = vand.u32 %v216, 4294901760
  %218 = vmatmul.mubr.f32.gmra.mxu0 %v217
  %v219 = vpop.f32.mrf.mxu0
  %v220 = vadd.f32 0.0, %v219
  %v221 = vpop.f32.mrf.mxu0
  %222 = vmatprep.mubr.f32.mxu0 0.0
  %v223 = vand.u32 %v56, 4294901760
  %v224 = vsub.f32 %v56, %v223
  %v225 = vand.u32 %v224, 4294901760
  %v226 = vsub.f32 %v224, %v225
  %v227 = vand.u32 %v226, 4294901760
  %228 = vmatmul.mubr.f32.gmra.mxu0 %v227
  %v229 = vpop.f32.mrf.mxu0
  %v230 = vadd.f32 0.0, %v229
  %v231 = vpop.f32.mrf.mxu0
  %232 = vmatprep.mubr.f32.mxu0 0.0
  %v233 = vand.u32 %v57, 4294901760
  %v234 = vsub.f32 %v57, %v233
  %v235 = vand.u32 %v234, 4294901760
  %v236 = vsub.f32 %v234, %v235
  %v237 = vand.u32 %v236, 4294901760
  %238 = vmatmul.mubr.f32.gmra.mxu0 %v237
  %v239 = vpop.f32.mrf.mxu0
  %v240 = vadd.f32 0.0, %v239
  %v241 = vpop.f32.mrf.mxu0
  %242 = vmatprep.mubr.f32.mxu0 0.0
  %v243 = vand.u32 %v58, 4294901760
  %v244 = vsub.f32 %v58, %v243
  %v245 = vand.u32 %v244, 4294901760
  %v246 = vsub.f32 %v244, %v245
  %v247 = vand.u32 %v246, 4294901760
  %248 = vmatmul.mubr.f32.gmra.mxu0 %v247
  %v249 = vpop.f32.mrf.mxu0
  %v250 = vadd.f32 0.0, %v249
  %v251 = vpop.f32.mrf.mxu0
  %252 = vmatprep.mubr.f32.mxu0 0.0
  %v253 = vand.u32 %v59, 4294901760
  %v254 = vsub.f32 %v59, %v253
  %v255 = vand.u32 %v254, 4294901760
  %v256 = vsub.f32 %v254, %v255
  %v257 = vand.u32 %v256, 4294901760
  %258 = vmatmul.mubr.f32.gmra.mxu0 %v257
  %v259 = vpop.f32.mrf.mxu0
  %v260 = vadd.f32 0.0, %v259
  %v261 = vpop.f32.mrf.mxu0
  %262 = vmatprep.mubr.f32.mxu0 0.0
  %v263 = vand.u32 %v60, 4294901760
  %v264 = vsub.f32 %v60, %v263
  %v265 = vand.u32 %v264, 4294901760
  %v266 = vsub.f32 %v264, %v265
  %v267 = vand.u32 %v266, 4294901760
  %268 = vmatmul.mubr.f32.gmra.mxu0 %v267
  %v269 = vpop.f32.mrf.mxu0
  %v270 = vadd.f32 0.0, %v269
  %v271 = vpop.f32.mrf.mxu0
  %272 = vmatprep.mubr.f32.mxu0 0.0
  %v273 = vand.u32 %v61, 4294901760
  %v274 = vsub.f32 %v61, %v273
  %v275 = vand.u32 %v274, 4294901760
  %v276 = vsub.f32 %v274, %v275
  %v277 = vand.u32 %v276, 4294901760
  %278 = vmatmul.mubr.f32.gmra.mxu0 %v277
  %v279 = vpop.f32.mrf.mxu0
  %v280 = vadd.f32 0.0, %v279
  %v281 = vpop.f32.mrf.mxu0
  %282 = vmatprep.mubr.f32.mxu0 0.0
  %v283 = vand.u32 %v62, 4294901760
  %v284 = vsub.f32 %v62, %v283
  %v285 = vand.u32 %v284, 4294901760
  %v286 = vsub.f32 %v284, %v285
  %v287 = vand.u32 %v286, 4294901760
  %288 = vmatmul.mubr.f32.gmra.mxu0 %v287
  %v289 = vpop.f32.mrf.mxu0
  %v290 = vadd.f32 0.0, %v289
  %v291 = vpop.f32.mrf.mxu0
  %292 = vmatprep.mubr.f32.mxu0 0.0
  %v293 = vand.u32 %v63, 4294901760
  %v294 = vsub.f32 %v63, %v293
  %v295 = vand.u32 %v294, 4294901760
  %v296 = vsub.f32 %v294, %v295
  %v297 = vand.u32 %v296, 4294901760
  %298 = vmatmul.mubr.f32.gmra.mxu0 %v297
  %v299 = vpop.f32.mrf.mxu0
  %v300 = vadd.f32 0.0, %v299
  %v301 = vpop.f32.mrf.mxu0
  %302 = vmatprep.mubr.f32.mxu0 0.0
  %v303 = vand.u32 %v64, 4294901760
  %v304 = vsub.f32 %v64, %v303
  %v305 = vand.u32 %v304, 4294901760
  %v306 = vsub.f32 %v304, %v305
  %v307 = vand.u32 %v306, 4294901760
  %308 = vmatmul.mubr.f32.gmra.mxu0 %v307
  %v309 = vpop.f32.mrf.mxu0
  %v310 = vadd.f32 0.0, %v309
  %v311 = vpop.f32.mrf.mxu0
  %312 = vmatprep.mubr.f32.mxu0 0.0
  %v313 = vand.u32 %v65, 4294901760
  %v314 = vsub.f32 %v65, %v313
  %v315 = vand.u32 %v314, 4294901760
  %v316 = vsub.f32 %v314, %v315
  %v317 = vand.u32 %v316, 4294901760
  %318 = vmatmul.mubr.f32.gmra.mxu0 %v317
  %v319 = vpop.f32.mrf.mxu0
  %v320 = vadd.f32 0.0, %v319
  %v321 = vpop.f32.mrf.mxu0
  %322 = vdwg.mxu0
  %323 = vmatprep.subr.mxu0 0.0
  %v324 = vand.u32 %v81, 4294901760
  %v325 = vsub.f32 %v81, %v324
  %v326 = vand.u32 %v325, 4294901760
  %v327 = vsub.f32 %v325, %v326
  %v328 = vand.u32 %v327, 4294901760
  %329 = vmatpush1.msra.mxu0 %v328
  %330 = vmatprep.subr.mxu0 0.0
  %v331 = vand.u32 %v80, 4294901760
  %v332 = vsub.f32 %v80, %v331
  %v333 = vand.u32 %v332, 4294901760
  %v334 = vsub.f32 %v332, %v333
  %v335 = vand.u32 %v334, 4294901760
  %336 = vmatpush1.msra.mxu0 %v335
  %337 = vmatprep.subr.mxu0 0.0
  %v338 = vand.u32 %v79, 4294901760
  %v339 = vsub.f32 %v79, %v338
  %v340 = vand.u32 %v339, 4294901760
  %v341 = vsub.f32 %v339, %v340
  %v342 = vand.u32 %v341, 4294901760
  %343 = vmatpush1.msra.mxu0 %v342
  %344 = vmatprep.subr.mxu0 0.0
  %v345 = vand.u32 %v78, 4294901760
  %v346 = vsub.f32 %v78, %v345
  %v347 = vand.u32 %v346, 4294901760
  %v348 = vsub.f32 %v346, %v347
  %v349 = vand.u32 %v348, 4294901760
  %350 = vmatpush1.msra.mxu0 %v349
  %351 = vmatprep.subr.mxu0 0.0
  %v352 = vand.u32 %v77, 4294901760
  %v353 = vsub.f32 %v77, %v352
  %v354 = vand.u32 %v353, 4294901760
  %v355 = vsub.f32 %v353, %v354
  %v356 = vand.u32 %v355, 4294901760
  %357 = vmatpush1.msra.mxu0 %v356
  %358 = vmatprep.subr.mxu0 0.0
  %v359 = vand.u32 %v76, 4294901760
  %v360 = vsub.f32 %v76, %v359
  %v361 = vand.u32 %v360, 4294901760
  %v362 = vsub.f32 %v360, %v361
  %v363 = vand.u32 %v362, 4294901760
  %364 = vmatpush1.msra.mxu0 %v363
  %365 = vmatprep.subr.mxu0 0.0
  %v366 = vand.u32 %v75, 4294901760
  %v367 = vsub.f32 %v75, %v366
  %v368 = vand.u32 %v367, 4294901760
  %v369 = vsub.f32 %v367, %v368
  %v370 = vand.u32 %v369, 4294901760
  %371 = vmatpush1.msra.mxu0 %v370
  %372 = vmatprep.subr.mxu0 0.0
  %v373 = vand.u32 %v74, 4294901760
  %v374 = vsub.f32 %v74, %v373
  %v375 = vand.u32 %v374, 4294901760
  %v376 = vsub.f32 %v374, %v375
  %v377 = vand.u32 %v376, 4294901760
  %378 = vmatpush1.msra.mxu0 %v377
  %379 = vmatprep.subr.mxu0 0.0
  %v380 = vand.u32 %v73, 4294901760
  %v381 = vsub.f32 %v73, %v380
  %v382 = vand.u32 %v381, 4294901760
  %v383 = vsub.f32 %v381, %v382
  %v384 = vand.u32 %v383, 4294901760
  %385 = vmatpush1.msra.mxu0 %v384
  %386 = vmatprep.subr.mxu0 0.0
  %v387 = vand.u32 %v72, 4294901760
  %v388 = vsub.f32 %v72, %v387
  %v389 = vand.u32 %v388, 4294901760
  %v390 = vsub.f32 %v388, %v389
  %v391 = vand.u32 %v390, 4294901760
  %392 = vmatpush1.msra.mxu0 %v391
  %393 = vmatprep.subr.mxu0 0.0
  %v394 = vand.u32 %v71, 4294901760
  %v395 = vsub.f32 %v71, %v394
  %v396 = vand.u32 %v395, 4294901760
  %v397 = vsub.f32 %v395, %v396
  %v398 = vand.u32 %v397, 4294901760
  %399 = vmatpush1.msra.mxu0 %v398
  %400 = vmatprep.subr.mxu0 0.0
  %v401 = vand.u32 %v70, 4294901760
  %v402 = vsub.f32 %v70, %v401
  %v403 = vand.u32 %v402, 4294901760
  %v404 = vsub.f32 %v402, %v403
  %v405 = vand.u32 %v404, 4294901760
  %406 = vmatpush1.msra.mxu0 %v405
  %407 = vmatprep.subr.mxu0 0.0
  %v408 = vand.u32 %v69, 4294901760
  %v409 = vsub.f32 %v69, %v408
  %v410 = vand.u32 %v409, 4294901760
  %v411 = vsub.f32 %v409, %v410
  %v412 = vand.u32 %v411, 4294901760
  %413 = vmatpush1.msra.mxu0 %v412
  %414 = vmatprep.subr.mxu0 0.0
  %v415 = vand.u32 %v68, 4294901760
  %v416 = vsub.f32 %v68, %v415
  %v417 = vand.u32 %v416, 4294901760
  %v418 = vsub.f32 %v416, %v417
  %v419 = vand.u32 %v418, 4294901760
  %420 = vmatpush1.msra.mxu0 %v419
  %421 = vmatprep.subr.mxu0 0.0
  %v422 = vand.u32 %v67, 4294901760
  %v423 = vsub.f32 %v67, %v422
  %v424 = vand.u32 %v423, 4294901760
  %v425 = vsub.f32 %v423, %v424
  %v426 = vand.u32 %v425, 4294901760
  %427 = vmatpush1.msra.mxu0 %v426
  %428 = vmatprep.subr.mxu0 0.0
  %v429 = vand.u32 %v66, 4294901760
  %v430 = vsub.f32 %v66, %v429
  %v431 = vand.u32 %v430, 4294901760
  %v432 = vsub.f32 %v430, %v431
  %v433 = vand.u32 %v432, 4294901760
  %434 = vmatpush1.msra.mxu0 %v433
  %435 = vmatprep.subr.mxu0 0.0
  %436 = vmatpush2.msra.mxu0 0.0
  %437 = vmatprep.subr.mxu0 0.0
  %438 = vmatpush2.msra.mxu0 0.0
  %439 = vmatprep.subr.mxu0 0.0
  %440 = vmatpush2.msra.mxu0 0.0
  %441 = vmatprep.subr.mxu0 0.0
  %442 = vmatpush2.msra.mxu0 0.0
  %443 = vmatprep.subr.mxu0 0.0
  %444 = vmatpush2.msra.mxu0 0.0
  %445 = vmatprep.subr.mxu0 0.0
  %446 = vmatpush2.msra.mxu0 0.0
  %447 = vmatprep.subr.mxu0 0.0
  %448 = vmatpush2.msra.mxu0 0.0
  %449 = vmatprep.subr.mxu0 0.0
  %450 = vmatpush2.msra.mxu0 0.0
  %451 = vmatprep.subr.mxu0 0.0
  %452 = vmatpush2.msra.mxu0 0.0
  %453 = vmatprep.subr.mxu0 0.0
  %454 = vmatpush2.msra.mxu0 0.0
  %455 = vmatprep.subr.mxu0 0.0
  %456 = vmatpush2.msra.mxu0 0.0
  %457 = vmatprep.subr.mxu0 0.0
  %458 = vmatpush2.msra.mxu0 0.0
  %459 = vmatprep.subr.mxu0 0.0
  %460 = vmatpush2.msra.mxu0 0.0
  %461 = vmatprep.subr.mxu0 0.0
  %462 = vmatpush2.msra.mxu0 0.0
  %463 = vmatprep.subr.mxu0 0.0
  %464 = vmatpush2.msra.mxu0 0.0
  %465 = vmatprep.subr.mxu0 0.0
  %466 = vmatpush2.msra.mxu0 0.0
  %467 = vmatprep.mubr.f32.mxu0 0.0
  %v468 = vand.u32 %v50, 4294901760
  %469 = vmatmul.mubr.f32.gmra.mxu0 %v468
  %v470 = vpop.f32.mrf.mxu0
  %v471 = vadd.f32 %v170, %v470
  %v472 = vpop.f32.mrf.mxu0
  %473 = vmatprep.mubr.f32.mxu0 0.0
  %v474 = vand.u32 %v51, 4294901760
  %475 = vmatmul.mubr.f32.gmra.mxu0 %v474
  %v476 = vpop.f32.mrf.mxu0
  %v477 = vadd.f32 %v180, %v476
  %v478 = vpop.f32.mrf.mxu0
  %479 = vmatprep.mubr.f32.mxu0 0.0
  %v480 = vand.u32 %v52, 4294901760
  %481 = vmatmul.mubr.f32.gmra.mxu0 %v480
  %v482 = vpop.f32.mrf.mxu0
  %v483 = vadd.f32 %v190, %v482
  %v484 = vpop.f32.mrf.mxu0
  %485 = vmatprep.mubr.f32.mxu0 0.0
  %v486 = vand.u32 %v53, 4294901760
  %487 = vmatmul.mubr.f32.gmra.mxu0 %v486
  %v488 = vpop.f32.mrf.mxu0
  %v489 = vadd.f32 %v200, %v488
  %v490 = vpop.f32.mrf.mxu0
  %491 = vmatprep.mubr.f32.mxu0 0.0
  %v492 = vand.u32 %v54, 4294901760
  %493 = vmatmul.mubr.f32.gmra.mxu0 %v492
  %v494 = vpop.f32.mrf.mxu0
  %v495 = vadd.f32 %v210, %v494
  %v496 = vpop.f32.mrf.mxu0
  %497 = vmatprep.mubr.f32.mxu0 0.0
  %v498 = vand.u32 %v55, 4294901760
  %499 = vmatmul.mubr.f32.gmra.mxu0 %v498
  %v500 = vpop.f32.mrf.mxu0
  %v501 = vadd.f32 %v220, %v500
  %v502 = vpop.f32.mrf.mxu0
  %503 = vmatprep.mubr.f32.mxu0 0.0
  %v504 = vand.u32 %v56, 4294901760
  %505 = vmatmul.mubr.f32.gmra.mxu0 %v504
  %v506 = vpop.f32.mrf.mxu0
  %v507 = vadd.f32 %v230, %v506
  %v508 = vpop.f32.mrf.mxu0
  %509 = vmatprep.mubr.f32.mxu0 0.0
  %v510 = vand.u32 %v57, 4294901760
  %511 = vmatmul.mubr.f32.gmra.mxu0 %v510
  %v512 = vpop.f32.mrf.mxu0
  %v513 = vadd.f32 %v240, %v512
  %v514 = vpop.f32.mrf.mxu0
  %515 = vmatprep.mubr.f32.mxu0 0.0
  %v516 = vand.u32 %v58, 4294901760
  %517 = vmatmul.mubr.f32.gmra.mxu0 %v516
  %v518 = vpop.f32.mrf.mxu0
  %v519 = vadd.f32 %v250, %v518
  %v520 = vpop.f32.mrf.mxu0
  %521 = vmatprep.mubr.f32.mxu0 0.0
  %v522 = vand.u32 %v59, 4294901760
  %523 = vmatmul.mubr.f32.gmra.mxu0 %v522
  %v524 = vpop.f32.mrf.mxu0
  %v525 = vadd.f32 %v260, %v524
  %v526 = vpop.f32.mrf.mxu0
  %527 = vmatprep.mubr.f32.mxu0 0.0
  %v528 = vand.u32 %v60, 4294901760
  %529 = vmatmul.mubr.f32.gmra.mxu0 %v528
  %v530 = vpop.f32.mrf.mxu0
  %v531 = vadd.f32 %v270, %v530
  %v532 = vpop.f32.mrf.mxu0
  %533 = vmatprep.mubr.f32.mxu0 0.0
  %v534 = vand.u32 %v61, 4294901760
  %535 = vmatmul.mubr.f32.gmra.mxu0 %v534
  %v536 = vpop.f32.mrf.mxu0
  %v537 = vadd.f32 %v280, %v536
  %v538 = vpop.f32.mrf.mxu0
  %539 = vmatprep.mubr.f32.mxu0 0.0
  %v540 = vand.u32 %v62, 4294901760
  %541 = vmatmul.mubr.f32.gmra.mxu0 %v540
  %v542 = vpop.f32.mrf.mxu0
  %v543 = vadd.f32 %v290, %v542
  %v544 = vpop.f32.mrf.mxu0
  %545 = vmatprep.mubr.f32.mxu0 0.0
  %v546 = vand.u32 %v63, 4294901760
  %547 = vmatmul.mubr.f32.gmra.mxu0 %v546
  %v548 = vpop.f32.mrf.mxu0
  %v549 = vadd.f32 %v300, %v548
  %v550 = vpop.f32.mrf.mxu0
  %551 = vmatprep.mubr.f32.mxu0 0.0
  %v552 = vand.u32 %v64, 4294901760
  %553 = vmatmul.mubr.f32.gmra.mxu0 %v552
  %v554 = vpop.f32.mrf.mxu0
  %v555 = vadd.f32 %v310, %v554
  %v556 = vpop.f32.mrf.mxu0
  %557 = vmatprep.mubr.f32.mxu0 0.0
  %v558 = vand.u32 %v65, 4294901760
  %559 = vmatmul.mubr.f32.gmra.mxu0 %v558
  %v560 = vpop.f32.mrf.mxu0
  %v561 = vadd.f32 %v320, %v560
  %v562 = vpop.f32.mrf.mxu0
  %563 = vdwg.mxu0
  %564 = vmatprep.subr.mxu0 0.0
  %v565 = vand.u32 %v81, 4294901760
  %v566 = vsub.f32 %v81, %v565
  %567 = vmatpush1.msra.mxu0 %v566
  %568 = vmatprep.subr.mxu0 0.0
  %v569 = vand.u32 %v80, 4294901760
  %v570 = vsub.f32 %v80, %v569
  %571 = vmatpush1.msra.mxu0 %v570
  %572 = vmatprep.subr.mxu0 0.0
  %v573 = vand.u32 %v79, 4294901760
  %v574 = vsub.f32 %v79, %v573
  %575 = vmatpush1.msra.mxu0 %v574
  %576 = vmatprep.subr.mxu0 0.0
  %v577 = vand.u32 %v78, 4294901760
  %v578 = vsub.f32 %v78, %v577
  %579 = vmatpush1.msra.mxu0 %v578
  %580 = vmatprep.subr.mxu0 0.0
  %v581 = vand.u32 %v77, 4294901760
  %v582 = vsub.f32 %v77, %v581
  %583 = vmatpush1.msra.mxu0 %v582
  %584 = vmatprep.subr.mxu0 0.0
  %v585 = vand.u32 %v76, 4294901760
  %v586 = vsub.f32 %v76, %v585
  %587 = vmatpush1.msra.mxu0 %v586
  %588 = vmatprep.subr.mxu0 0.0
  %v589 = vand.u32 %v75, 4294901760
  %v590 = vsub.f32 %v75, %v589
  %591 = vmatpush1.msra.mxu0 %v590
  %592 = vmatprep.subr.mxu0 0.0
  %v593 = vand.u32 %v74, 4294901760
  %v594 = vsub.f32 %v74, %v593
  %595 = vmatpush1.msra.mxu0 %v594
  %596 = vmatprep.subr.mxu0 0.0
  %v597 = vand.u32 %v73, 4294901760
  %v598 = vsub.f32 %v73, %v597
  %599 = vmatpush1.msra.mxu0 %v598
  %600 = vmatprep.subr.mxu0 0.0
  %v601 = vand.u32 %v72, 4294901760
  %v602 = vsub.f32 %v72, %v601
  %603 = vmatpush1.msra.mxu0 %v602
  %604 = vmatprep.subr.mxu0 0.0
  %v605 = vand.u32 %v71, 4294901760
  %v606 = vsub.f32 %v71, %v605
  %607 = vmatpush1.msra.mxu0 %v606
  %608 = vmatprep.subr.mxu0 0.0
  %v609 = vand.u32 %v70, 4294901760
  %v610 = vsub.f32 %v70, %v609
  %611 = vmatpush1.msra.mxu0 %v610
  %612 = vmatprep.subr.mxu0 0.0
  %v613 = vand.u32 %v69, 4294901760
  %v614 = vsub.f32 %v69, %v613
  %615 = vmatpush1.msra.mxu0 %v614
  %616 = vmatprep.subr.mxu0 0.0
  %v617 = vand.u32 %v68, 4294901760
  %v618 = vsub.f32 %v68, %v617
  %619 = vmatpush1.msra.mxu0 %v618
  %620 = vmatprep.subr.mxu0 0.0
  %v621 = vand.u32 %v67, 4294901760
  %v622 = vsub.f32 %v67, %v621
  %623 = vmatpush1.msra.mxu0 %v622
  %624 = vmatprep.subr.mxu0 0.0
  %v625 = vand.u32 %v66, 4294901760
  %v626 = vsub.f32 %v66, %v625
  %627 = vmatpush1.msra.mxu0 %v626
  %628 = vmatprep.subr.mxu0 0.0
  %629 = vmatpush2.msra.mxu0 0.0
  %630 = vmatprep.subr.mxu0 0.0
  %631 = vmatpush2.msra.mxu0 0.0
  %632 = vmatprep.subr.mxu0 0.0
  %633 = vmatpush2.msra.mxu0 0.0
  %634 = vmatprep.subr.mxu0 0.0
  %635 = vmatpush2.msra.mxu0 0.0
  %636 = vmatprep.subr.mxu0 0.0
  %637 = vmatpush2.msra.mxu0 0.0
  %638 = vmatprep.subr.mxu0 0.0
  %639 = vmatpush2.msra.mxu0 0.0
  %640 = vmatprep.subr.mxu0 0.0
  %641 = vmatpush2.msra.mxu0 0.0
  %642 = vmatprep.subr.mxu0 0.0
  %643 = vmatpush2.msra.mxu0 0.0
  %644 = vmatprep.subr.mxu0 0.0
  %645 = vmatpush2.msra.mxu0 0.0
  %646 = vmatprep.subr.mxu0 0.0
  %647 = vmatpush2.msra.mxu0 0.0
  %648 = vmatprep.subr.mxu0 0.0
  %649 = vmatpush2.msra.mxu0 0.0
  %650 = vmatprep.subr.mxu0 0.0
  %651 = vmatpush2.msra.mxu0 0.0
  %652 = vmatprep.subr.mxu0 0.0
  %653 = vmatpush2.msra.mxu0 0.0
  %654 = vmatprep.subr.mxu0 0.0
  %655 = vmatpush2.msra.mxu0 0.0
  %656 = vmatprep.subr.mxu0 0.0
  %657 = vmatpush2.msra.mxu0 0.0
  %658 = vmatprep.subr.mxu0 0.0
  %659 = vmatpush2.msra.mxu0 0.0
  %660 = vmatprep.mubr.f32.mxu0 0.0
  %v661 = vand.u32 %v50, 4294901760
  %v662 = vsub.f32 %v50, %v661
  %663 = vmatmul.mubr.f32.gmra.mxu0 %v662
  %v664 = vpop.f32.mrf.mxu0
  %v665 = vadd.f32 %v471, %v664
  %v666 = vpop.f32.mrf.mxu0
  %667 = vmatprep.mubr.f32.mxu0 0.0
  %v668 = vand.u32 %v51, 4294901760
  %v669 = vsub.f32 %v51, %v668
  %670 = vmatmul.mubr.f32.gmra.mxu0 %v669
  %v671 = vpop.f32.mrf.mxu0
  %v672 = vadd.f32 %v477, %v671
  %v673 = vpop.f32.mrf.mxu0
  %674 = vmatprep.mubr.f32.mxu0 0.0
  %v675 = vand.u32 %v52, 4294901760
  %v676 = vsub.f32 %v52, %v675
  %677 = vmatmul.mubr.f32.gmra.mxu0 %v676
  %v678 = vpop.f32.mrf.mxu0
  %v679 = vadd.f32 %v483, %v678
  %v680 = vpop.f32.mrf.mxu0
  %681 = vmatprep.mubr.f32.mxu0 0.0
  %v682 = vand.u32 %v53, 4294901760
  %v683 = vsub.f32 %v53, %v682
  %684 = vmatmul.mubr.f32.gmra.mxu0 %v683
  %v685 = vpop.f32.mrf.mxu0
  %v686 = vadd.f32 %v489, %v685
  %v687 = vpop.f32.mrf.mxu0
  %688 = vmatprep.mubr.f32.mxu0 0.0
  %v689 = vand.u32 %v54, 4294901760
  %v690 = vsub.f32 %v54, %v689
  %691 = vmatmul.mubr.f32.gmra.mxu0 %v690
  %v692 = vpop.f32.mrf.mxu0
  %v693 = vadd.f32 %v495, %v692
  %v694 = vpop.f32.mrf.mxu0
  %695 = vmatprep.mubr.f32.mxu0 0.0
  %v696 = vand.u32 %v55, 4294901760
  %v697 = vsub.f32 %v55, %v696
  %698 = vmatmul.mubr.f32.gmra.mxu0 %v697
  %v699 = vpop.f32.mrf.mxu0
  %v700 = vadd.f32 %v501, %v699
  %v701 = vpop.f32.mrf.mxu0
  %702 = vmatprep.mubr.f32.mxu0 0.0
  %v703 = vand.u32 %v56, 4294901760
  %v704 = vsub.f32 %v56, %v703
  %705 = vmatmul.mubr.f32.gmra.mxu0 %v704
  %v706 = vpop.f32.mrf.mxu0
  %v707 = vadd.f32 %v507, %v706
  %v708 = vpop.f32.mrf.mxu0
  %709 = vmatprep.mubr.f32.mxu0 0.0
  %v710 = vand.u32 %v57, 4294901760
  %v711 = vsub.f32 %v57, %v710
  %712 = vmatmul.mubr.f32.gmra.mxu0 %v711
  %v713 = vpop.f32.mrf.mxu0
  %v714 = vadd.f32 %v513, %v713
  %v715 = vpop.f32.mrf.mxu0
  %716 = vmatprep.mubr.f32.mxu0 0.0
  %v717 = vand.u32 %v58, 4294901760
  %v718 = vsub.f32 %v58, %v717
  %719 = vmatmul.mubr.f32.gmra.mxu0 %v718
  %v720 = vpop.f32.mrf.mxu0
  %v721 = vadd.f32 %v519, %v720
  %v722 = vpop.f32.mrf.mxu0
  %723 = vmatprep.mubr.f32.mxu0 0.0
  %v724 = vand.u32 %v59, 4294901760
  %v725 = vsub.f32 %v59, %v724
  %726 = vmatmul.mubr.f32.gmra.mxu0 %v725
  %v727 = vpop.f32.mrf.mxu0
  %v728 = vadd.f32 %v525, %v727
  %v729 = vpop.f32.mrf.mxu0
  %730 = vmatprep.mubr.f32.mxu0 0.0
  %v731 = vand.u32 %v60, 4294901760
  %v732 = vsub.f32 %v60, %v731
  %733 = vmatmul.mubr.f32.gmra.mxu0 %v732
  %v734 = vpop.f32.mrf.mxu0
  %v735 = vadd.f32 %v531, %v734
  %v736 = vpop.f32.mrf.mxu0
  %737 = vmatprep.mubr.f32.mxu0 0.0
  %v738 = vand.u32 %v61, 4294901760
  %v739 = vsub.f32 %v61, %v738
  %740 = vmatmul.mubr.f32.gmra.mxu0 %v739
  %v741 = vpop.f32.mrf.mxu0
  %v742 = vadd.f32 %v537, %v741
  %v743 = vpop.f32.mrf.mxu0
  %744 = vmatprep.mubr.f32.mxu0 0.0
  %v745 = vand.u32 %v62, 4294901760
  %v746 = vsub.f32 %v62, %v745
  %747 = vmatmul.mubr.f32.gmra.mxu0 %v746
  %v748 = vpop.f32.mrf.mxu0
  %v749 = vadd.f32 %v543, %v748
  %v750 = vpop.f32.mrf.mxu0
  %751 = vmatprep.mubr.f32.mxu0 0.0
  %v752 = vand.u32 %v63, 4294901760
  %v753 = vsub.f32 %v63, %v752
  %754 = vmatmul.mubr.f32.gmra.mxu0 %v753
  %v755 = vpop.f32.mrf.mxu0
  %v756 = vadd.f32 %v549, %v755
  %v757 = vpop.f32.mrf.mxu0
  %758 = vmatprep.mubr.f32.mxu0 0.0
  %v759 = vand.u32 %v64, 4294901760
  %v760 = vsub.f32 %v64, %v759
  %761 = vmatmul.mubr.f32.gmra.mxu0 %v760
  %v762 = vpop.f32.mrf.mxu0
  %v763 = vadd.f32 %v555, %v762
  %v764 = vpop.f32.mrf.mxu0
  %765 = vmatprep.mubr.f32.mxu0 0.0
  %v766 = vand.u32 %v65, 4294901760
  %v767 = vsub.f32 %v65, %v766
  %768 = vmatmul.mubr.f32.gmra.mxu0 %v767
  %v769 = vpop.f32.mrf.mxu0
  %v770 = vadd.f32 %v561, %v769
  %v771 = vpop.f32.mrf.mxu0
  %772 = vdwg.mxu0
  %773 = vmatprep.subr.mxu0 0.0
  %v774 = vand.u32 %v81, 4294901760
  %775 = vmatpush1.msra.mxu0 %v774
  %776 = vmatprep.subr.mxu0 0.0
  %v777 = vand.u32 %v80, 4294901760
  %778 = vmatpush1.msra.mxu0 %v777
  %779 = vmatprep.subr.mxu0 0.0
  %v780 = vand.u32 %v79, 4294901760
  %781 = vmatpush1.msra.mxu0 %v780
  %782 = vmatprep.subr.mxu0 0.0
  %v783 = vand.u32 %v78, 4294901760
  %784 = vmatpush1.msra.mxu0 %v783
  %785 = vmatprep.subr.mxu0 0.0
  %v786 = vand.u32 %v77, 4294901760
  %787 = vmatpush1.msra.mxu0 %v786
  %788 = vmatprep.subr.mxu0 0.0
  %v789 = vand.u32 %v76, 4294901760
  %790 = vmatpush1.msra.mxu0 %v789
  %791 = vmatprep.subr.mxu0 0.0
  %v792 = vand.u32 %v75, 4294901760
  %793 = vmatpush1.msra.mxu0 %v792
  %794 = vmatprep.subr.mxu0 0.0
  %v795 = vand.u32 %v74, 4294901760
  %796 = vmatpush1.msra.mxu0 %v795
  %797 = vmatprep.subr.mxu0 0.0
  %v798 = vand.u32 %v73, 4294901760
  %799 = vmatpush1.msra.mxu0 %v798
  %800 = vmatprep.subr.mxu0 0.0
  %v801 = vand.u32 %v72, 4294901760
  %802 = vmatpush1.msra.mxu0 %v801
  %803 = vmatprep.subr.mxu0 0.0
  %v804 = vand.u32 %v71, 4294901760
  %805 = vmatpush1.msra.mxu0 %v804
  %806 = vmatprep.subr.mxu0 0.0
  %v807 = vand.u32 %v70, 4294901760
  %808 = vmatpush1.msra.mxu0 %v807
  %809 = vmatprep.subr.mxu0 0.0
  %v810 = vand.u32 %v69, 4294901760
  %811 = vmatpush1.msra.mxu0 %v810
  %812 = vmatprep.subr.mxu0 0.0
  %v813 = vand.u32 %v68, 4294901760
  %814 = vmatpush1.msra.mxu0 %v813
  %815 = vmatprep.subr.mxu0 0.0
  %v816 = vand.u32 %v67, 4294901760
  %817 = vmatpush1.msra.mxu0 %v816
  %818 = vmatprep.subr.mxu0 0.0
  %v819 = vand.u32 %v66, 4294901760
  %820 = vmatpush1.msra.mxu0 %v819
  %821 = vmatprep.subr.mxu0 0.0
  %822 = vmatpush2.msra.mxu0 0.0
  %823 = vmatprep.subr.mxu0 0.0
  %824 = vmatpush2.msra.mxu0 0.0
  %825 = vmatprep.subr.mxu0 0.0
  %826 = vmatpush2.msra.mxu0 0.0
  %827 = vmatprep.subr.mxu0 0.0
  %828 = vmatpush2.msra.mxu0 0.0
  %829 = vmatprep.subr.mxu0 0.0
  %830 = vmatpush2.msra.mxu0 0.0
  %831 = vmatprep.subr.mxu0 0.0
  %832 = vmatpush2.msra.mxu0 0.0
  %833 = vmatprep.subr.mxu0 0.0
  %834 = vmatpush2.msra.mxu0 0.0
  %835 = vmatprep.subr.mxu0 0.0
  %836 = vmatpush2.msra.mxu0 0.0
  %837 = vmatprep.subr.mxu0 0.0
  %838 = vmatpush2.msra.mxu0 0.0
  %839 = vmatprep.subr.mxu0 0.0
  %840 = vmatpush2.msra.mxu0 0.0
  %841 = vmatprep.subr.mxu0 0.0
  %842 = vmatpush2.msra.mxu0 0.0
  %843 = vmatprep.subr.mxu0 0.0
  %844 = vmatpush2.msra.mxu0 0.0
  %845 = vmatprep.subr.mxu0 0.0
  %846 = vmatpush2.msra.mxu0 0.0
  %847 = vmatprep.subr.mxu0 0.0
  %848 = vmatpush2.msra.mxu0 0.0
  %849 = vmatprep.subr.mxu0 0.0
  %850 = vmatpush2.msra.mxu0 0.0
  %851 = vmatprep.subr.mxu0 0.0
  %852 = vmatpush2.msra.mxu0 0.0
  %853 = vmatprep.mubr.f32.mxu0 0.0
  %v854 = vand.u32 %v50, 4294901760
  %v855 = vsub.f32 %v50, %v854
  %v856 = vand.u32 %v855, 4294901760
  %857 = vmatmul.mubr.f32.gmra.mxu0 %v856
  %v858 = vpop.f32.mrf.mxu0
  %v859 = vadd.f32 %v665, %v858
  %v860 = vpop.f32.mrf.mxu0
  %861 = vmatprep.mubr.f32.mxu0 0.0
  %v862 = vand.u32 %v51, 4294901760
  %v863 = vsub.f32 %v51, %v862
  %v864 = vand.u32 %v863, 4294901760
  %865 = vmatmul.mubr.f32.gmra.mxu0 %v864
  %v866 = vpop.f32.mrf.mxu0
  %v867 = vadd.f32 %v672, %v866
  %v868 = vpop.f32.mrf.mxu0
  %869 = vmatprep.mubr.f32.mxu0 0.0
  %v870 = vand.u32 %v52, 4294901760
  %v871 = vsub.f32 %v52, %v870
  %v872 = vand.u32 %v871, 4294901760
  %873 = vmatmul.mubr.f32.gmra.mxu0 %v872
  %v874 = vpop.f32.mrf.mxu0
  %v875 = vadd.f32 %v679, %v874
  %v876 = vpop.f32.mrf.mxu0
  %877 = vmatprep.mubr.f32.mxu0 0.0
  %v878 = vand.u32 %v53, 4294901760
  %v879 = vsub.f32 %v53, %v878
  %v880 = vand.u32 %v879, 4294901760
  %881 = vmatmul.mubr.f32.gmra.mxu0 %v880
  %v882 = vpop.f32.mrf.mxu0
  %v883 = vadd.f32 %v686, %v882
  %v884 = vpop.f32.mrf.mxu0
  %885 = vmatprep.mubr.f32.mxu0 0.0
  %v886 = vand.u32 %v54, 4294901760
  %v887 = vsub.f32 %v54, %v886
  %v888 = vand.u32 %v887, 4294901760
  %889 = vmatmul.mubr.f32.gmra.mxu0 %v888
  %v890 = vpop.f32.mrf.mxu0
  %v891 = vadd.f32 %v693, %v890
  %v892 = vpop.f32.mrf.mxu0
  %893 = vmatprep.mubr.f32.mxu0 0.0
  %v894 = vand.u32 %v55, 4294901760
  %v895 = vsub.f32 %v55, %v894
  %v896 = vand.u32 %v895, 4294901760
  %897 = vmatmul.mubr.f32.gmra.mxu0 %v896
  %v898 = vpop.f32.mrf.mxu0
  %v899 = vadd.f32 %v700, %v898
  %v900 = vpop.f32.mrf.mxu0
  %901 = vmatprep.mubr.f32.mxu0 0.0
  %v902 = vand.u32 %v56, 4294901760
  %v903 = vsub.f32 %v56, %v902
  %v904 = vand.u32 %v903, 4294901760
  %905 = vmatmul.mubr.f32.gmra.mxu0 %v904
  %v906 = vpop.f32.mrf.mxu0
  %v907 = vadd.f32 %v707, %v906
  %v908 = vpop.f32.mrf.mxu0
  %909 = vmatprep.mubr.f32.mxu0 0.0
  %v910 = vand.u32 %v57, 4294901760
  %v911 = vsub.f32 %v57, %v910
  %v912 = vand.u32 %v911, 4294901760
  %913 = vmatmul.mubr.f32.gmra.mxu0 %v912
  %v914 = vpop.f32.mrf.mxu0
  %v915 = vadd.f32 %v714, %v914
  %v916 = vpop.f32.mrf.mxu0
  %917 = vmatprep.mubr.f32.mxu0 0.0
  %v918 = vand.u32 %v58, 4294901760
  %v919 = vsub.f32 %v58, %v918
  %v920 = vand.u32 %v919, 4294901760
  %921 = vmatmul.mubr.f32.gmra.mxu0 %v920
  %v922 = vpop.f32.mrf.mxu0
  %v923 = vadd.f32 %v721, %v922
  %v924 = vpop.f32.mrf.mxu0
  %925 = vmatprep.mubr.f32.mxu0 0.0
  %v926 = vand.u32 %v59, 4294901760
  %v927 = vsub.f32 %v59, %v926
  %v928 = vand.u32 %v927, 4294901760
  %929 = vmatmul.mubr.f32.gmra.mxu0 %v928
  %v930 = vpop.f32.mrf.mxu0
  %v931 = vadd.f32 %v728, %v930
  %v932 = vpop.f32.mrf.mxu0
  %933 = vmatprep.mubr.f32.mxu0 0.0
  %v934 = vand.u32 %v60, 4294901760
  %v935 = vsub.f32 %v60, %v934
  %v936 = vand.u32 %v935, 4294901760
  %937 = vmatmul.mubr.f32.gmra.mxu0 %v936
  %v938 = vpop.f32.mrf.mxu0
  %v939 = vadd.f32 %v735, %v938
  %v940 = vpop.f32.mrf.mxu0
  %941 = vmatprep.mubr.f32.mxu0 0.0
  %v942 = vand.u32 %v61, 4294901760
  %v943 = vsub.f32 %v61, %v942
  %v944 = vand.u32 %v943, 4294901760
  %945 = vmatmul.mubr.f32.gmra.mxu0 %v944
  %v946 = vpop.f32.mrf.mxu0
  %v947 = vadd.f32 %v742, %v946
  %v948 = vpop.f32.mrf.mxu0
  %949 = vmatprep.mubr.f32.mxu0 0.0
  %v950 = vand.u32 %v62, 4294901760
  %v951 = vsub.f32 %v62, %v950
  %v952 = vand.u32 %v951, 4294901760
  %953 = vmatmul.mubr.f32.gmra.mxu0 %v952
  %v954 = vpop.f32.mrf.mxu0
  %v955 = vadd.f32 %v749, %v954
  %v956 = vpop.f32.mrf.mxu0
  %957 = vmatprep.mubr.f32.mxu0 0.0
  %v958 = vand.u32 %v63, 4294901760
  %v959 = vsub.f32 %v63, %v958
  %v960 = vand.u32 %v959, 4294901760
  %961 = vmatmul.mubr.f32.gmra.mxu0 %v960
  %v962 = vpop.f32.mrf.mxu0
  %v963 = vadd.f32 %v756, %v962
  %v964 = vpop.f32.mrf.mxu0
  %965 = vmatprep.mubr.f32.mxu0 0.0
  %v966 = vand.u32 %v64, 4294901760
  %v967 = vsub.f32 %v64, %v966
  %v968 = vand.u32 %v967, 4294901760
  %969 = vmatmul.mubr.f32.gmra.mxu0 %v968
  %v970 = vpop.f32.mrf.mxu0
  %v971 = vadd.f32 %v763, %v970
  %v972 = vpop.f32.mrf.mxu0
  %973 = vmatprep.mubr.f32.mxu0 0.0
  %v974 = vand.u32 %v65, 4294901760
  %v975 = vsub.f32 %v65, %v974
  %v976 = vand.u32 %v975, 4294901760
  %977 = vmatmul.mubr.f32.gmra.mxu0 %v976
  %v978 = vpop.f32.mrf.mxu0
  %v979 = vadd.f32 %v770, %v978
  %v980 = vpop.f32.mrf.mxu0
  %981 = vdwg.mxu0
  %982 = vmatprep.subr.mxu0 0.0
  %v983 = vand.u32 %v81, 4294901760
  %v984 = vsub.f32 %v81, %v983
  %v985 = vand.u32 %v984, 4294901760
  %986 = vmatpush1.msra.mxu0 %v985
  %987 = vmatprep.subr.mxu0 0.0
  %v988 = vand.u32 %v80, 4294901760
  %v989 = vsub.f32 %v80, %v988
  %v990 = vand.u32 %v989, 4294901760
  %991 = vmatpush1.msra.mxu0 %v990
  %992 = vmatprep.subr.mxu0 0.0
  %v993 = vand.u32 %v79, 4294901760
  %v994 = vsub.f32 %v79, %v993
  %v995 = vand.u32 %v994, 4294901760
  %996 = vmatpush1.msra.mxu0 %v995
  %997 = vmatprep.subr.mxu0 0.0
  %v998 = vand.u32 %v78, 4294901760
  %v999 = vsub.f32 %v78, %v998
  %v1000 = vand.u32 %v999, 4294901760
  %1001 = vmatpush1.msra.mxu0 %v1000
  %1002 = vmatprep.subr.mxu0 0.0
  %v1003 = vand.u32 %v77, 4294901760
  %v1004 = vsub.f32 %v77, %v1003
  %v1005 = vand.u32 %v1004, 4294901760
  %1006 = vmatpush1.msra.mxu0 %v1005
  %1007 = vmatprep.subr.mxu0 0.0
  %v1008 = vand.u32 %v76, 4294901760
  %v1009 = vsub.f32 %v76, %v1008
  %v1010 = vand.u32 %v1009, 4294901760
  %1011 = vmatpush1.msra.mxu0 %v1010
  %1012 = vmatprep.subr.mxu0 0.0
  %v1013 = vand.u32 %v75, 4294901760
  %v1014 = vsub.f32 %v75, %v1013
  %v1015 = vand.u32 %v1014, 4294901760
  %1016 = vmatpush1.msra.mxu0 %v1015
  %1017 = vmatprep.subr.mxu0 0.0
  %v1018 = vand.u32 %v74, 4294901760
  %v1019 = vsub.f32 %v74, %v1018
  %v1020 = vand.u32 %v1019, 4294901760
  %1021 = vmatpush1.msra.mxu0 %v1020
  %1022 = vmatprep.subr.mxu0 0.0
  %v1023 = vand.u32 %v73, 4294901760
  %v1024 = vsub.f32 %v73, %v1023
  %v1025 = vand.u32 %v1024, 4294901760
  %1026 = vmatpush1.msra.mxu0 %v1025
  %1027 = vmatprep.subr.mxu0 0.0
  %v1028 = vand.u32 %v72, 4294901760
  %v1029 = vsub.f32 %v72, %v1028
  %v1030 = vand.u32 %v1029, 4294901760
  %1031 = vmatpush1.msra.mxu0 %v1030
  %1032 = vmatprep.subr.mxu0 0.0
  %v1033 = vand.u32 %v71, 4294901760
  %v1034 = vsub.f32 %v71, %v1033
  %v1035 = vand.u32 %v1034, 4294901760
  %1036 = vmatpush1.msra.mxu0 %v1035
  %1037 = vmatprep.subr.mxu0 0.0
  %v1038 = vand.u32 %v70, 4294901760
  %v1039 = vsub.f32 %v70, %v1038
  %v1040 = vand.u32 %v1039, 4294901760
  %1041 = vmatpush1.msra.mxu0 %v1040
  %1042 = vmatprep.subr.mxu0 0.0
  %v1043 = vand.u32 %v69, 4294901760
  %v1044 = vsub.f32 %v69, %v1043
  %v1045 = vand.u32 %v1044, 4294901760
  %1046 = vmatpush1.msra.mxu0 %v1045
  %1047 = vmatprep.subr.mxu0 0.0
  %v1048 = vand.u32 %v68, 4294901760
  %v1049 = vsub.f32 %v68, %v1048
  %v1050 = vand.u32 %v1049, 4294901760
  %1051 = vmatpush1.msra.mxu0 %v1050
  %1052 = vmatprep.subr.mxu0 0.0
  %v1053 = vand.u32 %v67, 4294901760
  %v1054 = vsub.f32 %v67, %v1053
  %v1055 = vand.u32 %v1054, 4294901760
  %1056 = vmatpush1.msra.mxu0 %v1055
  %1057 = vmatprep.subr.mxu0 0.0
  %v1058 = vand.u32 %v66, 4294901760
  %v1059 = vsub.f32 %v66, %v1058
  %v1060 = vand.u32 %v1059, 4294901760
  %1061 = vmatpush1.msra.mxu0 %v1060
  %1062 = vmatprep.subr.mxu0 0.0
  %1063 = vmatpush2.msra.mxu0 0.0
  %1064 = vmatprep.subr.mxu0 0.0
  %1065 = vmatpush2.msra.mxu0 0.0
  %1066 = vmatprep.subr.mxu0 0.0
  %1067 = vmatpush2.msra.mxu0 0.0
  %1068 = vmatprep.subr.mxu0 0.0
  %1069 = vmatpush2.msra.mxu0 0.0
  %1070 = vmatprep.subr.mxu0 0.0
  %1071 = vmatpush2.msra.mxu0 0.0
  %1072 = vmatprep.subr.mxu0 0.0
  %1073 = vmatpush2.msra.mxu0 0.0
  %1074 = vmatprep.subr.mxu0 0.0
  %1075 = vmatpush2.msra.mxu0 0.0
  %1076 = vmatprep.subr.mxu0 0.0
  %1077 = vmatpush2.msra.mxu0 0.0
  %1078 = vmatprep.subr.mxu0 0.0
  %1079 = vmatpush2.msra.mxu0 0.0
  %1080 = vmatprep.subr.mxu0 0.0
  %1081 = vmatpush2.msra.mxu0 0.0
  %1082 = vmatprep.subr.mxu0 0.0
  %1083 = vmatpush2.msra.mxu0 0.0
  %1084 = vmatprep.subr.mxu0 0.0
  %1085 = vmatpush2.msra.mxu0 0.0
  %1086 = vmatprep.subr.mxu0 0.0
  %1087 = vmatpush2.msra.mxu0 0.0
  %1088 = vmatprep.subr.mxu0 0.0
  %1089 = vmatpush2.msra.mxu0 0.0
  %1090 = vmatprep.subr.mxu0 0.0
  %1091 = vmatpush2.msra.mxu0 0.0
  %1092 = vmatprep.subr.mxu0 0.0
  %1093 = vmatpush2.msra.mxu0 0.0
  %1094 = vmatprep.mubr.f32.mxu0 0.0
  %v1095 = vand.u32 %v50, 4294901760
  %1096 = vmatmul.mubr.f32.gmra.mxu0 %v1095
  %v1097 = vpop.f32.mrf.mxu0
  %v1098 = vadd.f32 %v859, %v1097
  %v1099 = vpop.f32.mrf.mxu0
  %1100 = vmatprep.mubr.f32.mxu0 0.0
  %v1101 = vand.u32 %v51, 4294901760
  %1102 = vmatmul.mubr.f32.gmra.mxu0 %v1101
  %v1103 = vpop.f32.mrf.mxu0
  %v1104 = vadd.f32 %v867, %v1103
  %v1105 = vpop.f32.mrf.mxu0
  %1106 = vmatprep.mubr.f32.mxu0 0.0
  %v1107 = vand.u32 %v52, 4294901760
  %1108 = vmatmul.mubr.f32.gmra.mxu0 %v1107
  %v1109 = vpop.f32.mrf.mxu0
  %v1110 = vadd.f32 %v875, %v1109
  %v1111 = vpop.f32.mrf.mxu0
  %1112 = vmatprep.mubr.f32.mxu0 0.0
  %v1113 = vand.u32 %v53, 4294901760
  %1114 = vmatmul.mubr.f32.gmra.mxu0 %v1113
  %v1115 = vpop.f32.mrf.mxu0
  %v1116 = vadd.f32 %v883, %v1115
  %v1117 = vpop.f32.mrf.mxu0
  %1118 = vmatprep.mubr.f32.mxu0 0.0
  %v1119 = vand.u32 %v54, 4294901760
  %1120 = vmatmul.mubr.f32.gmra.mxu0 %v1119
  %v1121 = vpop.f32.mrf.mxu0
  %v1122 = vadd.f32 %v891, %v1121
  %v1123 = vpop.f32.mrf.mxu0
  %1124 = vmatprep.mubr.f32.mxu0 0.0
  %v1125 = vand.u32 %v55, 4294901760
  %1126 = vmatmul.mubr.f32.gmra.mxu0 %v1125
  %v1127 = vpop.f32.mrf.mxu0
  %v1128 = vadd.f32 %v899, %v1127
  %v1129 = vpop.f32.mrf.mxu0
  %1130 = vmatprep.mubr.f32.mxu0 0.0
  %v1131 = vand.u32 %v56, 4294901760
  %1132 = vmatmul.mubr.f32.gmra.mxu0 %v1131
  %v1133 = vpop.f32.mrf.mxu0
  %v1134 = vadd.f32 %v907, %v1133
  %v1135 = vpop.f32.mrf.mxu0
  %1136 = vmatprep.mubr.f32.mxu0 0.0
  %v1137 = vand.u32 %v57, 4294901760
  %1138 = vmatmul.mubr.f32.gmra.mxu0 %v1137
  %v1139 = vpop.f32.mrf.mxu0
  %v1140 = vadd.f32 %v915, %v1139
  %v1141 = vpop.f32.mrf.mxu0
  %1142 = vmatprep.mubr.f32.mxu0 0.0
  %v1143 = vand.u32 %v58, 4294901760
  %1144 = vmatmul.mubr.f32.gmra.mxu0 %v1143
  %v1145 = vpop.f32.mrf.mxu0
  %v1146 = vadd.f32 %v923, %v1145
  %v1147 = vpop.f32.mrf.mxu0
  %1148 = vmatprep.mubr.f32.mxu0 0.0
  %v1149 = vand.u32 %v59, 4294901760
  %1150 = vmatmul.mubr.f32.gmra.mxu0 %v1149
  %v1151 = vpop.f32.mrf.mxu0
  %v1152 = vadd.f32 %v931, %v1151
  %v1153 = vpop.f32.mrf.mxu0
  %1154 = vmatprep.mubr.f32.mxu0 0.0
  %v1155 = vand.u32 %v60, 4294901760
  %1156 = vmatmul.mubr.f32.gmra.mxu0 %v1155
  %v1157 = vpop.f32.mrf.mxu0
  %v1158 = vadd.f32 %v939, %v1157
  %v1159 = vpop.f32.mrf.mxu0
  %1160 = vmatprep.mubr.f32.mxu0 0.0
  %v1161 = vand.u32 %v61, 4294901760
  %1162 = vmatmul.mubr.f32.gmra.mxu0 %v1161
  %v1163 = vpop.f32.mrf.mxu0
  %v1164 = vadd.f32 %v947, %v1163
  %v1165 = vpop.f32.mrf.mxu0
  %1166 = vmatprep.mubr.f32.mxu0 0.0
  %v1167 = vand.u32 %v62, 4294901760
  %1168 = vmatmul.mubr.f32.gmra.mxu0 %v1167
  %v1169 = vpop.f32.mrf.mxu0
  %v1170 = vadd.f32 %v955, %v1169
  %v1171 = vpop.f32.mrf.mxu0
  %1172 = vmatprep.mubr.f32.mxu0 0.0
  %v1173 = vand.u32 %v63, 4294901760
  %1174 = vmatmul.mubr.f32.gmra.mxu0 %v1173
  %v1175 = vpop.f32.mrf.mxu0
  %v1176 = vadd.f32 %v963, %v1175
  %v1177 = vpop.f32.mrf.mxu0
  %1178 = vmatprep.mubr.f32.mxu0 0.0
  %v1179 = vand.u32 %v64, 4294901760
  %1180 = vmatmul.mubr.f32.gmra.mxu0 %v1179
  %v1181 = vpop.f32.mrf.mxu0
  %v1182 = vadd.f32 %v971, %v1181
  %v1183 = vpop.f32.mrf.mxu0
  %1184 = vmatprep.mubr.f32.mxu0 0.0
  %v1185 = vand.u32 %v65, 4294901760
  %1186 = vmatmul.mubr.f32.gmra.mxu0 %v1185
  %v1187 = vpop.f32.mrf.mxu0
  %v1188 = vadd.f32 %v979, %v1187
  %v1189 = vpop.f32.mrf.mxu0
  %1190 = vdwg.mxu0
  %1191 = vmatprep.subr.mxu0 0.0
  %v1192 = vand.u32 %v81, 4294901760
  %1193 = vmatpush1.msra.mxu0 %v1192
  %1194 = vmatprep.subr.mxu0 0.0
  %v1195 = vand.u32 %v80, 4294901760
  %1196 = vmatpush1.msra.mxu0 %v1195
  %1197 = vmatprep.subr.mxu0 0.0
  %v1198 = vand.u32 %v79, 4294901760
  %1199 = vmatpush1.msra.mxu0 %v1198
  %1200 = vmatprep.subr.mxu0 0.0
  %v1201 = vand.u32 %v78, 4294901760
  %1202 = vmatpush1.msra.mxu0 %v1201
  %1203 = vmatprep.subr.mxu0 0.0
  %v1204 = vand.u32 %v77, 4294901760
  %1205 = vmatpush1.msra.mxu0 %v1204
  %1206 = vmatprep.subr.mxu0 0.0
  %v1207 = vand.u32 %v76, 4294901760
  %1208 = vmatpush1.msra.mxu0 %v1207
  %1209 = vmatprep.subr.mxu0 0.0
  %v1210 = vand.u32 %v75, 4294901760
  %1211 = vmatpush1.msra.mxu0 %v1210
  %1212 = vmatprep.subr.mxu0 0.0
  %v1213 = vand.u32 %v74, 4294901760
  %1214 = vmatpush1.msra.mxu0 %v1213
  %1215 = vmatprep.subr.mxu0 0.0
  %v1216 = vand.u32 %v73, 4294901760
  %1217 = vmatpush1.msra.mxu0 %v1216
  %1218 = vmatprep.subr.mxu0 0.0
  %v1219 = vand.u32 %v72, 4294901760
  %1220 = vmatpush1.msra.mxu0 %v1219
  %1221 = vmatprep.subr.mxu0 0.0
  %v1222 = vand.u32 %v71, 4294901760
  %1223 = vmatpush1.msra.mxu0 %v1222
  %1224 = vmatprep.subr.mxu0 0.0
  %v1225 = vand.u32 %v70, 4294901760
  %1226 = vmatpush1.msra.mxu0 %v1225
  %1227 = vmatprep.subr.mxu0 0.0
  %v1228 = vand.u32 %v69, 4294901760
  %1229 = vmatpush1.msra.mxu0 %v1228
  %1230 = vmatprep.subr.mxu0 0.0
  %v1231 = vand.u32 %v68, 4294901760
  %1232 = vmatpush1.msra.mxu0 %v1231
  %1233 = vmatprep.subr.mxu0 0.0
  %v1234 = vand.u32 %v67, 4294901760
  %1235 = vmatpush1.msra.mxu0 %v1234
  %1236 = vmatprep.subr.mxu0 0.0
  %v1237 = vand.u32 %v66, 4294901760
  %1238 = vmatpush1.msra.mxu0 %v1237
  %1239 = vmatprep.subr.mxu0 0.0
  %1240 = vmatpush2.msra.mxu0 0.0
  %1241 = vmatprep.subr.mxu0 0.0
  %1242 = vmatpush2.msra.mxu0 0.0
  %1243 = vmatprep.subr.mxu0 0.0
  %1244 = vmatpush2.msra.mxu0 0.0
  %1245 = vmatprep.subr.mxu0 0.0
  %1246 = vmatpush2.msra.mxu0 0.0
  %1247 = vmatprep.subr.mxu0 0.0
  %1248 = vmatpush2.msra.mxu0 0.0
  %1249 = vmatprep.subr.mxu0 0.0
  %1250 = vmatpush2.msra.mxu0 0.0
  %1251 = vmatprep.subr.mxu0 0.0
  %1252 = vmatpush2.msra.mxu0 0.0
  %1253 = vmatprep.subr.mxu0 0.0
  %1254 = vmatpush2.msra.mxu0 0.0
  %1255 = vmatprep.subr.mxu0 0.0
  %1256 = vmatpush2.msra.mxu0 0.0
  %1257 = vmatprep.subr.mxu0 0.0
  %1258 = vmatpush2.msra.mxu0 0.0
  %1259 = vmatprep.subr.mxu0 0.0
  %1260 = vmatpush2.msra.mxu0 0.0
  %1261 = vmatprep.subr.mxu0 0.0
  %1262 = vmatpush2.msra.mxu0 0.0
  %1263 = vmatprep.subr.mxu0 0.0
  %1264 = vmatpush2.msra.mxu0 0.0
  %1265 = vmatprep.subr.mxu0 0.0
  %1266 = vmatpush2.msra.mxu0 0.0
  %1267 = vmatprep.subr.mxu0 0.0
  %1268 = vmatpush2.msra.mxu0 0.0
  %1269 = vmatprep.subr.mxu0 0.0
  %1270 = vmatpush2.msra.mxu0 0.0
  %1271 = vmatprep.mubr.f32.mxu0 0.0
  %v1272 = vand.u32 %v50, 4294901760
  %1273 = vmatmul.mubr.f32.gmra.mxu0 %v1272
  %v1274 = vpop.f32.mrf.mxu0
  %v1275 = vadd.f32 %v1098, %v1274
  %v1276 = vpop.f32.mrf.mxu0
  %1277 = vmatprep.mubr.f32.mxu0 0.0
  %v1278 = vand.u32 %v51, 4294901760
  %1279 = vmatmul.mubr.f32.gmra.mxu0 %v1278
  %v1280 = vpop.f32.mrf.mxu0
  %v1281 = vadd.f32 %v1104, %v1280
  %v1282 = vpop.f32.mrf.mxu0
  %1283 = vmatprep.mubr.f32.mxu0 0.0
  %v1284 = vand.u32 %v52, 4294901760
  %1285 = vmatmul.mubr.f32.gmra.mxu0 %v1284
  %v1286 = vpop.f32.mrf.mxu0
  %v1287 = vadd.f32 %v1110, %v1286
  %v1288 = vpop.f32.mrf.mxu0
  %1289 = vmatprep.mubr.f32.mxu0 0.0
  %v1290 = vand.u32 %v53, 4294901760
  %1291 = vmatmul.mubr.f32.gmra.mxu0 %v1290
  %v1292 = vpop.f32.mrf.mxu0
  %v1293 = vadd.f32 %v1116, %v1292
  %v1294 = vpop.f32.mrf.mxu0
  %1295 = vmatprep.mubr.f32.mxu0 0.0
  %v1296 = vand.u32 %v54, 4294901760
  %1297 = vmatmul.mubr.f32.gmra.mxu0 %v1296
  %v1298 = vpop.f32.mrf.mxu0
  %v1299 = vadd.f32 %v1122, %v1298
  %v1300 = vpop.f32.mrf.mxu0
  %1301 = vmatprep.mubr.f32.mxu0 0.0
  %v1302 = vand.u32 %v55, 4294901760
  %1303 = vmatmul.mubr.f32.gmra.mxu0 %v1302
  %v1304 = vpop.f32.mrf.mxu0
  %v1305 = vadd.f32 %v1128, %v1304
  %v1306 = vpop.f32.mrf.mxu0
  %1307 = vmatprep.mubr.f32.mxu0 0.0
  %v1308 = vand.u32 %v56, 4294901760
  %1309 = vmatmul.mubr.f32.gmra.mxu0 %v1308
  %v1310 = vpop.f32.mrf.mxu0
  %v1311 = vadd.f32 %v1134, %v1310
  %v1312 = vpop.f32.mrf.mxu0
  %1313 = vmatprep.mubr.f32.mxu0 0.0
  %v1314 = vand.u32 %v57, 4294901760
  %1315 = vmatmul.mubr.f32.gmra.mxu0 %v1314
  %v1316 = vpop.f32.mrf.mxu0
  %v1317 = vadd.f32 %v1140, %v1316
  %v1318 = vpop.f32.mrf.mxu0
  %1319 = vmatprep.mubr.f32.mxu0 0.0
  %v1320 = vand.u32 %v58, 4294901760
  %1321 = vmatmul.mubr.f32.gmra.mxu0 %v1320
  %v1322 = vpop.f32.mrf.mxu0
  %v1323 = vadd.f32 %v1146, %v1322
  %v1324 = vpop.f32.mrf.mxu0
  %1325 = vmatprep.mubr.f32.mxu0 0.0
  %v1326 = vand.u32 %v59, 4294901760
  %1327 = vmatmul.mubr.f32.gmra.mxu0 %v1326
  %v1328 = vpop.f32.mrf.mxu0
  %v1329 = vadd.f32 %v1152, %v1328
  %v1330 = vpop.f32.mrf.mxu0
  %1331 = vmatprep.mubr.f32.mxu0 0.0
  %v1332 = vand.u32 %v60, 4294901760
  %1333 = vmatmul.mubr.f32.gmra.mxu0 %v1332
  %v1334 = vpop.f32.mrf.mxu0
  %v1335 = vadd.f32 %v1158, %v1334
  %v1336 = vpop.f32.mrf.mxu0
  %1337 = vmatprep.mubr.f32.mxu0 0.0
  %v1338 = vand.u32 %v61, 4294901760
  %1339 = vmatmul.mubr.f32.gmra.mxu0 %v1338
  %v1340 = vpop.f32.mrf.mxu0
  %v1341 = vadd.f32 %v1164, %v1340
  %v1342 = vpop.f32.mrf.mxu0
  %1343 = vmatprep.mubr.f32.mxu0 0.0
  %v1344 = vand.u32 %v62, 4294901760
  %1345 = vmatmul.mubr.f32.gmra.mxu0 %v1344
  %v1346 = vpop.f32.mrf.mxu0
  %v1347 = vadd.f32 %v1170, %v1346
  %v1348 = vpop.f32.mrf.mxu0
  %1349 = vmatprep.mubr.f32.mxu0 0.0
  %v1350 = vand.u32 %v63, 4294901760
  %1351 = vmatmul.mubr.f32.gmra.mxu0 %v1350
  %v1352 = vpop.f32.mrf.mxu0
  %v1353 = vadd.f32 %v1176, %v1352
  %v1354 = vpop.f32.mrf.mxu0
  %1355 = vmatprep.mubr.f32.mxu0 0.0
  %v1356 = vand.u32 %v64, 4294901760
  %1357 = vmatmul.mubr.f32.gmra.mxu0 %v1356
  %v1358 = vpop.f32.mrf.mxu0
  %v1359 = vadd.f32 %v1182, %v1358
  %v1360 = vpop.f32.mrf.mxu0
  %1361 = vmatprep.mubr.f32.mxu0 0.0
  %v1362 = vand.u32 %v65, 4294901760
  %1363 = vmatmul.mubr.f32.gmra.mxu0 %v1362
  %v1364 = vpop.f32.mrf.mxu0
  %v1365 = vadd.f32 %v1188, %v1364
  %v1366 = vpop.f32.mrf.mxu0
  %1367 = vdwg.mxu0
  %v1368 = vadd.f32 %v34, %v1275
  %v1369 = vadd.f32 %v35, %v1281
  %v1370 = vadd.f32 %v36, %v1287
  %v1371 = vadd.f32 %v37, %v1293
  %v1372 = vadd.f32 %v38, %v1299
  %v1373 = vadd.f32 %v39, %v1305
  %v1374 = vadd.f32 %v40, %v1311
  %v1375 = vadd.f32 %v41, %v1317
  %v1376 = vadd.f32 %v42, %v1323
  %v1377 = vadd.f32 %v43, %v1329
  %v1378 = vadd.f32 %v44, %v1335
  %v1379 = vadd.f32 %v45, %v1341
  %v1380 = vadd.f32 %v46, %v1347
  %v1381 = vadd.f32 %v47, %v1353
  %v1382 = vadd.f32 %v48, %v1359
  %v1383 = vadd.f32 %v49, %v1365
  %1384 = vst [vmem:[#allocation2] sm:$0xff] %v1368
  %1385 = vst [vmem:[#allocation2 + $0x8] sm:$0xff] %v1369
  %1386 = vst [vmem:[#allocation2 + $0x10] sm:$0xff] %v1370
  %1387 = vst [vmem:[#allocation2 + $0x18] sm:$0xff] %v1371
  %1388 = vst [vmem:[#allocation2 + $0x20] sm:$0xff] %v1372
  %1389 = vst [vmem:[#allocation2 + $0x28] sm:$0xff] %v1373
  %1390 = vst [vmem:[#allocation2 + $0x30] sm:$0xff] %v1374
  %1391 = vst [vmem:[#allocation2 + $0x38] sm:$0xff] %v1375
  %1392 = vst [vmem:[#allocation2 + $0x40] sm:$0xff] %v1376
  %1393 = vst [vmem:[#allocation2 + $0x48] sm:$0xff] %v1377
  %1394 = vst [vmem:[#allocation2 + $0x50] sm:$0xff] %v1378
  %1395 = vst [vmem:[#allocation2 + $0x58] sm:$0xff] %v1379
  %1396 = vst [vmem:[#allocation2 + $0x60] sm:$0xff] %v1380
  %1397 = vst [vmem:[#allocation2 + $0x68] sm:$0xff] %v1381
  %1398 = vst [vmem:[#allocation2 + $0x70] sm:$0xff] %v1382
  %1399 = vst [vmem:[#allocation2 + $0x78] sm:$0xff] %v1383
  // Predicated region
  $region18: #{deformable_cross_attention.8} parent=0 // pred_check
    %p1400 = pneg %p14
  $region19: #{deformable_cross_attention.8} parent=0 // pred_check_branch
    %1402 = sbr.rel (%p1400) target = $region21
  $region20: #{deformable_cross_attention.8} parent=0 // pred_region
    %v1403 = vld [vmem:[#allocation2] sm:$0xff]
    %v1404 = vld [vmem:[#allocation2 + $0x8] sm:$0xff]
    %v1405 = vld [vmem:[#allocation2 + $0x10] sm:$0xff]
    %v1406 = vld [vmem:[#allocation2 + $0x18] sm:$0xff]
    %v1407 = vld [vmem:[#allocation2 + $0x20] sm:$0xff]
    %v1408 = vld [vmem:[#allocation2 + $0x28] sm:$0xff]
    %v1409 = vld [vmem:[#allocation2 + $0x30] sm:$0xff]
    %v1410 = vld [vmem:[#allocation2 + $0x38] sm:$0xff]
    %v1411 = vld [vmem:[#allocation2 + $0x40] sm:$0xff]
    %v1412 = vld [vmem:[#allocation2 + $0x48] sm:$0xff]
    %v1413 = vld [vmem:[#allocation2 + $0x50] sm:$0xff]
    %v1414 = vld [vmem:[#allocation2 + $0x58] sm:$0xff]
    %v1415 = vld [vmem:[#allocation2 + $0x60] sm:$0xff]
    %v1416 = vld [vmem:[#allocation2 + $0x68] sm:$0xff]
    %v1417 = vld [vmem:[#allocation2 + $0x70] sm:$0xff]
    %v1418 = vld [vmem:[#allocation2 + $0x78] sm:$0xff]
    %v1419 = vld [vmem:[%s2] sm:$0x1]
    %v1421 = vlaneseq
    %v1422 = vshrl.u32 %v1421, 7
    %v1423 = vsub.s32 0, %v1422
    %v1424 = vrot.slane %v1419, %v1423
    %v1426 = vadd.f32 %v1403, %v1424
    %v1427 = vadd.f32 %v1404, %v1424
    %v1428 = vadd.f32 %v1405, %v1424
    %v1429 = vadd.f32 %v1406, %v1424
    %v1430 = vadd.f32 %v1407, %v1424
    %v1431 = vadd.f32 %v1408, %v1424
    %v1432 = vadd.f32 %v1409, %v1424
    %v1433 = vadd.f32 %v1410, %v1424
    %v1434 = vadd.f32 %v1411, %v1424
    %v1435 = vadd.f32 %v1412, %v1424
    %v1436 = vadd.f32 %v1413, %v1424
    %v1437 = vadd.f32 %v1414, %v1424
    %v1438 = vadd.f32 %v1415, %v1424
    %v1439 = vadd.f32 %v1416, %v1424
    %v1440 = vadd.f32 %v1417, %v1424
    %v1441 = vadd.f32 %v1418, %v1424
    %1442 = vst [vmem:[%s3] sm:$0xff] %v1426
    %1443 = vst [vmem:[%s3 + $0x8] sm:$0xff] %v1427
    %1444 = vst [vmem:[%s3 + $0x10] sm:$0xff] %v1428
    %1445 = vst [vmem:[%s3 + $0x18] sm:$0xff] %v1429
    %1446 = vst [vmem:[%s3 + $0x20] sm:$0xff] %v1430
    %1447 = vst [vmem:[%s3 + $0x28] sm:$0xff] %v1431
    %1448 = vst [vmem:[%s3 + $0x30] sm:$0xff] %v1432
    %1449 = vst [vmem:[%s3 + $0x38] sm:$0xff] %v1433
    %1450 = vst [vmem:[%s3 + $0x40] sm:$0xff] %v1434
    %1451 = vst [vmem:[%s3 + $0x48] sm:$0xff] %v1435
    %1452 = vst [vmem:[%s3 + $0x50] sm:$0xff] %v1436
    %1453 = vst [vmem:[%s3 + $0x58] sm:$0xff] %v1437
    %1454 = vst [vmem:[%s3 + $0x60] sm:$0xff] %v1438
    %1455 = vst [vmem:[%s3 + $0x68] sm:$0xff] %v1439
    %1456 = vst [vmem:[%s3 + $0x70] sm:$0xff] %v1440
    %1457 = vst [vmem:[%s3 + $0x78] sm:$0xff] %v1441
  $region21: #{deformable_cross_attention.8} parent=0 // pred_fallthru
    _
  // Predicated region
  $region22: #{deformable_cross_attention.8} parent=0 // pred_check
    _
  $region23: #{deformable_cross_attention.8} parent=0 // pred_check_branch
    %1459 = sbr.rel (0) target = $region25
  $region24: #{deformable_cross_attention.8} parent=0 // pred_region
    _
  $region25: #{deformable_cross_attention.8} parent=0 // pred_fallthru
    _
  // Predicated region
  $region26: #{deformable_cross_attention.8} parent=0 // pred_check
    _
  $region27: #{deformable_cross_attention.8} parent=0 // pred_check_branch
    %1461 = sbr.rel (0) target = $region29
  $region28: #{deformable_cross_attention.8} parent=0 // pred_region
    _
  $region29: #{deformable_cross_attention.8} parent=0 // pred_fallthru
    _

// kernel: deformable_cross_attention.9
$region0: #{deformable_cross_attention.9}
  #allocation0 [shape = 'u32[]', space=smem, size = 0x4, offset = 0x4, fixed_abs, tag = 'smem constant byte address 0x4 - core index']
  #allocation1 [shape = 'u32[144,128]{1,0:T(1,128)}', space=vmem, size = 0x12000, scoped, tag = 'internal scratch']
  #allocation2 [shape = 'f32[256,128]{1,0:T(8,128)}', space=vmem, size = 0x20000, scoped, tag = 'scratch operand']
  %s0 = inlined_call_operand.vmem [shape: f32[256,128], index: 0, kind: input, shape index: {}]
  %s1 = inlined_call_operand.vmem [shape: f32[128,128], index: 1, kind: input, shape index: {}]
  %s2 = inlined_call_operand.vmem [shape: f32[1,128], index: 2, kind: input, shape index: {}]
  %s3 = inlined_call_operand.vmem [shape: f32[256,128], index: 3, kind: output, shape index: {}]
  %s4 = sld [smem:[#allocation0]]
  $region30: #{deformable_cross_attention.9} parent=0
    _
  %s6 = ssub.s32 1, %s4
  %s7 = scalar_select 0, %s6, %s4
  // Predicated region
  $region2: #{deformable_cross_attention.9} parent=0 // pred_check
    _
  $region3: #{deformable_cross_attention.9} parent=0 // pred_check_branch
    %9 = sbr.rel (0) target = $region5
  $region4: #{deformable_cross_attention.9} parent=0 // pred_region
    _
  $region5: #{deformable_cross_attention.9} parent=0 // pred_fallthru
    _
  // Predicated region
  $region6: #{deformable_cross_attention.9} parent=0 // pred_check
    _
  $region7: #{deformable_cross_attention.9} parent=0 // pred_check_branch
    %11 = sbr.rel (0) target = $region9
  $region8: #{deformable_cross_attention.9} parent=0 // pred_region
    _
  $region9: #{deformable_cross_attention.9} parent=0 // pred_fallthru
    _
  // Predicated region
  $region10: #{deformable_cross_attention.9} parent=0 // pred_check
    _
  $region11: #{deformable_cross_attention.9} parent=0 // pred_check_branch
    %13 = sbr.rel (0) target = $region13
  $region12: #{deformable_cross_attention.9} parent=0 // pred_region
    _
  $region13: #{deformable_cross_attention.9} parent=0 // pred_fallthru
    _
  %p14 = scmp.eq.s32.totalorder 0, 0
  // Predicated region
  $region14: #{deformable_cross_attention.9} parent=0 // pred_check
    %p15 = pneg %p14
  $region15: #{deformable_cross_attention.9} parent=0 // pred_check_branch
    %17 = sbr.rel (%p15) target = $region17
  $region16: #{deformable_cross_attention.9} parent=0 // pred_region
    %18 = vst [vmem:[#allocation2] sm:$0xff] 0.0
    %19 = vst [vmem:[#allocation2 + $0x8] sm:$0xff] 0.0
    %20 = vst [vmem:[#allocation2 + $0x10] sm:$0xff] 0.0
    %21 = vst [vmem:[#allocation2 + $0x18] sm:$0xff] 0.0
    %22 = vst [vmem:[#allocation2 + $0x20] sm:$0xff] 0.0
    %23 = vst [vmem:[#allocation2 + $0x28] sm:$0xff] 0.0
    %24 = vst [vmem:[#allocation2 + $0x30] sm:$0xff] 0.0
    %25 = vst [vmem:[#allocation2 + $0x38] sm:$0xff] 0.0
    %26 = vst [vmem:[#allocation2 + $0x40] sm:$0xff] 0.0
    %27 = vst [vmem:[#allocation2 + $0x48] sm:$0xff] 0.0
    %28 = vst [vmem:[#allocation2 + $0x50] sm:$0xff] 0.0
    %29 = vst [vmem:[#allocation2 + $0x58] sm:$0xff] 0.0
    %30 = vst [vmem:[#allocation2 + $0x60] sm:$0xff] 0.0
    %31 = vst [vmem:[#allocation2 + $0x68] sm:$0xff] 0.0
    %32 = vst [vmem:[#allocation2 + $0x70] sm:$0xff] 0.0
    %33 = vst [vmem:[#allocation2 + $0x78] sm:$0xff] 0.0
    %34 = vst [vmem:[#allocation2 + $0x80] sm:$0xff] 0.0
    %35 = vst [vmem:[#allocation2 + $0x88] sm:$0xff] 0.0
    %36 = vst [vmem:[#allocation2 + $0x90] sm:$0xff] 0.0
    %37 = vst [vmem:[#allocation2 + $0x98] sm:$0xff] 0.0
    %38 = vst [vmem:[#allocation2 + $0xa0] sm:$0xff] 0.0
    %39 = vst [vmem:[#allocation2 + $0xa8] sm:$0xff] 0.0
    %40 = vst [vmem:[#allocation2 + $0xb0] sm:$0xff] 0.0
    %41 = vst [vmem:[#allocation2 + $0xb8] sm:$0xff] 0.0
    %42 = vst [vmem:[#allocation2 + $0xc0] sm:$0xff] 0.0
    %43 = vst [vmem:[#allocation2 + $0xc8] sm:$0xff] 0.0
    %44 = vst [vmem:[#allocation2 + $0xd0] sm:$0xff] 0.0
    %45 = vst [vmem:[#allocation2 + $0xd8] sm:$0xff] 0.0
    %46 = vst [vmem:[#allocation2 + $0xe0] sm:$0xff] 0.0
    %47 = vst [vmem:[#allocation2 + $0xe8] sm:$0xff] 0.0
    %48 = vst [vmem:[#allocation2 + $0xf0] sm:$0xff] 0.0
    %49 = vst [vmem:[#allocation2 + $0xf8] sm:$0xff] 0.0
  $region17: #{deformable_cross_attention.9} parent=0 // pred_fallthru
    _
  %v50 = vld [vmem:[#allocation2] sm:$0xff]
  %v51 = vld [vmem:[#allocation2 + $0x8] sm:$0xff]
  %v52 = vld [vmem:[#allocation2 + $0x10] sm:$0xff]
  %v53 = vld [vmem:[#allocation2 + $0x18] sm:$0xff]
  %v54 = vld [vmem:[#allocation2 + $0x20] sm:$0xff]
  %v55 = vld [vmem:[#allocation2 + $0x28] sm:$0xff]
  %v56 = vld [vmem:[#allocation2 + $0x30] sm:$0xff]
  %v57 = vld [vmem:[#allocation2 + $0x38] sm:$0xff]
  %v58 = vld [vmem:[#allocation2 + $0x40] sm:$0xff]
  %v59 = vld [vmem:[#allocation2 + $0x48] sm:$0xff]
  %v60 = vld [vmem:[#allocation2 + $0x50] sm:$0xff]
  %v61 = vld [vmem:[#allocation2 + $0x58] sm:$0xff]
  %v62 = vld [vmem:[#allocation2 + $0x60] sm:$0xff]
  %v63 = vld [vmem:[#allocation2 + $0x68] sm:$0xff]
  %v64 = vld [vmem:[#allocation2 + $0x70] sm:$0xff]
  %v65 = vld [vmem:[#allocation2 + $0x78] sm:$0xff]
  %v66 = vld [vmem:[#allocation2 + $0x80] sm:$0xff]
  %v67 = vld [vmem:[#allocation2 + $0x88] sm:$0xff]
  %v68 = vld [vmem:[#allocation2 + $0x90] sm:$0xff]
  %v69 = vld [vmem:[#allocation2 + $0x98] sm:$0xff]
  %v70 = vld [vmem:[#allocation2 + $0xa0] sm:$0xff]
  %v71 = vld [vmem:[#allocation2 + $0xa8] sm:$0xff]
  %v72 = vld [vmem:[#allocation2 + $0xb0] sm:$0xff]
  %v73 = vld [vmem:[#allocation2 + $0xb8] sm:$0xff]
  %v74 = vld [vmem:[#allocation2 + $0xc0] sm:$0xff]
  %v75 = vld [vmem:[#allocation2 + $0xc8] sm:$0xff]
  %v76 = vld [vmem:[#allocation2 + $0xd0] sm:$0xff]
  %v77 = vld [vmem:[#allocation2 + $0xd8] sm:$0xff]
  %v78 = vld [vmem:[#allocation2 + $0xe0] sm:$0xff]
  %v79 = vld [vmem:[#allocation2 + $0xe8] sm:$0xff]
  %v80 = vld [vmem:[#allocation2 + $0xf0] sm:$0xff]
  %v81 = vld [vmem:[#allocation2 + $0xf8] sm:$0xff]
  %v82 = vld [vmem:[%s0] sm:$0xff]
  %v83 = vld [vmem:[%s0 + $0x8] sm:$0xff]
  %v84 = vld [vmem:[%s0 + $0x10] sm:$0xff]
  %v85 = vld [vmem:[%s0 + $0x18] sm:$0xff]
  %v86 = vld [vmem:[%s0 + $0x20] sm:$0xff]
  %v87 = vld [vmem:[%s0 + $0x28] sm:$0xff]
  %v88 = vld [vmem:[%s0 + $0x30] sm:$0xff]
  %v89 = vld [vmem:[%s0 + $0x38] sm:$0xff]
  %v90 = vld [vmem:[%s0 + $0x40] sm:$0xff]
  %v91 = vld [vmem:[%s0 + $0x48] sm:$0xff]
  %v92 = vld [vmem:[%s0 + $0x50] sm:$0xff]
  %v93 = vld [vmem:[%s0 + $0x58] sm:$0xff]
  %v94 = vld [vmem:[%s0 + $0x60] sm:$0xff]
  %v95 = vld [vmem:[%s0 + $0x68] sm:$0xff]
  %v96 = vld [vmem:[%s0 + $0x70] sm:$0xff]
  %v97 = vld [vmem:[%s0 + $0x78] sm:$0xff]
  %v98 = vld [vmem:[%s0 + $0x80] sm:$0xff]
  %v99 = vld [vmem:[%s0 + $0x88] sm:$0xff]
  %v100 = vld [vmem:[%s0 + $0x90] sm:$0xff]
  %v101 = vld [vmem:[%s0 + $0x98] sm:$0xff]
  %v102 = vld [vmem:[%s0 + $0xa0] sm:$0xff]
  %v103 = vld [vmem:[%s0 + $0xa8] sm:$0xff]
  %v104 = vld [vmem:[%s0 + $0xb0] sm:$0xff]
  %v105 = vld [vmem:[%s0 + $0xb8] sm:$0xff]
  %v106 = vld [vmem:[%s0 + $0xc0] sm:$0xff]
  %v107 = vld [vmem:[%s0 + $0xc8] sm:$0xff]
  %v108 = vld [vmem:[%s0 + $0xd0] sm:$0xff]
  %v109 = vld [vmem:[%s0 + $0xd8] sm:$0xff]
  %v110 = vld [vmem:[%s0 + $0xe0] sm:$0xff]
  %v111 = vld [vmem:[%s0 + $0xe8] sm:$0xff]
  %v112 = vld [vmem:[%s0 + $0xf0] sm:$0xff]
  %v113 = vld [vmem:[%s0 + $0xf8] sm:$0xff]
  %v114 = vld [vmem:[%s1] sm:$0xff]
  %v115 = vld [vmem:[%s1 + $0x8] sm:$0xff]
  %v116 = vld [vmem:[%s1 + $0x10] sm:$0xff]
  %v117 = vld [vmem:[%s1 + $0x18] sm:$0xff]
  %v118 = vld [vmem:[%s1 + $0x20] sm:$0xff]
  %v119 = vld [vmem:[%s1 + $0x28] sm:$0xff]
  %v120 = vld [vmem:[%s1 + $0x30] sm:$0xff]
  %v121 = vld [vmem:[%s1 + $0x38] sm:$0xff]
  %v122 = vld [vmem:[%s1 + $0x40] sm:$0xff]
  %v123 = vld [vmem:[%s1 + $0x48] sm:$0xff]
  %v124 = vld [vmem:[%s1 + $0x50] sm:$0xff]
  %v125 = vld [vmem:[%s1 + $0x58] sm:$0xff]
  %v126 = vld [vmem:[%s1 + $0x60] sm:$0xff]
  %v127 = vld [vmem:[%s1 + $0x68] sm:$0xff]
  %v128 = vld [vmem:[%s1 + $0x70] sm:$0xff]
  %v129 = vld [vmem:[%s1 + $0x78] sm:$0xff]
  %130 = vmatprep.subr.mxu0 0.0
  %v131 = vand.u32 %v129, 4294901760
  %132 = vmatpush1.msra.mxu0 %v131
  %133 = vmatprep.subr.mxu0 0.0
  %v134 = vand.u32 %v128, 4294901760
  %135 = vmatpush1.msra.mxu0 %v134
  %136 = vmatprep.subr.mxu0 0.0
  %v137 = vand.u32 %v127, 4294901760
  %138 = vmatpush1.msra.mxu0 %v137
  %139 = vmatprep.subr.mxu0 0.0
  %v140 = vand.u32 %v126, 4294901760
  %141 = vmatpush1.msra.mxu0 %v140
  %142 = vmatprep.subr.mxu0 0.0
  %v143 = vand.u32 %v125, 4294901760
  %144 = vmatpush1.msra.mxu0 %v143
  %145 = vmatprep.subr.mxu0 0.0
  %v146 = vand.u32 %v124, 4294901760
  %147 = vmatpush1.msra.mxu0 %v146
  %148 = vmatprep.subr.mxu0 0.0
  %v149 = vand.u32 %v123, 4294901760
  %150 = vmatpush1.msra.mxu0 %v149
  %151 = vmatprep.subr.mxu0 0.0
  %v152 = vand.u32 %v122, 4294901760
  %153 = vmatpush1.msra.mxu0 %v152
  %154 = vmatprep.subr.mxu0 0.0
  %v155 = vand.u32 %v121, 4294901760
  %156 = vmatpush1.msra.mxu0 %v155
  %157 = vmatprep.subr.mxu0 0.0
  %v158 = vand.u32 %v120, 4294901760
  %159 = vmatpush1.msra.mxu0 %v158
  %160 = vmatprep.subr.mxu0 0.0
  %v161 = vand.u32 %v119, 4294901760
  %162 = vmatpush1.msra.mxu0 %v161
  %163 = vmatprep.subr.mxu0 0.0
  %v164 = vand.u32 %v118, 4294901760
  %165 = vmatpush1.msra.mxu0 %v164
  %166 = vmatprep.subr.mxu0 0.0
  %v167 = vand.u32 %v117, 4294901760
  %168 = vmatpush1.msra.mxu0 %v167
  %169 = vmatprep.subr.mxu0 0.0
  %v170 = vand.u32 %v116, 4294901760
  %171 = vmatpush1.msra.mxu0 %v170
  %172 = vmatprep.subr.mxu0 0.0
  %v173 = vand.u32 %v115, 4294901760
  %174 = vmatpush1.msra.mxu0 %v173
  %175 = vmatprep.subr.mxu0 0.0
  %v176 = vand.u32 %v114, 4294901760
  %177 = vmatpush1.msra.mxu0 %v176
  %178 = vmatprep.subr.mxu0 0.0
  %179 = vmatpush2.msra.mxu0 0.0
  %180 = vmatprep.subr.mxu0 0.0
  %181 = vmatpush2.msra.mxu0 0.0
  %182 = vmatprep.subr.mxu0 0.0
  %183 = vmatpush2.msra.mxu0 0.0
  %184 = vmatprep.subr.mxu0 0.0
  %185 = vmatpush2.msra.mxu0 0.0
  %186 = vmatprep.subr.mxu0 0.0
  %187 = vmatpush2.msra.mxu0 0.0
  %188 = vmatprep.subr.mxu0 0.0
  %189 = vmatpush2.msra.mxu0 0.0
  %190 = vmatprep.subr.mxu0 0.0
  %191 = vmatpush2.msra.mxu0 0.0
  %192 = vmatprep.subr.mxu0 0.0
  %193 = vmatpush2.msra.mxu0 0.0
  %194 = vmatprep.subr.mxu0 0.0
  %195 = vmatpush2.msra.mxu0 0.0
  %196 = vmatprep.subr.mxu0 0.0
  %197 = vmatpush2.msra.mxu0 0.0
  %198 = vmatprep.subr.mxu0 0.0
  %199 = vmatpush2.msra.mxu0 0.0
  %200 = vmatprep.subr.mxu0 0.0
  %201 = vmatpush2.msra.mxu0 0.0
  %202 = vmatprep.subr.mxu0 0.0
  %203 = vmatpush2.msra.mxu0 0.0
  %204 = vmatprep.subr.mxu0 0.0
  %205 = vmatpush2.msra.mxu0 0.0
  %206 = vmatprep.subr.mxu0 0.0
  %207 = vmatpush2.msra.mxu0 0.0
  %208 = vmatprep.subr.mxu0 0.0
  %209 = vmatpush2.msra.mxu0 0.0
  %210 = vmatprep.mubr.f32.mxu0 0.0
  %v211 = vand.u32 %v82, 4294901760
  %v212 = vsub.f32 %v82, %v211
  %v213 = vand.u32 %v212, 4294901760
  %v214 = vsub.f32 %v212, %v213
  %v215 = vand.u32 %v214, 4294901760
  %216 = vmatmul.mubr.f32.gmra.mxu0 %v215
  %v217 = vpop.f32.mrf.mxu0
  %v218 = vadd.f32 0.0, %v217
  %v219 = vpop.f32.mrf.mxu0
  %220 = vmatprep.mubr.f32.mxu0 0.0
  %v221 = vand.u32 %v83, 4294901760
  %v222 = vsub.f32 %v83, %v221
  %v223 = vand.u32 %v222, 4294901760
  %v224 = vsub.f32 %v222, %v223
  %v225 = vand.u32 %v224, 4294901760
  %226 = vmatmul.mubr.f32.gmra.mxu0 %v225
  %v227 = vpop.f32.mrf.mxu0
  %v228 = vadd.f32 0.0, %v227
  %v229 = vpop.f32.mrf.mxu0
  %230 = vmatprep.mubr.f32.mxu0 0.0
  %v231 = vand.u32 %v84, 4294901760
  %v232 = vsub.f32 %v84, %v231
  %v233 = vand.u32 %v232, 4294901760
  %v234 = vsub.f32 %v232, %v233
  %v235 = vand.u32 %v234, 4294901760
  %236 = vmatmul.mubr.f32.gmra.mxu0 %v235
  %v237 = vpop.f32.mrf.mxu0
  %v238 = vadd.f32 0.0, %v237
  %v239 = vpop.f32.mrf.mxu0
  %240 = vmatprep.mubr.f32.mxu0 0.0
  %v241 = vand.u32 %v85, 4294901760
  %v242 = vsub.f32 %v85, %v241
  %v243 = vand.u32 %v242, 4294901760
  %v244 = vsub.f32 %v242, %v243
  %v245 = vand.u32 %v244, 4294901760
  %246 = vmatmul.mubr.f32.gmra.mxu0 %v245
  %v247 = vpop.f32.mrf.mxu0
  %v248 = vadd.f32 0.0, %v247
  %v249 = vpop.f32.mrf.mxu0
  %250 = vmatprep.mubr.f32.mxu0 0.0
  %v251 = vand.u32 %v86, 4294901760
  %v252 = vsub.f32 %v86, %v251
  %v253 = vand.u32 %v252, 4294901760
  %v254 = vsub.f32 %v252, %v253
  %v255 = vand.u32 %v254, 4294901760
  %256 = vmatmul.mubr.f32.gmra.mxu0 %v255
  %v257 = vpop.f32.mrf.mxu0
  %v258 = vadd.f32 0.0, %v257
  %v259 = vpop.f32.mrf.mxu0
  %260 = vmatprep.mubr.f32.mxu0 0.0
  %v261 = vand.u32 %v87, 4294901760
  %v262 = vsub.f32 %v87, %v261
  %v263 = vand.u32 %v262, 4294901760
  %v264 = vsub.f32 %v262, %v263
  %v265 = vand.u32 %v264, 4294901760
  %266 = vmatmul.mubr.f32.gmra.mxu0 %v265
  %v267 = vpop.f32.mrf.mxu0
  %v268 = vadd.f32 0.0, %v267
  %v269 = vpop.f32.mrf.mxu0
  %270 = vmatprep.mubr.f32.mxu0 0.0
  %v271 = vand.u32 %v88, 4294901760
  %v272 = vsub.f32 %v88, %v271
  %v273 = vand.u32 %v272, 4294901760
  %v274 = vsub.f32 %v272, %v273
  %v275 = vand.u32 %v274, 4294901760
  %276 = vmatmul.mubr.f32.gmra.mxu0 %v275
  %v277 = vpop.f32.mrf.mxu0
  %v278 = vadd.f32 0.0, %v277
  %v279 = vpop.f32.mrf.mxu0
  %280 = vmatprep.mubr.f32.mxu0 0.0
  %v281 = vand.u32 %v89, 4294901760
  %v282 = vsub.f32 %v89, %v281
  %v283 = vand.u32 %v282, 4294901760
  %v284 = vsub.f32 %v282, %v283
  %v285 = vand.u32 %v284, 4294901760
  %286 = vmatmul.mubr.f32.gmra.mxu0 %v285
  %v287 = vpop.f32.mrf.mxu0
  %v288 = vadd.f32 0.0, %v287
  %v289 = vpop.f32.mrf.mxu0
  %290 = vmatprep.mubr.f32.mxu0 0.0
  %v291 = vand.u32 %v90, 4294901760
  %v292 = vsub.f32 %v90, %v291
  %v293 = vand.u32 %v292, 4294901760
  %v294 = vsub.f32 %v292, %v293
  %v295 = vand.u32 %v294, 4294901760
  %296 = vmatmul.mubr.f32.gmra.mxu0 %v295
  %v297 = vpop.f32.mrf.mxu0
  %v298 = vadd.f32 0.0, %v297
  %v299 = vpop.f32.mrf.mxu0
  %300 = vmatprep.mubr.f32.mxu0 0.0
  %v301 = vand.u32 %v91, 4294901760
  %v302 = vsub.f32 %v91, %v301
  %v303 = vand.u32 %v302, 4294901760
  %v304 = vsub.f32 %v302, %v303
  %v305 = vand.u32 %v304, 4294901760
  %306 = vmatmul.mubr.f32.gmra.mxu0 %v305
  %v307 = vpop.f32.mrf.mxu0
  %v308 = vadd.f32 0.0, %v307
  %v309 = vpop.f32.mrf.mxu0
  %310 = vmatprep.mubr.f32.mxu0 0.0
  %v311 = vand.u32 %v92, 4294901760
  %v312 = vsub.f32 %v92, %v311
  %v313 = vand.u32 %v312, 4294901760
  %v314 = vsub.f32 %v312, %v313
  %v315 = vand.u32 %v314, 4294901760
  %316 = vmatmul.mubr.f32.gmra.mxu0 %v315
  %v317 = vpop.f32.mrf.mxu0
  %v318 = vadd.f32 0.0, %v317
  %v319 = vpop.f32.mrf.mxu0
  %320 = vmatprep.mubr.f32.mxu0 0.0
  %v321 = vand.u32 %v93, 4294901760
  %v322 = vsub.f32 %v93, %v321
  %v323 = vand.u32 %v322, 4294901760
  %v324 = vsub.f32 %v322, %v323
  %v325 = vand.u32 %v324, 4294901760
  %326 = vmatmul.mubr.f32.gmra.mxu0 %v325
  %v327 = vpop.f32.mrf.mxu0
  %v328 = vadd.f32 0.0, %v327
  %v329 = vpop.f32.mrf.mxu0
  %330 = vmatprep.mubr.f32.mxu0 0.0
  %v331 = vand.u32 %v94, 4294901760
  %v332 = vsub.f32 %v94, %v331
  %v333 = vand.u32 %v332, 4294901760
  %v334 = vsub.f32 %v332, %v333
  %v335 = vand.u32 %v334, 4294901760
  %336 = vmatmul.mubr.f32.gmra.mxu0 %v335
  %v337 = vpop.f32.mrf.mxu0
  %v338 = vadd.f32 0.0, %v337
  %v339 = vpop.f32.mrf.mxu0
  %340 = vmatprep.mubr.f32.mxu0 0.0
  %v341 = vand.u32 %v95, 4294901760
  %v342 = vsub.f32 %v95, %v341
  %v343 = vand.u32 %v342, 4294901760
  %v344 = vsub.f32 %v342, %v343
  %v345 = vand.u32 %v344, 4294901760
  %346 = vmatmul.mubr.f32.gmra.mxu0 %v345
  %v347 = vpop.f32.mrf.mxu0
  %v348 = vadd.f32 0.0, %v347
  %v349 = vpop.f32.mrf.mxu0
  %350 = vmatprep.mubr.f32.mxu0 0.0
  %v351 = vand.u32 %v96, 4294901760
  %v352 = vsub.f32 %v96, %v351
  %v353 = vand.u32 %v352, 4294901760
  %v354 = vsub.f32 %v352, %v353
  %v355 = vand.u32 %v354, 4294901760
  %356 = vmatmul.mubr.f32.gmra.mxu0 %v355
  %v357 = vpop.f32.mrf.mxu0
  %v358 = vadd.f32 0.0, %v357
  %v359 = vpop.f32.mrf.mxu0
  %360 = vmatprep.mubr.f32.mxu0 0.0
  %v361 = vand.u32 %v97, 4294901760
  %v362 = vsub.f32 %v97, %v361
  %v363 = vand.u32 %v362, 4294901760
  %v364 = vsub.f32 %v362, %v363
  %v365 = vand.u32 %v364, 4294901760
  %366 = vmatmul.mubr.f32.gmra.mxu0 %v365
  %v367 = vpop.f32.mrf.mxu0
  %v368 = vadd.f32 0.0, %v367
  %v369 = vpop.f32.mrf.mxu0
  %370 = vmatprep.mubr.f32.mxu0 0.0
  %v371 = vand.u32 %v98, 4294901760
  %v372 = vsub.f32 %v98, %v371
  %v373 = vand.u32 %v372, 4294901760
  %v374 = vsub.f32 %v372, %v373
  %v375 = vand.u32 %v374, 4294901760
  %376 = vmatmul.mubr.f32.gmra.mxu0 %v375
  %v377 = vpop.f32.mrf.mxu0
  %v378 = vadd.f32 0.0, %v377
  %v379 = vpop.f32.mrf.mxu0
  %380 = vmatprep.mubr.f32.mxu0 0.0
  %v381 = vand.u32 %v99, 4294901760
  %v382 = vsub.f32 %v99, %v381
  %v383 = vand.u32 %v382, 4294901760
  %v384 = vsub.f32 %v382, %v383
  %v385 = vand.u32 %v384, 4294901760
  %386 = vmatmul.mubr.f32.gmra.mxu0 %v385
  %v387 = vpop.f32.mrf.mxu0
  %v388 = vadd.f32 0.0, %v387
  %v389 = vpop.f32.mrf.mxu0
  %390 = vmatprep.mubr.f32.mxu0 0.0
  %v391 = vand.u32 %v100, 4294901760
  %v392 = vsub.f32 %v100, %v391
  %v393 = vand.u32 %v392, 4294901760
  %v394 = vsub.f32 %v392, %v393
  %v395 = vand.u32 %v394, 4294901760
  %396 = vmatmul.mubr.f32.gmra.mxu0 %v395
  %v397 = vpop.f32.mrf.mxu0
  %v398 = vadd.f32 0.0, %v397
  %v399 = vpop.f32.mrf.mxu0
  %400 = vmatprep.mubr.f32.mxu0 0.0
  %v401 = vand.u32 %v101, 4294901760
  %v402 = vsub.f32 %v101, %v401
  %v403 = vand.u32 %v402, 4294901760
  %v404 = vsub.f32 %v402, %v403
  %v405 = vand.u32 %v404, 4294901760
  %406 = vmatmul.mubr.f32.gmra.mxu0 %v405
  %v407 = vpop.f32.mrf.mxu0
  %v408 = vadd.f32 0.0, %v407
  %v409 = vpop.f32.mrf.mxu0
  %410 = vmatprep.mubr.f32.mxu0 0.0
  %v411 = vand.u32 %v102, 4294901760
  %v412 = vsub.f32 %v102, %v411
  %v413 = vand.u32 %v412, 4294901760
  %v414 = vsub.f32 %v412, %v413
  %v415 = vand.u32 %v414, 4294901760
  %416 = vmatmul.mubr.f32.gmra.mxu0 %v415
  %v417 = vpop.f32.mrf.mxu0
  %v418 = vadd.f32 0.0, %v417
  %v419 = vpop.f32.mrf.mxu0
  %420 = vmatprep.mubr.f32.mxu0 0.0
  %v421 = vand.u32 %v103, 4294901760
  %v422 = vsub.f32 %v103, %v421
  %v423 = vand.u32 %v422, 4294901760
  %v424 = vsub.f32 %v422, %v423
  %v425 = vand.u32 %v424, 4294901760
  %426 = vmatmul.mubr.f32.gmra.mxu0 %v425
  %v427 = vpop.f32.mrf.mxu0
  %v428 = vadd.f32 0.0, %v427
  %v429 = vpop.f32.mrf.mxu0
  %430 = vmatprep.mubr.f32.mxu0 0.0
  %v431 = vand.u32 %v104, 4294901760
  %v432 = vsub.f32 %v104, %v431
  %v433 = vand.u32 %v432, 4294901760
  %v434 = vsub.f32 %v432, %v433
  %v435 = vand.u32 %v434, 4294901760
  %436 = vmatmul.mubr.f32.gmra.mxu0 %v435
  %v437 = vpop.f32.mrf.mxu0
  %v438 = vadd.f32 0.0, %v437
  %v439 = vpop.f32.mrf.mxu0
  %440 = vmatprep.mubr.f32.mxu0 0.0
  %v441 = vand.u32 %v105, 4294901760
  %v442 = vsub.f32 %v105, %v441
  %v443 = vand.u32 %v442, 4294901760
  %v444 = vsub.f32 %v442, %v443
  %v445 = vand.u32 %v444, 4294901760
  %446 = vmatmul.mubr.f32.gmra.mxu0 %v445
  %v447 = vpop.f32.mrf.mxu0
  %v448 = vadd.f32 0.0, %v447
  %v449 = vpop.f32.mrf.mxu0
  %450 = vmatprep.mubr.f32.mxu0 0.0
  %v451 = vand.u32 %v106, 4294901760
  %v452 = vsub.f32 %v106, %v451
  %v453 = vand.u32 %v452, 4294901760
  %v454 = vsub.f32 %v452, %v453
  %v455 = vand.u32 %v454, 4294901760
  %456 = vmatmul.mubr.f32.gmra.mxu0 %v455
  %v457 = vpop.f32.mrf.mxu0
  %v458 = vadd.f32 0.0, %v457
  %v459 = vpop.f32.mrf.mxu0
  %460 = vmatprep.mubr.f32.mxu0 0.0
  %v461 = vand.u32 %v107, 4294901760
  %v462 = vsub.f32 %v107, %v461
  %v463 = vand.u32 %v462, 4294901760
  %v464 = vsub.f32 %v462, %v463
  %v465 = vand.u32 %v464, 4294901760
  %466 = vmatmul.mubr.f32.gmra.mxu0 %v465
  %v467 = vpop.f32.mrf.mxu0
  %v468 = vadd.f32 0.0, %v467
  %v469 = vpop.f32.mrf.mxu0
  %470 = vmatprep.mubr.f32.mxu0 0.0
  %v471 = vand.u32 %v108, 4294901760
  %v472 = vsub.f32 %v108, %v471
  %v473 = vand.u32 %v472, 4294901760
  %v474 = vsub.f32 %v472, %v473
  %v475 = vand.u32 %v474, 4294901760
  %476 = vmatmul.mubr.f32.gmra.mxu0 %v475
  %v477 = vpop.f32.mrf.mxu0
  %v478 = vadd.f32 0.0, %v477
  %v479 = vpop.f32.mrf.mxu0
  %480 = vmatprep.mubr.f32.mxu0 0.0
  %v481 = vand.u32 %v109, 4294901760
  %v482 = vsub.f32 %v109, %v481
  %v483 = vand.u32 %v482, 4294901760
  %v484 = vsub.f32 %v482, %v483
  %v485 = vand.u32 %v484, 4294901760
  %486 = vmatmul.mubr.f32.gmra.mxu0 %v485
  %v487 = vpop.f32.mrf.mxu0
  %v488 = vadd.f32 0.0, %v487
  %v489 = vpop.f32.mrf.mxu0
  %490 = vmatprep.mubr.f32.mxu0 0.0
  %v491 = vand.u32 %v110, 4294901760
  %v492 = vsub.f32 %v110, %v491
  %v493 = vand.u32 %v492, 4294901760
  %v494 = vsub.f32 %v492, %v493
  %v495 = vand.u32 %v494, 4294901760
  %496 = vmatmul.mubr.f32.gmra.mxu0 %v495
  %v497 = vpop.f32.mrf.mxu0
  %v498 = vadd.f32 0.0, %v497
  %v499 = vpop.f32.mrf.mxu0
  %500 = vmatprep.mubr.f32.mxu0 0.0
  %v501 = vand.u32 %v111, 4294901760
  %v502 = vsub.f32 %v111, %v501
  %v503 = vand.u32 %v502, 4294901760
  %v504 = vsub.f32 %v502, %v503
  %v505 = vand.u32 %v504, 4294901760
  %506 = vmatmul.mubr.f32.gmra.mxu0 %v505
  %v507 = vpop.f32.mrf.mxu0
  %v508 = vadd.f32 0.0, %v507
  %v509 = vpop.f32.mrf.mxu0
  %510 = vmatprep.mubr.f32.mxu0 0.0
  %v511 = vand.u32 %v112, 4294901760
  %v512 = vsub.f32 %v112, %v511
  %v513 = vand.u32 %v512, 4294901760
  %v514 = vsub.f32 %v512, %v513
  %v515 = vand.u32 %v514, 4294901760
  %516 = vmatmul.mubr.f32.gmra.mxu0 %v515
  %v517 = vpop.f32.mrf.mxu0
  %v518 = vadd.f32 0.0, %v517
  %v519 = vpop.f32.mrf.mxu0
  %520 = vmatprep.mubr.f32.mxu0 0.0
  %v521 = vand.u32 %v113, 4294901760
  %v522 = vsub.f32 %v113, %v521
  %v523 = vand.u32 %v522, 4294901760
  %v524 = vsub.f32 %v522, %v523
  %v525 = vand.u32 %v524, 4294901760
  %526 = vmatmul.mubr.f32.gmra.mxu0 %v525
  %v527 = vpop.f32.mrf.mxu0
  %v528 = vadd.f32 0.0, %v527
  %v529 = vpop.f32.mrf.mxu0
  %530 = vdwg.mxu0
  %531 = vmatprep.subr.mxu0 0.0
  %v532 = vand.u32 %v129, 4294901760
  %v533 = vsub.f32 %v129, %v532
  %v534 = vand.u32 %v533, 4294901760
  %v535 = vsub.f32 %v533, %v534
  %v536 = vand.u32 %v535, 4294901760
  %537 = vmatpush1.msra.mxu0 %v536
  %538 = vmatprep.subr.mxu0 0.0
  %v539 = vand.u32 %v128, 4294901760
  %v540 = vsub.f32 %v128, %v539
  %v541 = vand.u32 %v540, 4294901760
  %v542 = vsub.f32 %v540, %v541
  %v543 = vand.u32 %v542, 4294901760
  %544 = vmatpush1.msra.mxu0 %v543
  %545 = vmatprep.subr.mxu0 0.0
  %v546 = vand.u32 %v127, 4294901760
  %v547 = vsub.f32 %v127, %v546
  %v548 = vand.u32 %v547, 4294901760
  %v549 = vsub.f32 %v547, %v548
  %v550 = vand.u32 %v549, 4294901760
  %551 = vmatpush1.msra.mxu0 %v550
  %552 = vmatprep.subr.mxu0 0.0
  %v553 = vand.u32 %v126, 4294901760
  %v554 = vsub.f32 %v126, %v553
  %v555 = vand.u32 %v554, 4294901760
  %v556 = vsub.f32 %v554, %v555
  %v557 = vand.u32 %v556, 4294901760
  %558 = vmatpush1.msra.mxu0 %v557
  %559 = vmatprep.subr.mxu0 0.0
  %v560 = vand.u32 %v125, 4294901760
  %v561 = vsub.f32 %v125, %v560
  %v562 = vand.u32 %v561, 4294901760
  %v563 = vsub.f32 %v561, %v562
  %v564 = vand.u32 %v563, 4294901760
  %565 = vmatpush1.msra.mxu0 %v564
  %566 = vmatprep.subr.mxu0 0.0
  %v567 = vand.u32 %v124, 4294901760
  %v568 = vsub.f32 %v124, %v567
  %v569 = vand.u32 %v568, 4294901760
  %v570 = vsub.f32 %v568, %v569
  %v571 = vand.u32 %v570, 4294901760
  %572 = vmatpush1.msra.mxu0 %v571
  %573 = vmatprep.subr.mxu0 0.0
  %v574 = vand.u32 %v123, 4294901760
  %v575 = vsub.f32 %v123, %v574
  %v576 = vand.u32 %v575, 4294901760
  %v577 = vsub.f32 %v575, %v576
  %v578 = vand.u32 %v577, 4294901760
  %579 = vmatpush1.msra.mxu0 %v578
  %580 = vmatprep.subr.mxu0 0.0
  %v581 = vand.u32 %v122, 4294901760
  %v582 = vsub.f32 %v122, %v581
  %v583 = vand.u32 %v582, 4294901760
  %v584 = vsub.f32 %v582, %v583
  %v585 = vand.u32 %v584, 4294901760
  %586 = vmatpush1.msra.mxu0 %v585
  %587 = vmatprep.subr.mxu0 0.0
  %v588 = vand.u32 %v121, 4294901760
  %v589 = vsub.f32 %v121, %v588
  %v590 = vand.u32 %v589, 4294901760
  %v591 = vsub.f32 %v589, %v590
  %v592 = vand.u32 %v591, 4294901760
  %593 = vmatpush1.msra.mxu0 %v592
  %594 = vmatprep.subr.mxu0 0.0
  %v595 = vand.u32 %v120, 4294901760
  %v596 = vsub.f32 %v120, %v595
  %v597 = vand.u32 %v596, 4294901760
  %v598 = vsub.f32 %v596, %v597
  %v599 = vand.u32 %v598, 4294901760
  %600 = vmatpush1.msra.mxu0 %v599
  %601 = vmatprep.subr.mxu0 0.0
  %v602 = vand.u32 %v119, 4294901760
  %v603 = vsub.f32 %v119, %v602
  %v604 = vand.u32 %v603, 4294901760
  %v605 = vsub.f32 %v603, %v604
  %v606 = vand.u32 %v605, 4294901760
  %607 = vmatpush1.msra.mxu0 %v606
  %608 = vmatprep.subr.mxu0 0.0
  %v609 = vand.u32 %v118, 4294901760
  %v610 = vsub.f32 %v118, %v609
  %v611 = vand.u32 %v610, 4294901760
  %v612 = vsub.f32 %v610, %v611
  %v613 = vand.u32 %v612, 4294901760
  %614 = vmatpush1.msra.mxu0 %v613
  %615 = vmatprep.subr.mxu0 0.0
  %v616 = vand.u32 %v117, 4294901760
  %v617 = vsub.f32 %v117, %v616
  %v618 = vand.u32 %v617, 4294901760
  %v619 = vsub.f32 %v617, %v618
  %v620 = vand.u32 %v619, 4294901760
  %621 = vmatpush1.msra.mxu0 %v620
  %622 = vmatprep.subr.mxu0 0.0
  %v623 = vand.u32 %v116, 4294901760
  %v624 = vsub.f32 %v116, %v623
  %v625 = vand.u32 %v624, 4294901760
  %v626 = vsub.f32 %v624, %v625
  %v627 = vand.u32 %v626, 4294901760
  %628 = vmatpush1.msra.mxu0 %v627
  %629 = vmatprep.subr.mxu0 0.0
  %v630 = vand.u32 %v115, 4294901760
  %v631 = vsub.f32 %v115, %v630
  %v632 = vand.u32 %v631, 4294901760
  %v633 = vsub.f32 %v631, %v632
  %v634 = vand.u32 %v633, 4294901760
  %635 = vmatpush1.msra.mxu0 %v634
  %636 = vmatprep.subr.mxu0 0.0
  %v637 = vand.u32 %v114, 4294901760
  %v638 = vsub.f32 %v114, %v637
  %v639 = vand.u32 %v638, 4294901760
  %v640 = vsub.f32 %v638, %v639
  %v641 = vand.u32 %v640, 4294901760
  %642 = vmatpush1.msra.mxu0 %v641
  %643 = vmatprep.subr.mxu0 0.0
  %644 = vmatpush2.msra.mxu0 0.0
  %645 = vmatprep.subr.mxu0 0.0
  %646 = vmatpush2.msra.mxu0 0.0
  %647 = vmatprep.subr.mxu0 0.0
  %648 = vmatpush2.msra.mxu0 0.0
  %649 = vmatprep.subr.mxu0 0.0
  %650 = vmatpush2.msra.mxu0 0.0
  %651 = vmatprep.subr.mxu0 0.0
  %652 = vmatpush2.msra.mxu0 0.0
  %653 = vmatprep.subr.mxu0 0.0
  %654 = vmatpush2.msra.mxu0 0.0
  %655 = vmatprep.subr.mxu0 0.0
  %656 = vmatpush2.msra.mxu0 0.0
  %657 = vmatprep.subr.mxu0 0.0
  %658 = vmatpush2.msra.mxu0 0.0
  %659 = vmatprep.subr.mxu0 0.0
  %660 = vmatpush2.msra.mxu0 0.0
  %661 = vmatprep.subr.mxu0 0.0
  %662 = vmatpush2.msra.mxu0 0.0
  %663 = vmatprep.subr.mxu0 0.0
  %664 = vmatpush2.msra.mxu0 0.0
  %665 = vmatprep.subr.mxu0 0.0
  %666 = vmatpush2.msra.mxu0 0.0
  %667 = vmatprep.subr.mxu0 0.0
  %668 = vmatpush2.msra.mxu0 0.0
  %669 = vmatprep.subr.mxu0 0.0
  %670 = vmatpush2.msra.mxu0 0.0
  %671 = vmatprep.subr.mxu0 0.0
  %672 = vmatpush2.msra.mxu0 0.0
  %673 = vmatprep.subr.mxu0 0.0
  %674 = vmatpush2.msra.mxu0 0.0
  %675 = vmatprep.mubr.f32.mxu0 0.0
  %v676 = vand.u32 %v82, 4294901760
  %677 = vmatmul.mubr.f32.gmra.mxu0 %v676
  %v678 = vpop.f32.mrf.mxu0
  %v679 = vadd.f32 %v218, %v678
  %v680 = vpop.f32.mrf.mxu0
  %681 = vmatprep.mubr.f32.mxu0 0.0
  %v682 = vand.u32 %v83, 4294901760
  %683 = vmatmul.mubr.f32.gmra.mxu0 %v682
  %v684 = vpop.f32.mrf.mxu0
  %v685 = vadd.f32 %v228, %v684
  %v686 = vpop.f32.mrf.mxu0
  %687 = vmatprep.mubr.f32.mxu0 0.0
  %v688 = vand.u32 %v84, 4294901760
  %689 = vmatmul.mubr.f32.gmra.mxu0 %v688
  %v690 = vpop.f32.mrf.mxu0
  %v691 = vadd.f32 %v238, %v690
  %v692 = vpop.f32.mrf.mxu0
  %693 = vmatprep.mubr.f32.mxu0 0.0
  %v694 = vand.u32 %v85, 4294901760
  %695 = vmatmul.mubr.f32.gmra.mxu0 %v694
  %v696 = vpop.f32.mrf.mxu0
  %v697 = vadd.f32 %v248, %v696
  %v698 = vpop.f32.mrf.mxu0
  %699 = vmatprep.mubr.f32.mxu0 0.0
  %v700 = vand.u32 %v86, 4294901760
  %701 = vmatmul.mubr.f32.gmra.mxu0 %v700
  %v702 = vpop.f32.mrf.mxu0
  %v703 = vadd.f32 %v258, %v702
  %v704 = vpop.f32.mrf.mxu0
  %705 = vmatprep.mubr.f32.mxu0 0.0
  %v706 = vand.u32 %v87, 4294901760
  %707 = vmatmul.mubr.f32.gmra.mxu0 %v706
  %v708 = vpop.f32.mrf.mxu0
  %v709 = vadd.f32 %v268, %v708
  %v710 = vpop.f32.mrf.mxu0
  %711 = vmatprep.mubr.f32.mxu0 0.0
  %v712 = vand.u32 %v88, 4294901760
  %713 = vmatmul.mubr.f32.gmra.mxu0 %v712
  %v714 = vpop.f32.mrf.mxu0
  %v715 = vadd.f32 %v278, %v714
  %v716 = vpop.f32.mrf.mxu0
  %717 = vmatprep.mubr.f32.mxu0 0.0
  %v718 = vand.u32 %v89, 4294901760
  %719 = vmatmul.mubr.f32.gmra.mxu0 %v718
  %v720 = vpop.f32.mrf.mxu0
  %v721 = vadd.f32 %v288, %v720
  %v722 = vpop.f32.mrf.mxu0
  %723 = vmatprep.mubr.f32.mxu0 0.0
  %v724 = vand.u32 %v90, 4294901760
  %725 = vmatmul.mubr.f32.gmra.mxu0 %v724
  %v726 = vpop.f32.mrf.mxu0
  %v727 = vadd.f32 %v298, %v726
  %v728 = vpop.f32.mrf.mxu0
  %729 = vmatprep.mubr.f32.mxu0 0.0
  %v730 = vand.u32 %v91, 4294901760
  %731 = vmatmul.mubr.f32.gmra.mxu0 %v730
  %v732 = vpop.f32.mrf.mxu0
  %v733 = vadd.f32 %v308, %v732
  %v734 = vpop.f32.mrf.mxu0
  %735 = vmatprep.mubr.f32.mxu0 0.0
  %v736 = vand.u32 %v92, 4294901760
  %737 = vmatmul.mubr.f32.gmra.mxu0 %v736
  %v738 = vpop.f32.mrf.mxu0
  %v739 = vadd.f32 %v318, %v738
  %v740 = vpop.f32.mrf.mxu0
  %741 = vmatprep.mubr.f32.mxu0 0.0
  %v742 = vand.u32 %v93, 4294901760
  %743 = vmatmul.mubr.f32.gmra.mxu0 %v742
  %v744 = vpop.f32.mrf.mxu0
  %v745 = vadd.f32 %v328, %v744
  %v746 = vpop.f32.mrf.mxu0
  %747 = vmatprep.mubr.f32.mxu0 0.0
  %v748 = vand.u32 %v94, 4294901760
  %749 = vmatmul.mubr.f32.gmra.mxu0 %v748
  %v750 = vpop.f32.mrf.mxu0
  %v751 = vadd.f32 %v338, %v750
  %v752 = vpop.f32.mrf.mxu0
  %753 = vmatprep.mubr.f32.mxu0 0.0
  %v754 = vand.u32 %v95, 4294901760
  %755 = vmatmul.mubr.f32.gmra.mxu0 %v754
  %v756 = vpop.f32.mrf.mxu0
  %v757 = vadd.f32 %v348, %v756
  %v758 = vpop.f32.mrf.mxu0
  %759 = vmatprep.mubr.f32.mxu0 0.0
  %v760 = vand.u32 %v96, 4294901760
  %761 = vmatmul.mubr.f32.gmra.mxu0 %v760
  %v762 = vpop.f32.mrf.mxu0
  %v763 = vadd.f32 %v358, %v762
  %v764 = vpop.f32.mrf.mxu0
  %765 = vmatprep.mubr.f32.mxu0 0.0
  %v766 = vand.u32 %v97, 4294901760
  %767 = vmatmul.mubr.f32.gmra.mxu0 %v766
  %v768 = vpop.f32.mrf.mxu0
  %v769 = vadd.f32 %v368, %v768
  %v770 = vpop.f32.mrf.mxu0
  %771 = vmatprep.mubr.f32.mxu0 0.0
  %v772 = vand.u32 %v98, 4294901760
  %773 = vmatmul.mubr.f32.gmra.mxu0 %v772
  %v774 = vpop.f32.mrf.mxu0
  %v775 = vadd.f32 %v378, %v774
  %v776 = vpop.f32.mrf.mxu0
  %777 = vmatprep.mubr.f32.mxu0 0.0
  %v778 = vand.u32 %v99, 4294901760
  %779 = vmatmul.mubr.f32.gmra.mxu0 %v778
  %v780 = vpop.f32.mrf.mxu0
  %v781 = vadd.f32 %v388, %v780
  %v782 = vpop.f32.mrf.mxu0
  %783 = vmatprep.mubr.f32.mxu0 0.0
  %v784 = vand.u32 %v100, 4294901760
  %785 = vmatmul.mubr.f32.gmra.mxu0 %v784
  %v786 = vpop.f32.mrf.mxu0
  %v787 = vadd.f32 %v398, %v786
  %v788 = vpop.f32.mrf.mxu0
  %789 = vmatprep.mubr.f32.mxu0 0.0
  %v790 = vand.u32 %v101, 4294901760
  %791 = vmatmul.mubr.f32.gmra.mxu0 %v790
  %v792 = vpop.f32.mrf.mxu0
  %v793 = vadd.f32 %v408, %v792
  %v794 = vpop.f32.mrf.mxu0
  %795 = vmatprep.mubr.f32.mxu0 0.0
  %v796 = vand.u32 %v102, 4294901760
  %797 = vmatmul.mubr.f32.gmra.mxu0 %v796
  %v798 = vpop.f32.mrf.mxu0
  %v799 = vadd.f32 %v418, %v798
  %v800 = vpop.f32.mrf.mxu0
  %801 = vmatprep.mubr.f32.mxu0 0.0
  %v802 = vand.u32 %v103, 4294901760
  %803 = vmatmul.mubr.f32.gmra.mxu0 %v802
  %v804 = vpop.f32.mrf.mxu0
  %v805 = vadd.f32 %v428, %v804
  %v806 = vpop.f32.mrf.mxu0
  %807 = vmatprep.mubr.f32.mxu0 0.0
  %v808 = vand.u32 %v104, 4294901760
  %809 = vmatmul.mubr.f32.gmra.mxu0 %v808
  %v810 = vpop.f32.mrf.mxu0
  %v811 = vadd.f32 %v438, %v810
  %v812 = vpop.f32.mrf.mxu0
  %813 = vmatprep.mubr.f32.mxu0 0.0
  %v814 = vand.u32 %v105, 4294901760
  %815 = vmatmul.mubr.f32.gmra.mxu0 %v814
  %v816 = vpop.f32.mrf.mxu0
  %v817 = vadd.f32 %v448, %v816
  %v818 = vpop.f32.mrf.mxu0
  %819 = vmatprep.mubr.f32.mxu0 0.0
  %v820 = vand.u32 %v106, 4294901760
  %821 = vmatmul.mubr.f32.gmra.mxu0 %v820
  %v822 = vpop.f32.mrf.mxu0
  %v823 = vadd.f32 %v458, %v822
  %v824 = vpop.f32.mrf.mxu0
  %825 = vmatprep.mubr.f32.mxu0 0.0
  %v826 = vand.u32 %v107, 4294901760
  %827 = vmatmul.mubr.f32.gmra.mxu0 %v826
  %v828 = vpop.f32.mrf.mxu0
  %v829 = vadd.f32 %v468, %v828
  %v830 = vpop.f32.mrf.mxu0
  %831 = vmatprep.mubr.f32.mxu0 0.0
  %v832 = vand.u32 %v108, 4294901760
  %833 = vmatmul.mubr.f32.gmra.mxu0 %v832
  %v834 = vpop.f32.mrf.mxu0
  %v835 = vadd.f32 %v478, %v834
  %v836 = vpop.f32.mrf.mxu0
  %837 = vmatprep.mubr.f32.mxu0 0.0
  %v838 = vand.u32 %v109, 4294901760
  %839 = vmatmul.mubr.f32.gmra.mxu0 %v838
  %v840 = vpop.f32.mrf.mxu0
  %v841 = vadd.f32 %v488, %v840
  %v842 = vpop.f32.mrf.mxu0
  %843 = vmatprep.mubr.f32.mxu0 0.0
  %v844 = vand.u32 %v110, 4294901760
  %845 = vmatmul.mubr.f32.gmra.mxu0 %v844
  %v846 = vpop.f32.mrf.mxu0
  %v847 = vadd.f32 %v498, %v846
  %v848 = vpop.f32.mrf.mxu0
  %849 = vmatprep.mubr.f32.mxu0 0.0
  %v850 = vand.u32 %v111, 4294901760
  %851 = vmatmul.mubr.f32.gmra.mxu0 %v850
  %v852 = vpop.f32.mrf.mxu0
  %v853 = vadd.f32 %v508, %v852
  %v854 = vpop.f32.mrf.mxu0
  %855 = vmatprep.mubr.f32.mxu0 0.0
  %v856 = vand.u32 %v112, 4294901760
  %857 = vmatmul.mubr.f32.gmra.mxu0 %v856
  %v858 = vpop.f32.mrf.mxu0
  %v859 = vadd.f32 %v518, %v858
  %v860 = vpop.f32.mrf.mxu0
  %861 = vmatprep.mubr.f32.mxu0 0.0
  %v862 = vand.u32 %v113, 4294901760
  %863 = vmatmul.mubr.f32.gmra.mxu0 %v862
  %v864 = vpop.f32.mrf.mxu0
  %v865 = vadd.f32 %v528, %v864
  %v866 = vpop.f32.mrf.mxu0
  %867 = vdwg.mxu0
  %868 = vmatprep.subr.mxu0 0.0
  %v869 = vand.u32 %v129, 4294901760
  %v870 = vsub.f32 %v129, %v869
  %871 = vmatpush1.msra.mxu0 %v870
  %872 = vmatprep.subr.mxu0 0.0
  %v873 = vand.u32 %v128, 4294901760
  %v874 = vsub.f32 %v128, %v873
  %875 = vmatpush1.msra.mxu0 %v874
  %876 = vmatprep.subr.mxu0 0.0
  %v877 = vand.u32 %v127, 4294901760
  %v878 = vsub.f32 %v127, %v877
  %879 = vmatpush1.msra.mxu0 %v878
  %880 = vmatprep.subr.mxu0 0.0
  %v881 = vand.u32 %v126, 4294901760
  %v882 = vsub.f32 %v126, %v881
  %883 = vmatpush1.msra.mxu0 %v882
  %884 = vmatprep.subr.mxu0 0.0
  %v885 = vand.u32 %v125, 4294901760
  %v886 = vsub.f32 %v125, %v885
  %887 = vmatpush1.msra.mxu0 %v886
  %888 = vmatprep.subr.mxu0 0.0
  %v889 = vand.u32 %v124, 4294901760
  %v890 = vsub.f32 %v124, %v889
  %891 = vmatpush1.msra.mxu0 %v890
  %892 = vmatprep.subr.mxu0 0.0
  %v893 = vand.u32 %v123, 4294901760
  %v894 = vsub.f32 %v123, %v893
  %895 = vmatpush1.msra.mxu0 %v894
  %896 = vmatprep.subr.mxu0 0.0
  %v897 = vand.u32 %v122, 4294901760
  %v898 = vsub.f32 %v122, %v897
  %899 = vmatpush1.msra.mxu0 %v898
  %900 = vmatprep.subr.mxu0 0.0
  %v901 = vand.u32 %v121, 4294901760
  %v902 = vsub.f32 %v121, %v901
  %903 = vmatpush1.msra.mxu0 %v902
  %904 = vmatprep.subr.mxu0 0.0
  %v905 = vand.u32 %v120, 4294901760
  %v906 = vsub.f32 %v120, %v905
  %907 = vmatpush1.msra.mxu0 %v906
  %908 = vmatprep.subr.mxu0 0.0
  %v909 = vand.u32 %v119, 4294901760
  %v910 = vsub.f32 %v119, %v909
  %911 = vmatpush1.msra.mxu0 %v910
  %912 = vmatprep.subr.mxu0 0.0
  %v913 = vand.u32 %v118, 4294901760
  %v914 = vsub.f32 %v118, %v913
  %915 = vmatpush1.msra.mxu0 %v914
  %916 = vmatprep.subr.mxu0 0.0
  %v917 = vand.u32 %v117, 4294901760
  %v918 = vsub.f32 %v117, %v917
  %919 = vmatpush1.msra.mxu0 %v918
  %920 = vmatprep.subr.mxu0 0.0
  %v921 = vand.u32 %v116, 4294901760
  %v922 = vsub.f32 %v116, %v921
  %923 = vmatpush1.msra.mxu0 %v922
  %924 = vmatprep.subr.mxu0 0.0
  %v925 = vand.u32 %v115, 4294901760
  %v926 = vsub.f32 %v115, %v925
  %927 = vmatpush1.msra.mxu0 %v926
  %928 = vmatprep.subr.mxu0 0.0
  %v929 = vand.u32 %v114, 4294901760
  %v930 = vsub.f32 %v114, %v929
  %931 = vmatpush1.msra.mxu0 %v930
  %932 = vmatprep.subr.mxu0 0.0
  %933 = vmatpush2.msra.mxu0 0.0
  %934 = vmatprep.subr.mxu0 0.0
  %935 = vmatpush2.msra.mxu0 0.0
  %936 = vmatprep.subr.mxu0 0.0
  %937 = vmatpush2.msra.mxu0 0.0
  %938 = vmatprep.subr.mxu0 0.0
  %939 = vmatpush2.msra.mxu0 0.0
  %940 = vmatprep.subr.mxu0 0.0
  %941 = vmatpush2.msra.mxu0 0.0
  %942 = vmatprep.subr.mxu0 0.0
  %943 = vmatpush2.msra.mxu0 0.0
  %944 = vmatprep.subr.mxu0 0.0
  %945 = vmatpush2.msra.mxu0 0.0
  %946 = vmatprep.subr.mxu0 0.0
  %947 = vmatpush2.msra.mxu0 0.0
  %948 = vmatprep.subr.mxu0 0.0
  %949 = vmatpush2.msra.mxu0 0.0
  %950 = vmatprep.subr.mxu0 0.0
  %951 = vmatpush2.msra.mxu0 0.0
  %952 = vmatprep.subr.mxu0 0.0
  %953 = vmatpush2.msra.mxu0 0.0
  %954 = vmatprep.subr.mxu0 0.0
  %955 = vmatpush2.msra.mxu0 0.0
  %956 = vmatprep.subr.mxu0 0.0
  %957 = vmatpush2.msra.mxu0 0.0
  %958 = vmatprep.subr.mxu0 0.0
  %959 = vmatpush2.msra.mxu0 0.0
  %960 = vmatprep.subr.mxu0 0.0
  %961 = vmatpush2.msra.mxu0 0.0
  %962 = vmatprep.subr.mxu0 0.0
  %963 = vmatpush2.msra.mxu0 0.0
  %964 = vmatprep.mubr.f32.mxu0 0.0
  %v965 = vand.u32 %v82, 4294901760
  %v966 = vsub.f32 %v82, %v965
  %967 = vmatmul.mubr.f32.gmra.mxu0 %v966
  %v968 = vpop.f32.mrf.mxu0
  %v969 = vadd.f32 %v679, %v968
  %v970 = vpop.f32.mrf.mxu0
  %971 = vmatprep.mubr.f32.mxu0 0.0
  %v972 = vand.u32 %v83, 4294901760
  %v973 = vsub.f32 %v83, %v972
  %974 = vmatmul.mubr.f32.gmra.mxu0 %v973
  %v975 = vpop.f32.mrf.mxu0
  %v976 = vadd.f32 %v685, %v975
  %v977 = vpop.f32.mrf.mxu0
  %978 = vmatprep.mubr.f32.mxu0 0.0
  %v979 = vand.u32 %v84, 4294901760
  %v980 = vsub.f32 %v84, %v979
  %981 = vmatmul.mubr.f32.gmra.mxu0 %v980
  %v982 = vpop.f32.mrf.mxu0
  %v983 = vadd.f32 %v691, %v982
  %v984 = vpop.f32.mrf.mxu0
  %985 = vmatprep.mubr.f32.mxu0 0.0
  %v986 = vand.u32 %v85, 4294901760
  %v987 = vsub.f32 %v85, %v986
  %988 = vmatmul.mubr.f32.gmra.mxu0 %v987
  %v989 = vpop.f32.mrf.mxu0
  %v990 = vadd.f32 %v697, %v989
  %v991 = vpop.f32.mrf.mxu0
  %992 = vmatprep.mubr.f32.mxu0 0.0
  %v993 = vand.u32 %v86, 4294901760
  %v994 = vsub.f32 %v86, %v993
  %995 = vmatmul.mubr.f32.gmra.mxu0 %v994
  %v996 = vpop.f32.mrf.mxu0
  %v997 = vadd.f32 %v703, %v996
  %v998 = vpop.f32.mrf.mxu0
  %999 = vmatprep.mubr.f32.mxu0 0.0
  %v1000 = vand.u32 %v87, 4294901760
  %v1001 = vsub.f32 %v87, %v1000
  %1002 = vmatmul.mubr.f32.gmra.mxu0 %v1001
  %v1003 = vpop.f32.mrf.mxu0
  %v1004 = vadd.f32 %v709, %v1003
  %v1005 = vpop.f32.mrf.mxu0
  %1006 = vmatprep.mubr.f32.mxu0 0.0
  %v1007 = vand.u32 %v88, 4294901760
  %v1008 = vsub.f32 %v88, %v1007
  %1009 = vmatmul.mubr.f32.gmra.mxu0 %v1008
  %v1010 = vpop.f32.mrf.mxu0
  %v1011 = vadd.f32 %v715, %v1010
  %v1012 = vpop.f32.mrf.mxu0
  %1013 = vmatprep.mubr.f32.mxu0 0.0
  %v1014 = vand.u32 %v89, 4294901760
  %v1015 = vsub.f32 %v89, %v1014
  %1016 = vmatmul.mubr.f32.gmra.mxu0 %v1015
  %v1017 = vpop.f32.mrf.mxu0
  %v1018 = vadd.f32 %v721, %v1017
  %v1019 = vpop.f32.mrf.mxu0
  %1020 = vmatprep.mubr.f32.mxu0 0.0
  %v1021 = vand.u32 %v90, 4294901760
  %v1022 = vsub.f32 %v90, %v1021
  %1023 = vmatmul.mubr.f32.gmra.mxu0 %v1022
  %v1024 = vpop.f32.mrf.mxu0
  %v1025 = vadd.f32 %v727, %v1024
  %v1026 = vpop.f32.mrf.mxu0
  %1027 = vmatprep.mubr.f32.mxu0 0.0
  %v1028 = vand.u32 %v91, 4294901760
  %v1029 = vsub.f32 %v91, %v1028
  %1030 = vmatmul.mubr.f32.gmra.mxu0 %v1029
  %v1031 = vpop.f32.mrf.mxu0
  %v1032 = vadd.f32 %v733, %v1031
  %v1033 = vpop.f32.mrf.mxu0
  %1034 = vmatprep.mubr.f32.mxu0 0.0
  %v1035 = vand.u32 %v92, 4294901760
  %v1036 = vsub.f32 %v92, %v1035
  %1037 = vmatmul.mubr.f32.gmra.mxu0 %v1036
  %v1038 = vpop.f32.mrf.mxu0
  %v1039 = vadd.f32 %v739, %v1038
  %v1040 = vpop.f32.mrf.mxu0
  %1041 = vmatprep.mubr.f32.mxu0 0.0
  %v1042 = vand.u32 %v93, 4294901760
  %v1043 = vsub.f32 %v93, %v1042
  %1044 = vmatmul.mubr.f32.gmra.mxu0 %v1043
  %v1045 = vpop.f32.mrf.mxu0
  %v1046 = vadd.f32 %v745, %v1045
  %v1047 = vpop.f32.mrf.mxu0
  %1048 = vmatprep.mubr.f32.mxu0 0.0
  %v1049 = vand.u32 %v94, 4294901760
  %v1050 = vsub.f32 %v94, %v1049
  %1051 = vmatmul.mubr.f32.gmra.mxu0 %v1050
  %v1052 = vpop.f32.mrf.mxu0
  %v1053 = vadd.f32 %v751, %v1052
  %v1054 = vpop.f32.mrf.mxu0
  %1055 = vmatprep.mubr.f32.mxu0 0.0
  %v1056 = vand.u32 %v95, 4294901760
  %v1057 = vsub.f32 %v95, %v1056
  %1058 = vmatmul.mubr.f32.gmra.mxu0 %v1057
  %v1059 = vpop.f32.mrf.mxu0
  %v1060 = vadd.f32 %v757, %v1059
  %v1061 = vpop.f32.mrf.mxu0
  %1062 = vmatprep.mubr.f32.mxu0 0.0
  %v1063 = vand.u32 %v96, 4294901760
  %v1064 = vsub.f32 %v96, %v1063
  %1065 = vmatmul.mubr.f32.gmra.mxu0 %v1064
  %v1066 = vpop.f32.mrf.mxu0
  %v1067 = vadd.f32 %v763, %v1066
  %v1068 = vpop.f32.mrf.mxu0
  %1069 = vmatprep.mubr.f32.mxu0 0.0
  %v1070 = vand.u32 %v97, 4294901760
  %v1071 = vsub.f32 %v97, %v1070
  %1072 = vmatmul.mubr.f32.gmra.mxu0 %v1071
  %v1073 = vpop.f32.mrf.mxu0
  %v1074 = vadd.f32 %v769, %v1073
  %v1075 = vpop.f32.mrf.mxu0
  %1076 = vmatprep.mubr.f32.mxu0 0.0
  %v1077 = vand.u32 %v98, 4294901760
  %v1078 = vsub.f32 %v98, %v1077
  %1079 = vmatmul.mubr.f32.gmra.mxu0 %v1078
  %v1080 = vpop.f32.mrf.mxu0
  %v1081 = vadd.f32 %v775, %v1080
  %v1082 = vpop.f32.mrf.mxu0
  %1083 = vmatprep.mubr.f32.mxu0 0.0
  %v1084 = vand.u32 %v99, 4294901760
  %v1085 = vsub.f32 %v99, %v1084
  %1086 = vmatmul.mubr.f32.gmra.mxu0 %v1085
  %v1087 = vpop.f32.mrf.mxu0
  %v1088 = vadd.f32 %v781, %v1087
  %v1089 = vpop.f32.mrf.mxu0
  %1090 = vmatprep.mubr.f32.mxu0 0.0
  %v1091 = vand.u32 %v100, 4294901760
  %v1092 = vsub.f32 %v100, %v1091
  %1093 = vmatmul.mubr.f32.gmra.mxu0 %v1092
  %v1094 = vpop.f32.mrf.mxu0
  %v1095 = vadd.f32 %v787, %v1094
  %v1096 = vpop.f32.mrf.mxu0
  %1097 = vmatprep.mubr.f32.mxu0 0.0
  %v1098 = vand.u32 %v101, 4294901760
  %v1099 = vsub.f32 %v101, %v1098
  %1100 = vmatmul.mubr.f32.gmra.mxu0 %v1099
  %v1101 = vpop.f32.mrf.mxu0
  %v1102 = vadd.f32 %v793, %v1101
  %v1103 = vpop.f32.mrf.mxu0
  %1104 = vmatprep.mubr.f32.mxu0 0.0
  %v1105 = vand.u32 %v102, 4294901760
  %v1106 = vsub.f32 %v102, %v1105
  %1107 = vmatmul.mubr.f32.gmra.mxu0 %v1106
  %v1108 = vpop.f32.mrf.mxu0
  %v1109 = vadd.f32 %v799, %v1108
  %v1110 = vpop.f32.mrf.mxu0
  %1111 = vmatprep.mubr.f32.mxu0 0.0
  %v1112 = vand.u32 %v103, 4294901760
  %v1113 = vsub.f32 %v103, %v1112
  %1114 = vmatmul.mubr.f32.gmra.mxu0 %v1113
  %v1115 = vpop.f32.mrf.mxu0
  %v1116 = vadd.f32 %v805, %v1115
  %v1117 = vpop.f32.mrf.mxu0
  %1118 = vmatprep.mubr.f32.mxu0 0.0
  %v1119 = vand.u32 %v104, 4294901760
  %v1120 = vsub.f32 %v104, %v1119
  %1121 = vmatmul.mubr.f32.gmra.mxu0 %v1120
  %v1122 = vpop.f32.mrf.mxu0
  %v1123 = vadd.f32 %v811, %v1122
  %v1124 = vpop.f32.mrf.mxu0
  %1125 = vmatprep.mubr.f32.mxu0 0.0
  %v1126 = vand.u32 %v105, 4294901760
  %v1127 = vsub.f32 %v105, %v1126
  %1128 = vmatmul.mubr.f32.gmra.mxu0 %v1127
  %v1129 = vpop.f32.mrf.mxu0
  %v1130 = vadd.f32 %v817, %v1129
  %v1131 = vpop.f32.mrf.mxu0
  %1132 = vmatprep.mubr.f32.mxu0 0.0
  %v1133 = vand.u32 %v106, 4294901760
  %v1134 = vsub.f32 %v106, %v1133
  %1135 = vmatmul.mubr.f32.gmra.mxu0 %v1134
  %v1136 = vpop.f32.mrf.mxu0
  %v1137 = vadd.f32 %v823, %v1136
  %v1138 = vpop.f32.mrf.mxu0
  %1139 = vmatprep.mubr.f32.mxu0 0.0
  %v1140 = vand.u32 %v107, 4294901760
  %v1141 = vsub.f32 %v107, %v1140
  %1142 = vmatmul.mubr.f32.gmra.mxu0 %v1141
  %v1143 = vpop.f32.mrf.mxu0
  %v1144 = vadd.f32 %v829, %v1143
  %v1145 = vpop.f32.mrf.mxu0
  %1146 = vmatprep.mubr.f32.mxu0 0.0
  %v1147 = vand.u32 %v108, 4294901760
  %v1148 = vsub.f32 %v108, %v1147
  %1149 = vmatmul.mubr.f32.gmra.mxu0 %v1148
  %v1150 = vpop.f32.mrf.mxu0
  %v1151 = vadd.f32 %v835, %v1150
  %v1152 = vpop.f32.mrf.mxu0
  %1153 = vmatprep.mubr.f32.mxu0 0.0
  %v1154 = vand.u32 %v109, 4294901760
  %v1155 = vsub.f32 %v109, %v1154
  %1156 = vmatmul.mubr.f32.gmra.mxu0 %v1155
  %v1157 = vpop.f32.mrf.mxu0
  %v1158 = vadd.f32 %v841, %v1157
  %v1159 = vpop.f32.mrf.mxu0
  %1160 = vmatprep.mubr.f32.mxu0 0.0
  %v1161 = vand.u32 %v110, 4294901760
  %v1162 = vsub.f32 %v110, %v1161
  %1163 = vmatmul.mubr.f32.gmra.mxu0 %v1162
  %v1164 = vpop.f32.mrf.mxu0
  %v1165 = vadd.f32 %v847, %v1164
  %v1166 = vpop.f32.mrf.mxu0
  %1167 = vmatprep.mubr.f32.mxu0 0.0
  %v1168 = vand.u32 %v111, 4294901760
  %v1169 = vsub.f32 %v111, %v1168
  %1170 = vmatmul.mubr.f32.gmra.mxu0 %v1169
  %v1171 = vpop.f32.mrf.mxu0
  %v1172 = vadd.f32 %v853, %v1171
  %v1173 = vpop.f32.mrf.mxu0
  %1174 = vmatprep.mubr.f32.mxu0 0.0
  %v1175 = vand.u32 %v112, 4294901760
  %v1176 = vsub.f32 %v112, %v1175
  %1177 = vmatmul.mubr.f32.gmra.mxu0 %v1176
  %v1178 = vpop.f32.mrf.mxu0
  %v1179 = vadd.f32 %v859, %v1178
  %v1180 = vpop.f32.mrf.mxu0
  %1181 = vmatprep.mubr.f32.mxu0 0.0
  %v1182 = vand.u32 %v113, 4294901760
  %v1183 = vsub.f32 %v113, %v1182
  %1184 = vmatmul.mubr.f32.gmra.mxu0 %v1183
  %v1185 = vpop.f32.mrf.mxu0
  %v1186 = vadd.f32 %v865, %v1185
  %v1187 = vpop.f32.mrf.mxu0
  %1188 = vdwg.mxu0
  %1189 = vmatprep.subr.mxu0 0.0
  %v1190 = vand.u32 %v129, 4294901760
  %1191 = vmatpush1.msra.mxu0 %v1190
  %1192 = vmatprep.subr.mxu0 0.0
  %v1193 = vand.u32 %v128, 4294901760
  %1194 = vmatpush1.msra.mxu0 %v1193
  %1195 = vmatprep.subr.mxu0 0.0
  %v1196 = vand.u32 %v127, 4294901760
  %1197 = vmatpush1.msra.mxu0 %v1196
  %1198 = vmatprep.subr.mxu0 0.0
  %v1199 = vand.u32 %v126, 4294901760
  %1200 = vmatpush1.msra.mxu0 %v1199
  %1201 = vmatprep.subr.mxu0 0.0
  %v1202 = vand.u32 %v125, 4294901760
  %1203 = vmatpush1.msra.mxu0 %v1202
  %1204 = vmatprep.subr.mxu0 0.0
  %v1205 = vand.u32 %v124, 4294901760
  %1206 = vmatpush1.msra.mxu0 %v1205
  %1207 = vmatprep.subr.mxu0 0.0
  %v1208 = vand.u32 %v123, 4294901760
  %1209 = vmatpush1.msra.mxu0 %v1208
  %1210 = vmatprep.subr.mxu0 0.0
  %v1211 = vand.u32 %v122, 4294901760
  %1212 = vmatpush1.msra.mxu0 %v1211
  %1213 = vmatprep.subr.mxu0 0.0
  %v1214 = vand.u32 %v121, 4294901760
  %1215 = vmatpush1.msra.mxu0 %v1214
  %1216 = vmatprep.subr.mxu0 0.0
  %v1217 = vand.u32 %v120, 4294901760
  %1218 = vmatpush1.msra.mxu0 %v1217
  %1219 = vmatprep.subr.mxu0 0.0
  %v1220 = vand.u32 %v119, 4294901760
  %1221 = vmatpush1.msra.mxu0 %v1220
  %1222 = vmatprep.subr.mxu0 0.0
  %v1223 = vand.u32 %v118, 4294901760
  %1224 = vmatpush1.msra.mxu0 %v1223
  %1225 = vmatprep.subr.mxu0 0.0
  %v1226 = vand.u32 %v117, 4294901760
  %1227 = vmatpush1.msra.mxu0 %v1226
  %1228 = vmatprep.subr.mxu0 0.0
  %v1229 = vand.u32 %v116, 4294901760
  %1230 = vmatpush1.msra.mxu0 %v1229
  %1231 = vmatprep.subr.mxu0 0.0
  %v1232 = vand.u32 %v115, 4294901760
  %1233 = vmatpush1.msra.mxu0 %v1232
  %1234 = vmatprep.subr.mxu0 0.0
  %v1235 = vand.u32 %v114, 4294901760
  %1236 = vmatpush1.msra.mxu0 %v1235
  %1237 = vmatprep.subr.mxu0 0.0
  %1238 = vmatpush2.msra.mxu0 0.0
  %1239 = vmatprep.subr.mxu0 0.0
  %1240 = vmatpush2.msra.mxu0 0.0
  %1241 = vmatprep.subr.mxu0 0.0
  %1242 = vmatpush2.msra.mxu0 0.0
  %1243 = vmatprep.subr.mxu0 0.0
  %1244 = vmatpush2.msra.mxu0 0.0
  %1245 = vmatprep.subr.mxu0 0.0
  %1246 = vmatpush2.msra.mxu0 0.0
  %1247 = vmatprep.subr.mxu0 0.0
  %1248 = vmatpush2.msra.mxu0 0.0
  %1249 = vmatprep.subr.mxu0 0.0
  %1250 = vmatpush2.msra.mxu0 0.0
  %1251 = vmatprep.subr.mxu0 0.0
  %1252 = vmatpush2.msra.mxu0 0.0
  %1253 = vmatprep.subr.mxu0 0.0
  %1254 = vmatpush2.msra.mxu0 0.0
  %1255 = vmatprep.subr.mxu0 0.0
  %1256 = vmatpush2.msra.mxu0 0.0
  %1257 = vmatprep.subr.mxu0 0.0
  %1258 = vmatpush2.msra.mxu0 0.0
  %1259 = vmatprep.subr.mxu0 0.0
  %1260 = vmatpush2.msra.mxu0 0.0
  %1261 = vmatprep.subr.mxu0 0.0
  %1262 = vmatpush2.msra.mxu0 0.0
  %1263 = vmatprep.subr.mxu0 0.0
  %1264 = vmatpush2.msra.mxu0 0.0
  %1265 = vmatprep.subr.mxu0 0.0
  %1266 = vmatpush2.msra.mxu0 0.0
  %1267 = vmatprep.subr.mxu0 0.0
  %1268 = vmatpush2.msra.mxu0 0.0
  %1269 = vmatprep.mubr.f32.mxu0 0.0
  %v1270 = vand.u32 %v82, 4294901760
  %v1271 = vsub.f32 %v82, %v1270
  %v1272 = vand.u32 %v1271, 4294901760
  %1273 = vmatmul.mubr.f32.gmra.mxu0 %v1272
  %v1274 = vpop.f32.mrf.mxu0
  %v1275 = vadd.f32 %v969, %v1274
  %v1276 = vpop.f32.mrf.mxu0
  %1277 = vmatprep.mubr.f32.mxu0 0.0
  %v1278 = vand.u32 %v83, 4294901760
  %v1279 = vsub.f32 %v83, %v1278
  %v1280 = vand.u32 %v1279, 4294901760
  %1281 = vmatmul.mubr.f32.gmra.mxu0 %v1280
  %v1282 = vpop.f32.mrf.mxu0
  %v1283 = vadd.f32 %v976, %v1282
  %v1284 = vpop.f32.mrf.mxu0
  %1285 = vmatprep.mubr.f32.mxu0 0.0
  %v1286 = vand.u32 %v84, 4294901760
  %v1287 = vsub.f32 %v84, %v1286
  %v1288 = vand.u32 %v1287, 4294901760
  %1289 = vmatmul.mubr.f32.gmra.mxu0 %v1288
  %v1290 = vpop.f32.mrf.mxu0
  %v1291 = vadd.f32 %v983, %v1290
  %v1292 = vpop.f32.mrf.mxu0
  %1293 = vmatprep.mubr.f32.mxu0 0.0
  %v1294 = vand.u32 %v85, 4294901760
  %v1295 = vsub.f32 %v85, %v1294
  %v1296 = vand.u32 %v1295, 4294901760
  %1297 = vmatmul.mubr.f32.gmra.mxu0 %v1296
  %v1298 = vpop.f32.mrf.mxu0
  %v1299 = vadd.f32 %v990, %v1298
  %v1300 = vpop.f32.mrf.mxu0
  %1301 = vmatprep.mubr.f32.mxu0 0.0
  %v1302 = vand.u32 %v86, 4294901760
  %v1303 = vsub.f32 %v86, %v1302
  %v1304 = vand.u32 %v1303, 4294901760
  %1305 = vmatmul.mubr.f32.gmra.mxu0 %v1304
  %v1306 = vpop.f32.mrf.mxu0
  %v1307 = vadd.f32 %v997, %v1306
  %v1308 = vpop.f32.mrf.mxu0
  %1309 = vmatprep.mubr.f32.mxu0 0.0
  %v1310 = vand.u32 %v87, 4294901760
  %v1311 = vsub.f32 %v87, %v1310
  %v1312 = vand.u32 %v1311, 4294901760
  %1313 = vmatmul.mubr.f32.gmra.mxu0 %v1312
  %v1314 = vpop.f32.mrf.mxu0
  %v1315 = vadd.f32 %v1004, %v1314
  %v1316 = vpop.f32.mrf.mxu0
  %1317 = vmatprep.mubr.f32.mxu0 0.0
  %v1318 = vand.u32 %v88, 4294901760
  %v1319 = vsub.f32 %v88, %v1318
  %v1320 = vand.u32 %v1319, 4294901760
  %1321 = vmatmul.mubr.f32.gmra.mxu0 %v1320
  %v1322 = vpop.f32.mrf.mxu0
  %v1323 = vadd.f32 %v1011, %v1322
  %v1324 = vpop.f32.mrf.mxu0
  %1325 = vmatprep.mubr.f32.mxu0 0.0
  %v1326 = vand.u32 %v89, 4294901760
  %v1327 = vsub.f32 %v89, %v1326
  %v1328 = vand.u32 %v1327, 4294901760
  %1329 = vmatmul.mubr.f32.gmra.mxu0 %v1328
  %v1330 = vpop.f32.mrf.mxu0
  %v1331 = vadd.f32 %v1018, %v1330
  %v1332 = vpop.f32.mrf.mxu0
  %1333 = vmatprep.mubr.f32.mxu0 0.0
  %v1334 = vand.u32 %v90, 4294901760
  %v1335 = vsub.f32 %v90, %v1334
  %v1336 = vand.u32 %v1335, 4294901760
  %1337 = vmatmul.mubr.f32.gmra.mxu0 %v1336
  %v1338 = vpop.f32.mrf.mxu0
  %v1339 = vadd.f32 %v1025, %v1338
  %v1340 = vpop.f32.mrf.mxu0
  %1341 = vmatprep.mubr.f32.mxu0 0.0
  %v1342 = vand.u32 %v91, 4294901760
  %v1343 = vsub.f32 %v91, %v1342
  %v1344 = vand.u32 %v1343, 4294901760
  %1345 = vmatmul.mubr.f32.gmra.mxu0 %v1344
  %v1346 = vpop.f32.mrf.mxu0
  %v1347 = vadd.f32 %v1032, %v1346
  %v1348 = vpop.f32.mrf.mxu0
  %1349 = vmatprep.mubr.f32.mxu0 0.0
  %v1350 = vand.u32 %v92, 4294901760
  %v1351 = vsub.f32 %v92, %v1350
  %v1352 = vand.u32 %v1351, 4294901760
  %1353 = vmatmul.mubr.f32.gmra.mxu0 %v1352
  %v1354 = vpop.f32.mrf.mxu0
  %v1355 = vadd.f32 %v1039, %v1354
  %v1356 = vpop.f32.mrf.mxu0
  %1357 = vmatprep.mubr.f32.mxu0 0.0
  %v1358 = vand.u32 %v93, 4294901760
  %v1359 = vsub.f32 %v93, %v1358
  %v1360 = vand.u32 %v1359, 4294901760
  %1361 = vmatmul.mubr.f32.gmra.mxu0 %v1360
  %v1362 = vpop.f32.mrf.mxu0
  %v1363 = vadd.f32 %v1046, %v1362
  %v1364 = vpop.f32.mrf.mxu0
  %1365 = vmatprep.mubr.f32.mxu0 0.0
  %v1366 = vand.u32 %v94, 4294901760
  %v1367 = vsub.f32 %v94, %v1366
  %v1368 = vand.u32 %v1367, 4294901760
  %1369 = vmatmul.mubr.f32.gmra.mxu0 %v1368
  %v1370 = vpop.f32.mrf.mxu0
  %v1371 = vadd.f32 %v1053, %v1370
  %v1372 = vpop.f32.mrf.mxu0
  %1373 = vmatprep.mubr.f32.mxu0 0.0
  %v1374 = vand.u32 %v95, 4294901760
  %v1375 = vsub.f32 %v95, %v1374
  %v1376 = vand.u32 %v1375, 4294901760
  %1377 = vmatmul.mubr.f32.gmra.mxu0 %v1376
  %v1378 = vpop.f32.mrf.mxu0
  %v1379 = vadd.f32 %v1060, %v1378
  %v1380 = vpop.f32.mrf.mxu0
  %1381 = vmatprep.mubr.f32.mxu0 0.0
  %v1382 = vand.u32 %v96, 4294901760
  %v1383 = vsub.f32 %v96, %v1382
  %v1384 = vand.u32 %v1383, 4294901760
  %1385 = vmatmul.mubr.f32.gmra.mxu0 %v1384
  %v1386 = vpop.f32.mrf.mxu0
  %v1387 = vadd.f32 %v1067, %v1386
  %v1388 = vpop.f32.mrf.mxu0
  %1389 = vmatprep.mubr.f32.mxu0 0.0
  %v1390 = vand.u32 %v97, 4294901760
  %v1391 = vsub.f32 %v97, %v1390
  %v1392 = vand.u32 %v1391, 4294901760
  %1393 = vmatmul.mubr.f32.gmra.mxu0 %v1392
  %v1394 = vpop.f32.mrf.mxu0
  %v1395 = vadd.f32 %v1074, %v1394
  %v1396 = vpop.f32.mrf.mxu0
  %1397 = vmatprep.mubr.f32.mxu0 0.0
  %v1398 = vand.u32 %v98, 4294901760
  %v1399 = vsub.f32 %v98, %v1398
  %v1400 = vand.u32 %v1399, 4294901760
  %1401 = vmatmul.mubr.f32.gmra.mxu0 %v1400
  %v1402 = vpop.f32.mrf.mxu0
  %v1403 = vadd.f32 %v1081, %v1402
  %v1404 = vpop.f32.mrf.mxu0
  %1405 = vmatprep.mubr.f32.mxu0 0.0
  %v1406 = vand.u32 %v99, 4294901760
  %v1407 = vsub.f32 %v99, %v1406
  %v1408 = vand.u32 %v1407, 4294901760
  %1409 = vmatmul.mubr.f32.gmra.mxu0 %v1408
  %v1410 = vpop.f32.mrf.mxu0
  %v1411 = vadd.f32 %v1088, %v1410
  %v1412 = vpop.f32.mrf.mxu0
  %1413 = vmatprep.mubr.f32.mxu0 0.0
  %v1414 = vand.u32 %v100, 4294901760
  %v1415 = vsub.f32 %v100, %v1414
  %v1416 = vand.u32 %v1415, 4294901760
  %1417 = vmatmul.mubr.f32.gmra.mxu0 %v1416
  %v1418 = vpop.f32.mrf.mxu0
  %v1419 = vadd.f32 %v1095, %v1418
  %v1420 = vpop.f32.mrf.mxu0
  %1421 = vmatprep.mubr.f32.mxu0 0.0
  %v1422 = vand.u32 %v101, 4294901760
  %v1423 = vsub.f32 %v101, %v1422
  %v1424 = vand.u32 %v1423, 4294901760
  %1425 = vmatmul.mubr.f32.gmra.mxu0 %v1424
  %v1426 = vpop.f32.mrf.mxu0
  %v1427 = vadd.f32 %v1102, %v1426
  %v1428 = vpop.f32.mrf.mxu0
  %1429 = vmatprep.mubr.f32.mxu0 0.0
  %v1430 = vand.u32 %v102, 4294901760
  %v1431 = vsub.f32 %v102, %v1430
  %v1432 = vand.u32 %v1431, 4294901760
  %1433 = vmatmul.mubr.f32.gmra.mxu0 %v1432
  %v1434 = vpop.f32.mrf.mxu0
  %v1435 = vadd.f32 %v1109, %v1434
  %v1436 = vpop.f32.mrf.mxu0
  %1437 = vmatprep.mubr.f32.mxu0 0.0
  %v1438 = vand.u32 %v103, 4294901760
  %v1439 = vsub.f32 %v103, %v1438
  %v1440 = vand.u32 %v1439, 4294901760
  %1441 = vmatmul.mubr.f32.gmra.mxu0 %v1440
  %v1442 = vpop.f32.mrf.mxu0
  %v1443 = vadd.f32 %v1116, %v1442
  %v1444 = vpop.f32.mrf.mxu0
  %1445 = vmatprep.mubr.f32.mxu0 0.0
  %v1446 = vand.u32 %v104, 4294901760
  %v1447 = vsub.f32 %v104, %v1446
  %v1448 = vand.u32 %v1447, 4294901760
  %1449 = vmatmul.mubr.f32.gmra.mxu0 %v1448
  %v1450 = vpop.f32.mrf.mxu0
  %v1451 = vadd.f32 %v1123, %v1450
  %v1452 = vpop.f32.mrf.mxu0
  %1453 = vmatprep.mubr.f32.mxu0 0.0
  %v1454 = vand.u32 %v105, 4294901760
  %v1455 = vsub.f32 %v105, %v1454
  %v1456 = vand.u32 %v1455, 4294901760
  %1457 = vmatmul.mubr.f32.gmra.mxu0 %v1456
  %v1458 = vpop.f32.mrf.mxu0
  %v1459 = vadd.f32 %v1130, %v1458
  %v1460 = vpop.f32.mrf.mxu0
  %1461 = vmatprep.mubr.f32.mxu0 0.0
  %v1462 = vand.u32 %v106, 4294901760
  %v1463 = vsub.f32 %v106, %v1462
  %v1464 = vand.u32 %v1463, 4294901760
  %1465 = vmatmul.mubr.f32.gmra.mxu0 %v1464
  %v1466 = vpop.f32.mrf.mxu0
  %v1467 = vadd.f32 %v1137, %v1466
  %v1468 = vpop.f32.mrf.mxu0
  %1469 = vmatprep.mubr.f32.mxu0 0.0
  %v1470 = vand.u32 %v107, 4294901760
  %v1471 = vsub.f32 %v107, %v1470
  %v1472 = vand.u32 %v1471, 4294901760
  %1473 = vmatmul.mubr.f32.gmra.mxu0 %v1472
  %v1474 = vpop.f32.mrf.mxu0
  %v1475 = vadd.f32 %v1144, %v1474
  %v1476 = vpop.f32.mrf.mxu0
  %1477 = vmatprep.mubr.f32.mxu0 0.0
  %v1478 = vand.u32 %v108, 4294901760
  %v1479 = vsub.f32 %v108, %v1478
  %v1480 = vand.u32 %v1479, 4294901760
  %1481 = vmatmul.mubr.f32.gmra.mxu0 %v1480
  %v1482 = vpop.f32.mrf.mxu0
  %v1483 = vadd.f32 %v1151, %v1482
  %v1484 = vpop.f32.mrf.mxu0
  %1485 = vmatprep.mubr.f32.mxu0 0.0
  %v1486 = vand.u32 %v109, 4294901760
  %v1487 = vsub.f32 %v109, %v1486
  %v1488 = vand.u32 %v1487, 4294901760
  %1489 = vmatmul.mubr.f32.gmra.mxu0 %v1488
  %v1490 = vpop.f32.mrf.mxu0
  %v1491 = vadd.f32 %v1158, %v1490
  %v1492 = vpop.f32.mrf.mxu0
  %1493 = vmatprep.mubr.f32.mxu0 0.0
  %v1494 = vand.u32 %v110, 4294901760
  %v1495 = vsub.f32 %v110, %v1494
  %v1496 = vand.u32 %v1495, 4294901760
  %1497 = vmatmul.mubr.f32.gmra.mxu0 %v1496
  %v1498 = vpop.f32.mrf.mxu0
  %v1499 = vadd.f32 %v1165, %v1498
  %v1500 = vpop.f32.mrf.mxu0
  %1501 = vmatprep.mubr.f32.mxu0 0.0
  %v1502 = vand.u32 %v111, 4294901760
  %v1503 = vsub.f32 %v111, %v1502
  %v1504 = vand.u32 %v1503, 4294901760
  %1505 = vmatmul.mubr.f32.gmra.mxu0 %v1504
  %v1506 = vpop.f32.mrf.mxu0
  %v1507 = vadd.f32 %v1172, %v1506
  %v1508 = vpop.f32.mrf.mxu0
  %1509 = vmatprep.mubr.f32.mxu0 0.0
  %v1510 = vand.u32 %v112, 4294901760
  %v1511 = vsub.f32 %v112, %v1510
  %v1512 = vand.u32 %v1511, 4294901760
  %1513 = vmatmul.mubr.f32.gmra.mxu0 %v1512
  %v1514 = vpop.f32.mrf.mxu0
  %v1515 = vadd.f32 %v1179, %v1514
  %v1516 = vpop.f32.mrf.mxu0
  %1517 = vmatprep.mubr.f32.mxu0 0.0
  %v1518 = vand.u32 %v113, 4294901760
  %v1519 = vsub.f32 %v113, %v1518
  %v1520 = vand.u32 %v1519, 4294901760
  %1521 = vmatmul.mubr.f32.gmra.mxu0 %v1520
  %v1522 = vpop.f32.mrf.mxu0
  %v1523 = vadd.f32 %v1186, %v1522
  %v1524 = vpop.f32.mrf.mxu0
  %1525 = vdwg.mxu0
  %1526 = vmatprep.subr.mxu0 0.0
  %v1527 = vand.u32 %v129, 4294901760
  %v1528 = vsub.f32 %v129, %v1527
  %v1529 = vand.u32 %v1528, 4294901760
  %1530 = vmatpush1.msra.mxu0 %v1529
  %1531 = vmatprep.subr.mxu0 0.0
  %v1532 = vand.u32 %v128, 4294901760
  %v1533 = vsub.f32 %v128, %v1532
  %v1534 = vand.u32 %v1533, 4294901760
  %1535 = vmatpush1.msra.mxu0 %v1534
  %1536 = vmatprep.subr.mxu0 0.0
  %v1537 = vand.u32 %v127, 4294901760
  %v1538 = vsub.f32 %v127, %v1537
  %v1539 = vand.u32 %v1538, 4294901760
  %1540 = vmatpush1.msra.mxu0 %v1539
  %1541 = vmatprep.subr.mxu0 0.0
  %v1542 = vand.u32 %v126, 4294901760
  %v1543 = vsub.f32 %v126, %v1542
  %v1544 = vand.u32 %v1543, 4294901760
  %1545 = vmatpush1.msra.mxu0 %v1544
  %1546 = vmatprep.subr.mxu0 0.0
  %v1547 = vand.u32 %v125, 4294901760
  %v1548 = vsub.f32 %v125, %v1547
  %v1549 = vand.u32 %v1548, 4294901760
  %1550 = vmatpush1.msra.mxu0 %v1549
  %1551 = vmatprep.subr.mxu0 0.0
  %v1552 = vand.u32 %v124, 4294901760
  %v1553 = vsub.f32 %v124, %v1552
  %v1554 = vand.u32 %v1553, 4294901760
  %1555 = vmatpush1.msra.mxu0 %v1554
  %1556 = vmatprep.subr.mxu0 0.0
  %v1557 = vand.u32 %v123, 4294901760
  %v1558 = vsub.f32 %v123, %v1557
  %v1559 = vand.u32 %v1558, 4294901760
  %1560 = vmatpush1.msra.mxu0 %v1559
  %1561 = vmatprep.subr.mxu0 0.0
  %v1562 = vand.u32 %v122, 4294901760
  %v1563 = vsub.f32 %v122, %v1562
  %v1564 = vand.u32 %v1563, 4294901760
  %1565 = vmatpush1.msra.mxu0 %v1564
  %1566 = vmatprep.subr.mxu0 0.0
  %v1567 = vand.u32 %v121, 4294901760
  %v1568 = vsub.f32 %v121, %v1567
  %v1569 = vand.u32 %v1568, 4294901760
  %1570 = vmatpush1.msra.mxu0 %v1569
  %1571 = vmatprep.subr.mxu0 0.0
  %v1572 = vand.u32 %v120, 4294901760
  %v1573 = vsub.f32 %v120, %v1572
  %v1574 = vand.u32 %v1573, 4294901760
  %1575 = vmatpush1.msra.mxu0 %v1574
  %1576 = vmatprep.subr.mxu0 0.0
  %v1577 = vand.u32 %v119, 4294901760
  %v1578 = vsub.f32 %v119, %v1577
  %v1579 = vand.u32 %v1578, 4294901760
  %1580 = vmatpush1.msra.mxu0 %v1579
  %1581 = vmatprep.subr.mxu0 0.0
  %v1582 = vand.u32 %v118, 4294901760
  %v1583 = vsub.f32 %v118, %v1582
  %v1584 = vand.u32 %v1583, 4294901760
  %1585 = vmatpush1.msra.mxu0 %v1584
  %1586 = vmatprep.subr.mxu0 0.0
  %v1587 = vand.u32 %v117, 4294901760
  %v1588 = vsub.f32 %v117, %v1587
  %v1589 = vand.u32 %v1588, 4294901760
  %1590 = vmatpush1.msra.mxu0 %v1589
  %1591 = vmatprep.subr.mxu0 0.0
  %v1592 = vand.u32 %v116, 4294901760
  %v1593 = vsub.f32 %v116, %v1592
  %v1594 = vand.u32 %v1593, 4294901760
  %1595 = vmatpush1.msra.mxu0 %v1594
  %1596 = vmatprep.subr.mxu0 0.0
  %v1597 = vand.u32 %v115, 4294901760
  %v1598 = vsub.f32 %v115, %v1597
  %v1599 = vand.u32 %v1598, 4294901760
  %1600 = vmatpush1.msra.mxu0 %v1599
  %1601 = vmatprep.subr.mxu0 0.0
  %v1602 = vand.u32 %v114, 4294901760
  %v1603 = vsub.f32 %v114, %v1602
  %v1604 = vand.u32 %v1603, 4294901760
  %1605 = vmatpush1.msra.mxu0 %v1604
  %1606 = vmatprep.subr.mxu0 0.0
  %1607 = vmatpush2.msra.mxu0 0.0
  %1608 = vmatprep.subr.mxu0 0.0
  %1609 = vmatpush2.msra.mxu0 0.0
  %1610 = vmatprep.subr.mxu0 0.0
  %1611 = vmatpush2.msra.mxu0 0.0
  %1612 = vmatprep.subr.mxu0 0.0
  %1613 = vmatpush2.msra.mxu0 0.0
  %1614 = vmatprep.subr.mxu0 0.0
  %1615 = vmatpush2.msra.mxu0 0.0
  %1616 = vmatprep.subr.mxu0 0.0
  %1617 = vmatpush2.msra.mxu0 0.0
  %1618 = vmatprep.subr.mxu0 0.0
  %1619 = vmatpush2.msra.mxu0 0.0
  %1620 = vmatprep.subr.mxu0 0.0
  %1621 = vmatpush2.msra.mxu0 0.0
  %1622 = vmatprep.subr.mxu0 0.0
  %1623 = vmatpush2.msra.mxu0 0.0
  %1624 = vmatprep.subr.mxu0 0.0
  %1625 = vmatpush2.msra.mxu0 0.0
  %1626 = vmatprep.subr.mxu0 0.0
  %1627 = vmatpush2.msra.mxu0 0.0
  %1628 = vmatprep.subr.mxu0 0.0
  %1629 = vmatpush2.msra.mxu0 0.0
  %1630 = vmatprep.subr.mxu0 0.0
  %1631 = vmatpush2.msra.mxu0 0.0
  %1632 = vmatprep.subr.mxu0 0.0
  %1633 = vmatpush2.msra.mxu0 0.0
  %1634 = vmatprep.subr.mxu0 0.0
  %1635 = vmatpush2.msra.mxu0 0.0
  %1636 = vmatprep.subr.mxu0 0.0
  %1637 = vmatpush2.msra.mxu0 0.0
  %1638 = vmatprep.mubr.f32.mxu0 0.0
  %v1639 = vand.u32 %v82, 4294901760
  %1640 = vmatmul.mubr.f32.gmra.mxu0 %v1639
  %v1641 = vpop.f32.mrf.mxu0
  %v1642 = vadd.f32 %v1275, %v1641
  %v1643 = vpop.f32.mrf.mxu0
  %1644 = vmatprep.mubr.f32.mxu0 0.0
  %v1645 = vand.u32 %v83, 4294901760
  %1646 = vmatmul.mubr.f32.gmra.mxu0 %v1645
  %v1647 = vpop.f32.mrf.mxu0
  %v1648 = vadd.f32 %v1283, %v1647
  %v1649 = vpop.f32.mrf.mxu0
  %1650 = vmatprep.mubr.f32.mxu0 0.0
  %v1651 = vand.u32 %v84, 4294901760
  %1652 = vmatmul.mubr.f32.gmra.mxu0 %v1651
  %v1653 = vpop.f32.mrf.mxu0
  %v1654 = vadd.f32 %v1291, %v1653
  %v1655 = vpop.f32.mrf.mxu0
  %1656 = vmatprep.mubr.f32.mxu0 0.0
  %v1657 = vand.u32 %v85, 4294901760
  %1658 = vmatmul.mubr.f32.gmra.mxu0 %v1657
  %v1659 = vpop.f32.mrf.mxu0
  %v1660 = vadd.f32 %v1299, %v1659
  %v1661 = vpop.f32.mrf.mxu0
  %1662 = vmatprep.mubr.f32.mxu0 0.0
  %v1663 = vand.u32 %v86, 4294901760
  %1664 = vmatmul.mubr.f32.gmra.mxu0 %v1663
  %v1665 = vpop.f32.mrf.mxu0
  %v1666 = vadd.f32 %v1307, %v1665
  %v1667 = vpop.f32.mrf.mxu0
  %1668 = vmatprep.mubr.f32.mxu0 0.0
  %v1669 = vand.u32 %v87, 4294901760
  %1670 = vmatmul.mubr.f32.gmra.mxu0 %v1669
  %v1671 = vpop.f32.mrf.mxu0
  %v1672 = vadd.f32 %v1315, %v1671
  %v1673 = vpop.f32.mrf.mxu0
  %1674 = vmatprep.mubr.f32.mxu0 0.0
  %v1675 = vand.u32 %v88, 4294901760
  %1676 = vmatmul.mubr.f32.gmra.mxu0 %v1675
  %v1677 = vpop.f32.mrf.mxu0
  %v1678 = vadd.f32 %v1323, %v1677
  %v1679 = vpop.f32.mrf.mxu0
  %1680 = vmatprep.mubr.f32.mxu0 0.0
  %v1681 = vand.u32 %v89, 4294901760
  %1682 = vmatmul.mubr.f32.gmra.mxu0 %v1681
  %v1683 = vpop.f32.mrf.mxu0
  %v1684 = vadd.f32 %v1331, %v1683
  %v1685 = vpop.f32.mrf.mxu0
  %1686 = vmatprep.mubr.f32.mxu0 0.0
  %v1687 = vand.u32 %v90, 4294901760
  %1688 = vmatmul.mubr.f32.gmra.mxu0 %v1687
  %v1689 = vpop.f32.mrf.mxu0
  %v1690 = vadd.f32 %v1339, %v1689
  %v1691 = vpop.f32.mrf.mxu0
  %1692 = vmatprep.mubr.f32.mxu0 0.0
  %v1693 = vand.u32 %v91, 4294901760
  %1694 = vmatmul.mubr.f32.gmra.mxu0 %v1693
  %v1695 = vpop.f32.mrf.mxu0
  %v1696 = vadd.f32 %v1347, %v1695
  %v1697 = vpop.f32.mrf.mxu0
  %1698 = vmatprep.mubr.f32.mxu0 0.0
  %v1699 = vand.u32 %v92, 4294901760
  %1700 = vmatmul.mubr.f32.gmra.mxu0 %v1699
  %v1701 = vpop.f32.mrf.mxu0
  %v1702 = vadd.f32 %v1355, %v1701
  %v1703 = vpop.f32.mrf.mxu0
  %1704 = vmatprep.mubr.f32.mxu0 0.0
  %v1705 = vand.u32 %v93, 4294901760
  %1706 = vmatmul.mubr.f32.gmra.mxu0 %v1705
  %v1707 = vpop.f32.mrf.mxu0
  %v1708 = vadd.f32 %v1363, %v1707
  %v1709 = vpop.f32.mrf.mxu0
  %1710 = vmatprep.mubr.f32.mxu0 0.0
  %v1711 = vand.u32 %v94, 4294901760
  %1712 = vmatmul.mubr.f32.gmra.mxu0 %v1711
  %v1713 = vpop.f32.mrf.mxu0
  %v1714 = vadd.f32 %v1371, %v1713
  %v1715 = vpop.f32.mrf.mxu0
  %1716 = vmatprep.mubr.f32.mxu0 0.0
  %v1717 = vand.u32 %v95, 4294901760
  %1718 = vmatmul.mubr.f32.gmra.mxu0 %v1717
  %v1719 = vpop.f32.mrf.mxu0
  %v1720 = vadd.f32 %v1379, %v1719
  %v1721 = vpop.f32.mrf.mxu0
  %1722 = vmatprep.mubr.f32.mxu0 0.0
  %v1723 = vand.u32 %v96, 4294901760
  %1724 = vmatmul.mubr.f32.gmra.mxu0 %v1723
  %v1725 = vpop.f32.mrf.mxu0
  %v1726 = vadd.f32 %v1387, %v1725
  %v1727 = vpop.f32.mrf.mxu0
  %1728 = vmatprep.mubr.f32.mxu0 0.0
  %v1729 = vand.u32 %v97, 4294901760
  %1730 = vmatmul.mubr.f32.gmra.mxu0 %v1729
  %v1731 = vpop.f32.mrf.mxu0
  %v1732 = vadd.f32 %v1395, %v1731
  %v1733 = vpop.f32.mrf.mxu0
  %1734 = vmatprep.mubr.f32.mxu0 0.0
  %v1735 = vand.u32 %v98, 4294901760
  %1736 = vmatmul.mubr.f32.gmra.mxu0 %v1735
  %v1737 = vpop.f32.mrf.mxu0
  %v1738 = vadd.f32 %v1403, %v1737
  %v1739 = vpop.f32.mrf.mxu0
  %1740 = vmatprep.mubr.f32.mxu0 0.0
  %v1741 = vand.u32 %v99, 4294901760
  %1742 = vmatmul.mubr.f32.gmra.mxu0 %v1741
  %v1743 = vpop.f32.mrf.mxu0
  %v1744 = vadd.f32 %v1411, %v1743
  %v1745 = vpop.f32.mrf.mxu0
  %1746 = vmatprep.mubr.f32.mxu0 0.0
  %v1747 = vand.u32 %v100, 4294901760
  %1748 = vmatmul.mubr.f32.gmra.mxu0 %v1747
  %v1749 = vpop.f32.mrf.mxu0
  %v1750 = vadd.f32 %v1419, %v1749
  %v1751 = vpop.f32.mrf.mxu0
  %1752 = vmatprep.mubr.f32.mxu0 0.0
  %v1753 = vand.u32 %v101, 4294901760
  %1754 = vmatmul.mubr.f32.gmra.mxu0 %v1753
  %v1755 = vpop.f32.mrf.mxu0
  %v1756 = vadd.f32 %v1427, %v1755
  %v1757 = vpop.f32.mrf.mxu0
  %1758 = vmatprep.mubr.f32.mxu0 0.0
  %v1759 = vand.u32 %v102, 4294901760
  %1760 = vmatmul.mubr.f32.gmra.mxu0 %v1759
  %v1761 = vpop.f32.mrf.mxu0
  %v1762 = vadd.f32 %v1435, %v1761
  %v1763 = vpop.f32.mrf.mxu0
  %1764 = vmatprep.mubr.f32.mxu0 0.0
  %v1765 = vand.u32 %v103, 4294901760
  %1766 = vmatmul.mubr.f32.gmra.mxu0 %v1765
  %v1767 = vpop.f32.mrf.mxu0
  %v1768 = vadd.f32 %v1443, %v1767
  %v1769 = vpop.f32.mrf.mxu0
  %1770 = vmatprep.mubr.f32.mxu0 0.0
  %v1771 = vand.u32 %v104, 4294901760
  %1772 = vmatmul.mubr.f32.gmra.mxu0 %v1771
  %v1773 = vpop.f32.mrf.mxu0
  %v1774 = vadd.f32 %v1451, %v1773
  %v1775 = vpop.f32.mrf.mxu0
  %1776 = vmatprep.mubr.f32.mxu0 0.0
  %v1777 = vand.u32 %v105, 4294901760
  %1778 = vmatmul.mubr.f32.gmra.mxu0 %v1777
  %v1779 = vpop.f32.mrf.mxu0
  %v1780 = vadd.f32 %v1459, %v1779
  %v1781 = vpop.f32.mrf.mxu0
  %1782 = vmatprep.mubr.f32.mxu0 0.0
  %v1783 = vand.u32 %v106, 4294901760
  %1784 = vmatmul.mubr.f32.gmra.mxu0 %v1783
  %v1785 = vpop.f32.mrf.mxu0
  %v1786 = vadd.f32 %v1467, %v1785
  %v1787 = vpop.f32.mrf.mxu0
  %1788 = vmatprep.mubr.f32.mxu0 0.0
  %v1789 = vand.u32 %v107, 4294901760
  %1790 = vmatmul.mubr.f32.gmra.mxu0 %v1789
  %v1791 = vpop.f32.mrf.mxu0
  %v1792 = vadd.f32 %v1475, %v1791
  %v1793 = vpop.f32.mrf.mxu0
  %1794 = vmatprep.mubr.f32.mxu0 0.0
  %v1795 = vand.u32 %v108, 4294901760
  %1796 = vmatmul.mubr.f32.gmra.mxu0 %v1795
  %v1797 = vpop.f32.mrf.mxu0
  %v1798 = vadd.f32 %v1483, %v1797
  %v1799 = vpop.f32.mrf.mxu0
  %1800 = vmatprep.mubr.f32.mxu0 0.0
  %v1801 = vand.u32 %v109, 4294901760
  %1802 = vmatmul.mubr.f32.gmra.mxu0 %v1801
  %v1803 = vpop.f32.mrf.mxu0
  %v1804 = vadd.f32 %v1491, %v1803
  %v1805 = vpop.f32.mrf.mxu0
  %1806 = vmatprep.mubr.f32.mxu0 0.0
  %v1807 = vand.u32 %v110, 4294901760
  %1808 = vmatmul.mubr.f32.gmra.mxu0 %v1807
  %v1809 = vpop.f32.mrf.mxu0
  %v1810 = vadd.f32 %v1499, %v1809
  %v1811 = vpop.f32.mrf.mxu0
  %1812 = vmatprep.mubr.f32.mxu0 0.0
  %v1813 = vand.u32 %v111, 4294901760
  %1814 = vmatmul.mubr.f32.gmra.mxu0 %v1813
  %v1815 = vpop.f32.mrf.mxu0
  %v1816 = vadd.f32 %v1507, %v1815
  %v1817 = vpop.f32.mrf.mxu0
  %1818 = vmatprep.mubr.f32.mxu0 0.0
  %v1819 = vand.u32 %v112, 4294901760
  %1820 = vmatmul.mubr.f32.gmra.mxu0 %v1819
  %v1821 = vpop.f32.mrf.mxu0
  %v1822 = vadd.f32 %v1515, %v1821
  %v1823 = vpop.f32.mrf.mxu0
  %1824 = vmatprep.mubr.f32.mxu0 0.0
  %v1825 = vand.u32 %v113, 4294901760
  %1826 = vmatmul.mubr.f32.gmra.mxu0 %v1825
  %v1827 = vpop.f32.mrf.mxu0
  %v1828 = vadd.f32 %v1523, %v1827
  %v1829 = vpop.f32.mrf.mxu0
  %1830 = vdwg.mxu0
  %1831 = vmatprep.subr.mxu0 0.0
  %v1832 = vand.u32 %v129, 4294901760
  %1833 = vmatpush1.msra.mxu0 %v1832
  %1834 = vmatprep.subr.mxu0 0.0
  %v1835 = vand.u32 %v128, 4294901760
  %1836 = vmatpush1.msra.mxu0 %v1835
  %1837 = vmatprep.subr.mxu0 0.0
  %v1838 = vand.u32 %v127, 4294901760
  %1839 = vmatpush1.msra.mxu0 %v1838
  %1840 = vmatprep.subr.mxu0 0.0
  %v1841 = vand.u32 %v126, 4294901760
  %1842 = vmatpush1.msra.mxu0 %v1841
  %1843 = vmatprep.subr.mxu0 0.0
  %v1844 = vand.u32 %v125, 4294901760
  %1845 = vmatpush1.msra.mxu0 %v1844
  %1846 = vmatprep.subr.mxu0 0.0
  %v1847 = vand.u32 %v124, 4294901760
  %1848 = vmatpush1.msra.mxu0 %v1847
  %1849 = vmatprep.subr.mxu0 0.0
  %v1850 = vand.u32 %v123, 4294901760
  %1851 = vmatpush1.msra.mxu0 %v1850
  %1852 = vmatprep.subr.mxu0 0.0
  %v1853 = vand.u32 %v122, 4294901760
  %1854 = vmatpush1.msra.mxu0 %v1853
  %1855 = vmatprep.subr.mxu0 0.0
  %v1856 = vand.u32 %v121, 4294901760
  %1857 = vmatpush1.msra.mxu0 %v1856
  %1858 = vmatprep.subr.mxu0 0.0
  %v1859 = vand.u32 %v120, 4294901760
  %1860 = vmatpush1.msra.mxu0 %v1859
  %1861 = vmatprep.subr.mxu0 0.0
  %v1862 = vand.u32 %v119, 4294901760
  %1863 = vmatpush1.msra.mxu0 %v1862
  %1864 = vmatprep.subr.mxu0 0.0
  %v1865 = vand.u32 %v118, 4294901760
  %1866 = vmatpush1.msra.mxu0 %v1865
  %1867 = vmatprep.subr.mxu0 0.0
  %v1868 = vand.u32 %v117, 4294901760
  %1869 = vmatpush1.msra.mxu0 %v1868
  %1870 = vmatprep.subr.mxu0 0.0
  %v1871 = vand.u32 %v116, 4294901760
  %1872 = vmatpush1.msra.mxu0 %v1871
  %1873 = vmatprep.subr.mxu0 0.0
  %v1874 = vand.u32 %v115, 4294901760
  %1875 = vmatpush1.msra.mxu0 %v1874
  %1876 = vmatprep.subr.mxu0 0.0
  %v1877 = vand.u32 %v114, 4294901760
  %1878 = vmatpush1.msra.mxu0 %v1877
  %1879 = vmatprep.subr.mxu0 0.0
  %1880 = vmatpush2.msra.mxu0 0.0
  %1881 = vmatprep.subr.mxu0 0.0
  %1882 = vmatpush2.msra.mxu0 0.0
  %1883 = vmatprep.subr.mxu0 0.0
  %1884 = vmatpush2.msra.mxu0 0.0
  %1885 = vmatprep.subr.mxu0 0.0
  %1886 = vmatpush2.msra.mxu0 0.0
  %1887 = vmatprep.subr.mxu0 0.0
  %1888 = vmatpush2.msra.mxu0 0.0
  %1889 = vmatprep.subr.mxu0 0.0
  %1890 = vmatpush2.msra.mxu0 0.0
  %1891 = vmatprep.subr.mxu0 0.0
  %1892 = vmatpush2.msra.mxu0 0.0
  %1893 = vmatprep.subr.mxu0 0.0
  %1894 = vmatpush2.msra.mxu0 0.0
  %1895 = vmatprep.subr.mxu0 0.0
  %1896 = vmatpush2.msra.mxu0 0.0
  %1897 = vmatprep.subr.mxu0 0.0
  %1898 = vmatpush2.msra.mxu0 0.0
  %1899 = vmatprep.subr.mxu0 0.0
  %1900 = vmatpush2.msra.mxu0 0.0
  %1901 = vmatprep.subr.mxu0 0.0
  %1902 = vmatpush2.msra.mxu0 0.0
  %1903 = vmatprep.subr.mxu0 0.0
  %1904 = vmatpush2.msra.mxu0 0.0
  %1905 = vmatprep.subr.mxu0 0.0
  %1906 = vmatpush2.msra.mxu0 0.0
  %1907 = vmatprep.subr.mxu0 0.0
  %1908 = vmatpush2.msra.mxu0 0.0
  %1909 = vmatprep.subr.mxu0 0.0
  %1910 = vmatpush2.msra.mxu0 0.0
  %1911 = vmatprep.mubr.f32.mxu0 0.0
  %v1912 = vand.u32 %v82, 4294901760
  %1913 = vmatmul.mubr.f32.gmra.mxu0 %v1912
  %v1914 = vpop.f32.mrf.mxu0
  %v1915 = vadd.f32 %v1642, %v1914
  %v1916 = vpop.f32.mrf.mxu0
  %1917 = vmatprep.mubr.f32.mxu0 0.0
  %v1918 = vand.u32 %v83, 4294901760
  %1919 = vmatmul.mubr.f32.gmra.mxu0 %v1918
  %v1920 = vpop.f32.mrf.mxu0
  %v1921 = vadd.f32 %v1648, %v1920
  %v1922 = vpop.f32.mrf.mxu0
  %1923 = vmatprep.mubr.f32.mxu0 0.0
  %v1924 = vand.u32 %v84, 4294901760
  %1925 = vmatmul.mubr.f32.gmra.mxu0 %v1924
  %v1926 = vpop.f32.mrf.mxu0
  %v1927 = vadd.f32 %v1654, %v1926
  %v1928 = vpop.f32.mrf.mxu0
  %1929 = vmatprep.mubr.f32.mxu0 0.0
  %v1930 = vand.u32 %v85, 4294901760
  %1931 = vmatmul.mubr.f32.gmra.mxu0 %v1930
  %v1932 = vpop.f32.mrf.mxu0
  %v1933 = vadd.f32 %v1660, %v1932
  %v1934 = vpop.f32.mrf.mxu0
  %1935 = vmatprep.mubr.f32.mxu0 0.0
  %v1936 = vand.u32 %v86, 4294901760
  %1937 = vmatmul.mubr.f32.gmra.mxu0 %v1936
  %v1938 = vpop.f32.mrf.mxu0
  %v1939 = vadd.f32 %v1666, %v1938
  %v1940 = vpop.f32.mrf.mxu0
  %1941 = vmatprep.mubr.f32.mxu0 0.0
  %v1942 = vand.u32 %v87, 4294901760
  %1943 = vmatmul.mubr.f32.gmra.mxu0 %v1942
  %v1944 = vpop.f32.mrf.mxu0
  %v1945 = vadd.f32 %v1672, %v1944
  %v1946 = vpop.f32.mrf.mxu0
  %1947 = vmatprep.mubr.f32.mxu0 0.0
  %v1948 = vand.u32 %v88, 4294901760
  %1949 = vmatmul.mubr.f32.gmra.mxu0 %v1948
  %v1950 = vpop.f32.mrf.mxu0
  %v1951 = vadd.f32 %v1678, %v1950
  %v1952 = vpop.f32.mrf.mxu0
  %1953 = vmatprep.mubr.f32.mxu0 0.0
  %v1954 = vand.u32 %v89, 4294901760
  %1955 = vmatmul.mubr.f32.gmra.mxu0 %v1954
  %v1956 = vpop.f32.mrf.mxu0
  %v1957 = vadd.f32 %v1684, %v1956
  %v1958 = vpop.f32.mrf.mxu0
  %1959 = vmatprep.mubr.f32.mxu0 0.0
  %v1960 = vand.u32 %v90, 4294901760
  %1961 = vmatmul.mubr.f32.gmra.mxu0 %v1960
  %v1962 = vpop.f32.mrf.mxu0
  %v1963 = vadd.f32 %v1690, %v1962
  %v1964 = vpop.f32.mrf.mxu0
  %1965 = vmatprep.mubr.f32.mxu0 0.0
  %v1966 = vand.u32 %v91, 4294901760
  %1967 = vmatmul.mubr.f32.gmra.mxu0 %v1966
  %v1968 = vpop.f32.mrf.mxu0
  %v1969 = vadd.f32 %v1696, %v1968
  %v1970 = vpop.f32.mrf.mxu0
  %1971 = vmatprep.mubr.f32.mxu0 0.0
  %v1972 = vand.u32 %v92, 4294901760
  %1973 = vmatmul.mubr.f32.gmra.mxu0 %v1972
  %v1974 = vpop.f32.mrf.mxu0
  %v1975 = vadd.f32 %v1702, %v1974
  %v1976 = vpop.f32.mrf.mxu0
  %1977 = vmatprep.mubr.f32.mxu0 0.0
  %v1978 = vand.u32 %v93, 4294901760
  %1979 = vmatmul.mubr.f32.gmra.mxu0 %v1978
  %v1980 = vpop.f32.mrf.mxu0
  %v1981 = vadd.f32 %v1708, %v1980
  %v1982 = vpop.f32.mrf.mxu0
  %1983 = vmatprep.mubr.f32.mxu0 0.0
  %v1984 = vand.u32 %v94, 4294901760
  %1985 = vmatmul.mubr.f32.gmra.mxu0 %v1984
  %v1986 = vpop.f32.mrf.mxu0
  %v1987 = vadd.f32 %v1714, %v1986
  %v1988 = vpop.f32.mrf.mxu0
  %1989 = vmatprep.mubr.f32.mxu0 0.0
  %v1990 = vand.u32 %v95, 4294901760
  %1991 = vmatmul.mubr.f32.gmra.mxu0 %v1990
  %v1992 = vpop.f32.mrf.mxu0
  %v1993 = vadd.f32 %v1720, %v1992
  %v1994 = vpop.f32.mrf.mxu0
  %1995 = vmatprep.mubr.f32.mxu0 0.0
  %v1996 = vand.u32 %v96, 4294901760
  %1997 = vmatmul.mubr.f32.gmra.mxu0 %v1996
  %v1998 = vpop.f32.mrf.mxu0
  %v1999 = vadd.f32 %v1726, %v1998
  %v2000 = vpop.f32.mrf.mxu0
  %2001 = vmatprep.mubr.f32.mxu0 0.0
  %v2002 = vand.u32 %v97, 4294901760
  %2003 = vmatmul.mubr.f32.gmra.mxu0 %v2002
  %v2004 = vpop.f32.mrf.mxu0
  %v2005 = vadd.f32 %v1732, %v2004
  %v2006 = vpop.f32.mrf.mxu0
  %2007 = vmatprep.mubr.f32.mxu0 0.0
  %v2008 = vand.u32 %v98, 4294901760
  %2009 = vmatmul.mubr.f32.gmra.mxu0 %v2008
  %v2010 = vpop.f32.mrf.mxu0
  %v2011 = vadd.f32 %v1738, %v2010
  %v2012 = vpop.f32.mrf.mxu0
  %2013 = vmatprep.mubr.f32.mxu0 0.0
  %v2014 = vand.u32 %v99, 4294901760
  %2015 = vmatmul.mubr.f32.gmra.mxu0 %v2014
  %v2016 = vpop.f32.mrf.mxu0
  %v2017 = vadd.f32 %v1744, %v2016
  %v2018 = vpop.f32.mrf.mxu0
  %2019 = vmatprep.mubr.f32.mxu0 0.0
  %v2020 = vand.u32 %v100, 4294901760
  %2021 = vmatmul.mubr.f32.gmra.mxu0 %v2020
  %v2022 = vpop.f32.mrf.mxu0
  %v2023 = vadd.f32 %v1750, %v2022
  %v2024 = vpop.f32.mrf.mxu0
  %2025 = vmatprep.mubr.f32.mxu0 0.0
  %v2026 = vand.u32 %v101, 4294901760
  %2027 = vmatmul.mubr.f32.gmra.mxu0 %v2026
  %v2028 = vpop.f32.mrf.mxu0
  %v2029 = vadd.f32 %v1756, %v2028
  %v2030 = vpop.f32.mrf.mxu0
  %2031 = vmatprep.mubr.f32.mxu0 0.0
  %v2032 = vand.u32 %v102, 4294901760
  %2033 = vmatmul.mubr.f32.gmra.mxu0 %v2032
  %v2034 = vpop.f32.mrf.mxu0
  %v2035 = vadd.f32 %v1762, %v2034
  %v2036 = vpop.f32.mrf.mxu0
  %2037 = vmatprep.mubr.f32.mxu0 0.0
  %v2038 = vand.u32 %v103, 4294901760
  %2039 = vmatmul.mubr.f32.gmra.mxu0 %v2038
  %v2040 = vpop.f32.mrf.mxu0
  %v2041 = vadd.f32 %v1768, %v2040
  %v2042 = vpop.f32.mrf.mxu0
  %2043 = vmatprep.mubr.f32.mxu0 0.0
  %v2044 = vand.u32 %v104, 4294901760
  %2045 = vmatmul.mubr.f32.gmra.mxu0 %v2044
  %v2046 = vpop.f32.mrf.mxu0
  %v2047 = vadd.f32 %v1774, %v2046
  %v2048 = vpop.f32.mrf.mxu0
  %2049 = vmatprep.mubr.f32.mxu0 0.0
  %v2050 = vand.u32 %v105, 4294901760
  %2051 = vmatmul.mubr.f32.gmra.mxu0 %v2050
  %v2052 = vpop.f32.mrf.mxu0
  %v2053 = vadd.f32 %v1780, %v2052
  %v2054 = vpop.f32.mrf.mxu0
  %2055 = vmatprep.mubr.f32.mxu0 0.0
  %v2056 = vand.u32 %v106, 4294901760
  %2057 = vmatmul.mubr.f32.gmra.mxu0 %v2056
  %v2058 = vpop.f32.mrf.mxu0
  %v2059 = vadd.f32 %v1786, %v2058
  %v2060 = vpop.f32.mrf.mxu0
  %2061 = vmatprep.mubr.f32.mxu0 0.0
  %v2062 = vand.u32 %v107, 4294901760
  %2063 = vmatmul.mubr.f32.gmra.mxu0 %v2062
  %v2064 = vpop.f32.mrf.mxu0
  %v2065 = vadd.f32 %v1792, %v2064
  %v2066 = vpop.f32.mrf.mxu0
  %2067 = vmatprep.mubr.f32.mxu0 0.0
  %v2068 = vand.u32 %v108, 4294901760
  %2069 = vmatmul.mubr.f32.gmra.mxu0 %v2068
  %v2070 = vpop.f32.mrf.mxu0
  %v2071 = vadd.f32 %v1798, %v2070
  %v2072 = vpop.f32.mrf.mxu0
  %2073 = vmatprep.mubr.f32.mxu0 0.0
  %v2074 = vand.u32 %v109, 4294901760
  %2075 = vmatmul.mubr.f32.gmra.mxu0 %v2074
  %v2076 = vpop.f32.mrf.mxu0
  %v2077 = vadd.f32 %v1804, %v2076
  %v2078 = vpop.f32.mrf.mxu0
  %2079 = vmatprep.mubr.f32.mxu0 0.0
  %v2080 = vand.u32 %v110, 4294901760
  %2081 = vmatmul.mubr.f32.gmra.mxu0 %v2080
  %v2082 = vpop.f32.mrf.mxu0
  %v2083 = vadd.f32 %v1810, %v2082
  %v2084 = vpop.f32.mrf.mxu0
  %2085 = vmatprep.mubr.f32.mxu0 0.0
  %v2086 = vand.u32 %v111, 4294901760
  %2087 = vmatmul.mubr.f32.gmra.mxu0 %v2086
  %v2088 = vpop.f32.mrf.mxu0
  %v2089 = vadd.f32 %v1816, %v2088
  %v2090 = vpop.f32.mrf.mxu0
  %2091 = vmatprep.mubr.f32.mxu0 0.0
  %v2092 = vand.u32 %v112, 4294901760
  %2093 = vmatmul.mubr.f32.gmra.mxu0 %v2092
  %v2094 = vpop.f32.mrf.mxu0
  %v2095 = vadd.f32 %v1822, %v2094
  %v2096 = vpop.f32.mrf.mxu0
  %2097 = vmatprep.mubr.f32.mxu0 0.0
  %v2098 = vand.u32 %v113, 4294901760
  %2099 = vmatmul.mubr.f32.gmra.mxu0 %v2098
  %v2100 = vpop.f32.mrf.mxu0
  %v2101 = vadd.f32 %v1828, %v2100
  %v2102 = vpop.f32.mrf.mxu0
  %2103 = vdwg.mxu0
  %v2104 = vadd.f32 %v50, %v1915
  %v2105 = vadd.f32 %v51, %v1921
  %v2106 = vadd.f32 %v52, %v1927
  %v2107 = vadd.f32 %v53, %v1933
  %v2108 = vadd.f32 %v54, %v1939
  %v2109 = vadd.f32 %v55, %v1945
  %v2110 = vadd.f32 %v56, %v1951
  %v2111 = vadd.f32 %v57, %v1957
  %v2112 = vadd.f32 %v58, %v1963
  %v2113 = vadd.f32 %v59, %v1969
  %v2114 = vadd.f32 %v60, %v1975
  %v2115 = vadd.f32 %v61, %v1981
  %v2116 = vadd.f32 %v62, %v1987
  %v2117 = vadd.f32 %v63, %v1993
  %v2118 = vadd.f32 %v64, %v1999
  %v2119 = vadd.f32 %v65, %v2005
  %v2120 = vadd.f32 %v66, %v2011
  %v2121 = vadd.f32 %v67, %v2017
  %v2122 = vadd.f32 %v68, %v2023
  %v2123 = vadd.f32 %v69, %v2029
  %v2124 = vadd.f32 %v70, %v2035
  %v2125 = vadd.f32 %v71, %v2041
  %v2126 = vadd.f32 %v72, %v2047
  %v2127 = vadd.f32 %v73, %v2053
  %v2128 = vadd.f32 %v74, %v2059
  %v2129 = vadd.f32 %v75, %v2065
  %v2130 = vadd.f32 %v76, %v2071
  %v2131 = vadd.f32 %v77, %v2077
  %v2132 = vadd.f32 %v78, %v2083
  %v2133 = vadd.f32 %v79, %v2089
  %v2134 = vadd.f32 %v80, %v2095
  %v2135 = vadd.f32 %v81, %v2101
  %2136 = vst [vmem:[#allocation2] sm:$0xff] %v2104
  %2137 = vst [vmem:[#allocation2 + $0x8] sm:$0xff] %v2105
  %2138 = vst [vmem:[#allocation2 + $0x10] sm:$0xff] %v2106
  %2139 = vst [vmem:[#allocation2 + $0x18] sm:$0xff] %v2107
  %2140 = vst [vmem:[#allocation2 + $0x20] sm:$0xff] %v2108
  %2141 = vst [vmem:[#allocation2 + $0x28] sm:$0xff] %v2109
  %2142 = vst [vmem:[#allocation2 + $0x30] sm:$0xff] %v2110
  %2143 = vst [vmem:[#allocation2 + $0x38] sm:$0xff] %v2111
  %2144 = vst [vmem:[#allocation2 + $0x40] sm:$0xff] %v2112
  %2145 = vst [vmem:[#allocation2 + $0x48] sm:$0xff] %v2113
  %2146 = vst [vmem:[#allocation2 + $0x50] sm:$0xff] %v2114
  %2147 = vst [vmem:[#allocation2 + $0x58] sm:$0xff] %v2115
  %2148 = vst [vmem:[#allocation2 + $0x60] sm:$0xff] %v2116
  %2149 = vst [vmem:[#allocation2 + $0x68] sm:$0xff] %v2117
  %2150 = vst [vmem:[#allocation2 + $0x70] sm:$0xff] %v2118
  %2151 = vst [vmem:[#allocation2 + $0x78] sm:$0xff] %v2119
  %2152 = vst [vmem:[#allocation2 + $0x80] sm:$0xff] %v2120
  %2153 = vst [vmem:[#allocation2 + $0x88] sm:$0xff] %v2121
  %2154 = vst [vmem:[#allocation2 + $0x90] sm:$0xff] %v2122
  %2155 = vst [vmem:[#allocation2 + $0x98] sm:$0xff] %v2123
  %2156 = vst [vmem:[#allocation2 + $0xa0] sm:$0xff] %v2124
  %2157 = vst [vmem:[#allocation2 + $0xa8] sm:$0xff] %v2125
  %2158 = vst [vmem:[#allocation2 + $0xb0] sm:$0xff] %v2126
  %2159 = vst [vmem:[#allocation2 + $0xb8] sm:$0xff] %v2127
  %2160 = vst [vmem:[#allocation2 + $0xc0] sm:$0xff] %v2128
  %2161 = vst [vmem:[#allocation2 + $0xc8] sm:$0xff] %v2129
  %2162 = vst [vmem:[#allocation2 + $0xd0] sm:$0xff] %v2130
  %2163 = vst [vmem:[#allocation2 + $0xd8] sm:$0xff] %v2131
  %2164 = vst [vmem:[#allocation2 + $0xe0] sm:$0xff] %v2132
  %2165 = vst [vmem:[#allocation2 + $0xe8] sm:$0xff] %v2133
  %2166 = vst [vmem:[#allocation2 + $0xf0] sm:$0xff] %v2134
  %2167 = vst [vmem:[#allocation2 + $0xf8] sm:$0xff] %v2135
  // Predicated region
  $region18: #{deformable_cross_attention.9} parent=0 // pred_check
    %p2168 = pneg %p14
  $region19: #{deformable_cross_attention.9} parent=0 // pred_check_branch
    %2170 = sbr.rel (%p2168) target = $region21
  $region20: #{deformable_cross_attention.9} parent=0 // pred_region
    %v2171 = vld [vmem:[#allocation2] sm:$0xff]
    %v2172 = vld [vmem:[#allocation2 + $0x8] sm:$0xff]
    %v2173 = vld [vmem:[#allocation2 + $0x10] sm:$0xff]
    %v2174 = vld [vmem:[#allocation2 + $0x18] sm:$0xff]
    %v2175 = vld [vmem:[#allocation2 + $0x20] sm:$0xff]
    %v2176 = vld [vmem:[#allocation2 + $0x28] sm:$0xff]
    %v2177 = vld [vmem:[#allocation2 + $0x30] sm:$0xff]
    %v2178 = vld [vmem:[#allocation2 + $0x38] sm:$0xff]
    %v2179 = vld [vmem:[#allocation2 + $0x40] sm:$0xff]
    %v2180 = vld [vmem:[#allocation2 + $0x48] sm:$0xff]
    %v2181 = vld [vmem:[#allocation2 + $0x50] sm:$0xff]
    %v2182 = vld [vmem:[#allocation2 + $0x58] sm:$0xff]
    %v2183 = vld [vmem:[#allocation2 + $0x60] sm:$0xff]
    %v2184 = vld [vmem:[#allocation2 + $0x68] sm:$0xff]
    %v2185 = vld [vmem:[#allocation2 + $0x70] sm:$0xff]
    %v2186 = vld [vmem:[#allocation2 + $0x78] sm:$0xff]
    %v2187 = vld [vmem:[#allocation2 + $0x80] sm:$0xff]
    %v2188 = vld [vmem:[#allocation2 + $0x88] sm:$0xff]
    %v2189 = vld [vmem:[#allocation2 + $0x90] sm:$0xff]
    %v2190 = vld [vmem:[#allocation2 + $0x98] sm:$0xff]
    %v2191 = vld [vmem:[#allocation2 + $0xa0] sm:$0xff]
    %v2192 = vld [vmem:[#allocation2 + $0xa8] sm:$0xff]
    %v2193 = vld [vmem:[#allocation2 + $0xb0] sm:$0xff]
    %v2194 = vld [vmem:[#allocation2 + $0xb8] sm:$0xff]
    %v2195 = vld [vmem:[#allocation2 + $0xc0] sm:$0xff]
    %v2196 = vld [vmem:[#allocation2 + $0xc8] sm:$0xff]
    %v2197 = vld [vmem:[#allocation2 + $0xd0] sm:$0xff]
    %v2198 = vld [vmem:[#allocation2 + $0xd8] sm:$0xff]
    %v2199 = vld [vmem:[#allocation2 + $0xe0] sm:$0xff]
    %v2200 = vld [vmem:[#allocation2 + $0xe8] sm:$0xff]
    %v2201 = vld [vmem:[#allocation2 + $0xf0] sm:$0xff]
    %v2202 = vld [vmem:[#allocation2 + $0xf8] sm:$0xff]
    %v2203 = vld [vmem:[%s2] sm:$0x1]
    %v2205 = vlaneseq
    %v2206 = vshrl.u32 %v2205, 7
    %v2207 = vsub.s32 0, %v2206
    %v2208 = vrot.slane %v2203, %v2207
    %v2210 = vadd.f32 %v2171, %v2208
    %v2211 = vadd.f32 %v2172, %v2208
    %v2212 = vadd.f32 %v2173, %v2208
    %v2213 = vadd.f32 %v2174, %v2208
    %v2214 = vadd.f32 %v2175, %v2208
    %v2215 = vadd.f32 %v2176, %v2208
    %v2216 = vadd.f32 %v2177, %v2208
    %v2217 = vadd.f32 %v2178, %v2208
    %v2218 = vadd.f32 %v2179, %v2208
    %v2219 = vadd.f32 %v2180, %v2208
    %v2220 = vadd.f32 %v2181, %v2208
    %v2221 = vadd.f32 %v2182, %v2208
    %v2222 = vadd.f32 %v2183, %v2208
    %v2223 = vadd.f32 %v2184, %v2208
    %v2224 = vadd.f32 %v2185, %v2208
    %v2225 = vadd.f32 %v2186, %v2208
    %v2226 = vadd.f32 %v2187, %v2208
    %v2227 = vadd.f32 %v2188, %v2208
    %v2228 = vadd.f32 %v2189, %v2208
    %v2229 = vadd.f32 %v2190, %v2208
    %v2230 = vadd.f32 %v2191, %v2208
    %v2231 = vadd.f32 %v2192, %v2208
    %v2232 = vadd.f32 %v2193, %v2208
    %v2233 = vadd.f32 %v2194, %v2208
    %v2234 = vadd.f32 %v2195, %v2208
    %v2235 = vadd.f32 %v2196, %v2208
    %v2236 = vadd.f32 %v2197, %v2208
    %v2237 = vadd.f32 %v2198, %v2208
    %v2238 = vadd.f32 %v2199, %v2208
    %v2239 = vadd.f32 %v2200, %v2208
    %v2240 = vadd.f32 %v2201, %v2208
    %v2241 = vadd.f32 %v2202, %v2208
    %2242 = vst [vmem:[%s3] sm:$0xff] %v2210
    %2243 = vst [vmem:[%s3 + $0x8] sm:$0xff] %v2211
    %2244 = vst [vmem:[%s3 + $0x10] sm:$0xff] %v2212
    %2245 = vst [vmem:[%s3 + $0x18] sm:$0xff] %v2213
    %2246 = vst [vmem:[%s3 + $0x20] sm:$0xff] %v2214
    %2247 = vst [vmem:[%s3 + $0x28] sm:$0xff] %v2215
    %2248 = vst [vmem:[%s3 + $0x30] sm:$0xff] %v2216
    %2249 = vst [vmem:[%s3 + $0x38] sm:$0xff] %v2217
    %2250 = vst [vmem:[%s3 + $0x40] sm:$0xff] %v2218
    %2251 = vst [vmem:[%s3 + $0x48] sm:$0xff] %v2219
    %2252 = vst [vmem:[%s3 + $0x50] sm:$0xff] %v2220
    %2253 = vst [vmem:[%s3 + $0x58] sm:$0xff] %v2221
    %2254 = vst [vmem:[%s3 + $0x60] sm:$0xff] %v2222
    %2255 = vst [vmem:[%s3 + $0x68] sm:$0xff] %v2223
    %2256 = vst [vmem:[%s3 + $0x70] sm:$0xff] %v2224
    %2257 = vst [vmem:[%s3 + $0x78] sm:$0xff] %v2225
    %2258 = vst [vmem:[%s3 + $0x80] sm:$0xff] %v2226
    %2259 = vst [vmem:[%s3 + $0x88] sm:$0xff] %v2227
    %2260 = vst [vmem:[%s3 + $0x90] sm:$0xff] %v2228
    %2261 = vst [vmem:[%s3 + $0x98] sm:$0xff] %v2229
    %2262 = vst [vmem:[%s3 + $0xa0] sm:$0xff] %v2230
    %2263 = vst [vmem:[%s3 + $0xa8] sm:$0xff] %v2231
    %2264 = vst [vmem:[%s3 + $0xb0] sm:$0xff] %v2232
    %2265 = vst [vmem:[%s3 + $0xb8] sm:$0xff] %v2233
    %2266 = vst [vmem:[%s3 + $0xc0] sm:$0xff] %v2234
    %2267 = vst [vmem:[%s3 + $0xc8] sm:$0xff] %v2235
    %2268 = vst [vmem:[%s3 + $0xd0] sm:$0xff] %v2236
    %2269 = vst [vmem:[%s3 + $0xd8] sm:$0xff] %v2237
    %2270 = vst [vmem:[%s3 + $0xe0] sm:$0xff] %v2238
    %2271 = vst [vmem:[%s3 + $0xe8] sm:$0xff] %v2239
    %2272 = vst [vmem:[%s3 + $0xf0] sm:$0xff] %v2240
    %2273 = vst [vmem:[%s3 + $0xf8] sm:$0xff] %v2241
  $region21: #{deformable_cross_attention.9} parent=0 // pred_fallthru
    _
  // Predicated region
  $region22: #{deformable_cross_attention.9} parent=0 // pred_check
    _
  $region23: #{deformable_cross_attention.9} parent=0 // pred_check_branch
    %2275 = sbr.rel (0) target = $region25
  $region24: #{deformable_cross_attention.9} parent=0 // pred_region
    _
  $region25: #{deformable_cross_attention.9} parent=0 // pred_fallthru
    _
  // Predicated region
  $region26: #{deformable_cross_attention.9} parent=0 // pred_check
    _
  $region27: #{deformable_cross_attention.9} parent=0 // pred_check_branch
    %2277 = sbr.rel (0) target = $region29
  $region28: #{deformable_cross_attention.9} parent=0 // pred_region
    _
  $region29: #{deformable_cross_attention.9} parent=0 // pred_fallthru
    _

// kernel: deformable_cross_attention.13
$region0: #{deformable_cross_attention.13}
  #allocation0 [shape = 'u32[]', space=smem, size = 0x4, offset = 0x4, fixed_abs, tag = 'smem constant byte address 0x4 - core index']
  #allocation1 [shape = 'u32[144,128]{1,0:T(1,128)}', space=vmem, size = 0x12000, scoped, tag = 'internal scratch']
  %s0 = inlined_call_operand.vmem [shape: f32[2,4,128,32], index: 0, kind: input, shape index: {}]
  %s1 = inlined_call_operand.vmem [shape: f32[2,4,64,4], index: 1, kind: input, shape index: {}]
  %s2 = inlined_call_operand.vmem [shape: f32[2,4,64,4], index: 2, kind: input, shape index: {}]
  %s3 = inlined_call_operand.vmem [shape: f32[2,4,64,4], index: 3, kind: input, shape index: {}]
  %s4 = inlined_call_operand.vmem [shape: f32[2,4,64,32], index: 4, kind: output, shape index: {}]
  %s5 = sld [smem:[#allocation0]]
  $region49: #{deformable_cross_attention.13} parent=0
    _
  %s7 = ssub.s32 1, %s5
  %s8 = scalar_select 0, %s7, %s5
  loop: start=0, step=1, limit=10
  $region2: #{deformable_cross_attention.13} parent=0 // loop_pre_header
    _
  $region3: #{deformable_cross_attention.13} parent=0 // loop_header
    %s10 = sphi 0, %s14
    %p11 = scmp.ge.s32.totalorder %s10, 10
    %s17 = sphi 0, %s29
    %s18 = sphi 0, %s25
    %s19 = sphi 0, %s17
    %s20 = sphi 0, %s18
    %s21 = sphi 0, %s19
    %s22 = sphi 0, %s20
    %s34 = sphi 0, %s36
    %s37 = sphi 0, %s34
    %s38 = sphi 0, %s37
    %s54 = sphi 0, %s38
    %s62 = sphi 0, %s64
    %s65 = sphi 0, %s62
    %s66 = sphi 0, %s65
    %s82 = sphi 0, %s66
    %s90 = sphi 0, %s92
    %s93 = sphi 0, %s90
    %s94 = sphi 0, %s93
    %s110 = sphi 0, %s94
    %s118 = sphi 0, %s120
    %s121 = sphi 0, %s118
    %s122 = sphi 0, %s121
    %s138 = sphi 0, %s122
    %s146 = sphi 0, %s148
    %s149 = sphi 0, %s146
    %s150 = sphi 0, %s149
    %s166 = sphi 0, %s150
  $region4: #{deformable_cross_attention.13} parent=0 // loop_header_branch
    %13 = sbr.rel (%p11) target = $region8
  $region5: #{deformable_cross_attention.13} parent=0 // loop_body
    %s15 = ssub.s32 %s10, 1
    %s16 = ssub.s32 %s10, 2
    %s23 = sadd.s32 1, %s18
    %p24 = scmp.ge.s32.totalorder %s23, 4
    %s25 = scalar_select %p24, 0, %s23
    %s26 = sadd.s32 1, %s17
    %s27 = scalar_select %p24, %s26, %s17
    %p28 = scmp.ge.s32.totalorder %s27, 2
    %s29 = scalar_select %p28, 0, %s27
    %s30 = ssub.s32 %s17, %s29
    %s31 = ssub.s32 %s18, %s25
    %s32 = sor.u32 %s30, %s31
    %p33 = scmp.eq.s32.totalorder %s32, 0
    %s35 = sadd.s32 %s34, 1
    %s36 = scalar_select %p33, %s34, %s35
    %p39 = pneg %p33
    %p40 = scmp.eq.s32.totalorder %s10, 7
    %p41 = por %p39, %p40
    %p42 = scmp.ne.s32.totalorder %s34, %s37
    %p43 = scmp.eq.s32.totalorder %s10, 0
    %p44 = por %p42, %p43
    %p45 = scmp.ne.s32.totalorder %s34, %s37
    %p46 = scmp.eq.s32.totalorder %s15, 7
    %p47 = por %p45, %p46
    %p48 = scmp.ne.s32.totalorder %s37, %s38
    %p49 = scmp.eq.s32.totalorder %s15, 0
    %p50 = por %p48, %p49
    %p51 = scmp.ne.s32.totalorder %s37, %s38
    %p52 = scmp.eq.s32.totalorder %s16, 7
    %p53 = por %p51, %p52
    %p55 = scmp.ne.s32.totalorder %s38, %s54
    %p56 = scmp.eq.s32.totalorder %s16, 0
    %p57 = por %p55, %p56
    %s58 = ssub.s32 %s17, %s29
    %s59 = ssub.s32 %s18, %s25
    %s60 = sor.u32 %s58, %s59
    %p61 = scmp.eq.s32.totalorder %s60, 0
    %s63 = sadd.s32 %s62, 1
    %s64 = scalar_select %p61, %s62, %s63
    %p67 = pneg %p61
    %p68 = scmp.eq.s32.totalorder %s10, 7
    %p69 = por %p67, %p68
    %p70 = scmp.ne.s32.totalorder %s62, %s65
    %p71 = scmp.eq.s32.totalorder %s10, 0
    %p72 = por %p70, %p71
    %p73 = scmp.ne.s32.totalorder %s62, %s65
    %p74 = scmp.eq.s32.totalorder %s15, 7
    %p75 = por %p73, %p74
    %p76 = scmp.ne.s32.totalorder %s65, %s66
    %p77 = scmp.eq.s32.totalorder %s15, 0
    %p78 = por %p76, %p77
    %p79 = scmp.ne.s32.totalorder %s65, %s66
    %p80 = scmp.eq.s32.totalorder %s16, 7
    %p81 = por %p79, %p80
    %p83 = scmp.ne.s32.totalorder %s66, %s82
    %p84 = scmp.eq.s32.totalorder %s16, 0
    %p85 = por %p83, %p84
    %s86 = ssub.s32 %s17, %s29
    %s87 = ssub.s32 %s18, %s25
    %s88 = sor.u32 %s86, %s87
    %p89 = scmp.eq.s32.totalorder %s88, 0
    %s91 = sadd.s32 %s90, 1
    %s92 = scalar_select %p89, %s90, %s91
    %p95 = pneg %p89
    %p96 = scmp.eq.s32.totalorder %s10, 7
    %p97 = por %p95, %p96
    %p98 = scmp.ne.s32.totalorder %s90, %s93
    %p99 = scmp.eq.s32.totalorder %s10, 0
    %p100 = por %p98, %p99
    %p101 = scmp.ne.s32.totalorder %s90, %s93
    %p102 = scmp.eq.s32.totalorder %s15, 7
    %p103 = por %p101, %p102
    %p104 = scmp.ne.s32.totalorder %s93, %s94
    %p105 = scmp.eq.s32.totalorder %s15, 0
    %p106 = por %p104, %p105
    %p107 = scmp.ne.s32.totalorder %s93, %s94
    %p108 = scmp.eq.s32.totalorder %s16, 7
    %p109 = por %p107, %p108
    %p111 = scmp.ne.s32.totalorder %s94, %s110
    %p112 = scmp.eq.s32.totalorder %s16, 0
    %p113 = por %p111, %p112
    %s114 = ssub.s32 %s17, %s29
    %s115 = ssub.s32 %s18, %s25
    %s116 = sor.u32 %s114, %s115
    %p117 = scmp.eq.s32.totalorder %s116, 0
    %s119 = sadd.s32 %s118, 1
    %s120 = scalar_select %p117, %s118, %s119
    %p123 = pneg %p117
    %p124 = scmp.eq.s32.totalorder %s10, 7
    %p125 = por %p123, %p124
    %p126 = scmp.ne.s32.totalorder %s118, %s121
    %p127 = scmp.eq.s32.totalorder %s10, 0
    %p128 = por %p126, %p127
    %p129 = scmp.ne.s32.totalorder %s118, %s121
    %p130 = scmp.eq.s32.totalorder %s15, 7
    %p131 = por %p129, %p130
    %p132 = scmp.ne.s32.totalorder %s121, %s122
    %p133 = scmp.eq.s32.totalorder %s15, 0
    %p134 = por %p132, %p133
    %p135 = scmp.ne.s32.totalorder %s121, %s122
    %p136 = scmp.eq.s32.totalorder %s16, 7
    %p137 = por %p135, %p136
    %p139 = scmp.ne.s32.totalorder %s122, %s138
    %p140 = scmp.eq.s32.totalorder %s16, 0
    %p141 = por %p139, %p140
    %s142 = ssub.s32 %s17, %s29
    %s143 = ssub.s32 %s18, %s25
    %s144 = sor.u32 %s142, %s143
    %p145 = scmp.eq.s32.totalorder %s144, 0
    %s147 = sadd.s32 %s146, 1
    %s148 = scalar_select %p145, %s146, %s147
    %p151 = pneg %p145
    %p152 = scmp.eq.s32.totalorder %s10, 7
    %p153 = por %p151, %p152
    %p154 = scmp.ne.s32.totalorder %s146, %s149
    %p155 = scmp.eq.s32.totalorder %s10, 0
    %p156 = por %p154, %p155
    %p157 = scmp.ne.s32.totalorder %s146, %s149
    %p158 = scmp.eq.s32.totalorder %s15, 7
    %p159 = por %p157, %p158
    %p160 = scmp.ne.s32.totalorder %s149, %s150
    %p161 = scmp.eq.s32.totalorder %s15, 0
    %p162 = por %p160, %p161
    %p163 = scmp.ne.s32.totalorder %s149, %s150
    %p164 = scmp.eq.s32.totalorder %s16, 7
    %p165 = por %p163, %p164
    %p167 = scmp.ne.s32.totalorder %s150, %s166
    %p168 = scmp.eq.s32.totalorder %s16, 0
    %p169 = por %p167, %p168
    %p170 = scmp.le.s32.totalorder 1, %s10
    %p171 = scmp.lt.s32.totalorder %s10, 9
    %p172 = pnand %p170, %p171
    %p173 = pneg %p172
    // Predicated region
    $region9: #{deformable_cross_attention.13} parent=5 // pred_check
      _
    $region10: #{deformable_cross_attention.13} parent=5 // pred_check_branch
      %175 = sbr.rel (%p172) target = $region12
    $region11: #{deformable_cross_attention.13} parent=5 // pred_region
      %s176 = ssub.s32 %s10, 1
    $region12: #{deformable_cross_attention.13} parent=5 // pred_fallthru
      _
    %p177 = scmp.lt.s32.totalorder %s10, 8
    // Predicated region
    $region13: #{deformable_cross_attention.13} parent=5 // pred_check
      %p178 = pneg %p177
    $region14: #{deformable_cross_attention.13} parent=5 // pred_check_branch
      %180 = sbr.rel (%p178) target = $region16
    $region15: #{deformable_cross_attention.13} parent=5 // pred_region
      // Predicated region
      $region17: #{deformable_cross_attention.13} parent=15 // pred_check
        %p181 = pneg %p44
      $region18: #{deformable_cross_attention.13} parent=15 // pred_check_branch
        %183 = sbr.rel (%p181) target = $region20
      $region19: #{deformable_cross_attention.13} parent=15 // pred_region
        %p184 = scmp.lt.s32.totalorder %s17, 1
        %s185 = scalar_select %p184, %s17, 1
        %p186 = scmp.lt.s32.totalorder %s18, 3
        %s187 = scalar_select %p186, %s18, 3
        %s188 = smul.addr %s187, 16
        %s189 = smul.addr %s185, 64
        %s190 = sadd.s32 %s188, %s189
        %s191 = smul.addr %s190, 8
        %s192 = scalar_lea.vmem %s0, %s191
      $region20: #{deformable_cross_attention.13} parent=15 // pred_fallthru
        _
      // Predicated region
      $region21: #{deformable_cross_attention.13} parent=15 // pred_check
        %p193 = pneg %p72
      $region22: #{deformable_cross_attention.13} parent=15 // pred_check_branch
        %195 = sbr.rel (%p193) target = $region24
      $region23: #{deformable_cross_attention.13} parent=15 // pred_region
        %p196 = scmp.lt.s32.totalorder %s17, 1
        %s197 = scalar_select %p196, %s17, 1
        %p198 = scmp.lt.s32.totalorder %s18, 3
        %s199 = scalar_select %p198, %s18, 3
        %s200 = smul.addr %s199, 8
        %s201 = smul.addr %s197, 32
        %s202 = sadd.s32 %s200, %s201
        %s203 = smul.addr %s202, 8
        %s204 = scalar_lea.vmem %s1, %s203
      $region24: #{deformable_cross_attention.13} parent=15 // pred_fallthru
        _
      // Predicated region
      $region25: #{deformable_cross_attention.13} parent=15 // pred_check
        %p205 = pneg %p100
      $region26: #{deformable_cross_attention.13} parent=15 // pred_check_branch
        %207 = sbr.rel (%p205) target = $region28
      $region27: #{deformable_cross_attention.13} parent=15 // pred_region
        %p208 = scmp.lt.s32.totalorder %s17, 1
        %s209 = scalar_select %p208, %s17, 1
        %p210 = scmp.lt.s32.totalorder %s18, 3
        %s211 = scalar_select %p210, %s18, 3
        %s212 = smul.addr %s211, 8
        %s213 = smul.addr %s209, 32
        %s214 = sadd.s32 %s212, %s213
        %s215 = smul.addr %s214, 8
        %s216 = scalar_lea.vmem %s2, %s215
      $region28: #{deformable_cross_attention.13} parent=15 // pred_fallthru
        _
      // Predicated region
      $region29: #{deformable_cross_attention.13} parent=15 // pred_check
        %p217 = pneg %p128
      $region30: #{deformable_cross_attention.13} parent=15 // pred_check_branch
        %219 = sbr.rel (%p217) target = $region32
      $region31: #{deformable_cross_attention.13} parent=15 // pred_region
        %p220 = scmp.lt.s32.totalorder %s17, 1
        %s221 = scalar_select %p220, %s17, 1
        %p222 = scmp.lt.s32.totalorder %s18, 3
        %s223 = scalar_select %p222, %s18, 3
        %s224 = smul.addr %s223, 8
        %s225 = smul.addr %s221, 32
        %s226 = sadd.s32 %s224, %s225
        %s227 = smul.addr %s226, 8
        %s228 = scalar_lea.vmem %s3, %s227
      $region32: #{deformable_cross_attention.13} parent=15 // pred_fallthru
        _
    $region16: #{deformable_cross_attention.13} parent=5 // pred_fallthru
      _
    %p229 = scmp.le.s32.totalorder 1, %s10
    %p230 = scmp.lt.s32.totalorder %s10, 9
    %p231 = pnand %p229, %p230
    %p232 = pneg %p231
    // Predicated region
    $region33: #{deformable_cross_attention.13} parent=5 // pred_check
      _
    $region34: #{deformable_cross_attention.13} parent=5 // pred_check_branch
      %234 = sbr.rel (%p231) target = $region36
    $region35: #{deformable_cross_attention.13} parent=5 // pred_region
      %s235 = ssub.s32 %s10, 1
      %p236 = scmp.lt.s32.totalorder %s19, 1
      %s237 = scalar_select %p236, %s19, 1
      %p238 = scmp.lt.s32.totalorder %s20, 3
      %s239 = scalar_select %p238, %s20, 3
      %s240 = smul.addr %s239, 16
      %s241 = smul.addr %s237, 64
      %s242 = sadd.s32 %s240, %s241
      %s243 = smul.addr %s242, 8
      %s244 = scalar_lea.vmem %s0, %s243
      %p245 = pneg %p50
      %p246 = pneg %p47
      %p247 = scmp.lt.s32.totalorder %s19, 1
      %s248 = scalar_select %p247, %s19, 1
      %p249 = scmp.lt.s32.totalorder %s20, 3
      %s250 = scalar_select %p249, %s20, 3
      %s251 = smul.addr %s250, 8
      %s252 = smul.addr %s248, 32
      %s253 = sadd.s32 %s251, %s252
      %s254 = smul.addr %s253, 8
      %s255 = scalar_lea.vmem %s1, %s254
      %p256 = pneg %p78
      %p257 = pneg %p75
      %p258 = scmp.lt.s32.totalorder %s19, 1
      %s259 = scalar_select %p258, %s19, 1
      %p260 = scmp.lt.s32.totalorder %s20, 3
      %s261 = scalar_select %p260, %s20, 3
      %s262 = smul.addr %s261, 8
      %s263 = smul.addr %s259, 32
      %s264 = sadd.s32 %s262, %s263
      %s265 = smul.addr %s264, 8
      %s266 = scalar_lea.vmem %s2, %s265
      %p267 = pneg %p106
      %p268 = pneg %p103
      %p269 = scmp.lt.s32.totalorder %s19, 1
      %s270 = scalar_select %p269, %s19, 1
      %p271 = scmp.lt.s32.totalorder %s20, 3
      %s272 = scalar_select %p271, %s20, 3
      %s273 = smul.addr %s272, 8
      %s274 = smul.addr %s270, 32
      %s275 = sadd.s32 %s273, %s274
      %s276 = smul.addr %s275, 8
      %s277 = scalar_lea.vmem %s3, %s276
      %p278 = pneg %p134
      %p279 = pneg %p131
      %p280 = pneg %p162
      %p281 = pneg %p159
      %p282 = scmp.lt.s32.totalorder %s19, 1
      %s283 = scalar_select %p282, %s19, 1
      %p284 = scmp.lt.s32.totalorder %s20, 3
      %s285 = scalar_select %p284, %s20, 3
      %s286 = smul.addr %s285, 8
      %s287 = smul.addr %s283, 32
      %s288 = sadd.s32 %s286, %s287
      %s289 = smul.addr %s288, 8
      %s290 = scalar_lea.vmem %s4, %s289
      %p291 = scmp.lt.s32.totalorder %s19, 1
      %s292 = scalar_select %p291, %s19, 1
      %p293 = scmp.lt.s32.totalorder %s20, 3
      %s294 = scalar_select %p293, %s20, 3
      %s295 = smul.addr %s294, 16
      %s296 = smul.addr %s292, 64
      %s297 = sadd.s32 %s295, %s296
      %s298 = smul.addr %s297, 8
      %s299 = scalar_lea.vmem %s0, %s298
      %p300 = scmp.lt.s32.totalorder %s19, 1
      %s301 = scalar_select %p300, %s19, 1
      %p302 = scmp.lt.s32.totalorder %s20, 3
      %s303 = scalar_select %p302, %s20, 3
      %s304 = smul.addr %s303, 8
      %s305 = smul.addr %s301, 32
      %s306 = sadd.s32 %s304, %s305
      %s307 = smul.addr %s306, 8
      %s308 = scalar_lea.vmem %s1, %s307
      %p309 = scmp.lt.s32.totalorder %s19, 1
      %s310 = scalar_select %p309, %s19, 1
      %p311 = scmp.lt.s32.totalorder %s20, 3
      %s312 = scalar_select %p311, %s20, 3
      %s313 = smul.addr %s312, 8
      %s314 = smul.addr %s310, 32
      %s315 = sadd.s32 %s313, %s314
      %s316 = smul.addr %s315, 8
      %s317 = scalar_lea.vmem %s2, %s316
      %p318 = scmp.lt.s32.totalorder %s19, 1
      %s319 = scalar_select %p318, %s19, 1
      %p320 = scmp.lt.s32.totalorder %s20, 3
      %s321 = scalar_select %p320, %s20, 3
      %s322 = smul.addr %s321, 8
      %s323 = smul.addr %s319, 32
      %s324 = sadd.s32 %s322, %s323
      %s325 = smul.addr %s324, 8
      %s326 = scalar_lea.vmem %s3, %s325
      %p327 = scmp.lt.s32.totalorder %s19, 1
      %s328 = scalar_select %p327, %s19, 1
      %p329 = scmp.lt.s32.totalorder %s20, 3
      %s330 = scalar_select %p329, %s20, 3
      %s331 = smul.addr %s330, 8
      %s332 = smul.addr %s328, 32
      %s333 = sadd.s32 %s331, %s332
      %s334 = smul.addr %s333, 8
      %s335 = scalar_lea.vmem %s4, %s334
      %v336 = vld [vmem:[%s308] sm:$0xff]
      %v337 = vld [vmem:[%s308 + $0x8] sm:$0xff]
      %v338 = vld [vmem:[%s308 + $0x10] sm:$0xff]
      %v339 = vld [vmem:[%s308 + $0x18] sm:$0xff]
      %v340 = vld [vmem:[%s308 + $0x20] sm:$0xff]
      %v341 = vld [vmem:[%s308 + $0x28] sm:$0xff]
      %v342 = vld [vmem:[%s308 + $0x30] sm:$0xff]
      %v343 = vld [vmem:[%s308 + $0x38] sm:$0xff]
      %v344 = vld [vmem:[%s317] sm:$0xff]
      %v345 = vld [vmem:[%s317 + $0x8] sm:$0xff]
      %v346 = vld [vmem:[%s317 + $0x10] sm:$0xff]
      %v347 = vld [vmem:[%s317 + $0x18] sm:$0xff]
      %v348 = vld [vmem:[%s317 + $0x20] sm:$0xff]
      %v349 = vld [vmem:[%s317 + $0x28] sm:$0xff]
      %v350 = vld [vmem:[%s317 + $0x30] sm:$0xff]
      %v351 = vld [vmem:[%s317 + $0x38] sm:$0xff]
      %v352 = vld [vmem:[%s326] sm:$0xff]
      %v353 = vld [vmem:[%s326 + $0x8] sm:$0xff]
      %v354 = vld [vmem:[%s326 + $0x10] sm:$0xff]
      %v355 = vld [vmem:[%s326 + $0x18] sm:$0xff]
      %v356 = vld [vmem:[%s326 + $0x20] sm:$0xff]
      %v357 = vld [vmem:[%s326 + $0x28] sm:$0xff]
      %v358 = vld [vmem:[%s326 + $0x30] sm:$0xff]
      %v359 = vld [vmem:[%s326 + $0x38] sm:$0xff]
      %vm360 = vcmask 31744
      %v361 = vsel %vm360, %v352, -inf
      %362 = vmax.xlane.f32.xlu0 %v361
      %v363 = vpop.xlane.xlu0 %362
      %v364 = vsel %vm360, %v353, -inf
      %365 = vmax.xlane.f32.xlu0 %v364
      %v366 = vpop.xlane.xlu0 %365
      %v367 = vsel %vm360, %v354, -inf
      %368 = vmax.xlane.f32.xlu0 %v367
      %v369 = vpop.xlane.xlu0 %368
      %v370 = vsel %vm360, %v355, -inf
      %371 = vmax.xlane.f32.xlu0 %v370
      %v372 = vpop.xlane.xlu0 %371
      %v373 = vsel %vm360, %v356, -inf
      %374 = vmax.xlane.f32.xlu0 %v373
      %v375 = vpop.xlane.xlu0 %374
      %v376 = vsel %vm360, %v357, -inf
      %377 = vmax.xlane.f32.xlu0 %v376
      %v378 = vpop.xlane.xlu0 %377
      %v379 = vsel %vm360, %v358, -inf
      %380 = vmax.xlane.f32.xlu0 %v379
      %v381 = vpop.xlane.xlu0 %380
      %v382 = vsel %vm360, %v359, -inf
      %383 = vmax.xlane.f32.xlu0 %v382
      %v384 = vpop.xlane.xlu0 %383
      %v385 = vsub.f32 %v352, %v363
      %v386 = vsub.f32 %v353, %v366
      %v387 = vsub.f32 %v354, %v369
      %v388 = vsub.f32 %v355, %v372
      %v389 = vsub.f32 %v356, %v375
      %v390 = vsub.f32 %v357, %v378
      %v391 = vsub.f32 %v358, %v381
      %v392 = vsub.f32 %v359, %v384
      %v393 = vmul.f32 %v385, 1.442695
      %v394 = vpow.pop %v393
      %v395 = vmul.f32 %v386, 1.442695
      %v396 = vpow.pop %v395
      %v397 = vmul.f32 %v387, 1.442695
      %v398 = vpow.pop %v397
      %v399 = vmul.f32 %v388, 1.442695
      %v400 = vpow.pop %v399
      %v401 = vmul.f32 %v389, 1.442695
      %v402 = vpow.pop %v401
      %v403 = vmul.f32 %v390, 1.442695
      %v404 = vpow.pop %v403
      %v405 = vmul.f32 %v391, 1.442695
      %v406 = vpow.pop %v405
      %v407 = vmul.f32 %v392, 1.442695
      %v408 = vpow.pop %v407
      %v409 = vsel %vm360, %v394, 0.0
      %410 = vadd.xlane.f32.xlu0 %v409
      %v411 = vpop.xlane.xlu0 %410
      %v412 = vsel %vm360, %v396, 0.0
      %413 = vadd.xlane.f32.xlu0 %v412
      %v414 = vpop.xlane.xlu0 %413
      %v415 = vsel %vm360, %v398, 0.0
      %416 = vadd.xlane.f32.xlu0 %v415
      %v417 = vpop.xlane.xlu0 %416
      %v418 = vsel %vm360, %v400, 0.0
      %419 = vadd.xlane.f32.xlu0 %v418
      %v420 = vpop.xlane.xlu0 %419
      %v421 = vsel %vm360, %v402, 0.0
      %422 = vadd.xlane.f32.xlu0 %v421
      %v423 = vpop.xlane.xlu0 %422
      %v424 = vsel %vm360, %v404, 0.0
      %425 = vadd.xlane.f32.xlu0 %v424
      %v426 = vpop.xlane.xlu0 %425
      %v427 = vsel %vm360, %v406, 0.0
      %428 = vadd.xlane.f32.xlu0 %v427
      %v429 = vpop.xlane.xlu0 %428
      %v430 = vsel %vm360, %v408, 0.0
      %431 = vadd.xlane.f32.xlu0 %v430
      %v432 = vpop.xlane.xlu0 %431
      %v433 = vrcp.pop %v411
      %v434 = vmul.f32 %v394, %v433
      %v435 = vrcp.pop %v414
      %v436 = vmul.f32 %v396, %v435
      %v437 = vrcp.pop %v417
      %v438 = vmul.f32 %v398, %v437
      %v439 = vrcp.pop %v420
      %v440 = vmul.f32 %v400, %v439
      %v441 = vrcp.pop %v423
      %v442 = vmul.f32 %v402, %v441
      %v443 = vrcp.pop %v426
      %v444 = vmul.f32 %v404, %v443
      %v445 = vrcp.pop %v429
      %v446 = vmul.f32 %v406, %v445
      %v447 = vrcp.pop %v432
      %v448 = vmul.f32 %v408, %v447
      %v449 = vfloor.f32 %v336
      %v450 = vfloor.f32 %v337
      %v451 = vfloor.f32 %v338
      %v452 = vfloor.f32 %v339
      %v453 = vfloor.f32 %v340
      %v454 = vfloor.f32 %v341
      %v455 = vfloor.f32 %v342
      %v456 = vfloor.f32 %v343
      %v457 = vfloor.f32 %v344
      %v458 = vfloor.f32 %v345
      %v459 = vfloor.f32 %v346
      %v460 = vfloor.f32 %v347
      %v461 = vfloor.f32 %v348
      %v462 = vfloor.f32 %v349
      %v463 = vfloor.f32 %v350
      %v464 = vfloor.f32 %v351
      %v465 = vsub.f32 %v336, %v449
      %v466 = vsub.f32 %v337, %v450
      %v467 = vsub.f32 %v338, %v451
      %v468 = vsub.f32 %v339, %v452
      %v469 = vsub.f32 %v340, %v453
      %v470 = vsub.f32 %v341, %v454
      %v471 = vsub.f32 %v342, %v455
      %v472 = vsub.f32 %v343, %v456
      %v473 = vsub.f32 %v344, %v457
      %v474 = vsub.f32 %v345, %v458
      %v475 = vsub.f32 %v346, %v459
      %v476 = vsub.f32 %v347, %v460
      %v477 = vsub.f32 %v348, %v461
      %v478 = vsub.f32 %v349, %v462
      %v479 = vsub.f32 %v350, %v463
      %v480 = vsub.f32 %v351, %v464
      %v481 = vsub.f32 1.0, %v465
      %v482 = vsub.f32 1.0, %v466
      %v483 = vsub.f32 1.0, %v467
      %v484 = vsub.f32 1.0, %v468
      %v485 = vsub.f32 1.0, %v469
      %v486 = vsub.f32 1.0, %v470
      %v487 = vsub.f32 1.0, %v471
      %v488 = vsub.f32 1.0, %v472
      %v489 = vsub.f32 1.0, %v473
      %v490 = vsub.f32 1.0, %v474
      %v491 = vsub.f32 1.0, %v475
      %v492 = vsub.f32 1.0, %v476
      %v493 = vsub.f32 1.0, %v477
      %v494 = vsub.f32 1.0, %v478
      %v495 = vsub.f32 1.0, %v479
      %v496 = vsub.f32 1.0, %v480
      %v497 = vcvt.f32.s32.to.zero.pseudo %v449
      %v498 = vcvt.f32.s32.to.zero.pseudo %v450
      %v499 = vcvt.f32.s32.to.zero.pseudo %v451
      %v500 = vcvt.f32.s32.to.zero.pseudo %v452
      %v501 = vcvt.f32.s32.to.zero.pseudo %v453
      %v502 = vcvt.f32.s32.to.zero.pseudo %v454
      %v503 = vcvt.f32.s32.to.zero.pseudo %v455
      %v504 = vcvt.f32.s32.to.zero.pseudo %v456
      %v505 = vcvt.f32.s32.to.zero.pseudo %v457
      %v506 = vcvt.f32.s32.to.zero.pseudo %v458
      %v507 = vcvt.f32.s32.to.zero.pseudo %v459
      %v508 = vcvt.f32.s32.to.zero.pseudo %v460
      %v509 = vcvt.f32.s32.to.zero.pseudo %v461
      %v510 = vcvt.f32.s32.to.zero.pseudo %v462
      %v511 = vcvt.f32.s32.to.zero.pseudo %v463
      %v512 = vcvt.f32.s32.to.zero.pseudo %v464
      %v513 = vadd.s32 %v497, 1
      %v514 = vadd.s32 %v498, 1
      %v515 = vadd.s32 %v499, 1
      %v516 = vadd.s32 %v500, 1
      %v517 = vadd.s32 %v501, 1
      %v518 = vadd.s32 %v502, 1
      %v519 = vadd.s32 %v503, 1
      %v520 = vadd.s32 %v504, 1
      %v521 = vadd.s32 %v505, 1
      %v522 = vadd.s32 %v506, 1
      %v523 = vadd.s32 %v507, 1
      %v524 = vadd.s32 %v508, 1
      %v525 = vadd.s32 %v509, 1
      %v526 = vadd.s32 %v510, 1
      %v527 = vadd.s32 %v511, 1
      %v528 = vadd.s32 %v512, 1
      %v529 = vlaneseq
      %v530 = vand.u32 %v529, 127
      %v531 = vmul.f32 %v481, %v489
      %v532 = vmul.f32 %v482, %v490
      %v533 = vmul.f32 %v483, %v491
      %v534 = vmul.f32 %v484, %v492
      %v535 = vmul.f32 %v485, %v493
      %v536 = vmul.f32 %v486, %v494
      %v537 = vmul.f32 %v487, %v495
      %v538 = vmul.f32 %v488, %v496
      %vm539 = vcmp.ge.s32.totalorder %v497, 0
      %vm540 = vcmp.ge.s32.totalorder %v498, 0
      %vm541 = vcmp.ge.s32.totalorder %v499, 0
      %vm542 = vcmp.ge.s32.totalorder %v500, 0
      %vm543 = vcmp.ge.s32.totalorder %v501, 0
      %vm544 = vcmp.ge.s32.totalorder %v502, 0
      %vm545 = vcmp.ge.s32.totalorder %v503, 0
      %vm546 = vcmp.ge.s32.totalorder %v504, 0
      %vm547 = vcmp.lt.s32.totalorder %v497, 8
      %vm548 = vcmp.lt.s32.totalorder %v498, 8
      %vm549 = vcmp.lt.s32.totalorder %v499, 8
      %vm550 = vcmp.lt.s32.totalorder %v500, 8
      %vm551 = vcmp.lt.s32.totalorder %v501, 8
      %vm552 = vcmp.lt.s32.totalorder %v502, 8
      %vm553 = vcmp.lt.s32.totalorder %v503, 8
      %vm554 = vcmp.lt.s32.totalorder %v504, 8
      %vm555 = vmand %vm539, %vm547
      %vm556 = vmand %vm540, %vm548
      %vm557 = vmand %vm541, %vm549
      %vm558 = vmand %vm542, %vm550
      %vm559 = vmand %vm543, %vm551
      %vm560 = vmand %vm544, %vm552
      %vm561 = vmand %vm545, %vm553
      %vm562 = vmand %vm546, %vm554
      %vm563 = vcmp.ge.s32.totalorder %v505, 0
      %vm564 = vcmp.ge.s32.totalorder %v506, 0
      %vm565 = vcmp.ge.s32.totalorder %v507, 0
      %vm566 = vcmp.ge.s32.totalorder %v508, 0
      %vm567 = vcmp.ge.s32.totalorder %v509, 0
      %vm568 = vcmp.ge.s32.totalorder %v510, 0
      %vm569 = vcmp.ge.s32.totalorder %v511, 0
      %vm570 = vcmp.ge.s32.totalorder %v512, 0
      %vm571 = vmand %vm555, %vm563
      %vm572 = vmand %vm556, %vm564
      %vm573 = vmand %vm557, %vm565
      %vm574 = vmand %vm558, %vm566
      %vm575 = vmand %vm559, %vm567
      %vm576 = vmand %vm560, %vm568
      %vm577 = vmand %vm561, %vm569
      %vm578 = vmand %vm562, %vm570
      %vm579 = vcmp.lt.s32.totalorder %v505, 16
      %vm580 = vcmp.lt.s32.totalorder %v506, 16
      %vm581 = vcmp.lt.s32.totalorder %v507, 16
      %vm582 = vcmp.lt.s32.totalorder %v508, 16
      %vm583 = vcmp.lt.s32.totalorder %v509, 16
      %vm584 = vcmp.lt.s32.totalorder %v510, 16
      %vm585 = vcmp.lt.s32.totalorder %v511, 16
      %vm586 = vcmp.lt.s32.totalorder %v512, 16
      %vm587 = vmand %vm571, %vm579
      %vm588 = vmand %vm572, %vm580
      %vm589 = vmand %vm573, %vm581
      %vm590 = vmand %vm574, %vm582
      %vm591 = vmand %vm575, %vm583
      %vm592 = vmand %vm576, %vm584
      %vm593 = vmand %vm577, %vm585
      %vm594 = vmand %vm578, %vm586
      %v595 = vsel %vm587, %v531, 0.0
      %v596 = vsel %vm588, %v532, 0.0
      %v597 = vsel %vm589, %v533, 0.0
      %v598 = vsel %vm590, %v534, 0.0
      %v599 = vsel %vm591, %v535, 0.0
      %v600 = vsel %vm592, %v536, 0.0
      %v601 = vsel %vm593, %v537, 0.0
      %v602 = vsel %vm594, %v538, 0.0
      %v603 = vmul.f32 %v595, %v434
      %v604 = vmul.f32 %v596, %v436
      %v605 = vmul.f32 %v597, %v438
      %v606 = vmul.f32 %v598, %v440
      %v607 = vmul.f32 %v599, %v442
      %v608 = vmul.f32 %v600, %v444
      %v609 = vmul.f32 %v601, %v446
      %v610 = vmul.f32 %v602, %v448
      %v611 = vmul.u32 %v505, 8
      %v612 = vmul.u32 %v506, 8
      %v613 = vmul.u32 %v507, 8
      %v614 = vmul.u32 %v508, 8
      %v615 = vmul.u32 %v509, 8
      %v616 = vmul.u32 %v510, 8
      %v617 = vmul.u32 %v511, 8
      %v618 = vmul.u32 %v512, 8
      %v619 = vadd.s32 %v611, %v497
      %v620 = vadd.s32 %v612, %v498
      %v621 = vadd.s32 %v613, %v499
      %v622 = vadd.s32 %v614, %v500
      %v623 = vadd.s32 %v615, %v501
      %v624 = vadd.s32 %v616, %v502
      %v625 = vadd.s32 %v617, %v503
      %v626 = vadd.s32 %v618, %v504
      %627 = vset.pattern.permute.xlu0 0
      %628 = vperm.xlu0 %627, %v619
      %v629 = vpop.permute.xlu0 %628
      %630 = vset.pattern.permute.xlu0 0
      %631 = vperm.xlu0 %630, %v620
      %v632 = vpop.permute.xlu0 %631
      %633 = vset.pattern.permute.xlu0 0
      %634 = vperm.xlu0 %633, %v621
      %v635 = vpop.permute.xlu0 %634
      %636 = vset.pattern.permute.xlu0 0
      %637 = vperm.xlu0 %636, %v622
      %v638 = vpop.permute.xlu0 %637
      %639 = vset.pattern.permute.xlu0 0
      %640 = vperm.xlu0 %639, %v623
      %v641 = vpop.permute.xlu0 %640
      %642 = vset.pattern.permute.xlu0 0
      %643 = vperm.xlu0 %642, %v624
      %v644 = vpop.permute.xlu0 %643
      %645 = vset.pattern.permute.xlu0 0
      %646 = vperm.xlu0 %645, %v625
      %v647 = vpop.permute.xlu0 %646
      %648 = vset.pattern.permute.xlu0 0
      %649 = vperm.xlu0 %648, %v626
      %v650 = vpop.permute.xlu0 %649
      %vm651 = vcmp.eq.s32.totalorder %v530, %v629
      %vm652 = vcmp.eq.s32.totalorder %v530, %v632
      %vm653 = vcmp.eq.s32.totalorder %v530, %v635
      %vm654 = vcmp.eq.s32.totalorder %v530, %v638
      %vm655 = vcmp.eq.s32.totalorder %v530, %v641
      %vm656 = vcmp.eq.s32.totalorder %v530, %v644
      %vm657 = vcmp.eq.s32.totalorder %v530, %v647
      %vm658 = vcmp.eq.s32.totalorder %v530, %v650
      %660 = vset.pattern.permute.xlu0 0
      %661 = vperm.xlu0 %660, %v603
      %v662 = vpop.permute.xlu0 %661
      %665 = vset.pattern.permute.xlu0 0
      %666 = vperm.xlu0 %665, %v604
      %v667 = vpop.permute.xlu0 %666
      %670 = vset.pattern.permute.xlu0 0
      %671 = vperm.xlu0 %670, %v605
      %v672 = vpop.permute.xlu0 %671
      %675 = vset.pattern.permute.xlu0 0
      %676 = vperm.xlu0 %675, %v606
      %v677 = vpop.permute.xlu0 %676
      %680 = vset.pattern.permute.xlu0 0
      %681 = vperm.xlu0 %680, %v607
      %v682 = vpop.permute.xlu0 %681
      %685 = vset.pattern.permute.xlu0 0
      %686 = vperm.xlu0 %685, %v608
      %v687 = vpop.permute.xlu0 %686
      %690 = vset.pattern.permute.xlu0 0
      %691 = vperm.xlu0 %690, %v609
      %v692 = vpop.permute.xlu0 %691
      %695 = vset.pattern.permute.xlu0 0
      %696 = vperm.xlu0 %695, %v610
      %v697 = vpop.permute.xlu0 %696
      %v699 = vsel %vm651, %v662, 0.0
      %v700 = vsel %vm652, %v667, 0.0
      %v701 = vsel %vm653, %v672, 0.0
      %v702 = vsel %vm654, %v677, 0.0
      %v703 = vsel %vm655, %v682, 0.0
      %v704 = vsel %vm656, %v687, 0.0
      %v705 = vsel %vm657, %v692, 0.0
      %v706 = vsel %vm658, %v697, 0.0
      %v707 = vadd.f32 %v699, 0.0
      %v708 = vadd.f32 %v700, 0.0
      %v709 = vadd.f32 %v701, 0.0
      %v710 = vadd.f32 %v702, 0.0
      %v711 = vadd.f32 %v703, 0.0
      %v712 = vadd.f32 %v704, 0.0
      %v713 = vadd.f32 %v705, 0.0
      %v714 = vadd.f32 %v706, 0.0
      %715 = vset.pattern.permute.xlu0 1
      %716 = vperm.xlu0 %715, %v619
      %v717 = vpop.permute.xlu0 %716
      %718 = vset.pattern.permute.xlu0 1
      %719 = vperm.xlu0 %718, %v620
      %v720 = vpop.permute.xlu0 %719
      %721 = vset.pattern.permute.xlu0 1
      %722 = vperm.xlu0 %721, %v621
      %v723 = vpop.permute.xlu0 %722
      %724 = vset.pattern.permute.xlu0 1
      %725 = vperm.xlu0 %724, %v622
      %v726 = vpop.permute.xlu0 %725
      %727 = vset.pattern.permute.xlu0 1
      %728 = vperm.xlu0 %727, %v623
      %v729 = vpop.permute.xlu0 %728
      %730 = vset.pattern.permute.xlu0 1
      %731 = vperm.xlu0 %730, %v624
      %v732 = vpop.permute.xlu0 %731
      %733 = vset.pattern.permute.xlu0 1
      %734 = vperm.xlu0 %733, %v625
      %v735 = vpop.permute.xlu0 %734
      %736 = vset.pattern.permute.xlu0 1
      %737 = vperm.xlu0 %736, %v626
      %v738 = vpop.permute.xlu0 %737
      %vm739 = vcmp.eq.s32.totalorder %v530, %v717
      %vm740 = vcmp.eq.s32.totalorder %v530, %v720
      %vm741 = vcmp.eq.s32.totalorder %v530, %v723
      %vm742 = vcmp.eq.s32.totalorder %v530, %v726
      %vm743 = vcmp.eq.s32.totalorder %v530, %v729
      %vm744 = vcmp.eq.s32.totalorder %v530, %v732
      %vm745 = vcmp.eq.s32.totalorder %v530, %v735
      %vm746 = vcmp.eq.s32.totalorder %v530, %v738
      %747 = vset.pattern.permute.xlu0 1
      %748 = vperm.xlu0 %747, %v603
      %v749 = vpop.permute.xlu0 %748
      %751 = vset.pattern.permute.xlu0 1
      %752 = vperm.xlu0 %751, %v604
      %v753 = vpop.permute.xlu0 %752
      %755 = vset.pattern.permute.xlu0 1
      %756 = vperm.xlu0 %755, %v605
      %v757 = vpop.permute.xlu0 %756
      %759 = vset.pattern.permute.xlu0 1
      %760 = vperm.xlu0 %759, %v606
      %v761 = vpop.permute.xlu0 %760
      %763 = vset.pattern.permute.xlu0 1
      %764 = vperm.xlu0 %763, %v607
      %v765 = vpop.permute.xlu0 %764
      %767 = vset.pattern.permute.xlu0 1
      %768 = vperm.xlu0 %767, %v608
      %v769 = vpop.permute.xlu0 %768
      %771 = vset.pattern.permute.xlu0 1
      %772 = vperm.xlu0 %771, %v609
      %v773 = vpop.permute.xlu0 %772
      %775 = vset.pattern.permute.xlu0 1
      %776 = vperm.xlu0 %775, %v610
      %v777 = vpop.permute.xlu0 %776
      %v779 = vsel %vm739, %v749, 0.0
      %v780 = vsel %vm740, %v753, 0.0
      %v781 = vsel %vm741, %v757, 0.0
      %v782 = vsel %vm742, %v761, 0.0
      %v783 = vsel %vm743, %v765, 0.0
      %v784 = vsel %vm744, %v769, 0.0
      %v785 = vsel %vm745, %v773, 0.0
      %v786 = vsel %vm746, %v777, 0.0
      %v787 = vadd.f32 %v707, %v779
      %v788 = vadd.f32 %v708, %v780
      %v789 = vadd.f32 %v709, %v781
      %v790 = vadd.f32 %v710, %v782
      %v791 = vadd.f32 %v711, %v783
      %v792 = vadd.f32 %v712, %v784
      %v793 = vadd.f32 %v713, %v785
      %v794 = vadd.f32 %v714, %v786
      %795 = vset.pattern.permute.xlu0 2
      %796 = vperm.xlu0 %795, %v619
      %v797 = vpop.permute.xlu0 %796
      %798 = vset.pattern.permute.xlu0 2
      %799 = vperm.xlu0 %798, %v620
      %v800 = vpop.permute.xlu0 %799
      %801 = vset.pattern.permute.xlu0 2
      %802 = vperm.xlu0 %801, %v621
      %v803 = vpop.permute.xlu0 %802
      %804 = vset.pattern.permute.xlu0 2
      %805 = vperm.xlu0 %804, %v622
      %v806 = vpop.permute.xlu0 %805
      %807 = vset.pattern.permute.xlu0 2
      %808 = vperm.xlu0 %807, %v623
      %v809 = vpop.permute.xlu0 %808
      %810 = vset.pattern.permute.xlu0 2
      %811 = vperm.xlu0 %810, %v624
      %v812 = vpop.permute.xlu0 %811
      %813 = vset.pattern.permute.xlu0 2
      %814 = vperm.xlu0 %813, %v625
      %v815 = vpop.permute.xlu0 %814
      %816 = vset.pattern.permute.xlu0 2
      %817 = vperm.xlu0 %816, %v626
      %v818 = vpop.permute.xlu0 %817
      %vm819 = vcmp.eq.s32.totalorder %v530, %v797
      %vm820 = vcmp.eq.s32.totalorder %v530, %v800
      %vm821 = vcmp.eq.s32.totalorder %v530, %v803
      %vm822 = vcmp.eq.s32.totalorder %v530, %v806
      %vm823 = vcmp.eq.s32.totalorder %v530, %v809
      %vm824 = vcmp.eq.s32.totalorder %v530, %v812
      %vm825 = vcmp.eq.s32.totalorder %v530, %v815
      %vm826 = vcmp.eq.s32.totalorder %v530, %v818
      %827 = vset.pattern.permute.xlu0 2
      %828 = vperm.xlu0 %827, %v603
      %v829 = vpop.permute.xlu0 %828
      %831 = vset.pattern.permute.xlu0 2
      %832 = vperm.xlu0 %831, %v604
      %v833 = vpop.permute.xlu0 %832
      %835 = vset.pattern.permute.xlu0 2
      %836 = vperm.xlu0 %835, %v605
      %v837 = vpop.permute.xlu0 %836
      %839 = vset.pattern.permute.xlu0 2
      %840 = vperm.xlu0 %839, %v606
      %v841 = vpop.permute.xlu0 %840
      %843 = vset.pattern.permute.xlu0 2
      %844 = vperm.xlu0 %843, %v607
      %v845 = vpop.permute.xlu0 %844
      %847 = vset.pattern.permute.xlu0 2
      %848 = vperm.xlu0 %847, %v608
      %v849 = vpop.permute.xlu0 %848
      %851 = vset.pattern.permute.xlu0 2
      %852 = vperm.xlu0 %851, %v609
      %v853 = vpop.permute.xlu0 %852
      %855 = vset.pattern.permute.xlu0 2
      %856 = vperm.xlu0 %855, %v610
      %v857 = vpop.permute.xlu0 %856
      %v859 = vsel %vm819, %v829, 0.0
      %v860 = vsel %vm820, %v833, 0.0
      %v861 = vsel %vm821, %v837, 0.0
      %v862 = vsel %vm822, %v841, 0.0
      %v863 = vsel %vm823, %v845, 0.0
      %v864 = vsel %vm824, %v849, 0.0
      %v865 = vsel %vm825, %v853, 0.0
      %v866 = vsel %vm826, %v857, 0.0
      %v867 = vadd.f32 %v787, %v859
      %v868 = vadd.f32 %v788, %v860
      %v869 = vadd.f32 %v789, %v861
      %v870 = vadd.f32 %v790, %v862
      %v871 = vadd.f32 %v791, %v863
      %v872 = vadd.f32 %v792, %v864
      %v873 = vadd.f32 %v793, %v865
      %v874 = vadd.f32 %v794, %v866
      %875 = vset.pattern.permute.xlu0 3
      %876 = vperm.xlu0 %875, %v619
      %v877 = vpop.permute.xlu0 %876
      %878 = vset.pattern.permute.xlu0 3
      %879 = vperm.xlu0 %878, %v620
      %v880 = vpop.permute.xlu0 %879
      %881 = vset.pattern.permute.xlu0 3
      %882 = vperm.xlu0 %881, %v621
      %v883 = vpop.permute.xlu0 %882
      %884 = vset.pattern.permute.xlu0 3
      %885 = vperm.xlu0 %884, %v622
      %v886 = vpop.permute.xlu0 %885
      %887 = vset.pattern.permute.xlu0 3
      %888 = vperm.xlu0 %887, %v623
      %v889 = vpop.permute.xlu0 %888
      %890 = vset.pattern.permute.xlu0 3
      %891 = vperm.xlu0 %890, %v624
      %v892 = vpop.permute.xlu0 %891
      %893 = vset.pattern.permute.xlu0 3
      %894 = vperm.xlu0 %893, %v625
      %v895 = vpop.permute.xlu0 %894
      %896 = vset.pattern.permute.xlu0 3
      %897 = vperm.xlu0 %896, %v626
      %v898 = vpop.permute.xlu0 %897
      %vm899 = vcmp.eq.s32.totalorder %v530, %v877
      %vm900 = vcmp.eq.s32.totalorder %v530, %v880
      %vm901 = vcmp.eq.s32.totalorder %v530, %v883
      %vm902 = vcmp.eq.s32.totalorder %v530, %v886
      %vm903 = vcmp.eq.s32.totalorder %v530, %v889
      %vm904 = vcmp.eq.s32.totalorder %v530, %v892
      %vm905 = vcmp.eq.s32.totalorder %v530, %v895
      %vm906 = vcmp.eq.s32.totalorder %v530, %v898
      %907 = vset.pattern.permute.xlu0 3
      %908 = vperm.xlu0 %907, %v603
      %v909 = vpop.permute.xlu0 %908
      %911 = vset.pattern.permute.xlu0 3
      %912 = vperm.xlu0 %911, %v604
      %v913 = vpop.permute.xlu0 %912
      %915 = vset.pattern.permute.xlu0 3
      %916 = vperm.xlu0 %915, %v605
      %v917 = vpop.permute.xlu0 %916
      %919 = vset.pattern.permute.xlu0 3
      %920 = vperm.xlu0 %919, %v606
      %v921 = vpop.permute.xlu0 %920
      %923 = vset.pattern.permute.xlu0 3
      %924 = vperm.xlu0 %923, %v607
      %v925 = vpop.permute.xlu0 %924
      %927 = vset.pattern.permute.xlu0 3
      %928 = vperm.xlu0 %927, %v608
      %v929 = vpop.permute.xlu0 %928
      %931 = vset.pattern.permute.xlu0 3
      %932 = vperm.xlu0 %931, %v609
      %v933 = vpop.permute.xlu0 %932
      %935 = vset.pattern.permute.xlu0 3
      %936 = vperm.xlu0 %935, %v610
      %v937 = vpop.permute.xlu0 %936
      %v939 = vsel %vm899, %v909, 0.0
      %v940 = vsel %vm900, %v913, 0.0
      %v941 = vsel %vm901, %v917, 0.0
      %v942 = vsel %vm902, %v921, 0.0
      %v943 = vsel %vm903, %v925, 0.0
      %v944 = vsel %vm904, %v929, 0.0
      %v945 = vsel %vm905, %v933, 0.0
      %v946 = vsel %vm906, %v937, 0.0
      %v947 = vadd.f32 %v867, %v939
      %v948 = vadd.f32 %v868, %v940
      %v949 = vadd.f32 %v869, %v941
      %v950 = vadd.f32 %v870, %v942
      %v951 = vadd.f32 %v871, %v943
      %v952 = vadd.f32 %v872, %v944
      %v953 = vadd.f32 %v873, %v945
      %v954 = vadd.f32 %v874, %v946
      %v955 = vmul.f32 %v465, %v489
      %v956 = vmul.f32 %v466, %v490
      %v957 = vmul.f32 %v467, %v491
      %v958 = vmul.f32 %v468, %v492
      %v959 = vmul.f32 %v469, %v493
      %v960 = vmul.f32 %v470, %v494
      %v961 = vmul.f32 %v471, %v495
      %v962 = vmul.f32 %v472, %v496
      %vm963 = vcmp.ge.s32.totalorder %v513, 0
      %vm964 = vcmp.ge.s32.totalorder %v514, 0
      %vm965 = vcmp.ge.s32.totalorder %v515, 0
      %vm966 = vcmp.ge.s32.totalorder %v516, 0
      %vm967 = vcmp.ge.s32.totalorder %v517, 0
      %vm968 = vcmp.ge.s32.totalorder %v518, 0
      %vm969 = vcmp.ge.s32.totalorder %v519, 0
      %vm970 = vcmp.ge.s32.totalorder %v520, 0
      %vm971 = vcmp.lt.s32.totalorder %v513, 8
      %vm972 = vcmp.lt.s32.totalorder %v514, 8
      %vm973 = vcmp.lt.s32.totalorder %v515, 8
      %vm974 = vcmp.lt.s32.totalorder %v516, 8
      %vm975 = vcmp.lt.s32.totalorder %v517, 8
      %vm976 = vcmp.lt.s32.totalorder %v518, 8
      %vm977 = vcmp.lt.s32.totalorder %v519, 8
      %vm978 = vcmp.lt.s32.totalorder %v520, 8
      %vm979 = vmand %vm963, %vm971
      %vm980 = vmand %vm964, %vm972
      %vm981 = vmand %vm965, %vm973
      %vm982 = vmand %vm966, %vm974
      %vm983 = vmand %vm967, %vm975
      %vm984 = vmand %vm968, %vm976
      %vm985 = vmand %vm969, %vm977
      %vm986 = vmand %vm970, %vm978
      %vm987 = vmand %vm979, %vm563
      %vm988 = vmand %vm980, %vm564
      %vm989 = vmand %vm981, %vm565
      %vm990 = vmand %vm982, %vm566
      %vm991 = vmand %vm983, %vm567
      %vm992 = vmand %vm984, %vm568
      %vm993 = vmand %vm985, %vm569
      %vm994 = vmand %vm986, %vm570
      %vm995 = vmand %vm987, %vm579
      %vm996 = vmand %vm988, %vm580
      %vm997 = vmand %vm989, %vm581
      %vm998 = vmand %vm990, %vm582
      %vm999 = vmand %vm991, %vm583
      %vm1000 = vmand %vm992, %vm584
      %vm1001 = vmand %vm993, %vm585
      %vm1002 = vmand %vm994, %vm586
      %v1003 = vsel %vm995, %v955, 0.0
      %v1004 = vsel %vm996, %v956, 0.0
      %v1005 = vsel %vm997, %v957, 0.0
      %v1006 = vsel %vm998, %v958, 0.0
      %v1007 = vsel %vm999, %v959, 0.0
      %v1008 = vsel %vm1000, %v960, 0.0
      %v1009 = vsel %vm1001, %v961, 0.0
      %v1010 = vsel %vm1002, %v962, 0.0
      %v1011 = vmul.f32 %v1003, %v434
      %v1012 = vmul.f32 %v1004, %v436
      %v1013 = vmul.f32 %v1005, %v438
      %v1014 = vmul.f32 %v1006, %v440
      %v1015 = vmul.f32 %v1007, %v442
      %v1016 = vmul.f32 %v1008, %v444
      %v1017 = vmul.f32 %v1009, %v446
      %v1018 = vmul.f32 %v1010, %v448
      %v1019 = vadd.s32 %v611, %v513
      %v1020 = vadd.s32 %v612, %v514
      %v1021 = vadd.s32 %v613, %v515
      %v1022 = vadd.s32 %v614, %v516
      %v1023 = vadd.s32 %v615, %v517
      %v1024 = vadd.s32 %v616, %v518
      %v1025 = vadd.s32 %v617, %v519
      %v1026 = vadd.s32 %v618, %v520
      %1027 = vset.pattern.permute.xlu0 0
      %1028 = vperm.xlu0 %1027, %v1019
      %v1029 = vpop.permute.xlu0 %1028
      %1030 = vset.pattern.permute.xlu0 0
      %1031 = vperm.xlu0 %1030, %v1020
      %v1032 = vpop.permute.xlu0 %1031
      %1033 = vset.pattern.permute.xlu0 0
      %1034 = vperm.xlu0 %1033, %v1021
      %v1035 = vpop.permute.xlu0 %1034
      %1036 = vset.pattern.permute.xlu0 0
      %1037 = vperm.xlu0 %1036, %v1022
      %v1038 = vpop.permute.xlu0 %1037
      %1039 = vset.pattern.permute.xlu0 0
      %1040 = vperm.xlu0 %1039, %v1023
      %v1041 = vpop.permute.xlu0 %1040
      %1042 = vset.pattern.permute.xlu0 0
      %1043 = vperm.xlu0 %1042, %v1024
      %v1044 = vpop.permute.xlu0 %1043
      %1045 = vset.pattern.permute.xlu0 0
      %1046 = vperm.xlu0 %1045, %v1025
      %v1047 = vpop.permute.xlu0 %1046
      %1048 = vset.pattern.permute.xlu0 0
      %1049 = vperm.xlu0 %1048, %v1026
      %v1050 = vpop.permute.xlu0 %1049
      %vm1051 = vcmp.eq.s32.totalorder %v530, %v1029
      %vm1052 = vcmp.eq.s32.totalorder %v530, %v1032
      %vm1053 = vcmp.eq.s32.totalorder %v530, %v1035
      %vm1054 = vcmp.eq.s32.totalorder %v530, %v1038
      %vm1055 = vcmp.eq.s32.totalorder %v530, %v1041
      %vm1056 = vcmp.eq.s32.totalorder %v530, %v1044
      %vm1057 = vcmp.eq.s32.totalorder %v530, %v1047
      %vm1058 = vcmp.eq.s32.totalorder %v530, %v1050
      %1060 = vset.pattern.permute.xlu0 0
      %1061 = vperm.xlu0 %1060, %v1011
      %v1062 = vpop.permute.xlu0 %1061
      %1065 = vset.pattern.permute.xlu0 0
      %1066 = vperm.xlu0 %1065, %v1012
      %v1067 = vpop.permute.xlu0 %1066
      %1070 = vset.pattern.permute.xlu0 0
      %1071 = vperm.xlu0 %1070, %v1013
      %v1072 = vpop.permute.xlu0 %1071
      %1075 = vset.pattern.permute.xlu0 0
      %1076 = vperm.xlu0 %1075, %v1014
      %v1077 = vpop.permute.xlu0 %1076
      %1080 = vset.pattern.permute.xlu0 0
      %1081 = vperm.xlu0 %1080, %v1015
      %v1082 = vpop.permute.xlu0 %1081
      %1085 = vset.pattern.permute.xlu0 0
      %1086 = vperm.xlu0 %1085, %v1016
      %v1087 = vpop.permute.xlu0 %1086
      %1090 = vset.pattern.permute.xlu0 0
      %1091 = vperm.xlu0 %1090, %v1017
      %v1092 = vpop.permute.xlu0 %1091
      %1095 = vset.pattern.permute.xlu0 0
      %1096 = vperm.xlu0 %1095, %v1018
      %v1097 = vpop.permute.xlu0 %1096
      %v1099 = vsel %vm1051, %v1062, 0.0
      %v1100 = vsel %vm1052, %v1067, 0.0
      %v1101 = vsel %vm1053, %v1072, 0.0
      %v1102 = vsel %vm1054, %v1077, 0.0
      %v1103 = vsel %vm1055, %v1082, 0.0
      %v1104 = vsel %vm1056, %v1087, 0.0
      %v1105 = vsel %vm1057, %v1092, 0.0
      %v1106 = vsel %vm1058, %v1097, 0.0
      %v1107 = vadd.f32 %v947, %v1099
      %v1108 = vadd.f32 %v948, %v1100
      %v1109 = vadd.f32 %v949, %v1101
      %v1110 = vadd.f32 %v950, %v1102
      %v1111 = vadd.f32 %v951, %v1103
      %v1112 = vadd.f32 %v952, %v1104
      %v1113 = vadd.f32 %v953, %v1105
      %v1114 = vadd.f32 %v954, %v1106
      %1115 = vset.pattern.permute.xlu0 1
      %1116 = vperm.xlu0 %1115, %v1019
      %v1117 = vpop.permute.xlu0 %1116
      %1118 = vset.pattern.permute.xlu0 1
      %1119 = vperm.xlu0 %1118, %v1020
      %v1120 = vpop.permute.xlu0 %1119
      %1121 = vset.pattern.permute.xlu0 1
      %1122 = vperm.xlu0 %1121, %v1021
      %v1123 = vpop.permute.xlu0 %1122
      %1124 = vset.pattern.permute.xlu0 1
      %1125 = vperm.xlu0 %1124, %v1022
      %v1126 = vpop.permute.xlu0 %1125
      %1127 = vset.pattern.permute.xlu0 1
      %1128 = vperm.xlu0 %1127, %v1023
      %v1129 = vpop.permute.xlu0 %1128
      %1130 = vset.pattern.permute.xlu0 1
      %1131 = vperm.xlu0 %1130, %v1024
      %v1132 = vpop.permute.xlu0 %1131
      %1133 = vset.pattern.permute.xlu0 1
      %1134 = vperm.xlu0 %1133, %v1025
      %v1135 = vpop.permute.xlu0 %1134
      %1136 = vset.pattern.permute.xlu0 1
      %1137 = vperm.xlu0 %1136, %v1026
      %v1138 = vpop.permute.xlu0 %1137
      %vm1139 = vcmp.eq.s32.totalorder %v530, %v1117
      %vm1140 = vcmp.eq.s32.totalorder %v530, %v1120
      %vm1141 = vcmp.eq.s32.totalorder %v530, %v1123
      %vm1142 = vcmp.eq.s32.totalorder %v530, %v1126
      %vm1143 = vcmp.eq.s32.totalorder %v530, %v1129
      %vm1144 = vcmp.eq.s32.totalorder %v530, %v1132
      %vm1145 = vcmp.eq.s32.totalorder %v530, %v1135
      %vm1146 = vcmp.eq.s32.totalorder %v530, %v1138
      %1147 = vset.pattern.permute.xlu0 1
      %1148 = vperm.xlu0 %1147, %v1011
      %v1149 = vpop.permute.xlu0 %1148
      %1151 = vset.pattern.permute.xlu0 1
      %1152 = vperm.xlu0 %1151, %v1012
      %v1153 = vpop.permute.xlu0 %1152
      %1155 = vset.pattern.permute.xlu0 1
      %1156 = vperm.xlu0 %1155, %v1013
      %v1157 = vpop.permute.xlu0 %1156
      %1159 = vset.pattern.permute.xlu0 1
      %1160 = vperm.xlu0 %1159, %v1014
      %v1161 = vpop.permute.xlu0 %1160
      %1163 = vset.pattern.permute.xlu0 1
      %1164 = vperm.xlu0 %1163, %v1015
      %v1165 = vpop.permute.xlu0 %1164
      %1167 = vset.pattern.permute.xlu0 1
      %1168 = vperm.xlu0 %1167, %v1016
      %v1169 = vpop.permute.xlu0 %1168
      %1171 = vset.pattern.permute.xlu0 1
      %1172 = vperm.xlu0 %1171, %v1017
      %v1173 = vpop.permute.xlu0 %1172
      %1175 = vset.pattern.permute.xlu0 1
      %1176 = vperm.xlu0 %1175, %v1018
      %v1177 = vpop.permute.xlu0 %1176
      %v1179 = vsel %vm1139, %v1149, 0.0
      %v1180 = vsel %vm1140, %v1153, 0.0
      %v1181 = vsel %vm1141, %v1157, 0.0
      %v1182 = vsel %vm1142, %v1161, 0.0
      %v1183 = vsel %vm1143, %v1165, 0.0
      %v1184 = vsel %vm1144, %v1169, 0.0
      %v1185 = vsel %vm1145, %v1173, 0.0
      %v1186 = vsel %vm1146, %v1177, 0.0
      %v1187 = vadd.f32 %v1107, %v1179
      %v1188 = vadd.f32 %v1108, %v1180
      %v1189 = vadd.f32 %v1109, %v1181
      %v1190 = vadd.f32 %v1110, %v1182
      %v1191 = vadd.f32 %v1111, %v1183
      %v1192 = vadd.f32 %v1112, %v1184
      %v1193 = vadd.f32 %v1113, %v1185
      %v1194 = vadd.f32 %v1114, %v1186
      %1195 = vset.pattern.permute.xlu0 2
      %1196 = vperm.xlu0 %1195, %v1019
      %v1197 = vpop.permute.xlu0 %1196
      %1198 = vset.pattern.permute.xlu0 2
      %1199 = vperm.xlu0 %1198, %v1020
      %v1200 = vpop.permute.xlu0 %1199
      %1201 = vset.pattern.permute.xlu0 2
      %1202 = vperm.xlu0 %1201, %v1021
      %v1203 = vpop.permute.xlu0 %1202
      %1204 = vset.pattern.permute.xlu0 2
      %1205 = vperm.xlu0 %1204, %v1022
      %v1206 = vpop.permute.xlu0 %1205
      %1207 = vset.pattern.permute.xlu0 2
      %1208 = vperm.xlu0 %1207, %v1023
      %v1209 = vpop.permute.xlu0 %1208
      %1210 = vset.pattern.permute.xlu0 2
      %1211 = vperm.xlu0 %1210, %v1024
      %v1212 = vpop.permute.xlu0 %1211
      %1213 = vset.pattern.permute.xlu0 2
      %1214 = vperm.xlu0 %1213, %v1025
      %v1215 = vpop.permute.xlu0 %1214
      %1216 = vset.pattern.permute.xlu0 2
      %1217 = vperm.xlu0 %1216, %v1026
      %v1218 = vpop.permute.xlu0 %1217
      %vm1219 = vcmp.eq.s32.totalorder %v530, %v1197
      %vm1220 = vcmp.eq.s32.totalorder %v530, %v1200
      %vm1221 = vcmp.eq.s32.totalorder %v530, %v1203
      %vm1222 = vcmp.eq.s32.totalorder %v530, %v1206
      %vm1223 = vcmp.eq.s32.totalorder %v530, %v1209
      %vm1224 = vcmp.eq.s32.totalorder %v530, %v1212
      %vm1225 = vcmp.eq.s32.totalorder %v530, %v1215
      %vm1226 = vcmp.eq.s32.totalorder %v530, %v1218
      %1227 = vset.pattern.permute.xlu0 2
      %1228 = vperm.xlu0 %1227, %v1011
      %v1229 = vpop.permute.xlu0 %1228
      %1231 = vset.pattern.permute.xlu0 2
      %1232 = vperm.xlu0 %1231, %v1012
      %v1233 = vpop.permute.xlu0 %1232
      %1235 = vset.pattern.permute.xlu0 2
      %1236 = vperm.xlu0 %1235, %v1013
      %v1237 = vpop.permute.xlu0 %1236
      %1239 = vset.pattern.permute.xlu0 2
      %1240 = vperm.xlu0 %1239, %v1014
      %v1241 = vpop.permute.xlu0 %1240
      %1243 = vset.pattern.permute.xlu0 2
      %1244 = vperm.xlu0 %1243, %v1015
      %v1245 = vpop.permute.xlu0 %1244
      %1247 = vset.pattern.permute.xlu0 2
      %1248 = vperm.xlu0 %1247, %v1016
      %v1249 = vpop.permute.xlu0 %1248
      %1251 = vset.pattern.permute.xlu0 2
      %1252 = vperm.xlu0 %1251, %v1017
      %v1253 = vpop.permute.xlu0 %1252
      %1255 = vset.pattern.permute.xlu0 2
      %1256 = vperm.xlu0 %1255, %v1018
      %v1257 = vpop.permute.xlu0 %1256
      %v1259 = vsel %vm1219, %v1229, 0.0
      %v1260 = vsel %vm1220, %v1233, 0.0
      %v1261 = vsel %vm1221, %v1237, 0.0
      %v1262 = vsel %vm1222, %v1241, 0.0
      %v1263 = vsel %vm1223, %v1245, 0.0
      %v1264 = vsel %vm1224, %v1249, 0.0
      %v1265 = vsel %vm1225, %v1253, 0.0
      %v1266 = vsel %vm1226, %v1257, 0.0
      %v1267 = vadd.f32 %v1187, %v1259
      %v1268 = vadd.f32 %v1188, %v1260
      %v1269 = vadd.f32 %v1189, %v1261
      %v1270 = vadd.f32 %v1190, %v1262
      %v1271 = vadd.f32 %v1191, %v1263
      %v1272 = vadd.f32 %v1192, %v1264
      %v1273 = vadd.f32 %v1193, %v1265
      %v1274 = vadd.f32 %v1194, %v1266
      %1275 = vset.pattern.permute.xlu0 3
      %1276 = vperm.xlu0 %1275, %v1019
      %v1277 = vpop.permute.xlu0 %1276
      %1278 = vset.pattern.permute.xlu0 3
      %1279 = vperm.xlu0 %1278, %v1020
      %v1280 = vpop.permute.xlu0 %1279
      %1281 = vset.pattern.permute.xlu0 3
      %1282 = vperm.xlu0 %1281, %v1021
      %v1283 = vpop.permute.xlu0 %1282
      %1284 = vset.pattern.permute.xlu0 3
      %1285 = vperm.xlu0 %1284, %v1022
      %v1286 = vpop.permute.xlu0 %1285
      %1287 = vset.pattern.permute.xlu0 3
      %1288 = vperm.xlu0 %1287, %v1023
      %v1289 = vpop.permute.xlu0 %1288
      %1290 = vset.pattern.permute.xlu0 3
      %1291 = vperm.xlu0 %1290, %v1024
      %v1292 = vpop.permute.xlu0 %1291
      %1293 = vset.pattern.permute.xlu0 3
      %1294 = vperm.xlu0 %1293, %v1025
      %v1295 = vpop.permute.xlu0 %1294
      %1296 = vset.pattern.permute.xlu0 3
      %1297 = vperm.xlu0 %1296, %v1026
      %v1298 = vpop.permute.xlu0 %1297
      %vm1299 = vcmp.eq.s32.totalorder %v530, %v1277
      %vm1300 = vcmp.eq.s32.totalorder %v530, %v1280
      %vm1301 = vcmp.eq.s32.totalorder %v530, %v1283
      %vm1302 = vcmp.eq.s32.totalorder %v530, %v1286
      %vm1303 = vcmp.eq.s32.totalorder %v530, %v1289
      %vm1304 = vcmp.eq.s32.totalorder %v530, %v1292
      %vm1305 = vcmp.eq.s32.totalorder %v530, %v1295
      %vm1306 = vcmp.eq.s32.totalorder %v530, %v1298
      %1307 = vset.pattern.permute.xlu0 3
      %1308 = vperm.xlu0 %1307, %v1011
      %v1309 = vpop.permute.xlu0 %1308
      %1311 = vset.pattern.permute.xlu0 3
      %1312 = vperm.xlu0 %1311, %v1012
      %v1313 = vpop.permute.xlu0 %1312
      %1315 = vset.pattern.permute.xlu0 3
      %1316 = vperm.xlu0 %1315, %v1013
      %v1317 = vpop.permute.xlu0 %1316
      %1319 = vset.pattern.permute.xlu0 3
      %1320 = vperm.xlu0 %1319, %v1014
      %v1321 = vpop.permute.xlu0 %1320
      %1323 = vset.pattern.permute.xlu0 3
      %1324 = vperm.xlu0 %1323, %v1015
      %v1325 = vpop.permute.xlu0 %1324
      %1327 = vset.pattern.permute.xlu0 3
      %1328 = vperm.xlu0 %1327, %v1016
      %v1329 = vpop.permute.xlu0 %1328
      %1331 = vset.pattern.permute.xlu0 3
      %1332 = vperm.xlu0 %1331, %v1017
      %v1333 = vpop.permute.xlu0 %1332
      %1335 = vset.pattern.permute.xlu0 3
      %1336 = vperm.xlu0 %1335, %v1018
      %v1337 = vpop.permute.xlu0 %1336
      %v1339 = vsel %vm1299, %v1309, 0.0
      %v1340 = vsel %vm1300, %v1313, 0.0
      %v1341 = vsel %vm1301, %v1317, 0.0
      %v1342 = vsel %vm1302, %v1321, 0.0
      %v1343 = vsel %vm1303, %v1325, 0.0
      %v1344 = vsel %vm1304, %v1329, 0.0
      %v1345 = vsel %vm1305, %v1333, 0.0
      %v1346 = vsel %vm1306, %v1337, 0.0
      %v1347 = vadd.f32 %v1267, %v1339
      %v1348 = vadd.f32 %v1268, %v1340
      %v1349 = vadd.f32 %v1269, %v1341
      %v1350 = vadd.f32 %v1270, %v1342
      %v1351 = vadd.f32 %v1271, %v1343
      %v1352 = vadd.f32 %v1272, %v1344
      %v1353 = vadd.f32 %v1273, %v1345
      %v1354 = vadd.f32 %v1274, %v1346
      %v1355 = vmul.f32 %v481, %v473
      %v1356 = vmul.f32 %v482, %v474
      %v1357 = vmul.f32 %v483, %v475
      %v1358 = vmul.f32 %v484, %v476
      %v1359 = vmul.f32 %v485, %v477
      %v1360 = vmul.f32 %v486, %v478
      %v1361 = vmul.f32 %v487, %v479
      %v1362 = vmul.f32 %v488, %v480
      %vm1363 = vcmp.ge.s32.totalorder %v521, 0
      %vm1364 = vcmp.ge.s32.totalorder %v522, 0
      %vm1365 = vcmp.ge.s32.totalorder %v523, 0
      %vm1366 = vcmp.ge.s32.totalorder %v524, 0
      %vm1367 = vcmp.ge.s32.totalorder %v525, 0
      %vm1368 = vcmp.ge.s32.totalorder %v526, 0
      %vm1369 = vcmp.ge.s32.totalorder %v527, 0
      %vm1370 = vcmp.ge.s32.totalorder %v528, 0
      %vm1371 = vmand %vm555, %vm1363
      %vm1372 = vmand %vm556, %vm1364
      %vm1373 = vmand %vm557, %vm1365
      %vm1374 = vmand %vm558, %vm1366
      %vm1375 = vmand %vm559, %vm1367
      %vm1376 = vmand %vm560, %vm1368
      %vm1377 = vmand %vm561, %vm1369
      %vm1378 = vmand %vm562, %vm1370
      %vm1379 = vcmp.lt.s32.totalorder %v521, 16
      %vm1380 = vcmp.lt.s32.totalorder %v522, 16
      %vm1381 = vcmp.lt.s32.totalorder %v523, 16
      %vm1382 = vcmp.lt.s32.totalorder %v524, 16
      %vm1383 = vcmp.lt.s32.totalorder %v525, 16
      %vm1384 = vcmp.lt.s32.totalorder %v526, 16
      %vm1385 = vcmp.lt.s32.totalorder %v527, 16
      %vm1386 = vcmp.lt.s32.totalorder %v528, 16
      %vm1387 = vmand %vm1371, %vm1379
      %vm1388 = vmand %vm1372, %vm1380
      %vm1389 = vmand %vm1373, %vm1381
      %vm1390 = vmand %vm1374, %vm1382
      %vm1391 = vmand %vm1375, %vm1383
      %vm1392 = vmand %vm1376, %vm1384
      %vm1393 = vmand %vm1377, %vm1385
      %vm1394 = vmand %vm1378, %vm1386
      %v1395 = vsel %vm1387, %v1355, 0.0
      %v1396 = vsel %vm1388, %v1356, 0.0
      %v1397 = vsel %vm1389, %v1357, 0.0
      %v1398 = vsel %vm1390, %v1358, 0.0
      %v1399 = vsel %vm1391, %v1359, 0.0
      %v1400 = vsel %vm1392, %v1360, 0.0
      %v1401 = vsel %vm1393, %v1361, 0.0
      %v1402 = vsel %vm1394, %v1362, 0.0
      %v1403 = vmul.f32 %v1395, %v434
      %v1404 = vmul.f32 %v1396, %v436
      %v1405 = vmul.f32 %v1397, %v438
      %v1406 = vmul.f32 %v1398, %v440
      %v1407 = vmul.f32 %v1399, %v442
      %v1408 = vmul.f32 %v1400, %v444
      %v1409 = vmul.f32 %v1401, %v446
      %v1410 = vmul.f32 %v1402, %v448
      %v1411 = vmul.u32 %v521, 8
      %v1412 = vmul.u32 %v522, 8
      %v1413 = vmul.u32 %v523, 8
      %v1414 = vmul.u32 %v524, 8
      %v1415 = vmul.u32 %v525, 8
      %v1416 = vmul.u32 %v526, 8
      %v1417 = vmul.u32 %v527, 8
      %v1418 = vmul.u32 %v528, 8
      %v1419 = vadd.s32 %v1411, %v497
      %v1420 = vadd.s32 %v1412, %v498
      %v1421 = vadd.s32 %v1413, %v499
      %v1422 = vadd.s32 %v1414, %v500
      %v1423 = vadd.s32 %v1415, %v501
      %v1424 = vadd.s32 %v1416, %v502
      %v1425 = vadd.s32 %v1417, %v503
      %v1426 = vadd.s32 %v1418, %v504
      %1427 = vset.pattern.permute.xlu0 0
      %1428 = vperm.xlu0 %1427, %v1419
      %v1429 = vpop.permute.xlu0 %1428
      %1430 = vset.pattern.permute.xlu0 0
      %1431 = vperm.xlu0 %1430, %v1420
      %v1432 = vpop.permute.xlu0 %1431
      %1433 = vset.pattern.permute.xlu0 0
      %1434 = vperm.xlu0 %1433, %v1421
      %v1435 = vpop.permute.xlu0 %1434
      %1436 = vset.pattern.permute.xlu0 0
      %1437 = vperm.xlu0 %1436, %v1422
      %v1438 = vpop.permute.xlu0 %1437
      %1439 = vset.pattern.permute.xlu0 0
      %1440 = vperm.xlu0 %1439, %v1423
      %v1441 = vpop.permute.xlu0 %1440
      %1442 = vset.pattern.permute.xlu0 0
      %1443 = vperm.xlu0 %1442, %v1424
      %v1444 = vpop.permute.xlu0 %1443
      %1445 = vset.pattern.permute.xlu0 0
      %1446 = vperm.xlu0 %1445, %v1425
      %v1447 = vpop.permute.xlu0 %1446
      %1448 = vset.pattern.permute.xlu0 0
      %1449 = vperm.xlu0 %1448, %v1426
      %v1450 = vpop.permute.xlu0 %1449
      %vm1451 = vcmp.eq.s32.totalorder %v530, %v1429
      %vm1452 = vcmp.eq.s32.totalorder %v530, %v1432
      %vm1453 = vcmp.eq.s32.totalorder %v530, %v1435
      %vm1454 = vcmp.eq.s32.totalorder %v530, %v1438
      %vm1455 = vcmp.eq.s32.totalorder %v530, %v1441
      %vm1456 = vcmp.eq.s32.totalorder %v530, %v1444
      %vm1457 = vcmp.eq.s32.totalorder %v530, %v1447
      %vm1458 = vcmp.eq.s32.totalorder %v530, %v1450
      %1460 = vset.pattern.permute.xlu0 0
      %1461 = vperm.xlu0 %1460, %v1403
      %v1462 = vpop.permute.xlu0 %1461
      %1465 = vset.pattern.permute.xlu0 0
      %1466 = vperm.xlu0 %1465, %v1404
      %v1467 = vpop.permute.xlu0 %1466
      %1470 = vset.pattern.permute.xlu0 0
      %1471 = vperm.xlu0 %1470, %v1405
      %v1472 = vpop.permute.xlu0 %1471
      %1475 = vset.pattern.permute.xlu0 0
      %1476 = vperm.xlu0 %1475, %v1406
      %v1477 = vpop.permute.xlu0 %1476
      %1480 = vset.pattern.permute.xlu0 0
      %1481 = vperm.xlu0 %1480, %v1407
      %v1482 = vpop.permute.xlu0 %1481
      %1485 = vset.pattern.permute.xlu0 0
      %1486 = vperm.xlu0 %1485, %v1408
      %v1487 = vpop.permute.xlu0 %1486
      %1490 = vset.pattern.permute.xlu0 0
      %1491 = vperm.xlu0 %1490, %v1409
      %v1492 = vpop.permute.xlu0 %1491
      %1495 = vset.pattern.permute.xlu0 0
      %1496 = vperm.xlu0 %1495, %v1410
      %v1497 = vpop.permute.xlu0 %1496
      %v1499 = vsel %vm1451, %v1462, 0.0
      %v1500 = vsel %vm1452, %v1467, 0.0
      %v1501 = vsel %vm1453, %v1472, 0.0
      %v1502 = vsel %vm1454, %v1477, 0.0
      %v1503 = vsel %vm1455, %v1482, 0.0
      %v1504 = vsel %vm1456, %v1487, 0.0
      %v1505 = vsel %vm1457, %v1492, 0.0
      %v1506 = vsel %vm1458, %v1497, 0.0
      %v1507 = vadd.f32 %v1347, %v1499
      %v1508 = vadd.f32 %v1348, %v1500
      %v1509 = vadd.f32 %v1349, %v1501
      %v1510 = vadd.f32 %v1350, %v1502
      %v1511 = vadd.f32 %v1351, %v1503
      %v1512 = vadd.f32 %v1352, %v1504
      %v1513 = vadd.f32 %v1353, %v1505
      %v1514 = vadd.f32 %v1354, %v1506
      %1515 = vset.pattern.permute.xlu0 1
      %1516 = vperm.xlu0 %1515, %v1419
      %v1517 = vpop.permute.xlu0 %1516
      %1518 = vset.pattern.permute.xlu0 1
      %1519 = vperm.xlu0 %1518, %v1420
      %v1520 = vpop.permute.xlu0 %1519
      %1521 = vset.pattern.permute.xlu0 1
      %1522 = vperm.xlu0 %1521, %v1421
      %v1523 = vpop.permute.xlu0 %1522
      %1524 = vset.pattern.permute.xlu0 1
      %1525 = vperm.xlu0 %1524, %v1422
      %v1526 = vpop.permute.xlu0 %1525
      %1527 = vset.pattern.permute.xlu0 1
      %1528 = vperm.xlu0 %1527, %v1423
      %v1529 = vpop.permute.xlu0 %1528
      %1530 = vset.pattern.permute.xlu0 1
      %1531 = vperm.xlu0 %1530, %v1424
      %v1532 = vpop.permute.xlu0 %1531
      %1533 = vset.pattern.permute.xlu0 1
      %1534 = vperm.xlu0 %1533, %v1425
      %v1535 = vpop.permute.xlu0 %1534
      %1536 = vset.pattern.permute.xlu0 1
      %1537 = vperm.xlu0 %1536, %v1426
      %v1538 = vpop.permute.xlu0 %1537
      %vm1539 = vcmp.eq.s32.totalorder %v530, %v1517
      %vm1540 = vcmp.eq.s32.totalorder %v530, %v1520
      %vm1541 = vcmp.eq.s32.totalorder %v530, %v1523
      %vm1542 = vcmp.eq.s32.totalorder %v530, %v1526
      %vm1543 = vcmp.eq.s32.totalorder %v530, %v1529
      %vm1544 = vcmp.eq.s32.totalorder %v530, %v1532
      %vm1545 = vcmp.eq.s32.totalorder %v530, %v1535
      %vm1546 = vcmp.eq.s32.totalorder %v530, %v1538
      %1547 = vset.pattern.permute.xlu0 1
      %1548 = vperm.xlu0 %1547, %v1403
      %v1549 = vpop.permute.xlu0 %1548
      %1551 = vset.pattern.permute.xlu0 1
      %1552 = vperm.xlu0 %1551, %v1404
      %v1553 = vpop.permute.xlu0 %1552
      %1555 = vset.pattern.permute.xlu0 1
      %1556 = vperm.xlu0 %1555, %v1405
      %v1557 = vpop.permute.xlu0 %1556
      %1559 = vset.pattern.permute.xlu0 1
      %1560 = vperm.xlu0 %1559, %v1406
      %v1561 = vpop.permute.xlu0 %1560
      %1563 = vset.pattern.permute.xlu0 1
      %1564 = vperm.xlu0 %1563, %v1407
      %v1565 = vpop.permute.xlu0 %1564
      %1567 = vset.pattern.permute.xlu0 1
      %1568 = vperm.xlu0 %1567, %v1408
      %v1569 = vpop.permute.xlu0 %1568
      %1571 = vset.pattern.permute.xlu0 1
      %1572 = vperm.xlu0 %1571, %v1409
      %v1573 = vpop.permute.xlu0 %1572
      %1575 = vset.pattern.permute.xlu0 1
      %1576 = vperm.xlu0 %1575, %v1410
      %v1577 = vpop.permute.xlu0 %1576
      %v1579 = vsel %vm1539, %v1549, 0.0
      %v1580 = vsel %vm1540, %v1553, 0.0
      %v1581 = vsel %vm1541, %v1557, 0.0
      %v1582 = vsel %vm1542, %v1561, 0.0
      %v1583 = vsel %vm1543, %v1565, 0.0
      %v1584 = vsel %vm1544, %v1569, 0.0
      %v1585 = vsel %vm1545, %v1573, 0.0
      %v1586 = vsel %vm1546, %v1577, 0.0
      %v1587 = vadd.f32 %v1507, %v1579
      %v1588 = vadd.f32 %v1508, %v1580
      %v1589 = vadd.f32 %v1509, %v1581
      %v1590 = vadd.f32 %v1510, %v1582
      %v1591 = vadd.f32 %v1511, %v1583
      %v1592 = vadd.f32 %v1512, %v1584
      %v1593 = vadd.f32 %v1513, %v1585
      %v1594 = vadd.f32 %v1514, %v1586
      %1595 = vset.pattern.permute.xlu0 2
      %1596 = vperm.xlu0 %1595, %v1419
      %v1597 = vpop.permute.xlu0 %1596
      %1598 = vset.pattern.permute.xlu0 2
      %1599 = vperm.xlu0 %1598, %v1420
      %v1600 = vpop.permute.xlu0 %1599
      %1601 = vset.pattern.permute.xlu0 2
      %1602 = vperm.xlu0 %1601, %v1421
      %v1603 = vpop.permute.xlu0 %1602
      %1604 = vset.pattern.permute.xlu0 2
      %1605 = vperm.xlu0 %1604, %v1422
      %v1606 = vpop.permute.xlu0 %1605
      %1607 = vset.pattern.permute.xlu0 2
      %1608 = vperm.xlu0 %1607, %v1423
      %v1609 = vpop.permute.xlu0 %1608
      %1610 = vset.pattern.permute.xlu0 2
      %1611 = vperm.xlu0 %1610, %v1424
      %v1612 = vpop.permute.xlu0 %1611
      %1613 = vset.pattern.permute.xlu0 2
      %1614 = vperm.xlu0 %1613, %v1425
      %v1615 = vpop.permute.xlu0 %1614
      %1616 = vset.pattern.permute.xlu0 2
      %1617 = vperm.xlu0 %1616, %v1426
      %v1618 = vpop.permute.xlu0 %1617
      %vm1619 = vcmp.eq.s32.totalorder %v530, %v1597
      %vm1620 = vcmp.eq.s32.totalorder %v530, %v1600
      %vm1621 = vcmp.eq.s32.totalorder %v530, %v1603
      %vm1622 = vcmp.eq.s32.totalorder %v530, %v1606
      %vm1623 = vcmp.eq.s32.totalorder %v530, %v1609
      %vm1624 = vcmp.eq.s32.totalorder %v530, %v1612
      %vm1625 = vcmp.eq.s32.totalorder %v530, %v1615
      %vm1626 = vcmp.eq.s32.totalorder %v530, %v1618
      %1627 = vset.pattern.permute.xlu0 2
      %1628 = vperm.xlu0 %1627, %v1403
      %v1629 = vpop.permute.xlu0 %1628
      %1631 = vset.pattern.permute.xlu0 2
      %1632 = vperm.xlu0 %1631, %v1404
      %v1633 = vpop.permute.xlu0 %1632
      %1635 = vset.pattern.permute.xlu0 2
      %1636 = vperm.xlu0 %1635, %v1405
      %v1637 = vpop.permute.xlu0 %1636
      %1639 = vset.pattern.permute.xlu0 2
      %1640 = vperm.xlu0 %1639, %v1406
      %v1641 = vpop.permute.xlu0 %1640
      %1643 = vset.pattern.permute.xlu0 2
      %1644 = vperm.xlu0 %1643, %v1407
      %v1645 = vpop.permute.xlu0 %1644
      %1647 = vset.pattern.permute.xlu0 2
      %1648 = vperm.xlu0 %1647, %v1408
      %v1649 = vpop.permute.xlu0 %1648
      %1651 = vset.pattern.permute.xlu0 2
      %1652 = vperm.xlu0 %1651, %v1409
      %v1653 = vpop.permute.xlu0 %1652
      %1655 = vset.pattern.permute.xlu0 2
      %1656 = vperm.xlu0 %1655, %v1410
      %v1657 = vpop.permute.xlu0 %1656
      %v1659 = vsel %vm1619, %v1629, 0.0
      %v1660 = vsel %vm1620, %v1633, 0.0
      %v1661 = vsel %vm1621, %v1637, 0.0
      %v1662 = vsel %vm1622, %v1641, 0.0
      %v1663 = vsel %vm1623, %v1645, 0.0
      %v1664 = vsel %vm1624, %v1649, 0.0
      %v1665 = vsel %vm1625, %v1653, 0.0
      %v1666 = vsel %vm1626, %v1657, 0.0
      %v1667 = vadd.f32 %v1587, %v1659
      %v1668 = vadd.f32 %v1588, %v1660
      %v1669 = vadd.f32 %v1589, %v1661
      %v1670 = vadd.f32 %v1590, %v1662
      %v1671 = vadd.f32 %v1591, %v1663
      %v1672 = vadd.f32 %v1592, %v1664
      %v1673 = vadd.f32 %v1593, %v1665
      %v1674 = vadd.f32 %v1594, %v1666
      %1675 = vset.pattern.permute.xlu0 3
      %1676 = vperm.xlu0 %1675, %v1419
      %v1677 = vpop.permute.xlu0 %1676
      %1678 = vset.pattern.permute.xlu0 3
      %1679 = vperm.xlu0 %1678, %v1420
      %v1680 = vpop.permute.xlu0 %1679
      %1681 = vset.pattern.permute.xlu0 3
      %1682 = vperm.xlu0 %1681, %v1421
      %v1683 = vpop.permute.xlu0 %1682
      %1684 = vset.pattern.permute.xlu0 3
      %1685 = vperm.xlu0 %1684, %v1422
      %v1686 = vpop.permute.xlu0 %1685
      %1687 = vset.pattern.permute.xlu0 3
      %1688 = vperm.xlu0 %1687, %v1423
      %v1689 = vpop.permute.xlu0 %1688
      %1690 = vset.pattern.permute.xlu0 3
      %1691 = vperm.xlu0 %1690, %v1424
      %v1692 = vpop.permute.xlu0 %1691
      %1693 = vset.pattern.permute.xlu0 3
      %1694 = vperm.xlu0 %1693, %v1425
      %v1695 = vpop.permute.xlu0 %1694
      %1696 = vset.pattern.permute.xlu0 3
      %1697 = vperm.xlu0 %1696, %v1426
      %v1698 = vpop.permute.xlu0 %1697
      %vm1699 = vcmp.eq.s32.totalorder %v530, %v1677
      %vm1700 = vcmp.eq.s32.totalorder %v530, %v1680
      %vm1701 = vcmp.eq.s32.totalorder %v530, %v1683
      %vm1702 = vcmp.eq.s32.totalorder %v530, %v1686
      %vm1703 = vcmp.eq.s32.totalorder %v530, %v1689
      %vm1704 = vcmp.eq.s32.totalorder %v530, %v1692
      %vm1705 = vcmp.eq.s32.totalorder %v530, %v1695
      %vm1706 = vcmp.eq.s32.totalorder %v530, %v1698
      %1707 = vset.pattern.permute.xlu0 3
      %1708 = vperm.xlu0 %1707, %v1403
      %v1709 = vpop.permute.xlu0 %1708
      %1711 = vset.pattern.permute.xlu0 3
      %1712 = vperm.xlu0 %1711, %v1404
      %v1713 = vpop.permute.xlu0 %1712
      %1715 = vset.pattern.permute.xlu0 3
      %1716 = vperm.xlu0 %1715, %v1405
      %v1717 = vpop.permute.xlu0 %1716
      %1719 = vset.pattern.permute.xlu0 3
      %1720 = vperm.xlu0 %1719, %v1406
      %v1721 = vpop.permute.xlu0 %1720
      %1723 = vset.pattern.permute.xlu0 3
      %1724 = vperm.xlu0 %1723, %v1407
      %v1725 = vpop.permute.xlu0 %1724
      %1727 = vset.pattern.permute.xlu0 3
      %1728 = vperm.xlu0 %1727, %v1408
      %v1729 = vpop.permute.xlu0 %1728
      %1731 = vset.pattern.permute.xlu0 3
      %1732 = vperm.xlu0 %1731, %v1409
      %v1733 = vpop.permute.xlu0 %1732
      %1735 = vset.pattern.permute.xlu0 3
      %1736 = vperm.xlu0 %1735, %v1410
      %v1737 = vpop.permute.xlu0 %1736
      %v1739 = vsel %vm1699, %v1709, 0.0
      %v1740 = vsel %vm1700, %v1713, 0.0
      %v1741 = vsel %vm1701, %v1717, 0.0
      %v1742 = vsel %vm1702, %v1721, 0.0
      %v1743 = vsel %vm1703, %v1725, 0.0
      %v1744 = vsel %vm1704, %v1729, 0.0
      %v1745 = vsel %vm1705, %v1733, 0.0
      %v1746 = vsel %vm1706, %v1737, 0.0
      %v1747 = vadd.f32 %v1667, %v1739
      %v1748 = vadd.f32 %v1668, %v1740
      %v1749 = vadd.f32 %v1669, %v1741
      %v1750 = vadd.f32 %v1670, %v1742
      %v1751 = vadd.f32 %v1671, %v1743
      %v1752 = vadd.f32 %v1672, %v1744
      %v1753 = vadd.f32 %v1673, %v1745
      %v1754 = vadd.f32 %v1674, %v1746
      %v1755 = vmul.f32 %v465, %v473
      %v1756 = vmul.f32 %v466, %v474
      %v1757 = vmul.f32 %v467, %v475
      %v1758 = vmul.f32 %v468, %v476
      %v1759 = vmul.f32 %v469, %v477
      %v1760 = vmul.f32 %v470, %v478
      %v1761 = vmul.f32 %v471, %v479
      %v1762 = vmul.f32 %v472, %v480
      %vm1763 = vmand %vm979, %vm1363
      %vm1764 = vmand %vm980, %vm1364
      %vm1765 = vmand %vm981, %vm1365
      %vm1766 = vmand %vm982, %vm1366
      %vm1767 = vmand %vm983, %vm1367
      %vm1768 = vmand %vm984, %vm1368
      %vm1769 = vmand %vm985, %vm1369
      %vm1770 = vmand %vm986, %vm1370
      %vm1771 = vmand %vm1763, %vm1379
      %vm1772 = vmand %vm1764, %vm1380
      %vm1773 = vmand %vm1765, %vm1381
      %vm1774 = vmand %vm1766, %vm1382
      %vm1775 = vmand %vm1767, %vm1383
      %vm1776 = vmand %vm1768, %vm1384
      %vm1777 = vmand %vm1769, %vm1385
      %vm1778 = vmand %vm1770, %vm1386
      %v1779 = vsel %vm1771, %v1755, 0.0
      %v1780 = vsel %vm1772, %v1756, 0.0
      %v1781 = vsel %vm1773, %v1757, 0.0
      %v1782 = vsel %vm1774, %v1758, 0.0
      %v1783 = vsel %vm1775, %v1759, 0.0
      %v1784 = vsel %vm1776, %v1760, 0.0
      %v1785 = vsel %vm1777, %v1761, 0.0
      %v1786 = vsel %vm1778, %v1762, 0.0
      %v1787 = vmul.f32 %v1779, %v434
      %v1788 = vmul.f32 %v1780, %v436
      %v1789 = vmul.f32 %v1781, %v438
      %v1790 = vmul.f32 %v1782, %v440
      %v1791 = vmul.f32 %v1783, %v442
      %v1792 = vmul.f32 %v1784, %v444
      %v1793 = vmul.f32 %v1785, %v446
      %v1794 = vmul.f32 %v1786, %v448
      %v1795 = vadd.s32 %v1411, %v513
      %v1796 = vadd.s32 %v1412, %v514
      %v1797 = vadd.s32 %v1413, %v515
      %v1798 = vadd.s32 %v1414, %v516
      %v1799 = vadd.s32 %v1415, %v517
      %v1800 = vadd.s32 %v1416, %v518
      %v1801 = vadd.s32 %v1417, %v519
      %v1802 = vadd.s32 %v1418, %v520
      %1803 = vset.pattern.permute.xlu0 0
      %1804 = vperm.xlu0 %1803, %v1795
      %v1805 = vpop.permute.xlu0 %1804
      %1806 = vset.pattern.permute.xlu0 0
      %1807 = vperm.xlu0 %1806, %v1796
      %v1808 = vpop.permute.xlu0 %1807
      %1809 = vset.pattern.permute.xlu0 0
      %1810 = vperm.xlu0 %1809, %v1797
      %v1811 = vpop.permute.xlu0 %1810
      %1812 = vset.pattern.permute.xlu0 0
      %1813 = vperm.xlu0 %1812, %v1798
      %v1814 = vpop.permute.xlu0 %1813
      %1815 = vset.pattern.permute.xlu0 0
      %1816 = vperm.xlu0 %1815, %v1799
      %v1817 = vpop.permute.xlu0 %1816
      %1818 = vset.pattern.permute.xlu0 0
      %1819 = vperm.xlu0 %1818, %v1800
      %v1820 = vpop.permute.xlu0 %1819
      %1821 = vset.pattern.permute.xlu0 0
      %1822 = vperm.xlu0 %1821, %v1801
      %v1823 = vpop.permute.xlu0 %1822
      %1824 = vset.pattern.permute.xlu0 0
      %1825 = vperm.xlu0 %1824, %v1802
      %v1826 = vpop.permute.xlu0 %1825
      %vm1827 = vcmp.eq.s32.totalorder %v530, %v1805
      %vm1828 = vcmp.eq.s32.totalorder %v530, %v1808
      %vm1829 = vcmp.eq.s32.totalorder %v530, %v1811
      %vm1830 = vcmp.eq.s32.totalorder %v530, %v1814
      %vm1831 = vcmp.eq.s32.totalorder %v530, %v1817
      %vm1832 = vcmp.eq.s32.totalorder %v530, %v1820
      %vm1833 = vcmp.eq.s32.totalorder %v530, %v1823
      %vm1834 = vcmp.eq.s32.totalorder %v530, %v1826
      %1836 = vset.pattern.permute.xlu0 0
      %1837 = vperm.xlu0 %1836, %v1787
      %v1838 = vpop.permute.xlu0 %1837
      %1841 = vset.pattern.permute.xlu0 0
      %1842 = vperm.xlu0 %1841, %v1788
      %v1843 = vpop.permute.xlu0 %1842
      %1846 = vset.pattern.permute.xlu0 0
      %1847 = vperm.xlu0 %1846, %v1789
      %v1848 = vpop.permute.xlu0 %1847
      %1851 = vset.pattern.permute.xlu0 0
      %1852 = vperm.xlu0 %1851, %v1790
      %v1853 = vpop.permute.xlu0 %1852
      %1856 = vset.pattern.permute.xlu0 0
      %1857 = vperm.xlu0 %1856, %v1791
      %v1858 = vpop.permute.xlu0 %1857
      %1861 = vset.pattern.permute.xlu0 0
      %1862 = vperm.xlu0 %1861, %v1792
      %v1863 = vpop.permute.xlu0 %1862
      %1866 = vset.pattern.permute.xlu0 0
      %1867 = vperm.xlu0 %1866, %v1793
      %v1868 = vpop.permute.xlu0 %1867
      %1871 = vset.pattern.permute.xlu0 0
      %1872 = vperm.xlu0 %1871, %v1794
      %v1873 = vpop.permute.xlu0 %1872
      %v1875 = vsel %vm1827, %v1838, 0.0
      %v1876 = vsel %vm1828, %v1843, 0.0
      %v1877 = vsel %vm1829, %v1848, 0.0
      %v1878 = vsel %vm1830, %v1853, 0.0
      %v1879 = vsel %vm1831, %v1858, 0.0
      %v1880 = vsel %vm1832, %v1863, 0.0
      %v1881 = vsel %vm1833, %v1868, 0.0
      %v1882 = vsel %vm1834, %v1873, 0.0
      %v1883 = vadd.f32 %v1747, %v1875
      %v1884 = vadd.f32 %v1748, %v1876
      %v1885 = vadd.f32 %v1749, %v1877
      %v1886 = vadd.f32 %v1750, %v1878
      %v1887 = vadd.f32 %v1751, %v1879
      %v1888 = vadd.f32 %v1752, %v1880
      %v1889 = vadd.f32 %v1753, %v1881
      %v1890 = vadd.f32 %v1754, %v1882
      %1891 = vset.pattern.permute.xlu0 1
      %1892 = vperm.xlu0 %1891, %v1795
      %v1893 = vpop.permute.xlu0 %1892
      %1894 = vset.pattern.permute.xlu0 1
      %1895 = vperm.xlu0 %1894, %v1796
      %v1896 = vpop.permute.xlu0 %1895
      %1897 = vset.pattern.permute.xlu0 1
      %1898 = vperm.xlu0 %1897, %v1797
      %v1899 = vpop.permute.xlu0 %1898
      %1900 = vset.pattern.permute.xlu0 1
      %1901 = vperm.xlu0 %1900, %v1798
      %v1902 = vpop.permute.xlu0 %1901
      %1903 = vset.pattern.permute.xlu0 1
      %1904 = vperm.xlu0 %1903, %v1799
      %v1905 = vpop.permute.xlu0 %1904
      %1906 = vset.pattern.permute.xlu0 1
      %1907 = vperm.xlu0 %1906, %v1800
      %v1908 = vpop.permute.xlu0 %1907
      %1909 = vset.pattern.permute.xlu0 1
      %1910 = vperm.xlu0 %1909, %v1801
      %v1911 = vpop.permute.xlu0 %1910
      %1912 = vset.pattern.permute.xlu0 1
      %1913 = vperm.xlu0 %1912, %v1802
      %v1914 = vpop.permute.xlu0 %1913
      %vm1915 = vcmp.eq.s32.totalorder %v530, %v1893
      %vm1916 = vcmp.eq.s32.totalorder %v530, %v1896
      %vm1917 = vcmp.eq.s32.totalorder %v530, %v1899
      %vm1918 = vcmp.eq.s32.totalorder %v530, %v1902
      %vm1919 = vcmp.eq.s32.totalorder %v530, %v1905
      %vm1920 = vcmp.eq.s32.totalorder %v530, %v1908
      %vm1921 = vcmp.eq.s32.totalorder %v530, %v1911
      %vm1922 = vcmp.eq.s32.totalorder %v530, %v1914
      %1923 = vset.pattern.permute.xlu0 1
      %1924 = vperm.xlu0 %1923, %v1787
      %v1925 = vpop.permute.xlu0 %1924
      %1927 = vset.pattern.permute.xlu0 1
      %1928 = vperm.xlu0 %1927, %v1788
      %v1929 = vpop.permute.xlu0 %1928
      %1931 = vset.pattern.permute.xlu0 1
      %1932 = vperm.xlu0 %1931, %v1789
      %v1933 = vpop.permute.xlu0 %1932
      %1935 = vset.pattern.permute.xlu0 1
      %1936 = vperm.xlu0 %1935, %v1790
      %v1937 = vpop.permute.xlu0 %1936
      %1939 = vset.pattern.permute.xlu0 1
      %1940 = vperm.xlu0 %1939, %v1791
      %v1941 = vpop.permute.xlu0 %1940
      %1943 = vset.pattern.permute.xlu0 1
      %1944 = vperm.xlu0 %1943, %v1792
      %v1945 = vpop.permute.xlu0 %1944
      %1947 = vset.pattern.permute.xlu0 1
      %1948 = vperm.xlu0 %1947, %v1793
      %v1949 = vpop.permute.xlu0 %1948
      %1951 = vset.pattern.permute.xlu0 1
      %1952 = vperm.xlu0 %1951, %v1794
      %v1953 = vpop.permute.xlu0 %1952
      %v1955 = vsel %vm1915, %v1925, 0.0
      %v1956 = vsel %vm1916, %v1929, 0.0
      %v1957 = vsel %vm1917, %v1933, 0.0
      %v1958 = vsel %vm1918, %v1937, 0.0
      %v1959 = vsel %vm1919, %v1941, 0.0
      %v1960 = vsel %vm1920, %v1945, 0.0
      %v1961 = vsel %vm1921, %v1949, 0.0
      %v1962 = vsel %vm1922, %v1953, 0.0
      %v1963 = vadd.f32 %v1883, %v1955
      %v1964 = vadd.f32 %v1884, %v1956
      %v1965 = vadd.f32 %v1885, %v1957
      %v1966 = vadd.f32 %v1886, %v1958
      %v1967 = vadd.f32 %v1887, %v1959
      %v1968 = vadd.f32 %v1888, %v1960
      %v1969 = vadd.f32 %v1889, %v1961
      %v1970 = vadd.f32 %v1890, %v1962
      %1971 = vset.pattern.permute.xlu0 2
      %1972 = vperm.xlu0 %1971, %v1795
      %v1973 = vpop.permute.xlu0 %1972
      %1974 = vset.pattern.permute.xlu0 2
      %1975 = vperm.xlu0 %1974, %v1796
      %v1976 = vpop.permute.xlu0 %1975
      %1977 = vset.pattern.permute.xlu0 2
      %1978 = vperm.xlu0 %1977, %v1797
      %v1979 = vpop.permute.xlu0 %1978
      %1980 = vset.pattern.permute.xlu0 2
      %1981 = vperm.xlu0 %1980, %v1798
      %v1982 = vpop.permute.xlu0 %1981
      %1983 = vset.pattern.permute.xlu0 2
      %1984 = vperm.xlu0 %1983, %v1799
      %v1985 = vpop.permute.xlu0 %1984
      %1986 = vset.pattern.permute.xlu0 2
      %1987 = vperm.xlu0 %1986, %v1800
      %v1988 = vpop.permute.xlu0 %1987
      %1989 = vset.pattern.permute.xlu0 2
      %1990 = vperm.xlu0 %1989, %v1801
      %v1991 = vpop.permute.xlu0 %1990
      %1992 = vset.pattern.permute.xlu0 2
      %1993 = vperm.xlu0 %1992, %v1802
      %v1994 = vpop.permute.xlu0 %1993
      %vm1995 = vcmp.eq.s32.totalorder %v530, %v1973
      %vm1996 = vcmp.eq.s32.totalorder %v530, %v1976
      %vm1997 = vcmp.eq.s32.totalorder %v530, %v1979
      %vm1998 = vcmp.eq.s32.totalorder %v530, %v1982
      %vm1999 = vcmp.eq.s32.totalorder %v530, %v1985
      %vm2000 = vcmp.eq.s32.totalorder %v530, %v1988
      %vm2001 = vcmp.eq.s32.totalorder %v530, %v1991
      %vm2002 = vcmp.eq.s32.totalorder %v530, %v1994
      %2003 = vset.pattern.permute.xlu0 2
      %2004 = vperm.xlu0 %2003, %v1787
      %v2005 = vpop.permute.xlu0 %2004
      %2007 = vset.pattern.permute.xlu0 2
      %2008 = vperm.xlu0 %2007, %v1788
      %v2009 = vpop.permute.xlu0 %2008
      %2011 = vset.pattern.permute.xlu0 2
      %2012 = vperm.xlu0 %2011, %v1789
      %v2013 = vpop.permute.xlu0 %2012
      %2015 = vset.pattern.permute.xlu0 2
      %2016 = vperm.xlu0 %2015, %v1790
      %v2017 = vpop.permute.xlu0 %2016
      %2019 = vset.pattern.permute.xlu0 2
      %2020 = vperm.xlu0 %2019, %v1791
      %v2021 = vpop.permute.xlu0 %2020
      %2023 = vset.pattern.permute.xlu0 2
      %2024 = vperm.xlu0 %2023, %v1792
      %v2025 = vpop.permute.xlu0 %2024
      %2027 = vset.pattern.permute.xlu0 2
      %2028 = vperm.xlu0 %2027, %v1793
      %v2029 = vpop.permute.xlu0 %2028
      %2031 = vset.pattern.permute.xlu0 2
      %2032 = vperm.xlu0 %2031, %v1794
      %v2033 = vpop.permute.xlu0 %2032
      %v2035 = vsel %vm1995, %v2005, 0.0
      %v2036 = vsel %vm1996, %v2009, 0.0
      %v2037 = vsel %vm1997, %v2013, 0.0
      %v2038 = vsel %vm1998, %v2017, 0.0
      %v2039 = vsel %vm1999, %v2021, 0.0
      %v2040 = vsel %vm2000, %v2025, 0.0
      %v2041 = vsel %vm2001, %v2029, 0.0
      %v2042 = vsel %vm2002, %v2033, 0.0
      %v2043 = vadd.f32 %v1963, %v2035
      %v2044 = vadd.f32 %v1964, %v2036
      %v2045 = vadd.f32 %v1965, %v2037
      %v2046 = vadd.f32 %v1966, %v2038
      %v2047 = vadd.f32 %v1967, %v2039
      %v2048 = vadd.f32 %v1968, %v2040
      %v2049 = vadd.f32 %v1969, %v2041
      %v2050 = vadd.f32 %v1970, %v2042
      %2051 = vset.pattern.permute.xlu0 3
      %2052 = vperm.xlu0 %2051, %v1795
      %v2053 = vpop.permute.xlu0 %2052
      %2054 = vset.pattern.permute.xlu0 3
      %2055 = vperm.xlu0 %2054, %v1796
      %v2056 = vpop.permute.xlu0 %2055
      %2057 = vset.pattern.permute.xlu0 3
      %2058 = vperm.xlu0 %2057, %v1797
      %v2059 = vpop.permute.xlu0 %2058
      %2060 = vset.pattern.permute.xlu0 3
      %2061 = vperm.xlu0 %2060, %v1798
      %v2062 = vpop.permute.xlu0 %2061
      %2063 = vset.pattern.permute.xlu0 3
      %2064 = vperm.xlu0 %2063, %v1799
      %v2065 = vpop.permute.xlu0 %2064
      %2066 = vset.pattern.permute.xlu0 3
      %2067 = vperm.xlu0 %2066, %v1800
      %v2068 = vpop.permute.xlu0 %2067
      %2069 = vset.pattern.permute.xlu0 3
      %2070 = vperm.xlu0 %2069, %v1801
      %v2071 = vpop.permute.xlu0 %2070
      %2072 = vset.pattern.permute.xlu0 3
      %2073 = vperm.xlu0 %2072, %v1802
      %v2074 = vpop.permute.xlu0 %2073
      %vm2075 = vcmp.eq.s32.totalorder %v530, %v2053
      %vm2076 = vcmp.eq.s32.totalorder %v530, %v2056
      %vm2077 = vcmp.eq.s32.totalorder %v530, %v2059
      %vm2078 = vcmp.eq.s32.totalorder %v530, %v2062
      %vm2079 = vcmp.eq.s32.totalorder %v530, %v2065
      %vm2080 = vcmp.eq.s32.totalorder %v530, %v2068
      %vm2081 = vcmp.eq.s32.totalorder %v530, %v2071
      %vm2082 = vcmp.eq.s32.totalorder %v530, %v2074
      %2083 = vset.pattern.permute.xlu0 3
      %2084 = vperm.xlu0 %2083, %v1787
      %v2085 = vpop.permute.xlu0 %2084
      %2087 = vset.pattern.permute.xlu0 3
      %2088 = vperm.xlu0 %2087, %v1788
      %v2089 = vpop.permute.xlu0 %2088
      %2091 = vset.pattern.permute.xlu0 3
      %2092 = vperm.xlu0 %2091, %v1789
      %v2093 = vpop.permute.xlu0 %2092
      %2095 = vset.pattern.permute.xlu0 3
      %2096 = vperm.xlu0 %2095, %v1790
      %v2097 = vpop.permute.xlu0 %2096
      %2099 = vset.pattern.permute.xlu0 3
      %2100 = vperm.xlu0 %2099, %v1791
      %v2101 = vpop.permute.xlu0 %2100
      %2103 = vset.pattern.permute.xlu0 3
      %2104 = vperm.xlu0 %2103, %v1792
      %v2105 = vpop.permute.xlu0 %2104
      %2107 = vset.pattern.permute.xlu0 3
      %2108 = vperm.xlu0 %2107, %v1793
      %v2109 = vpop.permute.xlu0 %2108
      %2111 = vset.pattern.permute.xlu0 3
      %2112 = vperm.xlu0 %2111, %v1794
      %v2113 = vpop.permute.xlu0 %2112
      %v2115 = vsel %vm2075, %v2085, 0.0
      %v2116 = vsel %vm2076, %v2089, 0.0
      %v2117 = vsel %vm2077, %v2093, 0.0
      %v2118 = vsel %vm2078, %v2097, 0.0
      %v2119 = vsel %vm2079, %v2101, 0.0
      %v2120 = vsel %vm2080, %v2105, 0.0
      %v2121 = vsel %vm2081, %v2109, 0.0
      %v2122 = vsel %vm2082, %v2113, 0.0
      %v2123 = vadd.f32 %v2043, %v2115
      %v2124 = vadd.f32 %v2044, %v2116
      %v2125 = vadd.f32 %v2045, %v2117
      %v2126 = vadd.f32 %v2046, %v2118
      %v2127 = vadd.f32 %v2047, %v2119
      %v2128 = vadd.f32 %v2048, %v2120
      %v2129 = vadd.f32 %v2049, %v2121
      %v2130 = vadd.f32 %v2050, %v2122
      %v2131 = vld [vmem:[%s299] sm:$0xff]
      %v2132 = vld [vmem:[%s299 + $0x8] sm:$0xff]
      %v2133 = vld [vmem:[%s299 + $0x10] sm:$0xff]
      %v2134 = vld [vmem:[%s299 + $0x18] sm:$0xff]
      %v2135 = vld [vmem:[%s299 + $0x20] sm:$0xff]
      %v2136 = vld [vmem:[%s299 + $0x28] sm:$0xff]
      %v2137 = vld [vmem:[%s299 + $0x30] sm:$0xff]
      %v2138 = vld [vmem:[%s299 + $0x38] sm:$0xff]
      %v2139 = vld [vmem:[%s299 + $0x40] sm:$0xff]
      %v2140 = vld [vmem:[%s299 + $0x48] sm:$0xff]
      %v2141 = vld [vmem:[%s299 + $0x50] sm:$0xff]
      %v2142 = vld [vmem:[%s299 + $0x58] sm:$0xff]
      %v2143 = vld [vmem:[%s299 + $0x60] sm:$0xff]
      %v2144 = vld [vmem:[%s299 + $0x68] sm:$0xff]
      %v2145 = vld [vmem:[%s299 + $0x70] sm:$0xff]
      %v2146 = vld [vmem:[%s299 + $0x78] sm:$0xff]
      %2147 = vmatprep.subr.mxu0 0.0
      %v2148 = vand.u32 %v2146, 4294901760
      %2149 = vmatpush1.msra.mxu0 %v2148
      %2150 = vmatprep.subr.mxu0 0.0
      %v2151 = vand.u32 %v2145, 4294901760
      %2152 = vmatpush1.msra.mxu0 %v2151
      %2153 = vmatprep.subr.mxu0 0.0
      %v2154 = vand.u32 %v2144, 4294901760
      %2155 = vmatpush1.msra.mxu0 %v2154
      %2156 = vmatprep.subr.mxu0 0.0
      %v2157 = vand.u32 %v2143, 4294901760
      %2158 = vmatpush1.msra.mxu0 %v2157
      %2159 = vmatprep.subr.mxu0 0.0
      %v2160 = vand.u32 %v2142, 4294901760
      %2161 = vmatpush1.msra.mxu0 %v2160
      %2162 = vmatprep.subr.mxu0 0.0
      %v2163 = vand.u32 %v2141, 4294901760
      %2164 = vmatpush1.msra.mxu0 %v2163
      %2165 = vmatprep.subr.mxu0 0.0
      %v2166 = vand.u32 %v2140, 4294901760
      %2167 = vmatpush1.msra.mxu0 %v2166
      %2168 = vmatprep.subr.mxu0 0.0
      %v2169 = vand.u32 %v2139, 4294901760
      %2170 = vmatpush1.msra.mxu0 %v2169
      %2171 = vmatprep.subr.mxu0 0.0
      %v2172 = vand.u32 %v2138, 4294901760
      %2173 = vmatpush1.msra.mxu0 %v2172
      %2174 = vmatprep.subr.mxu0 0.0
      %v2175 = vand.u32 %v2137, 4294901760
      %2176 = vmatpush1.msra.mxu0 %v2175
      %2177 = vmatprep.subr.mxu0 0.0
      %v2178 = vand.u32 %v2136, 4294901760
      %2179 = vmatpush1.msra.mxu0 %v2178
      %2180 = vmatprep.subr.mxu0 0.0
      %v2181 = vand.u32 %v2135, 4294901760
      %2182 = vmatpush1.msra.mxu0 %v2181
      %2183 = vmatprep.subr.mxu0 0.0
      %v2184 = vand.u32 %v2134, 4294901760
      %2185 = vmatpush1.msra.mxu0 %v2184
      %2186 = vmatprep.subr.mxu0 0.0
      %v2187 = vand.u32 %v2133, 4294901760
      %2188 = vmatpush1.msra.mxu0 %v2187
      %2189 = vmatprep.subr.mxu0 0.0
      %v2190 = vand.u32 %v2132, 4294901760
      %2191 = vmatpush1.msra.mxu0 %v2190
      %2192 = vmatprep.subr.mxu0 0.0
      %v2193 = vand.u32 %v2131, 4294901760
      %2194 = vmatpush1.msra.mxu0 %v2193
      %2195 = vmatprep.subr.mxu0 0.0
      %2196 = vmatpush2.msra.mxu0 0.0
      %2197 = vmatprep.subr.mxu0 0.0
      %2198 = vmatpush2.msra.mxu0 0.0
      %2199 = vmatprep.subr.mxu0 0.0
      %2200 = vmatpush2.msra.mxu0 0.0
      %2201 = vmatprep.subr.mxu0 0.0
      %2202 = vmatpush2.msra.mxu0 0.0
      %2203 = vmatprep.subr.mxu0 0.0
      %2204 = vmatpush2.msra.mxu0 0.0
      %2205 = vmatprep.subr.mxu0 0.0
      %2206 = vmatpush2.msra.mxu0 0.0
      %2207 = vmatprep.subr.mxu0 0.0
      %2208 = vmatpush2.msra.mxu0 0.0
      %2209 = vmatprep.subr.mxu0 0.0
      %2210 = vmatpush2.msra.mxu0 0.0
      %2211 = vmatprep.subr.mxu0 0.0
      %2212 = vmatpush2.msra.mxu0 0.0
      %2213 = vmatprep.subr.mxu0 0.0
      %2214 = vmatpush2.msra.mxu0 0.0
      %2215 = vmatprep.subr.mxu0 0.0
      %2216 = vmatpush2.msra.mxu0 0.0
      %2217 = vmatprep.subr.mxu0 0.0
      %2218 = vmatpush2.msra.mxu0 0.0
      %2219 = vmatprep.subr.mxu0 0.0
      %2220 = vmatpush2.msra.mxu0 0.0
      %2221 = vmatprep.subr.mxu0 0.0
      %2222 = vmatpush2.msra.mxu0 0.0
      %2223 = vmatprep.subr.mxu0 0.0
      %2224 = vmatpush2.msra.mxu0 0.0
      %2225 = vmatprep.subr.mxu0 0.0
      %2226 = vmatpush2.msra.mxu0 0.0
      %2227 = vmatprep.mubr.f32.mxu0 0.0
      %v2228 = vand.u32 %v2123, 4294901760
      %v2229 = vsub.f32 %v2123, %v2228
      %v2230 = vand.u32 %v2229, 4294901760
      %v2231 = vsub.f32 %v2229, %v2230
      %v2232 = vand.u32 %v2231, 4294901760
      %2233 = vmatmul.mubr.f32.gmra.mxu0 %v2232
      %v2234 = vpop.f32.mrf.mxu0
      %v2235 = vadd.f32 0.0, %v2234
      %v2236 = vpop.f32.mrf.mxu0
      %2237 = vmatprep.mubr.f32.mxu0 0.0
      %v2238 = vand.u32 %v2124, 4294901760
      %v2239 = vsub.f32 %v2124, %v2238
      %v2240 = vand.u32 %v2239, 4294901760
      %v2241 = vsub.f32 %v2239, %v2240
      %v2242 = vand.u32 %v2241, 4294901760
      %2243 = vmatmul.mubr.f32.gmra.mxu0 %v2242
      %v2244 = vpop.f32.mrf.mxu0
      %v2245 = vadd.f32 0.0, %v2244
      %v2246 = vpop.f32.mrf.mxu0
      %2247 = vmatprep.mubr.f32.mxu0 0.0
      %v2248 = vand.u32 %v2125, 4294901760
      %v2249 = vsub.f32 %v2125, %v2248
      %v2250 = vand.u32 %v2249, 4294901760
      %v2251 = vsub.f32 %v2249, %v2250
      %v2252 = vand.u32 %v2251, 4294901760
      %2253 = vmatmul.mubr.f32.gmra.mxu0 %v2252
      %v2254 = vpop.f32.mrf.mxu0
      %v2255 = vadd.f32 0.0, %v2254
      %v2256 = vpop.f32.mrf.mxu0
      %2257 = vmatprep.mubr.f32.mxu0 0.0
      %v2258 = vand.u32 %v2126, 4294901760
      %v2259 = vsub.f32 %v2126, %v2258
      %v2260 = vand.u32 %v2259, 4294901760
      %v2261 = vsub.f32 %v2259, %v2260
      %v2262 = vand.u32 %v2261, 4294901760
      %2263 = vmatmul.mubr.f32.gmra.mxu0 %v2262
      %v2264 = vpop.f32.mrf.mxu0
      %v2265 = vadd.f32 0.0, %v2264
      %v2266 = vpop.f32.mrf.mxu0
      %2267 = vmatprep.mubr.f32.mxu0 0.0
      %v2268 = vand.u32 %v2127, 4294901760
      %v2269 = vsub.f32 %v2127, %v2268
      %v2270 = vand.u32 %v2269, 4294901760
      %v2271 = vsub.f32 %v2269, %v2270
      %v2272 = vand.u32 %v2271, 4294901760
      %2273 = vmatmul.mubr.f32.gmra.mxu0 %v2272
      %v2274 = vpop.f32.mrf.mxu0
      %v2275 = vadd.f32 0.0, %v2274
      %v2276 = vpop.f32.mrf.mxu0
      %2277 = vmatprep.mubr.f32.mxu0 0.0
      %v2278 = vand.u32 %v2128, 4294901760
      %v2279 = vsub.f32 %v2128, %v2278
      %v2280 = vand.u32 %v2279, 4294901760
      %v2281 = vsub.f32 %v2279, %v2280
      %v2282 = vand.u32 %v2281, 4294901760
      %2283 = vmatmul.mubr.f32.gmra.mxu0 %v2282
      %v2284 = vpop.f32.mrf.mxu0
      %v2285 = vadd.f32 0.0, %v2284
      %v2286 = vpop.f32.mrf.mxu0
      %2287 = vmatprep.mubr.f32.mxu0 0.0
      %v2288 = vand.u32 %v2129, 4294901760
      %v2289 = vsub.f32 %v2129, %v2288
      %v2290 = vand.u32 %v2289, 4294901760
      %v2291 = vsub.f32 %v2289, %v2290
      %v2292 = vand.u32 %v2291, 4294901760
      %2293 = vmatmul.mubr.f32.gmra.mxu0 %v2292
      %v2294 = vpop.f32.mrf.mxu0
      %v2295 = vadd.f32 0.0, %v2294
      %v2296 = vpop.f32.mrf.mxu0
      %2297 = vmatprep.mubr.f32.mxu0 0.0
      %v2298 = vand.u32 %v2130, 4294901760
      %v2299 = vsub.f32 %v2130, %v2298
      %v2300 = vand.u32 %v2299, 4294901760
      %v2301 = vsub.f32 %v2299, %v2300
      %v2302 = vand.u32 %v2301, 4294901760
      %2303 = vmatmul.mubr.f32.gmra.mxu0 %v2302
      %v2304 = vpop.f32.mrf.mxu0
      %v2305 = vadd.f32 0.0, %v2304
      %v2306 = vpop.f32.mrf.mxu0
      %2307 = vdwg.mxu0
      %2308 = vmatprep.subr.mxu0 0.0
      %v2309 = vand.u32 %v2146, 4294901760
      %v2310 = vsub.f32 %v2146, %v2309
      %v2311 = vand.u32 %v2310, 4294901760
      %v2312 = vsub.f32 %v2310, %v2311
      %v2313 = vand.u32 %v2312, 4294901760
      %2314 = vmatpush1.msra.mxu0 %v2313
      %2315 = vmatprep.subr.mxu0 0.0
      %v2316 = vand.u32 %v2145, 4294901760
      %v2317 = vsub.f32 %v2145, %v2316
      %v2318 = vand.u32 %v2317, 4294901760
      %v2319 = vsub.f32 %v2317, %v2318
      %v2320 = vand.u32 %v2319, 4294901760
      %2321 = vmatpush1.msra.mxu0 %v2320
      %2322 = vmatprep.subr.mxu0 0.0
      %v2323 = vand.u32 %v2144, 4294901760
      %v2324 = vsub.f32 %v2144, %v2323
      %v2325 = vand.u32 %v2324, 4294901760
      %v2326 = vsub.f32 %v2324, %v2325
      %v2327 = vand.u32 %v2326, 4294901760
      %2328 = vmatpush1.msra.mxu0 %v2327
      %2329 = vmatprep.subr.mxu0 0.0
      %v2330 = vand.u32 %v2143, 4294901760
      %v2331 = vsub.f32 %v2143, %v2330
      %v2332 = vand.u32 %v2331, 4294901760
      %v2333 = vsub.f32 %v2331, %v2332
      %v2334 = vand.u32 %v2333, 4294901760
      %2335 = vmatpush1.msra.mxu0 %v2334
      %2336 = vmatprep.subr.mxu0 0.0
      %v2337 = vand.u32 %v2142, 4294901760
      %v2338 = vsub.f32 %v2142, %v2337
      %v2339 = vand.u32 %v2338, 4294901760
      %v2340 = vsub.f32 %v2338, %v2339
      %v2341 = vand.u32 %v2340, 4294901760
      %2342 = vmatpush1.msra.mxu0 %v2341
      %2343 = vmatprep.subr.mxu0 0.0
      %v2344 = vand.u32 %v2141, 4294901760
      %v2345 = vsub.f32 %v2141, %v2344
      %v2346 = vand.u32 %v2345, 4294901760
      %v2347 = vsub.f32 %v2345, %v2346
      %v2348 = vand.u32 %v2347, 4294901760
      %2349 = vmatpush1.msra.mxu0 %v2348
      %2350 = vmatprep.subr.mxu0 0.0
      %v2351 = vand.u32 %v2140, 4294901760
      %v2352 = vsub.f32 %v2140, %v2351
      %v2353 = vand.u32 %v2352, 4294901760
      %v2354 = vsub.f32 %v2352, %v2353
      %v2355 = vand.u32 %v2354, 4294901760
      %2356 = vmatpush1.msra.mxu0 %v2355
      %2357 = vmatprep.subr.mxu0 0.0
      %v2358 = vand.u32 %v2139, 4294901760
      %v2359 = vsub.f32 %v2139, %v2358
      %v2360 = vand.u32 %v2359, 4294901760
      %v2361 = vsub.f32 %v2359, %v2360
      %v2362 = vand.u32 %v2361, 4294901760
      %2363 = vmatpush1.msra.mxu0 %v2362
      %2364 = vmatprep.subr.mxu0 0.0
      %v2365 = vand.u32 %v2138, 4294901760
      %v2366 = vsub.f32 %v2138, %v2365
      %v2367 = vand.u32 %v2366, 4294901760
      %v2368 = vsub.f32 %v2366, %v2367
      %v2369 = vand.u32 %v2368, 4294901760
      %2370 = vmatpush1.msra.mxu0 %v2369
      %2371 = vmatprep.subr.mxu0 0.0
      %v2372 = vand.u32 %v2137, 4294901760
      %v2373 = vsub.f32 %v2137, %v2372
      %v2374 = vand.u32 %v2373, 4294901760
      %v2375 = vsub.f32 %v2373, %v2374
      %v2376 = vand.u32 %v2375, 4294901760
      %2377 = vmatpush1.msra.mxu0 %v2376
      %2378 = vmatprep.subr.mxu0 0.0
      %v2379 = vand.u32 %v2136, 4294901760
      %v2380 = vsub.f32 %v2136, %v2379
      %v2381 = vand.u32 %v2380, 4294901760
      %v2382 = vsub.f32 %v2380, %v2381
      %v2383 = vand.u32 %v2382, 4294901760
      %2384 = vmatpush1.msra.mxu0 %v2383
      %2385 = vmatprep.subr.mxu0 0.0
      %v2386 = vand.u32 %v2135, 4294901760
      %v2387 = vsub.f32 %v2135, %v2386
      %v2388 = vand.u32 %v2387, 4294901760
      %v2389 = vsub.f32 %v2387, %v2388
      %v2390 = vand.u32 %v2389, 4294901760
      %2391 = vmatpush1.msra.mxu0 %v2390
      %2392 = vmatprep.subr.mxu0 0.0
      %v2393 = vand.u32 %v2134, 4294901760
      %v2394 = vsub.f32 %v2134, %v2393
      %v2395 = vand.u32 %v2394, 4294901760
      %v2396 = vsub.f32 %v2394, %v2395
      %v2397 = vand.u32 %v2396, 4294901760
      %2398 = vmatpush1.msra.mxu0 %v2397
      %2399 = vmatprep.subr.mxu0 0.0
      %v2400 = vand.u32 %v2133, 4294901760
      %v2401 = vsub.f32 %v2133, %v2400
      %v2402 = vand.u32 %v2401, 4294901760
      %v2403 = vsub.f32 %v2401, %v2402
      %v2404 = vand.u32 %v2403, 4294901760
      %2405 = vmatpush1.msra.mxu0 %v2404
      %2406 = vmatprep.subr.mxu0 0.0
      %v2407 = vand.u32 %v2132, 4294901760
      %v2408 = vsub.f32 %v2132, %v2407
      %v2409 = vand.u32 %v2408, 4294901760
      %v2410 = vsub.f32 %v2408, %v2409
      %v2411 = vand.u32 %v2410, 4294901760
      %2412 = vmatpush1.msra.mxu0 %v2411
      %2413 = vmatprep.subr.mxu0 0.0
      %v2414 = vand.u32 %v2131, 4294901760
      %v2415 = vsub.f32 %v2131, %v2414
      %v2416 = vand.u32 %v2415, 4294901760
      %v2417 = vsub.f32 %v2415, %v2416
      %v2418 = vand.u32 %v2417, 4294901760
      %2419 = vmatpush1.msra.mxu0 %v2418
      %2420 = vmatprep.subr.mxu0 0.0
      %2421 = vmatpush2.msra.mxu0 0.0
      %2422 = vmatprep.subr.mxu0 0.0
      %2423 = vmatpush2.msra.mxu0 0.0
      %2424 = vmatprep.subr.mxu0 0.0
      %2425 = vmatpush2.msra.mxu0 0.0
      %2426 = vmatprep.subr.mxu0 0.0
      %2427 = vmatpush2.msra.mxu0 0.0
      %2428 = vmatprep.subr.mxu0 0.0
      %2429 = vmatpush2.msra.mxu0 0.0
      %2430 = vmatprep.subr.mxu0 0.0
      %2431 = vmatpush2.msra.mxu0 0.0
      %2432 = vmatprep.subr.mxu0 0.0
      %2433 = vmatpush2.msra.mxu0 0.0
      %2434 = vmatprep.subr.mxu0 0.0
      %2435 = vmatpush2.msra.mxu0 0.0
      %2436 = vmatprep.subr.mxu0 0.0
      %2437 = vmatpush2.msra.mxu0 0.0
      %2438 = vmatprep.subr.mxu0 0.0
      %2439 = vmatpush2.msra.mxu0 0.0
      %2440 = vmatprep.subr.mxu0 0.0
      %2441 = vmatpush2.msra.mxu0 0.0
      %2442 = vmatprep.subr.mxu0 0.0
      %2443 = vmatpush2.msra.mxu0 0.0
      %2444 = vmatprep.subr.mxu0 0.0
      %2445 = vmatpush2.msra.mxu0 0.0
      %2446 = vmatprep.subr.mxu0 0.0
      %2447 = vmatpush2.msra.mxu0 0.0
      %2448 = vmatprep.subr.mxu0 0.0
      %2449 = vmatpush2.msra.mxu0 0.0
      %2450 = vmatprep.subr.mxu0 0.0
      %2451 = vmatpush2.msra.mxu0 0.0
      %2452 = vmatprep.mubr.f32.mxu0 0.0
      %v2453 = vand.u32 %v2123, 4294901760
      %2454 = vmatmul.mubr.f32.gmra.mxu0 %v2453
      %v2455 = vpop.f32.mrf.mxu0
      %v2456 = vadd.f32 %v2235, %v2455
      %v2457 = vpop.f32.mrf.mxu0
      %2458 = vmatprep.mubr.f32.mxu0 0.0
      %v2459 = vand.u32 %v2124, 4294901760
      %2460 = vmatmul.mubr.f32.gmra.mxu0 %v2459
      %v2461 = vpop.f32.mrf.mxu0
      %v2462 = vadd.f32 %v2245, %v2461
      %v2463 = vpop.f32.mrf.mxu0
      %2464 = vmatprep.mubr.f32.mxu0 0.0
      %v2465 = vand.u32 %v2125, 4294901760
      %2466 = vmatmul.mubr.f32.gmra.mxu0 %v2465
      %v2467 = vpop.f32.mrf.mxu0
      %v2468 = vadd.f32 %v2255, %v2467
      %v2469 = vpop.f32.mrf.mxu0
      %2470 = vmatprep.mubr.f32.mxu0 0.0
      %v2471 = vand.u32 %v2126, 4294901760
      %2472 = vmatmul.mubr.f32.gmra.mxu0 %v2471
      %v2473 = vpop.f32.mrf.mxu0
      %v2474 = vadd.f32 %v2265, %v2473
      %v2475 = vpop.f32.mrf.mxu0
      %2476 = vmatprep.mubr.f32.mxu0 0.0
      %v2477 = vand.u32 %v2127, 4294901760
      %2478 = vmatmul.mubr.f32.gmra.mxu0 %v2477
      %v2479 = vpop.f32.mrf.mxu0
      %v2480 = vadd.f32 %v2275, %v2479
      %v2481 = vpop.f32.mrf.mxu0
      %2482 = vmatprep.mubr.f32.mxu0 0.0
      %v2483 = vand.u32 %v2128, 4294901760
      %2484 = vmatmul.mubr.f32.gmra.mxu0 %v2483
      %v2485 = vpop.f32.mrf.mxu0
      %v2486 = vadd.f32 %v2285, %v2485
      %v2487 = vpop.f32.mrf.mxu0
      %2488 = vmatprep.mubr.f32.mxu0 0.0
      %v2489 = vand.u32 %v2129, 4294901760
      %2490 = vmatmul.mubr.f32.gmra.mxu0 %v2489
      %v2491 = vpop.f32.mrf.mxu0
      %v2492 = vadd.f32 %v2295, %v2491
      %v2493 = vpop.f32.mrf.mxu0
      %2494 = vmatprep.mubr.f32.mxu0 0.0
      %v2495 = vand.u32 %v2130, 4294901760
      %2496 = vmatmul.mubr.f32.gmra.mxu0 %v2495
      %v2497 = vpop.f32.mrf.mxu0
      %v2498 = vadd.f32 %v2305, %v2497
      %v2499 = vpop.f32.mrf.mxu0
      %2500 = vdwg.mxu0
      %2501 = vmatprep.subr.mxu0 0.0
      %v2502 = vand.u32 %v2146, 4294901760
      %v2503 = vsub.f32 %v2146, %v2502
      %2504 = vmatpush1.msra.mxu0 %v2503
      %2505 = vmatprep.subr.mxu0 0.0
      %v2506 = vand.u32 %v2145, 4294901760
      %v2507 = vsub.f32 %v2145, %v2506
      %2508 = vmatpush1.msra.mxu0 %v2507
      %2509 = vmatprep.subr.mxu0 0.0
      %v2510 = vand.u32 %v2144, 4294901760
      %v2511 = vsub.f32 %v2144, %v2510
      %2512 = vmatpush1.msra.mxu0 %v2511
      %2513 = vmatprep.subr.mxu0 0.0
      %v2514 = vand.u32 %v2143, 4294901760
      %v2515 = vsub.f32 %v2143, %v2514
      %2516 = vmatpush1.msra.mxu0 %v2515
      %2517 = vmatprep.subr.mxu0 0.0
      %v2518 = vand.u32 %v2142, 4294901760
      %v2519 = vsub.f32 %v2142, %v2518
      %2520 = vmatpush1.msra.mxu0 %v2519
      %2521 = vmatprep.subr.mxu0 0.0
      %v2522 = vand.u32 %v2141, 4294901760
      %v2523 = vsub.f32 %v2141, %v2522
      %2524 = vmatpush1.msra.mxu0 %v2523
      %2525 = vmatprep.subr.mxu0 0.0
      %v2526 = vand.u32 %v2140, 4294901760
      %v2527 = vsub.f32 %v2140, %v2526
      %2528 = vmatpush1.msra.mxu0 %v2527
      %2529 = vmatprep.subr.mxu0 0.0
      %v2530 = vand.u32 %v2139, 4294901760
      %v2531 = vsub.f32 %v2139, %v2530
      %2532 = vmatpush1.msra.mxu0 %v2531
      %2533 = vmatprep.subr.mxu0 0.0
      %v2534 = vand.u32 %v2138, 4294901760
      %v2535 = vsub.f32 %v2138, %v2534
      %2536 = vmatpush1.msra.mxu0 %v2535
      %2537 = vmatprep.subr.mxu0 0.0
      %v2538 = vand.u32 %v2137, 4294901760
      %v2539 = vsub.f32 %v2137, %v2538
      %2540 = vmatpush1.msra.mxu0 %v2539
      %2541 = vmatprep.subr.mxu0 0.0
      %v2542 = vand.u32 %v2136, 4294901760
      %v2543 = vsub.f32 %v2136, %v2542
      %2544 = vmatpush1.msra.mxu0 %v2543
      %2545 = vmatprep.subr.mxu0 0.0
      %v2546 = vand.u32 %v2135, 4294901760
      %v2547 = vsub.f32 %v2135, %v2546
      %2548 = vmatpush1.msra.mxu0 %v2547
      %2549 = vmatprep.subr.mxu0 0.0
      %v2550 = vand.u32 %v2134, 4294901760
      %v2551 = vsub.f32 %v2134, %v2550
      %2552 = vmatpush1.msra.mxu0 %v2551
      %2553 = vmatprep.subr.mxu0 0.0
      %v2554 = vand.u32 %v2133, 4294901760
      %v2555 = vsub.f32 %v2133, %v2554
      %2556 = vmatpush1.msra.mxu0 %v2555
      %2557 = vmatprep.subr.mxu0 0.0
      %v2558 = vand.u32 %v2132, 4294901760
      %v2559 = vsub.f32 %v2132, %v2558
      %2560 = vmatpush1.msra.mxu0 %v2559
      %2561 = vmatprep.subr.mxu0 0.0
      %v2562 = vand.u32 %v2131, 4294901760
      %v2563 = vsub.f32 %v2131, %v2562
      %2564 = vmatpush1.msra.mxu0 %v2563
      %2565 = vmatprep.subr.mxu0 0.0
      %2566 = vmatpush2.msra.mxu0 0.0
      %2567 = vmatprep.subr.mxu0 0.0
      %2568 = vmatpush2.msra.mxu0 0.0
      %2569 = vmatprep.subr.mxu0 0.0
      %2570 = vmatpush2.msra.mxu0 0.0
      %2571 = vmatprep.subr.mxu0 0.0
      %2572 = vmatpush2.msra.mxu0 0.0
      %2573 = vmatprep.subr.mxu0 0.0
      %2574 = vmatpush2.msra.mxu0 0.0
      %2575 = vmatprep.subr.mxu0 0.0
      %2576 = vmatpush2.msra.mxu0 0.0
      %2577 = vmatprep.subr.mxu0 0.0
      %2578 = vmatpush2.msra.mxu0 0.0
      %2579 = vmatprep.subr.mxu0 0.0
      %2580 = vmatpush2.msra.mxu0 0.0
      %2581 = vmatprep.subr.mxu0 0.0
      %2582 = vmatpush2.msra.mxu0 0.0
      %2583 = vmatprep.subr.mxu0 0.0
      %2584 = vmatpush2.msra.mxu0 0.0
      %2585 = vmatprep.subr.mxu0 0.0
      %2586 = vmatpush2.msra.mxu0 0.0
      %2587 = vmatprep.subr.mxu0 0.0
      %2588 = vmatpush2.msra.mxu0 0.0
      %2589 = vmatprep.subr.mxu0 0.0
      %2590 = vmatpush2.msra.mxu0 0.0
      %2591 = vmatprep.subr.mxu0 0.0
      %2592 = vmatpush2.msra.mxu0 0.0
      %2593 = vmatprep.subr.mxu0 0.0
      %2594 = vmatpush2.msra.mxu0 0.0
      %2595 = vmatprep.subr.mxu0 0.0
      %2596 = vmatpush2.msra.mxu0 0.0
      %2597 = vmatprep.mubr.f32.mxu0 0.0
      %v2598 = vand.u32 %v2123, 4294901760
      %v2599 = vsub.f32 %v2123, %v2598
      %2600 = vmatmul.mubr.f32.gmra.mxu0 %v2599
      %v2601 = vpop.f32.mrf.mxu0
      %v2602 = vadd.f32 %v2456, %v2601
      %v2603 = vpop.f32.mrf.mxu0
      %2604 = vmatprep.mubr.f32.mxu0 0.0
      %v2605 = vand.u32 %v2124, 4294901760
      %v2606 = vsub.f32 %v2124, %v2605
      %2607 = vmatmul.mubr.f32.gmra.mxu0 %v2606
      %v2608 = vpop.f32.mrf.mxu0
      %v2609 = vadd.f32 %v2462, %v2608
      %v2610 = vpop.f32.mrf.mxu0
      %2611 = vmatprep.mubr.f32.mxu0 0.0
      %v2612 = vand.u32 %v2125, 4294901760
      %v2613 = vsub.f32 %v2125, %v2612
      %2614 = vmatmul.mubr.f32.gmra.mxu0 %v2613
      %v2615 = vpop.f32.mrf.mxu0
      %v2616 = vadd.f32 %v2468, %v2615
      %v2617 = vpop.f32.mrf.mxu0
      %2618 = vmatprep.mubr.f32.mxu0 0.0
      %v2619 = vand.u32 %v2126, 4294901760
      %v2620 = vsub.f32 %v2126, %v2619
      %2621 = vmatmul.mubr.f32.gmra.mxu0 %v2620
      %v2622 = vpop.f32.mrf.mxu0
      %v2623 = vadd.f32 %v2474, %v2622
      %v2624 = vpop.f32.mrf.mxu0
      %2625 = vmatprep.mubr.f32.mxu0 0.0
      %v2626 = vand.u32 %v2127, 4294901760
      %v2627 = vsub.f32 %v2127, %v2626
      %2628 = vmatmul.mubr.f32.gmra.mxu0 %v2627
      %v2629 = vpop.f32.mrf.mxu0
      %v2630 = vadd.f32 %v2480, %v2629
      %v2631 = vpop.f32.mrf.mxu0
      %2632 = vmatprep.mubr.f32.mxu0 0.0
      %v2633 = vand.u32 %v2128, 4294901760
      %v2634 = vsub.f32 %v2128, %v2633
      %2635 = vmatmul.mubr.f32.gmra.mxu0 %v2634
      %v2636 = vpop.f32.mrf.mxu0
      %v2637 = vadd.f32 %v2486, %v2636
      %v2638 = vpop.f32.mrf.mxu0
      %2639 = vmatprep.mubr.f32.mxu0 0.0
      %v2640 = vand.u32 %v2129, 4294901760
      %v2641 = vsub.f32 %v2129, %v2640
      %2642 = vmatmul.mubr.f32.gmra.mxu0 %v2641
      %v2643 = vpop.f32.mrf.mxu0
      %v2644 = vadd.f32 %v2492, %v2643
      %v2645 = vpop.f32.mrf.mxu0
      %2646 = vmatprep.mubr.f32.mxu0 0.0
      %v2647 = vand.u32 %v2130, 4294901760
      %v2648 = vsub.f32 %v2130, %v2647
      %2649 = vmatmul.mubr.f32.gmra.mxu0 %v2648
      %v2650 = vpop.f32.mrf.mxu0
      %v2651 = vadd.f32 %v2498, %v2650
      %v2652 = vpop.f32.mrf.mxu0
      %2653 = vdwg.mxu0
      %2654 = vmatprep.subr.mxu0 0.0
      %v2655 = vand.u32 %v2146, 4294901760
      %2656 = vmatpush1.msra.mxu0 %v2655
      %2657 = vmatprep.subr.mxu0 0.0
      %v2658 = vand.u32 %v2145, 4294901760
      %2659 = vmatpush1.msra.mxu0 %v2658
      %2660 = vmatprep.subr.mxu0 0.0
      %v2661 = vand.u32 %v2144, 4294901760
      %2662 = vmatpush1.msra.mxu0 %v2661
      %2663 = vmatprep.subr.mxu0 0.0
      %v2664 = vand.u32 %v2143, 4294901760
      %2665 = vmatpush1.msra.mxu0 %v2664
      %2666 = vmatprep.subr.mxu0 0.0
      %v2667 = vand.u32 %v2142, 4294901760
      %2668 = vmatpush1.msra.mxu0 %v2667
      %2669 = vmatprep.subr.mxu0 0.0
      %v2670 = vand.u32 %v2141, 4294901760
      %2671 = vmatpush1.msra.mxu0 %v2670
      %2672 = vmatprep.subr.mxu0 0.0
      %v2673 = vand.u32 %v2140, 4294901760
      %2674 = vmatpush1.msra.mxu0 %v2673
      %2675 = vmatprep.subr.mxu0 0.0
      %v2676 = vand.u32 %v2139, 4294901760
      %2677 = vmatpush1.msra.mxu0 %v2676
      %2678 = vmatprep.subr.mxu0 0.0
      %v2679 = vand.u32 %v2138, 4294901760
      %2680 = vmatpush1.msra.mxu0 %v2679
      %2681 = vmatprep.subr.mxu0 0.0
      %v2682 = vand.u32 %v2137, 4294901760
      %2683 = vmatpush1.msra.mxu0 %v2682
      %2684 = vmatprep.subr.mxu0 0.0
      %v2685 = vand.u32 %v2136, 4294901760
      %2686 = vmatpush1.msra.mxu0 %v2685
      %2687 = vmatprep.subr.mxu0 0.0
      %v2688 = vand.u32 %v2135, 4294901760
      %2689 = vmatpush1.msra.mxu0 %v2688
      %2690 = vmatprep.subr.mxu0 0.0
      %v2691 = vand.u32 %v2134, 4294901760
      %2692 = vmatpush1.msra.mxu0 %v2691
      %2693 = vmatprep.subr.mxu0 0.0
      %v2694 = vand.u32 %v2133, 4294901760
      %2695 = vmatpush1.msra.mxu0 %v2694
      %2696 = vmatprep.subr.mxu0 0.0
      %v2697 = vand.u32 %v2132, 4294901760
      %2698 = vmatpush1.msra.mxu0 %v2697
      %2699 = vmatprep.subr.mxu0 0.0
      %v2700 = vand.u32 %v2131, 4294901760
      %2701 = vmatpush1.msra.mxu0 %v2700
      %2702 = vmatprep.subr.mxu0 0.0
      %2703 = vmatpush2.msra.mxu0 0.0
      %2704 = vmatprep.subr.mxu0 0.0
      %2705 = vmatpush2.msra.mxu0 0.0
      %2706 = vmatprep.subr.mxu0 0.0
      %2707 = vmatpush2.msra.mxu0 0.0
      %2708 = vmatprep.subr.mxu0 0.0
      %2709 = vmatpush2.msra.mxu0 0.0
      %2710 = vmatprep.subr.mxu0 0.0
      %2711 = vmatpush2.msra.mxu0 0.0
      %2712 = vmatprep.subr.mxu0 0.0
      %2713 = vmatpush2.msra.mxu0 0.0
      %2714 = vmatprep.subr.mxu0 0.0
      %2715 = vmatpush2.msra.mxu0 0.0
      %2716 = vmatprep.subr.mxu0 0.0
      %2717 = vmatpush2.msra.mxu0 0.0
      %2718 = vmatprep.subr.mxu0 0.0
      %2719 = vmatpush2.msra.mxu0 0.0
      %2720 = vmatprep.subr.mxu0 0.0
      %2721 = vmatpush2.msra.mxu0 0.0
      %2722 = vmatprep.subr.mxu0 0.0
      %2723 = vmatpush2.msra.mxu0 0.0
      %2724 = vmatprep.subr.mxu0 0.0
      %2725 = vmatpush2.msra.mxu0 0.0
      %2726 = vmatprep.subr.mxu0 0.0
      %2727 = vmatpush2.msra.mxu0 0.0
      %2728 = vmatprep.subr.mxu0 0.0
      %2729 = vmatpush2.msra.mxu0 0.0
      %2730 = vmatprep.subr.mxu0 0.0
      %2731 = vmatpush2.msra.mxu0 0.0
      %2732 = vmatprep.subr.mxu0 0.0
      %2733 = vmatpush2.msra.mxu0 0.0
      %2734 = vmatprep.mubr.f32.mxu0 0.0
      %v2735 = vand.u32 %v2123, 4294901760
      %v2736 = vsub.f32 %v2123, %v2735
      %v2737 = vand.u32 %v2736, 4294901760
      %2738 = vmatmul.mubr.f32.gmra.mxu0 %v2737
      %v2739 = vpop.f32.mrf.mxu0
      %v2740 = vadd.f32 %v2602, %v2739
      %v2741 = vpop.f32.mrf.mxu0
      %2742 = vmatprep.mubr.f32.mxu0 0.0
      %v2743 = vand.u32 %v2124, 4294901760
      %v2744 = vsub.f32 %v2124, %v2743
      %v2745 = vand.u32 %v2744, 4294901760
      %2746 = vmatmul.mubr.f32.gmra.mxu0 %v2745
      %v2747 = vpop.f32.mrf.mxu0
      %v2748 = vadd.f32 %v2609, %v2747
      %v2749 = vpop.f32.mrf.mxu0
      %2750 = vmatprep.mubr.f32.mxu0 0.0
      %v2751 = vand.u32 %v2125, 4294901760
      %v2752 = vsub.f32 %v2125, %v2751
      %v2753 = vand.u32 %v2752, 4294901760
      %2754 = vmatmul.mubr.f32.gmra.mxu0 %v2753
      %v2755 = vpop.f32.mrf.mxu0
      %v2756 = vadd.f32 %v2616, %v2755
      %v2757 = vpop.f32.mrf.mxu0
      %2758 = vmatprep.mubr.f32.mxu0 0.0
      %v2759 = vand.u32 %v2126, 4294901760
      %v2760 = vsub.f32 %v2126, %v2759
      %v2761 = vand.u32 %v2760, 4294901760
      %2762 = vmatmul.mubr.f32.gmra.mxu0 %v2761
      %v2763 = vpop.f32.mrf.mxu0
      %v2764 = vadd.f32 %v2623, %v2763
      %v2765 = vpop.f32.mrf.mxu0
      %2766 = vmatprep.mubr.f32.mxu0 0.0
      %v2767 = vand.u32 %v2127, 4294901760
      %v2768 = vsub.f32 %v2127, %v2767
      %v2769 = vand.u32 %v2768, 4294901760
      %2770 = vmatmul.mubr.f32.gmra.mxu0 %v2769
      %v2771 = vpop.f32.mrf.mxu0
      %v2772 = vadd.f32 %v2630, %v2771
      %v2773 = vpop.f32.mrf.mxu0
      %2774 = vmatprep.mubr.f32.mxu0 0.0
      %v2775 = vand.u32 %v2128, 4294901760
      %v2776 = vsub.f32 %v2128, %v2775
      %v2777 = vand.u32 %v2776, 4294901760
      %2778 = vmatmul.mubr.f32.gmra.mxu0 %v2777
      %v2779 = vpop.f32.mrf.mxu0
      %v2780 = vadd.f32 %v2637, %v2779
      %v2781 = vpop.f32.mrf.mxu0
      %2782 = vmatprep.mubr.f32.mxu0 0.0
      %v2783 = vand.u32 %v2129, 4294901760
      %v2784 = vsub.f32 %v2129, %v2783
      %v2785 = vand.u32 %v2784, 4294901760
      %2786 = vmatmul.mubr.f32.gmra.mxu0 %v2785
      %v2787 = vpop.f32.mrf.mxu0
      %v2788 = vadd.f32 %v2644, %v2787
      %v2789 = vpop.f32.mrf.mxu0
      %2790 = vmatprep.mubr.f32.mxu0 0.0
      %v2791 = vand.u32 %v2130, 4294901760
      %v2792 = vsub.f32 %v2130, %v2791
      %v2793 = vand.u32 %v2792, 4294901760
      %2794 = vmatmul.mubr.f32.gmra.mxu0 %v2793
      %v2795 = vpop.f32.mrf.mxu0
      %v2796 = vadd.f32 %v2651, %v2795
      %v2797 = vpop.f32.mrf.mxu0
      %2798 = vdwg.mxu0
      %2799 = vmatprep.subr.mxu0 0.0
      %v2800 = vand.u32 %v2146, 4294901760
      %v2801 = vsub.f32 %v2146, %v2800
      %v2802 = vand.u32 %v2801, 4294901760
      %2803 = vmatpush1.msra.mxu0 %v2802
      %2804 = vmatprep.subr.mxu0 0.0
      %v2805 = vand.u32 %v2145, 4294901760
      %v2806 = vsub.f32 %v2145, %v2805
      %v2807 = vand.u32 %v2806, 4294901760
      %2808 = vmatpush1.msra.mxu0 %v2807
      %2809 = vmatprep.subr.mxu0 0.0
      %v2810 = vand.u32 %v2144, 4294901760
      %v2811 = vsub.f32 %v2144, %v2810
      %v2812 = vand.u32 %v2811, 4294901760
      %2813 = vmatpush1.msra.mxu0 %v2812
      %2814 = vmatprep.subr.mxu0 0.0
      %v2815 = vand.u32 %v2143, 4294901760
      %v2816 = vsub.f32 %v2143, %v2815
      %v2817 = vand.u32 %v2816, 4294901760
      %2818 = vmatpush1.msra.mxu0 %v2817
      %2819 = vmatprep.subr.mxu0 0.0
      %v2820 = vand.u32 %v2142, 4294901760
      %v2821 = vsub.f32 %v2142, %v2820
      %v2822 = vand.u32 %v2821, 4294901760
      %2823 = vmatpush1.msra.mxu0 %v2822
      %2824 = vmatprep.subr.mxu0 0.0
      %v2825 = vand.u32 %v2141, 4294901760
      %v2826 = vsub.f32 %v2141, %v2825
      %v2827 = vand.u32 %v2826, 4294901760
      %2828 = vmatpush1.msra.mxu0 %v2827
      %2829 = vmatprep.subr.mxu0 0.0
      %v2830 = vand.u32 %v2140, 4294901760
      %v2831 = vsub.f32 %v2140, %v2830
      %v2832 = vand.u32 %v2831, 4294901760
      %2833 = vmatpush1.msra.mxu0 %v2832
      %2834 = vmatprep.subr.mxu0 0.0
      %v2835 = vand.u32 %v2139, 4294901760
      %v2836 = vsub.f32 %v2139, %v2835
      %v2837 = vand.u32 %v2836, 4294901760
      %2838 = vmatpush1.msra.mxu0 %v2837
      %2839 = vmatprep.subr.mxu0 0.0
      %v2840 = vand.u32 %v2138, 4294901760
      %v2841 = vsub.f32 %v2138, %v2840
      %v2842 = vand.u32 %v2841, 4294901760
      %2843 = vmatpush1.msra.mxu0 %v2842
      %2844 = vmatprep.subr.mxu0 0.0
      %v2845 = vand.u32 %v2137, 4294901760
      %v2846 = vsub.f32 %v2137, %v2845
      %v2847 = vand.u32 %v2846, 4294901760
      %2848 = vmatpush1.msra.mxu0 %v2847
      %2849 = vmatprep.subr.mxu0 0.0
      %v2850 = vand.u32 %v2136, 4294901760
      %v2851 = vsub.f32 %v2136, %v2850
      %v2852 = vand.u32 %v2851, 4294901760
      %2853 = vmatpush1.msra.mxu0 %v2852
      %2854 = vmatprep.subr.mxu0 0.0
      %v2855 = vand.u32 %v2135, 4294901760
      %v2856 = vsub.f32 %v2135, %v2855
      %v2857 = vand.u32 %v2856, 4294901760
      %2858 = vmatpush1.msra.mxu0 %v2857
      %2859 = vmatprep.subr.mxu0 0.0
      %v2860 = vand.u32 %v2134, 4294901760
      %v2861 = vsub.f32 %v2134, %v2860
      %v2862 = vand.u32 %v2861, 4294901760
      %2863 = vmatpush1.msra.mxu0 %v2862
      %2864 = vmatprep.subr.mxu0 0.0
      %v2865 = vand.u32 %v2133, 4294901760
      %v2866 = vsub.f32 %v2133, %v2865
      %v2867 = vand.u32 %v2866, 4294901760
      %2868 = vmatpush1.msra.mxu0 %v2867
      %2869 = vmatprep.subr.mxu0 0.0
      %v2870 = vand.u32 %v2132, 4294901760
      %v2871 = vsub.f32 %v2132, %v2870
      %v2872 = vand.u32 %v2871, 4294901760
      %2873 = vmatpush1.msra.mxu0 %v2872
      %2874 = vmatprep.subr.mxu0 0.0
      %v2875 = vand.u32 %v2131, 4294901760
      %v2876 = vsub.f32 %v2131, %v2875
      %v2877 = vand.u32 %v2876, 4294901760
      %2878 = vmatpush1.msra.mxu0 %v2877
      %2879 = vmatprep.subr.mxu0 0.0
      %2880 = vmatpush2.msra.mxu0 0.0
      %2881 = vmatprep.subr.mxu0 0.0
      %2882 = vmatpush2.msra.mxu0 0.0
      %2883 = vmatprep.subr.mxu0 0.0
      %2884 = vmatpush2.msra.mxu0 0.0
      %2885 = vmatprep.subr.mxu0 0.0
      %2886 = vmatpush2.msra.mxu0 0.0
      %2887 = vmatprep.subr.mxu0 0.0
      %2888 = vmatpush2.msra.mxu0 0.0
      %2889 = vmatprep.subr.mxu0 0.0
      %2890 = vmatpush2.msra.mxu0 0.0
      %2891 = vmatprep.subr.mxu0 0.0
      %2892 = vmatpush2.msra.mxu0 0.0
      %2893 = vmatprep.subr.mxu0 0.0
      %2894 = vmatpush2.msra.mxu0 0.0
      %2895 = vmatprep.subr.mxu0 0.0
      %2896 = vmatpush2.msra.mxu0 0.0
      %2897 = vmatprep.subr.mxu0 0.0
      %2898 = vmatpush2.msra.mxu0 0.0
      %2899 = vmatprep.subr.mxu0 0.0
      %2900 = vmatpush2.msra.mxu0 0.0
      %2901 = vmatprep.subr.mxu0 0.0
      %2902 = vmatpush2.msra.mxu0 0.0
      %2903 = vmatprep.subr.mxu0 0.0
      %2904 = vmatpush2.msra.mxu0 0.0
      %2905 = vmatprep.subr.mxu0 0.0
      %2906 = vmatpush2.msra.mxu0 0.0
      %2907 = vmatprep.subr.mxu0 0.0
      %2908 = vmatpush2.msra.mxu0 0.0
      %2909 = vmatprep.subr.mxu0 0.0
      %2910 = vmatpush2.msra.mxu0 0.0
      %2911 = vmatprep.mubr.f32.mxu0 0.0
      %v2912 = vand.u32 %v2123, 4294901760
      %2913 = vmatmul.mubr.f32.gmra.mxu0 %v2912
      %v2914 = vpop.f32.mrf.mxu0
      %v2915 = vadd.f32 %v2740, %v2914
      %v2916 = vpop.f32.mrf.mxu0
      %2917 = vmatprep.mubr.f32.mxu0 0.0
      %v2918 = vand.u32 %v2124, 4294901760
      %2919 = vmatmul.mubr.f32.gmra.mxu0 %v2918
      %v2920 = vpop.f32.mrf.mxu0
      %v2921 = vadd.f32 %v2748, %v2920
      %v2922 = vpop.f32.mrf.mxu0
      %2923 = vmatprep.mubr.f32.mxu0 0.0
      %v2924 = vand.u32 %v2125, 4294901760
      %2925 = vmatmul.mubr.f32.gmra.mxu0 %v2924
      %v2926 = vpop.f32.mrf.mxu0
      %v2927 = vadd.f32 %v2756, %v2926
      %v2928 = vpop.f32.mrf.mxu0
      %2929 = vmatprep.mubr.f32.mxu0 0.0
      %v2930 = vand.u32 %v2126, 4294901760
      %2931 = vmatmul.mubr.f32.gmra.mxu0 %v2930
      %v2932 = vpop.f32.mrf.mxu0
      %v2933 = vadd.f32 %v2764, %v2932
      %v2934 = vpop.f32.mrf.mxu0
      %2935 = vmatprep.mubr.f32.mxu0 0.0
      %v2936 = vand.u32 %v2127, 4294901760
      %2937 = vmatmul.mubr.f32.gmra.mxu0 %v2936
      %v2938 = vpop.f32.mrf.mxu0
      %v2939 = vadd.f32 %v2772, %v2938
      %v2940 = vpop.f32.mrf.mxu0
      %2941 = vmatprep.mubr.f32.mxu0 0.0
      %v2942 = vand.u32 %v2128, 4294901760
      %2943 = vmatmul.mubr.f32.gmra.mxu0 %v2942
      %v2944 = vpop.f32.mrf.mxu0
      %v2945 = vadd.f32 %v2780, %v2944
      %v2946 = vpop.f32.mrf.mxu0
      %2947 = vmatprep.mubr.f32.mxu0 0.0
      %v2948 = vand.u32 %v2129, 4294901760
      %2949 = vmatmul.mubr.f32.gmra.mxu0 %v2948
      %v2950 = vpop.f32.mrf.mxu0
      %v2951 = vadd.f32 %v2788, %v2950
      %v2952 = vpop.f32.mrf.mxu0
      %2953 = vmatprep.mubr.f32.mxu0 0.0
      %v2954 = vand.u32 %v2130, 4294901760
      %2955 = vmatmul.mubr.f32.gmra.mxu0 %v2954
      %v2956 = vpop.f32.mrf.mxu0
      %v2957 = vadd.f32 %v2796, %v2956
      %v2958 = vpop.f32.mrf.mxu0
      %2959 = vdwg.mxu0
      %2960 = vmatprep.subr.mxu0 0.0
      %v2961 = vand.u32 %v2146, 4294901760
      %2962 = vmatpush1.msra.mxu0 %v2961
      %2963 = vmatprep.subr.mxu0 0.0
      %v2964 = vand.u32 %v2145, 4294901760
      %2965 = vmatpush1.msra.mxu0 %v2964
      %2966 = vmatprep.subr.mxu0 0.0
      %v2967 = vand.u32 %v2144, 4294901760
      %2968 = vmatpush1.msra.mxu0 %v2967
      %2969 = vmatprep.subr.mxu0 0.0
      %v2970 = vand.u32 %v2143, 4294901760
      %2971 = vmatpush1.msra.mxu0 %v2970
      %2972 = vmatprep.subr.mxu0 0.0
      %v2973 = vand.u32 %v2142, 4294901760
      %2974 = vmatpush1.msra.mxu0 %v2973
      %2975 = vmatprep.subr.mxu0 0.0
      %v2976 = vand.u32 %v2141, 4294901760
      %2977 = vmatpush1.msra.mxu0 %v2976
      %2978 = vmatprep.subr.mxu0 0.0
      %v2979 = vand.u32 %v2140, 4294901760
      %2980 = vmatpush1.msra.mxu0 %v2979
      %2981 = vmatprep.subr.mxu0 0.0
      %v2982 = vand.u32 %v2139, 4294901760
      %2983 = vmatpush1.msra.mxu0 %v2982
      %2984 = vmatprep.subr.mxu0 0.0
      %v2985 = vand.u32 %v2138, 4294901760
      %2986 = vmatpush1.msra.mxu0 %v2985
      %2987 = vmatprep.subr.mxu0 0.0
      %v2988 = vand.u32 %v2137, 4294901760
      %2989 = vmatpush1.msra.mxu0 %v2988
      %2990 = vmatprep.subr.mxu0 0.0
      %v2991 = vand.u32 %v2136, 4294901760
      %2992 = vmatpush1.msra.mxu0 %v2991
      %2993 = vmatprep.subr.mxu0 0.0
      %v2994 = vand.u32 %v2135, 4294901760
      %2995 = vmatpush1.msra.mxu0 %v2994
      %2996 = vmatprep.subr.mxu0 0.0
      %v2997 = vand.u32 %v2134, 4294901760
      %2998 = vmatpush1.msra.mxu0 %v2997
      %2999 = vmatprep.subr.mxu0 0.0
      %v3000 = vand.u32 %v2133, 4294901760
      %3001 = vmatpush1.msra.mxu0 %v3000
      %3002 = vmatprep.subr.mxu0 0.0
      %v3003 = vand.u32 %v2132, 4294901760
      %3004 = vmatpush1.msra.mxu0 %v3003
      %3005 = vmatprep.subr.mxu0 0.0
      %v3006 = vand.u32 %v2131, 4294901760
      %3007 = vmatpush1.msra.mxu0 %v3006
      %3008 = vmatprep.subr.mxu0 0.0
      %3009 = vmatpush2.msra.mxu0 0.0
      %3010 = vmatprep.subr.mxu0 0.0
      %3011 = vmatpush2.msra.mxu0 0.0
      %3012 = vmatprep.subr.mxu0 0.0
      %3013 = vmatpush2.msra.mxu0 0.0
      %3014 = vmatprep.subr.mxu0 0.0
      %3015 = vmatpush2.msra.mxu0 0.0
      %3016 = vmatprep.subr.mxu0 0.0
      %3017 = vmatpush2.msra.mxu0 0.0
      %3018 = vmatprep.subr.mxu0 0.0
      %3019 = vmatpush2.msra.mxu0 0.0
      %3020 = vmatprep.subr.mxu0 0.0
      %3021 = vmatpush2.msra.mxu0 0.0
      %3022 = vmatprep.subr.mxu0 0.0
      %3023 = vmatpush2.msra.mxu0 0.0
      %3024 = vmatprep.subr.mxu0 0.0
      %3025 = vmatpush2.msra.mxu0 0.0
      %3026 = vmatprep.subr.mxu0 0.0
      %3027 = vmatpush2.msra.mxu0 0.0
      %3028 = vmatprep.subr.mxu0 0.0
      %3029 = vmatpush2.msra.mxu0 0.0
      %3030 = vmatprep.subr.mxu0 0.0
      %3031 = vmatpush2.msra.mxu0 0.0
      %3032 = vmatprep.subr.mxu0 0.0
      %3033 = vmatpush2.msra.mxu0 0.0
      %3034 = vmatprep.subr.mxu0 0.0
      %3035 = vmatpush2.msra.mxu0 0.0
      %3036 = vmatprep.subr.mxu0 0.0
      %3037 = vmatpush2.msra.mxu0 0.0
      %3038 = vmatprep.subr.mxu0 0.0
      %3039 = vmatpush2.msra.mxu0 0.0
      %3040 = vmatprep.mubr.f32.mxu0 0.0
      %v3041 = vand.u32 %v2123, 4294901760
      %3042 = vmatmul.mubr.f32.gmra.mxu0 %v3041
      %v3043 = vpop.f32.mrf.mxu0
      %v3044 = vadd.f32 %v2915, %v3043
      %v3045 = vpop.f32.mrf.mxu0
      %3046 = vmatprep.mubr.f32.mxu0 0.0
      %v3047 = vand.u32 %v2124, 4294901760
      %3048 = vmatmul.mubr.f32.gmra.mxu0 %v3047
      %v3049 = vpop.f32.mrf.mxu0
      %v3050 = vadd.f32 %v2921, %v3049
      %v3051 = vpop.f32.mrf.mxu0
      %3052 = vmatprep.mubr.f32.mxu0 0.0
      %v3053 = vand.u32 %v2125, 4294901760
      %3054 = vmatmul.mubr.f32.gmra.mxu0 %v3053
      %v3055 = vpop.f32.mrf.mxu0
      %v3056 = vadd.f32 %v2927, %v3055
      %v3057 = vpop.f32.mrf.mxu0
      %3058 = vmatprep.mubr.f32.mxu0 0.0
      %v3059 = vand.u32 %v2126, 4294901760
      %3060 = vmatmul.mubr.f32.gmra.mxu0 %v3059
      %v3061 = vpop.f32.mrf.mxu0
      %v3062 = vadd.f32 %v2933, %v3061
      %v3063 = vpop.f32.mrf.mxu0
      %3064 = vmatprep.mubr.f32.mxu0 0.0
      %v3065 = vand.u32 %v2127, 4294901760
      %3066 = vmatmul.mubr.f32.gmra.mxu0 %v3065
      %v3067 = vpop.f32.mrf.mxu0
      %v3068 = vadd.f32 %v2939, %v3067
      %v3069 = vpop.f32.mrf.mxu0
      %3070 = vmatprep.mubr.f32.mxu0 0.0
      %v3071 = vand.u32 %v2128, 4294901760
      %3072 = vmatmul.mubr.f32.gmra.mxu0 %v3071
      %v3073 = vpop.f32.mrf.mxu0
      %v3074 = vadd.f32 %v2945, %v3073
      %v3075 = vpop.f32.mrf.mxu0
      %3076 = vmatprep.mubr.f32.mxu0 0.0
      %v3077 = vand.u32 %v2129, 4294901760
      %3078 = vmatmul.mubr.f32.gmra.mxu0 %v3077
      %v3079 = vpop.f32.mrf.mxu0
      %v3080 = vadd.f32 %v2951, %v3079
      %v3081 = vpop.f32.mrf.mxu0
      %3082 = vmatprep.mubr.f32.mxu0 0.0
      %v3083 = vand.u32 %v2130, 4294901760
      %3084 = vmatmul.mubr.f32.gmra.mxu0 %v3083
      %v3085 = vpop.f32.mrf.mxu0
      %v3086 = vadd.f32 %v2957, %v3085
      %v3087 = vpop.f32.mrf.mxu0
      %3088 = vdwg.mxu0
      %vm3089 = vcmask 261120
      %3090 = vst.msk [vmem:[%s335] sm:$0xff] %vm3089, %v3044
      %3091 = vst.msk [vmem:[%s335 + $0x8] sm:$0xff] %vm3089, %v3050
      %3092 = vst.msk [vmem:[%s335 + $0x10] sm:$0xff] %vm3089, %v3056
      %3093 = vst.msk [vmem:[%s335 + $0x18] sm:$0xff] %vm3089, %v3062
      %3094 = vst.msk [vmem:[%s335 + $0x20] sm:$0xff] %vm3089, %v3068
      %3095 = vst.msk [vmem:[%s335 + $0x28] sm:$0xff] %vm3089, %v3074
      %3096 = vst.msk [vmem:[%s335 + $0x30] sm:$0xff] %vm3089, %v3080
      %3097 = vst.msk [vmem:[%s335 + $0x38] sm:$0xff] %vm3089, %v3086
      %p3098 = scmp.lt.s32.totalorder %s19, 1
      %s3099 = scalar_select %p3098, %s19, 1
      %p3100 = scmp.lt.s32.totalorder %s20, 3
      %s3101 = scalar_select %p3100, %s20, 3
      %s3102 = smul.addr %s3101, 8
      %s3103 = smul.addr %s3099, 32
      %s3104 = sadd.s32 %s3102, %s3103
      %s3105 = smul.addr %s3104, 8
      %s3106 = scalar_lea.vmem %s4, %s3105
      // Predicated region
      $region37: #{deformable_cross_attention.13} parent=35 // pred_check
        %p3107 = pneg %p159
      $region38: #{deformable_cross_attention.13} parent=35 // pred_check_branch
        %3109 = sbr.rel (%p3107) target = $region40
      $region39: #{deformable_cross_attention.13} parent=35 // pred_region
        _
      $region40: #{deformable_cross_attention.13} parent=35 // pred_fallthru
        _
    $region36: #{deformable_cross_attention.13} parent=5 // pred_fallthru
      _
    %p3110 = scmp.le.s32.totalorder 2, %s10
    // Predicated region
    $region41: #{deformable_cross_attention.13} parent=5 // pred_check
      %p3111 = pneg %p3110
    $region42: #{deformable_cross_attention.13} parent=5 // pred_check_branch
      %3113 = sbr.rel (%p3111) target = $region44
    $region43: #{deformable_cross_attention.13} parent=5 // pred_region
      %s3114 = ssub.s32 %s10, 2
      // Predicated region
      $region45: #{deformable_cross_attention.13} parent=43 // pred_check
        %p3115 = pneg %p165
      $region46: #{deformable_cross_attention.13} parent=43 // pred_check_branch
        %3117 = sbr.rel (%p3115) target = $region48
      $region47: #{deformable_cross_attention.13} parent=43 // pred_region
        %p3118 = scmp.lt.s32.totalorder %s21, 1
        %s3119 = scalar_select %p3118, %s21, 1
        %p3120 = scmp.lt.s32.totalorder %s22, 3
        %s3121 = scalar_select %p3120, %s22, 3
        %s3122 = smul.addr %s3121, 8
        %s3123 = smul.addr %s3119, 32
        %s3124 = sadd.s32 %s3122, %s3123
        %s3125 = smul.addr %s3124, 8
        %s3126 = scalar_lea.vmem %s4, %s3125
      $region48: #{deformable_cross_attention.13} parent=43 // pred_fallthru
        _
    $region44: #{deformable_cross_attention.13} parent=5 // pred_fallthru
      _
  $region6: #{deformable_cross_attention.13} parent=0 // loop_footer
    %s14 = sadd.s32 1, %s10
  $region7: #{deformable_cross_attention.13} parent=0 // loop_footer_branch
    %9 = sbr.rel target = $region3
  $region8: #{deformable_cross_attention.13} parent=0 // loop_exit
    _

</llo_original>
